<compile_context>
chip_gen: v5e
topology: v5e:2x2
jax: 0.10.0
libtpu: 0.0.40
codegen_flags: <defaults>
</compile_context>

<pallas_src>
import math

import jax
import jax.numpy as jnp
from jax import lax
from jax.experimental import pallas as pl
from jax.experimental.pallas import tpu as pltpu


# ----------------------------------------------------------------------------
# Fused DoubleConv kernel (GhostModule applied twice, all on-chip)
# ----------------------------------------------------------------------------
def _make_double_conv_kernel(H, W, Cin, C1a, C1b, mid):
    taps = [(ky, kx) for ky in range(3) for kx in range(3)]

    def ghost_block(xp_bf16, cin, c1, w1_ref, s1_ref, b1_ref,
                    w2_ref, s2_ref, b2_ref, x1pad_ref):
        # xp_bf16 : (H+2, W+2, cin) bf16 zero-padded input to the module
        # w1_ref  : (9, cin, c1)    bf16 primary 3x3 conv weights, tap-major
        # s1,b1   : (1, c1)         f32  folded BN of the primary conv
        # w2_ref  : (9, 1, c1)      f32  depthwise 3x3 weights, tap-major
        # s2,b2   : (1, c1)         f32  folded BN of the cheap_operation
        # x1pad_ref: (H+2, W+2, c1) f32  VMEM scratch for zero-padded x1
        # returns : (H, W, 2*c1)    f32  concat([x1, x2], channel axis)

        # --- primary 3x3 conv as 9 shifted matmuls (bf16 MXU, f32 accumulate)
        acc = jnp.zeros((H * W, c1), jnp.float32)
        for t, (ky, kx) in enumerate(taps):
            xt = xp_bf16[ky:ky + H, kx:kx + W, :].reshape(H * W, cin)
            acc = acc + jnp.dot(xt, w1_ref[t],
                                preferred_element_type=jnp.float32)
        x1 = jnp.maximum(acc * s1_ref[...] + b1_ref[...], 0.0)   # BN + ReLU
        x1_3d = x1.reshape(H, W, c1)

        # --- zero-pad x1 in VMEM (PyTorch pads x1 with zeros, not the input)
        x1pad_ref[...] = jnp.zeros_like(x1pad_ref)
        x1pad_ref[1:H + 1, 1:W + 1, :] = x1_3d

        # --- depthwise 3x3 + BN + ReLU: pure VPU, x1 never leaves VMEM
        acc2 = jnp.zeros((H, W, c1), jnp.float32)
        for t, (ky, kx) in enumerate(taps):
            acc2 = acc2 + x1pad_ref[ky:ky + H, kx:kx + W, :] * w2_ref[t]
        x2_3d = jnp.maximum(acc2 * s2_ref[...] + b2_ref[...], 0.0)

        # --- GhostModule concat
        return jnp.concatenate([x1_3d, x2_3d], axis=-1)

    def kernel(xp_ref,
               w1a_ref, s1a_ref, b1a_ref, w2a_ref, s2a_ref, b2a_ref,
               w1b_ref, s1b_ref, b1b_ref, w2b_ref, s2b_ref, b2b_ref,
               o_ref, x1pa_ref, ypad_ref, x1pb_ref):
        # --- GhostModule 1
        y1 = ghost_block(xp_ref[0], Cin, C1a,
                         w1a_ref, s1a_ref, b1a_ref,
                         w2a_ref, s2a_ref, b2a_ref, x1pa_ref)
        # GhostModule keeps only its first `oup` channels before the next one.
        y1 = y1[:, :, :mid]

        # --- zero-pad the inter-module activation in VMEM (never hits HBM)
        ypad_ref[...] = jnp.zeros_like(ypad_ref)
        ypad_ref[1:H + 1, 1:W + 1, :] = y1

        # --- GhostModule 2 (MXU operands in bf16, everything else f32)
        y2 = ghost_block(ypad_ref[...].astype(jnp.bfloat16), mid, C1b,
                         w1b_ref, s1b_ref, b1b_ref,
                         w2b_ref, s2b_ref, b2b_ref, x1pb_ref)

        # --- single full-width store of the final concat
        o_ref[0] = y2

    return kernel


def double_conv(x_nchw, params, out_ch):
    """DoubleConv: GhostModule(in_ch, out_ch, 3) -> GhostModule(out_ch, out_ch, 3)."""
    x = jnp.transpose(x_nchw, (0, 2, 3, 1)).astype(jnp.float32)   # NCHW -> NHWC
    N, H, W, Cin = x.shape
    # In-kernel spatial reshapes rely on 8-aligned H/W (vreg sublane tiling).
    assert H % 8 == 0 and W % 8 == 0, (H, W)

    g1, g2 = params["g1"], params["g2"]
    C1a = g1["w1"].shape[2]                      # init_channels of module 1
    C1b = g2["w1"].shape[2]                      # init_channels of module 2
    mid = out_ch                                 # channels fed to module 2
    assert g2["w1"].shape[1] == mid and mid <= 2 * C1a

    # Only the (H+2)x(W+2) zero-pad of the network input is materialized in
    # HBM (no im2col, no inter-module activation); bf16 for the MXU path.
    xp = jnp.pad(x, ((0, 0), (1, 1), (1, 1), (0, 0))).astype(jnp.bfloat16)

    out = pl.pallas_call(
        _make_double_conv_kernel(H, W, Cin, C1a, C1b, mid),
        out_shape=jax.ShapeDtypeStruct((N, H, W, 2 * C1b), jnp.float32),
        grid_spec=pltpu.PrefetchScalarGridSpec(
            num_scalar_prefetch=0,
            grid=(N,),
            in_specs=[
                pl.BlockSpec((1, H + 2, W + 2, Cin), lambda n: (n, 0, 0, 0)),
                # GhostModule 1 parameters
                pl.BlockSpec((9, Cin, C1a), lambda n: (0, 0, 0)),
                pl.BlockSpec((1, C1a), lambda n: (0, 0)),
                pl.BlockSpec((1, C1a), lambda n: (0, 0)),
                pl.BlockSpec((9, 1, C1a), lambda n: (0, 0, 0)),
                pl.BlockSpec((1, C1a), lambda n: (0, 0)),
                pl.BlockSpec((1, C1a), lambda n: (0, 0)),
                # GhostModule 2 parameters
                pl.BlockSpec((9, mid, C1b), lambda n: (0, 0, 0)),
                pl.BlockSpec((1, C1b), lambda n: (0, 0)),
                pl.BlockSpec((1, C1b), lambda n: (0, 0)),
                pl.BlockSpec((9, 1, C1b), lambda n: (0, 0, 0)),
                pl.BlockSpec((1, C1b), lambda n: (0, 0)),
                pl.BlockSpec((1, C1b), lambda n: (0, 0)),
            ],
            out_specs=pl.BlockSpec((1, H, W, 2 * C1b), lambda n: (n, 0, 0, 0)),
            scratch_shapes=[
                pltpu.VMEM((H + 2, W + 2, C1a), jnp.float32),   # padded x1 (module 1)
                pltpu.VMEM((H + 2, W + 2, mid), jnp.float32),   # padded inter-module act
                pltpu.VMEM((H + 2, W + 2, C1b), jnp.float32),   # padded x1 (module 2)
            ],
        ),
        compiler_params=pltpu.CompilerParams(
            dimension_semantics=("parallel",)),
    )(xp,
      g1["w1"], g1["s1"], g1["b1"], g1["w2"], g1["s2"], g1["b2"],
      g2["w1"], g2["s1"], g2["b1"], g2["w2"], g2["s2"], g2["b2"])

    out = out[..., :out_ch]
    return jnp.transpose(out, (0, 3, 1, 2))                       # NHWC -> NCHW


# ----------------------------------------------------------------------------
# Parameter init (mirrors the PyTorch module's shapes) + kernel layouts
# ----------------------------------------------------------------------------
def _bn_fold(c, eps=1e-5):
    gamma = jnp.ones((c,), jnp.float32)
    beta = jnp.zeros((c,), jnp.float32)
    mean = jnp.zeros((c,), jnp.float32)
    var = jnp.ones((c,), jnp.float32)
    scale = gamma / jnp.sqrt(var + eps)
    return scale, beta - mean * scale


def init_ghost(key, inp, oup, kernel_size=3, ratio=2, dw_size=3):
    init_c = math.ceil(oup / ratio)
    new_c = init_c * (ratio - 1)
    assert new_c == init_c                       # holds for the module's ratio=2
    k1, k2 = jax.random.split(key)
    b1_ = 1.0 / math.sqrt(inp * kernel_size * kernel_size)
    w_pw = jax.random.uniform(k1, (init_c, inp, kernel_size, kernel_size),
                              jnp.float32, -b1_, b1_)
    b2_ = 1.0 / math.sqrt(1 * dw_size * dw_size)
    w_dw = jax.random.uniform(k2, (new_c, 1, dw_size, dw_size),
                              jnp.float32, -b2_, b2_)
    s1, b1 = _bn_fold(init_c)
    s2, b2 = _bn_fold(new_c)
    # Kernel layouts: tap-major weights; bf16 for the MXU path.
    w1 = jnp.transpose(w_pw, (2, 3, 1, 0)).reshape(9, inp, init_c).astype(jnp.bfloat16)
    w2 = jnp.transpose(w_dw[:, 0], (1, 2, 0)).reshape(9, 1, new_c)
    return dict(w1=w1, s1=s1.reshape(1, -1), b1=b1.reshape(1, -1),
                w2=w2, s2=s2.reshape(1, -1), b2=b2.reshape(1, -1),
                w_pw=w_pw, w_dw=w_dw)            # raw weights kept for the reference


# ----------------------------------------------------------------------------
# Pure-JAX reference (f32) for a correctness check
# ----------------------------------------------------------------------------
def _ghost_ref(x_nhwc, p, oup):
    C1 = p["w_pw"].shape[0]
    x1 = lax.conv_general_dilated(
        x_nhwc, jnp.transpose(p["w_pw"], (2, 3, 1, 0)), (1, 1), "SAME",
        dimension_numbers=("NHWC", "HWIO", "NHWC"))
    x1 = jnp.maximum(x1 * p["s1"][0] + p["b1"][0], 0.0)
    x2 = lax.conv_general_dilated(
        x1, jnp.transpose(p["w_dw"], (2, 3, 1, 0)), (1, 1), "SAME",
        dimension_numbers=("NHWC", "HWIO", "NHWC"), feature_group_count=C1)
    x2 = jnp.maximum(x2 * p["s2"][0] + p["b2"][0], 0.0)
    return jnp.concatenate([x1, x2], axis=-1)[..., :oup]


# ----------------------------------------------------------------------------
if __name__ == "__main__":
    IN_CH, OUT_CH = 4, 64
    B, H, W = 2, 16, 16

    kx, kp = jax.random.split(jax.random.PRNGKey(0))
    x = jax.random.normal(kx, (B, IN_CH, H, W), jnp.float32)
    k1, k2 = jax.random.split(kp)
    params = dict(g1=init_ghost(k1, IN_CH, OUT_CH),
                  g2=init_ghost(k2, OUT_CH, OUT_CH))

    fwd = jax.jit(double_conv, static_argnums=2)
    out = jax.block_until_ready(fwd(x, params, OUT_CH))

    assert out.shape == (B, OUT_CH, H, W), out.shape
    assert bool(jnp.all(jnp.isfinite(out)))

    # Check against a pure-JAX f32 reference (kernel uses bf16 MXU operands).
    x_nhwc = jnp.transpose(x, (0, 2, 3, 1))
    ref = _ghost_ref(_ghost_ref(x_nhwc, params["g1"], OUT_CH),
                     params["g2"], OUT_CH)
    ref = jnp.transpose(ref, (0, 3, 1, 2))
    max_err = float(jnp.max(jnp.abs(out - ref)))
    assert bool(jnp.allclose(out, ref, atol=5e-2, rtol=5e-2)), max_err

    print("KERNEL_OK")
</pallas_src>

<mosaic_0001>
module attributes {stable_mosaic.version = 11 : i64} {
  func.func @kernel(%arg0: i32, %arg1: memref<1x18x18x4xbf16, #tpu.memory_space<vmem>>, %arg2: memref<9x4x32xbf16, #tpu.memory_space<vmem>>, %arg3: memref<1x32xf32, #tpu.memory_space<vmem>>, %arg4: memref<1x32xf32, #tpu.memory_space<vmem>>, %arg5: memref<9x1x32xf32, #tpu.memory_space<vmem>>, %arg6: memref<1x32xf32, #tpu.memory_space<vmem>>, %arg7: memref<1x32xf32, #tpu.memory_space<vmem>>, %arg8: memref<9x64x32xbf16, #tpu.memory_space<vmem>>, %arg9: memref<1x32xf32, #tpu.memory_space<vmem>>, %arg10: memref<1x32xf32, #tpu.memory_space<vmem>>, %arg11: memref<9x1x32xf32, #tpu.memory_space<vmem>>, %arg12: memref<1x32xf32, #tpu.memory_space<vmem>>, %arg13: memref<1x32xf32, #tpu.memory_space<vmem>>, %arg14: memref<1x16x16x64xf32, #tpu.memory_space<vmem>>, %arg15: memref<18x18x32xf32, #tpu.memory_space<vmem>>, %arg16: memref<18x18x64xf32, #tpu.memory_space<vmem>>, %arg17: memref<18x18x32xf32, #tpu.memory_space<vmem>>) attributes {dimension_semantics = [#tpu.dimension_semantics<parallel>], iteration_bounds = array<i64: 2>, scalar_prefetch = 0 : i64, scratch_operands = 3 : i64, tpu.core_type = #tpu.core_type<tc>, window_params = [{transform_indices = @transform_0, window_bounds = array<i64: 1, 18, 18, 4>}, {pipeline_mode = #tpu.pipeline_mode<synchronous>, transform_indices = @transform_1, window_bounds = array<i64: 9, 4, 32>}, {pipeline_mode = #tpu.pipeline_mode<synchronous>, transform_indices = @transform_2, window_bounds = array<i64: 1, 32>}, {pipeline_mode = #tpu.pipeline_mode<synchronous>, transform_indices = @transform_3, window_bounds = array<i64: 1, 32>}, {pipeline_mode = #tpu.pipeline_mode<synchronous>, transform_indices = @transform_4, window_bounds = array<i64: 9, 1, 32>}, {pipeline_mode = #tpu.pipeline_mode<synchronous>, transform_indices = @transform_5, window_bounds = array<i64: 1, 32>}, {pipeline_mode = #tpu.pipeline_mode<synchronous>, transform_indices = @transform_6, window_bounds = array<i64: 1, 32>}, {pipeline_mode = #tpu.pipeline_mode<synchronous>, transform_indices = @transform_7, window_bounds = array<i64: 9, 64, 32>}, {pipeline_mode = #tpu.pipeline_mode<synchronous>, transform_indices = @transform_8, window_bounds = array<i64: 1, 32>}, {pipeline_mode = #tpu.pipeline_mode<synchronous>, transform_indices = @transform_9, window_bounds = array<i64: 1, 32>}, {pipeline_mode = #tpu.pipeline_mode<synchronous>, transform_indices = @transform_10, window_bounds = array<i64: 9, 1, 32>}, {pipeline_mode = #tpu.pipeline_mode<synchronous>, transform_indices = @transform_11, window_bounds = array<i64: 1, 32>}, {pipeline_mode = #tpu.pipeline_mode<synchronous>, transform_indices = @transform_12, window_bounds = array<i64: 1, 32>}, {transform_indices = @transform_13, window_bounds = array<i64: 1, 16, 16, 64>}]} {
    %c0 = arith.constant 0 : index
    %c0_0 = arith.constant 0 : index
    %c0_1 = arith.constant 0 : index
    %c0_2 = arith.constant 0 : index
    %0 = vector.load %arg1[%c0, %c0_0, %c0_1, %c0_2] : memref<1x18x18x4xbf16, #tpu.memory_space<vmem>>, vector<1x18x18x4xbf16>
    %1 = vector.shape_cast %0 : vector<1x18x18x4xbf16> to vector<18x18x4xbf16>
    %cst = arith.constant 0.000000e+00 : f32
    %2 = vector.broadcast %cst : f32 to vector<256x32xf32>
    %3 = vector.extract_strided_slice %1 {offsets = [0, 0, 0], sizes = [16, 16, 4], strides = [1, 1, 1]} : vector<18x18x4xbf16> to vector<16x16x4xbf16>
    %4 = vector.shape_cast %3 : vector<16x16x4xbf16> to vector<256x4xbf16>
    %c0_3 = arith.constant 0 : index
    %c0_4 = arith.constant 0 : index
    %c0_5 = arith.constant 0 : index
    %5 = vector.load %arg2[%c0_3, %c0_4, %c0_5] : memref<9x4x32xbf16, #tpu.memory_space<vmem>>, vector<1x4x32xbf16>
    %6 = vector.shape_cast %5 : vector<1x4x32xbf16> to vector<4x32xbf16>
    %cst_6 = arith.constant dense<0.000000e+00> : vector<256x32xf32>
    %7 = tpu.matmul %4, %6, %cst_6 {dimension_numbers = #tpu.dot_dimension_numbers<[1], [0], [0], [1], [0, 0, 1, 1], [], []>} : vector<256x4xbf16>, vector<4x32xbf16>, vector<256x32xf32> -> vector<256x32xf32>
    %8 = arith.addf %2, %7 : vector<256x32xf32>
    %9 = vector.extract_strided_slice %1 {offsets = [0, 1, 0], sizes = [16, 16, 4], strides = [1, 1, 1]} : vector<18x18x4xbf16> to vector<16x16x4xbf16>
    %10 = vector.shape_cast %9 : vector<16x16x4xbf16> to vector<256x4xbf16>
    %c1 = arith.constant 1 : index
    %c0_7 = arith.constant 0 : index
    %c0_8 = arith.constant 0 : index
    %11 = vector.load %arg2[%c1, %c0_7, %c0_8] : memref<9x4x32xbf16, #tpu.memory_space<vmem>>, vector<1x4x32xbf16>
    %12 = vector.shape_cast %11 : vector<1x4x32xbf16> to vector<4x32xbf16>
    %cst_9 = arith.constant dense<0.000000e+00> : vector<256x32xf32>
    %13 = tpu.matmul %10, %12, %cst_9 {dimension_numbers = #tpu.dot_dimension_numbers<[1], [0], [0], [1], [0, 0, 1, 1], [], []>} : vector<256x4xbf16>, vector<4x32xbf16>, vector<256x32xf32> -> vector<256x32xf32>
    %14 = arith.addf %8, %13 : vector<256x32xf32>
    %15 = vector.extract_strided_slice %1 {offsets = [0, 2, 0], sizes = [16, 16, 4], strides = [1, 1, 1]} : vector<18x18x4xbf16> to vector<16x16x4xbf16>
    %16 = vector.shape_cast %15 : vector<16x16x4xbf16> to vector<256x4xbf16>
    %c2 = arith.constant 2 : index
    %c0_10 = arith.constant 0 : index
    %c0_11 = arith.constant 0 : index
    %17 = vector.load %arg2[%c2, %c0_10, %c0_11] : memref<9x4x32xbf16, #tpu.memory_space<vmem>>, vector<1x4x32xbf16>
    %18 = vector.shape_cast %17 : vector<1x4x32xbf16> to vector<4x32xbf16>
    %cst_12 = arith.constant dense<0.000000e+00> : vector<256x32xf32>
    %19 = tpu.matmul %16, %18, %cst_12 {dimension_numbers = #tpu.dot_dimension_numbers<[1], [0], [0], [1], [0, 0, 1, 1], [], []>} : vector<256x4xbf16>, vector<4x32xbf16>, vector<256x32xf32> -> vector<256x32xf32>
    %20 = arith.addf %14, %19 : vector<256x32xf32>
    %21 = vector.extract_strided_slice %1 {offsets = [1, 0, 0], sizes = [16, 16, 4], strides = [1, 1, 1]} : vector<18x18x4xbf16> to vector<16x16x4xbf16>
    %22 = vector.shape_cast %21 : vector<16x16x4xbf16> to vector<256x4xbf16>
    %c3 = arith.constant 3 : index
    %c0_13 = arith.constant 0 : index
    %c0_14 = arith.constant 0 : index
    %23 = vector.load %arg2[%c3, %c0_13, %c0_14] : memref<9x4x32xbf16, #tpu.memory_space<vmem>>, vector<1x4x32xbf16>
    %24 = vector.shape_cast %23 : vector<1x4x32xbf16> to vector<4x32xbf16>
    %cst_15 = arith.constant dense<0.000000e+00> : vector<256x32xf32>
    %25 = tpu.matmul %22, %24, %cst_15 {dimension_numbers = #tpu.dot_dimension_numbers<[1], [0], [0], [1], [0, 0, 1, 1], [], []>} : vector<256x4xbf16>, vector<4x32xbf16>, vector<256x32xf32> -> vector<256x32xf32>
    %26 = arith.addf %20, %25 : vector<256x32xf32>
    %27 = vector.extract_strided_slice %1 {offsets = [1, 1, 0], sizes = [16, 16, 4], strides = [1, 1, 1]} : vector<18x18x4xbf16> to vector<16x16x4xbf16>
    %28 = vector.shape_cast %27 : vector<16x16x4xbf16> to vector<256x4xbf16>
    %c4 = arith.constant 4 : index
    %c0_16 = arith.constant 0 : index
    %c0_17 = arith.constant 0 : index
    %29 = vector.load %arg2[%c4, %c0_16, %c0_17] : memref<9x4x32xbf16, #tpu.memory_space<vmem>>, vector<1x4x32xbf16>
    %30 = vector.shape_cast %29 : vector<1x4x32xbf16> to vector<4x32xbf16>
    %cst_18 = arith.constant dense<0.000000e+00> : vector<256x32xf32>
    %31 = tpu.matmul %28, %30, %cst_18 {dimension_numbers = #tpu.dot_dimension_numbers<[1], [0], [0], [1], [0, 0, 1, 1], [], []>} : vector<256x4xbf16>, vector<4x32xbf16>, vector<256x32xf32> -> vector<256x32xf32>
    %32 = arith.addf %26, %31 : vector<256x32xf32>
    %33 = vector.extract_strided_slice %1 {offsets = [1, 2, 0], sizes = [16, 16, 4], strides = [1, 1, 1]} : vector<18x18x4xbf16> to vector<16x16x4xbf16>
    %34 = vector.shape_cast %33 : vector<16x16x4xbf16> to vector<256x4xbf16>
    %c5 = arith.constant 5 : index
    %c0_19 = arith.constant 0 : index
    %c0_20 = arith.constant 0 : index
    %35 = vector.load %arg2[%c5, %c0_19, %c0_20] : memref<9x4x32xbf16, #tpu.memory_space<vmem>>, vector<1x4x32xbf16>
    %36 = vector.shape_cast %35 : vector<1x4x32xbf16> to vector<4x32xbf16>
    %cst_21 = arith.constant dense<0.000000e+00> : vector<256x32xf32>
    %37 = tpu.matmul %34, %36, %cst_21 {dimension_numbers = #tpu.dot_dimension_numbers<[1], [0], [0], [1], [0, 0, 1, 1], [], []>} : vector<256x4xbf16>, vector<4x32xbf16>, vector<256x32xf32> -> vector<256x32xf32>
    %38 = arith.addf %32, %37 : vector<256x32xf32>
    %39 = vector.extract_strided_slice %1 {offsets = [2, 0, 0], sizes = [16, 16, 4], strides = [1, 1, 1]} : vector<18x18x4xbf16> to vector<16x16x4xbf16>
    %40 = vector.shape_cast %39 : vector<16x16x4xbf16> to vector<256x4xbf16>
    %c6 = arith.constant 6 : index
    %c0_22 = arith.constant 0 : index
    %c0_23 = arith.constant 0 : index
    %41 = vector.load %arg2[%c6, %c0_22, %c0_23] : memref<9x4x32xbf16, #tpu.memory_space<vmem>>, vector<1x4x32xbf16>
    %42 = vector.shape_cast %41 : vector<1x4x32xbf16> to vector<4x32xbf16>
    %cst_24 = arith.constant dense<0.000000e+00> : vector<256x32xf32>
    %43 = tpu.matmul %40, %42, %cst_24 {dimension_numbers = #tpu.dot_dimension_numbers<[1], [0], [0], [1], [0, 0, 1, 1], [], []>} : vector<256x4xbf16>, vector<4x32xbf16>, vector<256x32xf32> -> vector<256x32xf32>
    %44 = arith.addf %38, %43 : vector<256x32xf32>
    %45 = vector.extract_strided_slice %1 {offsets = [2, 1, 0], sizes = [16, 16, 4], strides = [1, 1, 1]} : vector<18x18x4xbf16> to vector<16x16x4xbf16>
    %46 = vector.shape_cast %45 : vector<16x16x4xbf16> to vector<256x4xbf16>
    %c7 = arith.constant 7 : index
    %c0_25 = arith.constant 0 : index
    %c0_26 = arith.constant 0 : index
    %47 = vector.load %arg2[%c7, %c0_25, %c0_26] : memref<9x4x32xbf16, #tpu.memory_space<vmem>>, vector<1x4x32xbf16>
    %48 = vector.shape_cast %47 : vector<1x4x32xbf16> to vector<4x32xbf16>
    %cst_27 = arith.constant dense<0.000000e+00> : vector<256x32xf32>
    %49 = tpu.matmul %46, %48, %cst_27 {dimension_numbers = #tpu.dot_dimension_numbers<[1], [0], [0], [1], [0, 0, 1, 1], [], []>} : vector<256x4xbf16>, vector<4x32xbf16>, vector<256x32xf32> -> vector<256x32xf32>
    %50 = arith.addf %44, %49 : vector<256x32xf32>
    %51 = vector.extract_strided_slice %1 {offsets = [2, 2, 0], sizes = [16, 16, 4], strides = [1, 1, 1]} : vector<18x18x4xbf16> to vector<16x16x4xbf16>
    %52 = vector.shape_cast %51 : vector<16x16x4xbf16> to vector<256x4xbf16>
    %c8 = arith.constant 8 : index
    %c0_28 = arith.constant 0 : index
    %c0_29 = arith.constant 0 : index
    %53 = vector.load %arg2[%c8, %c0_28, %c0_29] : memref<9x4x32xbf16, #tpu.memory_space<vmem>>, vector<1x4x32xbf16>
    %54 = vector.shape_cast %53 : vector<1x4x32xbf16> to vector<4x32xbf16>
    %cst_30 = arith.constant dense<0.000000e+00> : vector<256x32xf32>
    %55 = tpu.matmul %52, %54, %cst_30 {dimension_numbers = #tpu.dot_dimension_numbers<[1], [0], [0], [1], [0, 0, 1, 1], [], []>} : vector<256x4xbf16>, vector<4x32xbf16>, vector<256x32xf32> -> vector<256x32xf32>
    %56 = arith.addf %50, %55 : vector<256x32xf32>
    %c0_31 = arith.constant 0 : index
    %c0_32 = arith.constant 0 : index
    %57 = vector.load %arg3[%c0_31, %c0_32] : memref<1x32xf32, #tpu.memory_space<vmem>>, vector<1x32xf32>
    %58 = vector.broadcast %57 : vector<1x32xf32> to vector<256x32xf32>
    %59 = arith.mulf %56, %58 : vector<256x32xf32>
    %c0_33 = arith.constant 0 : index
    %c0_34 = arith.constant 0 : index
    %60 = vector.load %arg4[%c0_33, %c0_34] : memref<1x32xf32, #tpu.memory_space<vmem>>, vector<1x32xf32>
    %61 = vector.broadcast %60 : vector<1x32xf32> to vector<256x32xf32>
    %62 = arith.addf %59, %61 : vector<256x32xf32>
    %cst_35 = arith.constant 0.000000e+00 : f32
    %63 = vector.broadcast %cst_35 : f32 to vector<256x32xf32>
    %64 = arith.maximumf %62, %63 : vector<256x32xf32>
    %65 = vector.shape_cast %64 : vector<256x32xf32> to vector<16x16x32xf32>
    %cst_36 = arith.constant 0.000000e+00 : f32
    %66 = vector.broadcast %cst_36 : f32 to vector<18x18x32xf32>
    %c0_37 = arith.constant 0 : index
    %c0_38 = arith.constant 0 : index
    %c0_39 = arith.constant 0 : index
    %67 = vector.load %arg15[%c0_37, %c0_38, %c0_39] : memref<18x18x32xf32, #tpu.memory_space<vmem>>, vector<18x18x32xf32>
    tpu.vector_store %arg15[%c0_37, %c0_38, %c0_39], %66 {strides = array<i32>} : memref<18x18x32xf32, #tpu.memory_space<vmem>>, vector<18x18x32xf32>,
    %c1_40 = arith.constant 1 : index
    %c1_41 = arith.constant 1 : index
    %c0_42 = arith.constant 0 : index
    %68 = vector.load %arg15[%c1_40, %c1_41, %c0_42] : memref<18x18x32xf32, #tpu.memory_space<vmem>>, vector<16x16x32xf32>
    tpu.vector_store %arg15[%c1_40, %c1_41, %c0_42], %65 {strides = array<i32>} : memref<18x18x32xf32, #tpu.memory_space<vmem>>, vector<16x16x32xf32>,
    %cst_43 = arith.constant 0.000000e+00 : f32
    %69 = vector.broadcast %cst_43 : f32 to vector<16x16x32xf32>
    %c0_44 = arith.constant 0 : index
    %c0_45 = arith.constant 0 : index
    %c0_46 = arith.constant 0 : index
    %70 = vector.load %arg15[%c0_44, %c0_45, %c0_46] : memref<18x18x32xf32, #tpu.memory_space<vmem>>, vector<16x16x32xf32>
    %c0_47 = arith.constant 0 : index
    %c0_48 = arith.constant 0 : index
    %c0_49 = arith.constant 0 : index
    %71 = vector.load %arg5[%c0_47, %c0_48, %c0_49] : memref<9x1x32xf32, #tpu.memory_space<vmem>>, vector<1x1x32xf32>
    %72 = vector.shape_cast %71 : vector<1x1x32xf32> to vector<1x32xf32>
    %73 = vector.shape_cast %72 : vector<1x32xf32> to vector<1x1x32xf32>
    %74 = vector.broadcast %73 : vector<1x1x32xf32> to vector<16x16x32xf32>
    %75 = arith.mulf %70, %74 : vector<16x16x32xf32>
    %76 = arith.addf %69, %75 : vector<16x16x32xf32>
    %c0_50 = arith.constant 0 : index
    %c1_51 = arith.constant 1 : index
    %c0_52 = arith.constant 0 : index
    %77 = vector.load %arg15[%c0_50, %c1_51, %c0_52] : memref<18x18x32xf32, #tpu.memory_space<vmem>>, vector<16x16x32xf32>
    %c1_53 = arith.constant 1 : index
    %c0_54 = arith.constant 0 : index
    %c0_55 = arith.constant 0 : index
    %78 = vector.load %arg5[%c1_53, %c0_54, %c0_55] : memref<9x1x32xf32, #tpu.memory_space<vmem>>, vector<1x1x32xf32>
    %79 = vector.shape_cast %78 : vector<1x1x32xf32> to vector<1x32xf32>
    %80 = vector.shape_cast %79 : vector<1x32xf32> to vector<1x1x32xf32>
    %81 = vector.broadcast %80 : vector<1x1x32xf32> to vector<16x16x32xf32>
    %82 = arith.mulf %77, %81 : vector<16x16x32xf32>
    %83 = arith.addf %76, %82 : vector<16x16x32xf32>
    %c0_56 = arith.constant 0 : index
    %c2_57 = arith.constant 2 : index
    %c0_58 = arith.constant 0 : index
    %84 = vector.load %arg15[%c0_56, %c2_57, %c0_58] : memref<18x18x32xf32, #tpu.memory_space<vmem>>, vector<16x16x32xf32>
    %c2_59 = arith.constant 2 : index
    %c0_60 = arith.constant 0 : index
    %c0_61 = arith.constant 0 : index
    %85 = vector.load %arg5[%c2_59, %c0_60, %c0_61] : memref<9x1x32xf32, #tpu.memory_space<vmem>>, vector<1x1x32xf32>
    %86 = vector.shape_cast %85 : vector<1x1x32xf32> to vector<1x32xf32>
    %87 = vector.shape_cast %86 : vector<1x32xf32> to vector<1x1x32xf32>
    %88 = vector.broadcast %87 : vector<1x1x32xf32> to vector<16x16x32xf32>
    %89 = arith.mulf %84, %88 : vector<16x16x32xf32>
    %90 = arith.addf %83, %89 : vector<16x16x32xf32>
    %c1_62 = arith.constant 1 : index
    %c0_63 = arith.constant 0 : index
    %c0_64 = arith.constant 0 : index
    %91 = vector.load %arg15[%c1_62, %c0_63, %c0_64] : memref<18x18x32xf32, #tpu.memory_space<vmem>>, vector<16x16x32xf32>
    %c3_65 = arith.constant 3 : index
    %c0_66 = arith.constant 0 : index
    %c0_67 = arith.constant 0 : index
    %92 = vector.load %arg5[%c3_65, %c0_66, %c0_67] : memref<9x1x32xf32, #tpu.memory_space<vmem>>, vector<1x1x32xf32>
    %93 = vector.shape_cast %92 : vector<1x1x32xf32> to vector<1x32xf32>
    %94 = vector.shape_cast %93 : vector<1x32xf32> to vector<1x1x32xf32>
    %95 = vector.broadcast %94 : vector<1x1x32xf32> to vector<16x16x32xf32>
    %96 = arith.mulf %91, %95 : vector<16x16x32xf32>
    %97 = arith.addf %90, %96 : vector<16x16x32xf32>
    %c1_68 = arith.constant 1 : index
    %c1_69 = arith.constant 1 : index
    %c0_70 = arith.constant 0 : index
    %98 = vector.load %arg15[%c1_68, %c1_69, %c0_70] : memref<18x18x32xf32, #tpu.memory_space<vmem>>, vector<16x16x32xf32>
    %c4_71 = arith.constant 4 : index
    %c0_72 = arith.constant 0 : index
    %c0_73 = arith.constant 0 : index
    %99 = vector.load %arg5[%c4_71, %c0_72, %c0_73] : memref<9x1x32xf32, #tpu.memory_space<vmem>>, vector<1x1x32xf32>
    %100 = vector.shape_cast %99 : vector<1x1x32xf32> to vector<1x32xf32>
    %101 = vector.shape_cast %100 : vector<1x32xf32> to vector<1x1x32xf32>
    %102 = vector.broadcast %101 : vector<1x1x32xf32> to vector<16x16x32xf32>
    %103 = arith.mulf %98, %102 : vector<16x16x32xf32>
    %104 = arith.addf %97, %103 : vector<16x16x32xf32>
    %c1_74 = arith.constant 1 : index
    %c2_75 = arith.constant 2 : index
    %c0_76 = arith.constant 0 : index
    %105 = vector.load %arg15[%c1_74, %c2_75, %c0_76] : memref<18x18x32xf32, #tpu.memory_space<vmem>>, vector<16x16x32xf32>
    %c5_77 = arith.constant 5 : index
    %c0_78 = arith.constant 0 : index
    %c0_79 = arith.constant 0 : index
    %106 = vector.load %arg5[%c5_77, %c0_78, %c0_79] : memref<9x1x32xf32, #tpu.memory_space<vmem>>, vector<1x1x32xf32>
    %107 = vector.shape_cast %106 : vector<1x1x32xf32> to vector<1x32xf32>
    %108 = vector.shape_cast %107 : vector<1x32xf32> to vector<1x1x32xf32>
    %109 = vector.broadcast %108 : vector<1x1x32xf32> to vector<16x16x32xf32>
    %110 = arith.mulf %105, %109 : vector<16x16x32xf32>
    %111 = arith.addf %104, %110 : vector<16x16x32xf32>
    %c2_80 = arith.constant 2 : index
    %c0_81 = arith.constant 0 : index
    %c0_82 = arith.constant 0 : index
    %112 = vector.load %arg15[%c2_80, %c0_81, %c0_82] : memref<18x18x32xf32, #tpu.memory_space<vmem>>, vector<16x16x32xf32>
    %c6_83 = arith.constant 6 : index
    %c0_84 = arith.constant 0 : index
    %c0_85 = arith.constant 0 : index
    %113 = vector.load %arg5[%c6_83, %c0_84, %c0_85] : memref<9x1x32xf32, #tpu.memory_space<vmem>>, vector<1x1x32xf32>
    %114 = vector.shape_cast %113 : vector<1x1x32xf32> to vector<1x32xf32>
    %115 = vector.shape_cast %114 : vector<1x32xf32> to vector<1x1x32xf32>
    %116 = vector.broadcast %115 : vector<1x1x32xf32> to vector<16x16x32xf32>
    %117 = arith.mulf %112, %116 : vector<16x16x32xf32>
    %118 = arith.addf %111, %117 : vector<16x16x32xf32>
    %c2_86 = arith.constant 2 : index
    %c1_87 = arith.constant 1 : index
    %c0_88 = arith.constant 0 : index
    %119 = vector.load %arg15[%c2_86, %c1_87, %c0_88] : memref<18x18x32xf32, #tpu.memory_space<vmem>>, vector<16x16x32xf32>
    %c7_89 = arith.constant 7 : index
    %c0_90 = arith.constant 0 : index
    %c0_91 = arith.constant 0 : index
    %120 = vector.load %arg5[%c7_89, %c0_90, %c0_91] : memref<9x1x32xf32, #tpu.memory_space<vmem>>, vector<1x1x32xf32>
    %121 = vector.shape_cast %120 : vector<1x1x32xf32> to vector<1x32xf32>
    %122 = vector.shape_cast %121 : vector<1x32xf32> to vector<1x1x32xf32>
    %123 = vector.broadcast %122 : vector<1x1x32xf32> to vector<16x16x32xf32>
    %124 = arith.mulf %119, %123 : vector<16x16x32xf32>
    %125 = arith.addf %118, %124 : vector<16x16x32xf32>
    %c2_92 = arith.constant 2 : index
    %c2_93 = arith.constant 2 : index
    %c0_94 = arith.constant 0 : index
    %126 = vector.load %arg15[%c2_92, %c2_93, %c0_94] : memref<18x18x32xf32, #tpu.memory_space<vmem>>, vector<16x16x32xf32>
    %c8_95 = arith.constant 8 : index
    %c0_96 = arith.constant 0 : index
    %c0_97 = arith.constant 0 : index
    %127 = vector.load %arg5[%c8_95, %c0_96, %c0_97] : memref<9x1x32xf32, #tpu.memory_space<vmem>>, vector<1x1x32xf32>
    %128 = vector.shape_cast %127 : vector<1x1x32xf32> to vector<1x32xf32>
    %129 = vector.shape_cast %128 : vector<1x32xf32> to vector<1x1x32xf32>
    %130 = vector.broadcast %129 : vector<1x1x32xf32> to vector<16x16x32xf32>
    %131 = arith.mulf %126, %130 : vector<16x16x32xf32>
    %132 = arith.addf %125, %131 : vector<16x16x32xf32>
    %c0_98 = arith.constant 0 : index
    %c0_99 = arith.constant 0 : index
    %133 = vector.load %arg6[%c0_98, %c0_99] : memref<1x32xf32, #tpu.memory_space<vmem>>, vector<1x32xf32>
    %134 = vector.shape_cast %133 : vector<1x32xf32> to vector<1x1x32xf32>
    %135 = vector.broadcast %134 : vector<1x1x32xf32> to vector<16x16x32xf32>
    %136 = arith.mulf %132, %135 : vector<16x16x32xf32>
    %c0_100 = arith.constant 0 : index
    %c0_101 = arith.constant 0 : index
    %137 = vector.load %arg7[%c0_100, %c0_101] : memref<1x32xf32, #tpu.memory_space<vmem>>, vector<1x32xf32>
    %138 = vector.shape_cast %137 : vector<1x32xf32> to vector<1x1x32xf32>
    %139 = vector.broadcast %138 : vector<1x1x32xf32> to vector<16x16x32xf32>
    %140 = arith.addf %136, %139 : vector<16x16x32xf32>
    %cst_102 = arith.constant 0.000000e+00 : f32
    %141 = vector.broadcast %cst_102 : f32 to vector<16x16x32xf32>
    %142 = arith.maximumf %140, %141 : vector<16x16x32xf32>
    %143 = tpu.concatenate %65, %142 in 2 : vector<16x16x32xf32>, vector<16x16x32xf32> -> vector<16x16x64xf32>
    %cst_103 = arith.constant 0.000000e+00 : f32
    %144 = vector.broadcast %cst_103 : f32 to vector<18x18x64xf32>
    %c0_104 = arith.constant 0 : index
    %c0_105 = arith.constant 0 : index
    %c0_106 = arith.constant 0 : index
    %145 = vector.load %arg16[%c0_104, %c0_105, %c0_106] : memref<18x18x64xf32, #tpu.memory_space<vmem>>, vector<18x18x64xf32>
    tpu.vector_store %arg16[%c0_104, %c0_105, %c0_106], %144 {strides = array<i32>} : memref<18x18x64xf32, #tpu.memory_space<vmem>>, vector<18x18x64xf32>,
    %c1_107 = arith.constant 1 : index
    %c1_108 = arith.constant 1 : index
    %c0_109 = arith.constant 0 : index
    %146 = vector.load %arg16[%c1_107, %c1_108, %c0_109] : memref<18x18x64xf32, #tpu.memory_space<vmem>>, vector<16x16x64xf32>
    tpu.vector_store %arg16[%c1_107, %c1_108, %c0_109], %143 {strides = array<i32>} : memref<18x18x64xf32, #tpu.memory_space<vmem>>, vector<16x16x64xf32>,
    %c0_110 = arith.constant 0 : index
    %c0_111 = arith.constant 0 : index
    %c0_112 = arith.constant 0 : index
    %147 = vector.load %arg16[%c0_110, %c0_111, %c0_112] : memref<18x18x64xf32, #tpu.memory_space<vmem>>, vector<18x18x64xf32>
    %148 = arith.truncf %147 : vector<18x18x64xf32> to vector<18x18x64xbf16>
    %cst_113 = arith.constant 0.000000e+00 : f32
    %149 = vector.broadcast %cst_113 : f32 to vector<256x32xf32>
    %150 = vector.extract_strided_slice %148 {offsets = [0, 0, 0], sizes = [16, 16, 64], strides = [1, 1, 1]} : vector<18x18x64xbf16> to vector<16x16x64xbf16>
    %151 = vector.shape_cast %150 : vector<16x16x64xbf16> to vector<256x64xbf16>
    %c0_114 = arith.constant 0 : index
    %c0_115 = arith.constant 0 : index
    %c0_116 = arith.constant 0 : index
    %152 = vector.load %arg8[%c0_114, %c0_115, %c0_116] : memref<9x64x32xbf16, #tpu.memory_space<vmem>>, vector<1x64x32xbf16>
    %153 = vector.shape_cast %152 : vector<1x64x32xbf16> to vector<64x32xbf16>
    %cst_117 = arith.constant dense<0.000000e+00> : vector<256x32xf32>
    %154 = tpu.matmul %151, %153, %cst_117 {dimension_numbers = #tpu.dot_dimension_numbers<[1], [0], [0], [1], [0, 0, 1, 1], [], []>} : vector<256x64xbf16>, vector<64x32xbf16>, vector<256x32xf32> -> vector<256x32xf32>
    %155 = arith.addf %149, %154 : vector<256x32xf32>
    %156 = vector.extract_strided_slice %148 {offsets = [0, 1, 0], sizes = [16, 16, 64], strides = [1, 1, 1]} : vector<18x18x64xbf16> to vector<16x16x64xbf16>
    %157 = vector.shape_cast %156 : vector<16x16x64xbf16> to vector<256x64xbf16>
    %c1_118 = arith.constant 1 : index
    %c0_119 = arith.constant 0 : index
    %c0_120 = arith.constant 0 : index
    %158 = vector.load %arg8[%c1_118, %c0_119, %c0_120] : memref<9x64x32xbf16, #tpu.memory_space<vmem>>, vector<1x64x32xbf16>
    %159 = vector.shape_cast %158 : vector<1x64x32xbf16> to vector<64x32xbf16>
    %cst_121 = arith.constant dense<0.000000e+00> : vector<256x32xf32>
    %160 = tpu.matmul %157, %159, %cst_121 {dimension_numbers = #tpu.dot_dimension_numbers<[1], [0], [0], [1], [0, 0, 1, 1], [], []>} : vector<256x64xbf16>, vector<64x32xbf16>, vector<256x32xf32> -> vector<256x32xf32>
    %161 = arith.addf %155, %160 : vector<256x32xf32>
    %162 = vector.extract_strided_slice %148 {offsets = [0, 2, 0], sizes = [16, 16, 64], strides = [1, 1, 1]} : vector<18x18x64xbf16> to vector<16x16x64xbf16>
    %163 = vector.shape_cast %162 : vector<16x16x64xbf16> to vector<256x64xbf16>
    %c2_122 = arith.constant 2 : index
    %c0_123 = arith.constant 0 : index
    %c0_124 = arith.constant 0 : index
    %164 = vector.load %arg8[%c2_122, %c0_123, %c0_124] : memref<9x64x32xbf16, #tpu.memory_space<vmem>>, vector<1x64x32xbf16>
    %165 = vector.shape_cast %164 : vector<1x64x32xbf16> to vector<64x32xbf16>
    %cst_125 = arith.constant dense<0.000000e+00> : vector<256x32xf32>
    %166 = tpu.matmul %163, %165, %cst_125 {dimension_numbers = #tpu.dot_dimension_numbers<[1], [0], [0], [1], [0, 0, 1, 1], [], []>} : vector<256x64xbf16>, vector<64x32xbf16>, vector<256x32xf32> -> vector<256x32xf32>
    %167 = arith.addf %161, %166 : vector<256x32xf32>
    %168 = vector.extract_strided_slice %148 {offsets = [1, 0, 0], sizes = [16, 16, 64], strides = [1, 1, 1]} : vector<18x18x64xbf16> to vector<16x16x64xbf16>
    %169 = vector.shape_cast %168 : vector<16x16x64xbf16> to vector<256x64xbf16>
    %c3_126 = arith.constant 3 : index
    %c0_127 = arith.constant 0 : index
    %c0_128 = arith.constant 0 : index
    %170 = vector.load %arg8[%c3_126, %c0_127, %c0_128] : memref<9x64x32xbf16, #tpu.memory_space<vmem>>, vector<1x64x32xbf16>
    %171 = vector.shape_cast %170 : vector<1x64x32xbf16> to vector<64x32xbf16>
    %cst_129 = arith.constant dense<0.000000e+00> : vector<256x32xf32>
    %172 = tpu.matmul %169, %171, %cst_129 {dimension_numbers = #tpu.dot_dimension_numbers<[1], [0], [0], [1], [0, 0, 1, 1], [], []>} : vector<256x64xbf16>, vector<64x32xbf16>, vector<256x32xf32> -> vector<256x32xf32>
    %173 = arith.addf %167, %172 : vector<256x32xf32>
    %174 = vector.extract_strided_slice %148 {offsets = [1, 1, 0], sizes = [16, 16, 64], strides = [1, 1, 1]} : vector<18x18x64xbf16> to vector<16x16x64xbf16>
    %175 = vector.shape_cast %174 : vector<16x16x64xbf16> to vector<256x64xbf16>
    %c4_130 = arith.constant 4 : index
    %c0_131 = arith.constant 0 : index
    %c0_132 = arith.constant 0 : index
    %176 = vector.load %arg8[%c4_130, %c0_131, %c0_132] : memref<9x64x32xbf16, #tpu.memory_space<vmem>>, vector<1x64x32xbf16>
    %177 = vector.shape_cast %176 : vector<1x64x32xbf16> to vector<64x32xbf16>
    %cst_133 = arith.constant dense<0.000000e+00> : vector<256x32xf32>
    %178 = tpu.matmul %175, %177, %cst_133 {dimension_numbers = #tpu.dot_dimension_numbers<[1], [0], [0], [1], [0, 0, 1, 1], [], []>} : vector<256x64xbf16>, vector<64x32xbf16>, vector<256x32xf32> -> vector<256x32xf32>
    %179 = arith.addf %173, %178 : vector<256x32xf32>
    %180 = vector.extract_strided_slice %148 {offsets = [1, 2, 0], sizes = [16, 16, 64], strides = [1, 1, 1]} : vector<18x18x64xbf16> to vector<16x16x64xbf16>
    %181 = vector.shape_cast %180 : vector<16x16x64xbf16> to vector<256x64xbf16>
    %c5_134 = arith.constant 5 : index
    %c0_135 = arith.constant 0 : index
    %c0_136 = arith.constant 0 : index
    %182 = vector.load %arg8[%c5_134, %c0_135, %c0_136] : memref<9x64x32xbf16, #tpu.memory_space<vmem>>, vector<1x64x32xbf16>
    %183 = vector.shape_cast %182 : vector<1x64x32xbf16> to vector<64x32xbf16>
    %cst_137 = arith.constant dense<0.000000e+00> : vector<256x32xf32>
    %184 = tpu.matmul %181, %183, %cst_137 {dimension_numbers = #tpu.dot_dimension_numbers<[1], [0], [0], [1], [0, 0, 1, 1], [], []>} : vector<256x64xbf16>, vector<64x32xbf16>, vector<256x32xf32> -> vector<256x32xf32>
    %185 = arith.addf %179, %184 : vector<256x32xf32>
    %186 = vector.extract_strided_slice %148 {offsets = [2, 0, 0], sizes = [16, 16, 64], strides = [1, 1, 1]} : vector<18x18x64xbf16> to vector<16x16x64xbf16>
    %187 = vector.shape_cast %186 : vector<16x16x64xbf16> to vector<256x64xbf16>
    %c6_138 = arith.constant 6 : index
    %c0_139 = arith.constant 0 : index
    %c0_140 = arith.constant 0 : index
    %188 = vector.load %arg8[%c6_138, %c0_139, %c0_140] : memref<9x64x32xbf16, #tpu.memory_space<vmem>>, vector<1x64x32xbf16>
    %189 = vector.shape_cast %188 : vector<1x64x32xbf16> to vector<64x32xbf16>
    %cst_141 = arith.constant dense<0.000000e+00> : vector<256x32xf32>
    %190 = tpu.matmul %187, %189, %cst_141 {dimension_numbers = #tpu.dot_dimension_numbers<[1], [0], [0], [1], [0, 0, 1, 1], [], []>} : vector<256x64xbf16>, vector<64x32xbf16>, vector<256x32xf32> -> vector<256x32xf32>
    %191 = arith.addf %185, %190 : vector<256x32xf32>
    %192 = vector.extract_strided_slice %148 {offsets = [2, 1, 0], sizes = [16, 16, 64], strides = [1, 1, 1]} : vector<18x18x64xbf16> to vector<16x16x64xbf16>
    %193 = vector.shape_cast %192 : vector<16x16x64xbf16> to vector<256x64xbf16>
    %c7_142 = arith.constant 7 : index
    %c0_143 = arith.constant 0 : index
    %c0_144 = arith.constant 0 : index
    %194 = vector.load %arg8[%c7_142, %c0_143, %c0_144] : memref<9x64x32xbf16, #tpu.memory_space<vmem>>, vector<1x64x32xbf16>
    %195 = vector.shape_cast %194 : vector<1x64x32xbf16> to vector<64x32xbf16>
    %cst_145 = arith.constant dense<0.000000e+00> : vector<256x32xf32>
    %196 = tpu.matmul %193, %195, %cst_145 {dimension_numbers = #tpu.dot_dimension_numbers<[1], [0], [0], [1], [0, 0, 1, 1], [], []>} : vector<256x64xbf16>, vector<64x32xbf16>, vector<256x32xf32> -> vector<256x32xf32>
    %197 = arith.addf %191, %196 : vector<256x32xf32>
    %198 = vector.extract_strided_slice %148 {offsets = [2, 2, 0], sizes = [16, 16, 64], strides = [1, 1, 1]} : vector<18x18x64xbf16> to vector<16x16x64xbf16>
    %199 = vector.shape_cast %198 : vector<16x16x64xbf16> to vector<256x64xbf16>
    %c8_146 = arith.constant 8 : index
    %c0_147 = arith.constant 0 : index
    %c0_148 = arith.constant 0 : index
    %200 = vector.load %arg8[%c8_146, %c0_147, %c0_148] : memref<9x64x32xbf16, #tpu.memory_space<vmem>>, vector<1x64x32xbf16>
    %201 = vector.shape_cast %200 : vector<1x64x32xbf16> to vector<64x32xbf16>
    %cst_149 = arith.constant dense<0.000000e+00> : vector<256x32xf32>
    %202 = tpu.matmul %199, %201, %cst_149 {dimension_numbers = #tpu.dot_dimension_numbers<[1], [0], [0], [1], [0, 0, 1, 1], [], []>} : vector<256x64xbf16>, vector<64x32xbf16>, vector<256x32xf32> -> vector<256x32xf32>
    %203 = arith.addf %197, %202 : vector<256x32xf32>
    %c0_150 = arith.constant 0 : index
    %c0_151 = arith.constant 0 : index
    %204 = vector.load %arg9[%c0_150, %c0_151] : memref<1x32xf32, #tpu.memory_space<vmem>>, vector<1x32xf32>
    %205 = vector.broadcast %204 : vector<1x32xf32> to vector<256x32xf32>
    %206 = arith.mulf %203, %205 : vector<256x32xf32>
    %c0_152 = arith.constant 0 : index
    %c0_153 = arith.constant 0 : index
    %207 = vector.load %arg10[%c0_152, %c0_153] : memref<1x32xf32, #tpu.memory_space<vmem>>, vector<1x32xf32>
    %208 = vector.broadcast %207 : vector<1x32xf32> to vector<256x32xf32>
    %209 = arith.addf %206, %208 : vector<256x32xf32>
    %cst_154 = arith.constant 0.000000e+00 : f32
    %210 = vector.broadcast %cst_154 : f32 to vector<256x32xf32>
    %211 = arith.maximumf %209, %210 : vector<256x32xf32>
    %212 = vector.shape_cast %211 : vector<256x32xf32> to vector<16x16x32xf32>
    %cst_155 = arith.constant 0.000000e+00 : f32
    %213 = vector.broadcast %cst_155 : f32 to vector<18x18x32xf32>
    %c0_156 = arith.constant 0 : index
    %c0_157 = arith.constant 0 : index
    %c0_158 = arith.constant 0 : index
    %214 = vector.load %arg17[%c0_156, %c0_157, %c0_158] : memref<18x18x32xf32, #tpu.memory_space<vmem>>, vector<18x18x32xf32>
    tpu.vector_store %arg17[%c0_156, %c0_157, %c0_158], %213 {strides = array<i32>} : memref<18x18x32xf32, #tpu.memory_space<vmem>>, vector<18x18x32xf32>,
    %c1_159 = arith.constant 1 : index
    %c1_160 = arith.constant 1 : index
    %c0_161 = arith.constant 0 : index
    %215 = vector.load %arg17[%c1_159, %c1_160, %c0_161] : memref<18x18x32xf32, #tpu.memory_space<vmem>>, vector<16x16x32xf32>
    tpu.vector_store %arg17[%c1_159, %c1_160, %c0_161], %212 {strides = array<i32>} : memref<18x18x32xf32, #tpu.memory_space<vmem>>, vector<16x16x32xf32>,
    %cst_162 = arith.constant 0.000000e+00 : f32
    %216 = vector.broadcast %cst_162 : f32 to vector<16x16x32xf32>
    %c0_163 = arith.constant 0 : index
    %c0_164 = arith.constant 0 : index
    %c0_165 = arith.constant 0 : index
    %217 = vector.load %arg17[%c0_163, %c0_164, %c0_165] : memref<18x18x32xf32, #tpu.memory_space<vmem>>, vector<16x16x32xf32>
    %c0_166 = arith.constant 0 : index
    %c0_167 = arith.constant 0 : index
    %c0_168 = arith.constant 0 : index
    %218 = vector.load %arg11[%c0_166, %c0_167, %c0_168] : memref<9x1x32xf32, #tpu.memory_space<vmem>>, vector<1x1x32xf32>
    %219 = vector.shape_cast %218 : vector<1x1x32xf32> to vector<1x32xf32>
    %220 = vector.shape_cast %219 : vector<1x32xf32> to vector<1x1x32xf32>
    %221 = vector.broadcast %220 : vector<1x1x32xf32> to vector<16x16x32xf32>
    %222 = arith.mulf %217, %221 : vector<16x16x32xf32>
    %223 = arith.addf %216, %222 : vector<16x16x32xf32>
    %c0_169 = arith.constant 0 : index
    %c1_170 = arith.constant 1 : index
    %c0_171 = arith.constant 0 : index
    %224 = vector.load %arg17[%c0_169, %c1_170, %c0_171] : memref<18x18x32xf32, #tpu.memory_space<vmem>>, vector<16x16x32xf32>
    %c1_172 = arith.constant 1 : index
    %c0_173 = arith.constant 0 : index
    %c0_174 = arith.constant 0 : index
    %225 = vector.load %arg11[%c1_172, %c0_173, %c0_174] : memref<9x1x32xf32, #tpu.memory_space<vmem>>, vector<1x1x32xf32>
    %226 = vector.shape_cast %225 : vector<1x1x32xf32> to vector<1x32xf32>
    %227 = vector.shape_cast %226 : vector<1x32xf32> to vector<1x1x32xf32>
    %228 = vector.broadcast %227 : vector<1x1x32xf32> to vector<16x16x32xf32>
    %229 = arith.mulf %224, %228 : vector<16x16x32xf32>
    %230 = arith.addf %223, %229 : vector<16x16x32xf32>
    %c0_175 = arith.constant 0 : index
    %c2_176 = arith.constant 2 : index
    %c0_177 = arith.constant 0 : index
    %231 = vector.load %arg17[%c0_175, %c2_176, %c0_177] : memref<18x18x32xf32, #tpu.memory_space<vmem>>, vector<16x16x32xf32>
    %c2_178 = arith.constant 2 : index
    %c0_179 = arith.constant 0 : index
    %c0_180 = arith.constant 0 : index
    %232 = vector.load %arg11[%c2_178, %c0_179, %c0_180] : memref<9x1x32xf32, #tpu.memory_space<vmem>>, vector<1x1x32xf32>
    %233 = vector.shape_cast %232 : vector<1x1x32xf32> to vector<1x32xf32>
    %234 = vector.shape_cast %233 : vector<1x32xf32> to vector<1x1x32xf32>
    %235 = vector.broadcast %234 : vector<1x1x32xf32> to vector<16x16x32xf32>
    %236 = arith.mulf %231, %235 : vector<16x16x32xf32>
    %237 = arith.addf %230, %236 : vector<16x16x32xf32>
    %c1_181 = arith.constant 1 : index
    %c0_182 = arith.constant 0 : index
    %c0_183 = arith.constant 0 : index
    %238 = vector.load %arg17[%c1_181, %c0_182, %c0_183] : memref<18x18x32xf32, #tpu.memory_space<vmem>>, vector<16x16x32xf32>
    %c3_184 = arith.constant 3 : index
    %c0_185 = arith.constant 0 : index
    %c0_186 = arith.constant 0 : index
    %239 = vector.load %arg11[%c3_184, %c0_185, %c0_186] : memref<9x1x32xf32, #tpu.memory_space<vmem>>, vector<1x1x32xf32>
    %240 = vector.shape_cast %239 : vector<1x1x32xf32> to vector<1x32xf32>
    %241 = vector.shape_cast %240 : vector<1x32xf32> to vector<1x1x32xf32>
    %242 = vector.broadcast %241 : vector<1x1x32xf32> to vector<16x16x32xf32>
    %243 = arith.mulf %238, %242 : vector<16x16x32xf32>
    %244 = arith.addf %237, %243 : vector<16x16x32xf32>
    %c1_187 = arith.constant 1 : index
    %c1_188 = arith.constant 1 : index
    %c0_189 = arith.constant 0 : index
    %245 = vector.load %arg17[%c1_187, %c1_188, %c0_189] : memref<18x18x32xf32, #tpu.memory_space<vmem>>, vector<16x16x32xf32>
    %c4_190 = arith.constant 4 : index
    %c0_191 = arith.constant 0 : index
    %c0_192 = arith.constant 0 : index
    %246 = vector.load %arg11[%c4_190, %c0_191, %c0_192] : memref<9x1x32xf32, #tpu.memory_space<vmem>>, vector<1x1x32xf32>
    %247 = vector.shape_cast %246 : vector<1x1x32xf32> to vector<1x32xf32>
    %248 = vector.shape_cast %247 : vector<1x32xf32> to vector<1x1x32xf32>
    %249 = vector.broadcast %248 : vector<1x1x32xf32> to vector<16x16x32xf32>
    %250 = arith.mulf %245, %249 : vector<16x16x32xf32>
    %251 = arith.addf %244, %250 : vector<16x16x32xf32>
    %c1_193 = arith.constant 1 : index
    %c2_194 = arith.constant 2 : index
    %c0_195 = arith.constant 0 : index
    %252 = vector.load %arg17[%c1_193, %c2_194, %c0_195] : memref<18x18x32xf32, #tpu.memory_space<vmem>>, vector<16x16x32xf32>
    %c5_196 = arith.constant 5 : index
    %c0_197 = arith.constant 0 : index
    %c0_198 = arith.constant 0 : index
    %253 = vector.load %arg11[%c5_196, %c0_197, %c0_198] : memref<9x1x32xf32, #tpu.memory_space<vmem>>, vector<1x1x32xf32>
    %254 = vector.shape_cast %253 : vector<1x1x32xf32> to vector<1x32xf32>
    %255 = vector.shape_cast %254 : vector<1x32xf32> to vector<1x1x32xf32>
    %256 = vector.broadcast %255 : vector<1x1x32xf32> to vector<16x16x32xf32>
    %257 = arith.mulf %252, %256 : vector<16x16x32xf32>
    %258 = arith.addf %251, %257 : vector<16x16x32xf32>
    %c2_199 = arith.constant 2 : index
    %c0_200 = arith.constant 0 : index
    %c0_201 = arith.constant 0 : index
    %259 = vector.load %arg17[%c2_199, %c0_200, %c0_201] : memref<18x18x32xf32, #tpu.memory_space<vmem>>, vector<16x16x32xf32>
    %c6_202 = arith.constant 6 : index
    %c0_203 = arith.constant 0 : index
    %c0_204 = arith.constant 0 : index
    %260 = vector.load %arg11[%c6_202, %c0_203, %c0_204] : memref<9x1x32xf32, #tpu.memory_space<vmem>>, vector<1x1x32xf32>
    %261 = vector.shape_cast %260 : vector<1x1x32xf32> to vector<1x32xf32>
    %262 = vector.shape_cast %261 : vector<1x32xf32> to vector<1x1x32xf32>
    %263 = vector.broadcast %262 : vector<1x1x32xf32> to vector<16x16x32xf32>
    %264 = arith.mulf %259, %263 : vector<16x16x32xf32>
    %265 = arith.addf %258, %264 : vector<16x16x32xf32>
    %c2_205 = arith.constant 2 : index
    %c1_206 = arith.constant 1 : index
    %c0_207 = arith.constant 0 : index
    %266 = vector.load %arg17[%c2_205, %c1_206, %c0_207] : memref<18x18x32xf32, #tpu.memory_space<vmem>>, vector<16x16x32xf32>
    %c7_208 = arith.constant 7 : index
    %c0_209 = arith.constant 0 : index
    %c0_210 = arith.constant 0 : index
    %267 = vector.load %arg11[%c7_208, %c0_209, %c0_210] : memref<9x1x32xf32, #tpu.memory_space<vmem>>, vector<1x1x32xf32>
    %268 = vector.shape_cast %267 : vector<1x1x32xf32> to vector<1x32xf32>
    %269 = vector.shape_cast %268 : vector<1x32xf32> to vector<1x1x32xf32>
    %270 = vector.broadcast %269 : vector<1x1x32xf32> to vector<16x16x32xf32>
    %271 = arith.mulf %266, %270 : vector<16x16x32xf32>
    %272 = arith.addf %265, %271 : vector<16x16x32xf32>
    %c2_211 = arith.constant 2 : index
    %c2_212 = arith.constant 2 : index
    %c0_213 = arith.constant 0 : index
    %273 = vector.load %arg17[%c2_211, %c2_212, %c0_213] : memref<18x18x32xf32, #tpu.memory_space<vmem>>, vector<16x16x32xf32>
    %c8_214 = arith.constant 8 : index
    %c0_215 = arith.constant 0 : index
    %c0_216 = arith.constant 0 : index
    %274 = vector.load %arg11[%c8_214, %c0_215, %c0_216] : memref<9x1x32xf32, #tpu.memory_space<vmem>>, vector<1x1x32xf32>
    %275 = vector.shape_cast %274 : vector<1x1x32xf32> to vector<1x32xf32>
    %276 = vector.shape_cast %275 : vector<1x32xf32> to vector<1x1x32xf32>
    %277 = vector.broadcast %276 : vector<1x1x32xf32> to vector<16x16x32xf32>
    %278 = arith.mulf %273, %277 : vector<16x16x32xf32>
    %279 = arith.addf %272, %278 : vector<16x16x32xf32>
    %c0_217 = arith.constant 0 : index
    %c0_218 = arith.constant 0 : index
    %280 = vector.load %arg12[%c0_217, %c0_218] : memref<1x32xf32, #tpu.memory_space<vmem>>, vector<1x32xf32>
    %281 = vector.shape_cast %280 : vector<1x32xf32> to vector<1x1x32xf32>
    %282 = vector.broadcast %281 : vector<1x1x32xf32> to vector<16x16x32xf32>
    %283 = arith.mulf %279, %282 : vector<16x16x32xf32>
    %c0_219 = arith.constant 0 : index
    %c0_220 = arith.constant 0 : index
    %284 = vector.load %arg13[%c0_219, %c0_220] : memref<1x32xf32, #tpu.memory_space<vmem>>, vector<1x32xf32>
    %285 = vector.shape_cast %284 : vector<1x32xf32> to vector<1x1x32xf32>
    %286 = vector.broadcast %285 : vector<1x1x32xf32> to vector<16x16x32xf32>
    %287 = arith.addf %283, %286 : vector<16x16x32xf32>
    %cst_221 = arith.constant 0.000000e+00 : f32
    %288 = vector.broadcast %cst_221 : f32 to vector<16x16x32xf32>
    %289 = arith.maximumf %287, %288 : vector<16x16x32xf32>
    %290 = tpu.concatenate %212, %289 in 2 : vector<16x16x32xf32>, vector<16x16x32xf32> -> vector<16x16x64xf32>
    %c0_222 = arith.constant 0 : index
    %c0_223 = arith.constant 0 : index
    %c0_224 = arith.constant 0 : index
    %c0_225 = arith.constant 0 : index
    %291 = vector.load %arg14[%c0_222, %c0_223, %c0_224, %c0_225] : memref<1x16x16x64xf32, #tpu.memory_space<vmem>>, vector<1x16x16x64xf32>
    %292 = vector.shape_cast %291 : vector<1x16x16x64xf32> to vector<16x16x64xf32>
    %293 = vector.shape_cast %290 : vector<16x16x64xf32> to vector<1x16x16x64xf32>
    tpu.vector_store %arg14[%c0_222, %c0_223, %c0_224, %c0_225], %293 {strides = array<i32>} : memref<1x16x16x64xf32, #tpu.memory_space<vmem>>, vector<1x16x16x64xf32>,
    return
  }
  func.func @transform_0(%arg0: i32) -> (i32, i32, i32, i32) {
    %c0_i32 = arith.constant 0 : i32
    %c0_i32_0 = arith.constant 0 : i32
    %c0_i32_1 = arith.constant 0 : i32
    %c0_i32_2 = arith.constant 0 : i32
    return %arg0, %c0_i32, %c0_i32_0, %c0_i32_1 : i32, i32, i32, i32
  }
  func.func @transform_1(%arg0: i32) -> (i32, i32, i32) {
    %c0_i32 = arith.constant 0 : i32
    %c0_i32_0 = arith.constant 0 : i32
    %c0_i32_1 = arith.constant 0 : i32
    %c0_i32_2 = arith.constant 0 : i32
    return %c0_i32, %c0_i32_0, %c0_i32_1 : i32, i32, i32
  }
  func.func @transform_2(%arg0: i32) -> (i32, i32) {
    %c0_i32 = arith.constant 0 : i32
    %c0_i32_0 = arith.constant 0 : i32
    %c0_i32_1 = arith.constant 0 : i32
    return %c0_i32, %c0_i32_0 : i32, i32
  }
  func.func @transform_3(%arg0: i32) -> (i32, i32) {
    %c0_i32 = arith.constant 0 : i32
    %c0_i32_0 = arith.constant 0 : i32
    %c0_i32_1 = arith.constant 0 : i32
    return %c0_i32, %c0_i32_0 : i32, i32
  }
  func.func @transform_4(%arg0: i32) -> (i32, i32, i32) {
    %c0_i32 = arith.constant 0 : i32
    %c0_i32_0 = arith.constant 0 : i32
    %c0_i32_1 = arith.constant 0 : i32
    %c0_i32_2 = arith.constant 0 : i32
    return %c0_i32, %c0_i32_0, %c0_i32_1 : i32, i32, i32
  }
  func.func @transform_5(%arg0: i32) -> (i32, i32) {
    %c0_i32 = arith.constant 0 : i32
    %c0_i32_0 = arith.constant 0 : i32
    %c0_i32_1 = arith.constant 0 : i32
    return %c0_i32, %c0_i32_0 : i32, i32
  }
  func.func @transform_6(%arg0: i32) -> (i32, i32) {
    %c0_i32 = arith.constant 0 : i32
    %c0_i32_0 = arith.constant 0 : i32
    %c0_i32_1 = arith.constant 0 : i32
    return %c0_i32, %c0_i32_0 : i32, i32
  }
  func.func @transform_7(%arg0: i32) -> (i32, i32, i32) {
    %c0_i32 = arith.constant 0 : i32
    %c0_i32_0 = arith.constant 0 : i32
    %c0_i32_1 = arith.constant 0 : i32
    %c0_i32_2 = arith.constant 0 : i32
    return %c0_i32, %c0_i32_0, %c0_i32_1 : i32, i32, i32
  }
  func.func @transform_8(%arg0: i32) -> (i32, i32) {
    %c0_i32 = arith.constant 0 : i32
    %c0_i32_0 = arith.constant 0 : i32
    %c0_i32_1 = arith.constant 0 : i32
    return %c0_i32, %c0_i32_0 : i32, i32
  }
  func.func @transform_9(%arg0: i32) -> (i32, i32) {
    %c0_i32 = arith.constant 0 : i32
    %c0_i32_0 = arith.constant 0 : i32
    %c0_i32_1 = arith.constant 0 : i32
    return %c0_i32, %c0_i32_0 : i32, i32
  }
  func.func @transform_10(%arg0: i32) -> (i32, i32, i32) {
    %c0_i32 = arith.constant 0 : i32
    %c0_i32_0 = arith.constant 0 : i32
    %c0_i32_1 = arith.constant 0 : i32
    %c0_i32_2 = arith.constant 0 : i32
    return %c0_i32, %c0_i32_0, %c0_i32_1 : i32, i32, i32
  }
  func.func @transform_11(%arg0: i32) -> (i32, i32) {
    %c0_i32 = arith.constant 0 : i32
    %c0_i32_0 = arith.constant 0 : i32
    %c0_i32_1 = arith.constant 0 : i32
    return %c0_i32, %c0_i32_0 : i32, i32
  }
  func.func @transform_12(%arg0: i32) -> (i32, i32) {
    %c0_i32 = arith.constant 0 : i32
    %c0_i32_0 = arith.constant 0 : i32
    %c0_i32_1 = arith.constant 0 : i32
    return %c0_i32, %c0_i32_0 : i32, i32
  }
  func.func @transform_13(%arg0: i32) -> (i32, i32, i32, i32) {
    %c0_i32 = arith.constant 0 : i32
    %c0_i32_0 = arith.constant 0 : i32
    %c0_i32_1 = arith.constant 0 : i32
    %c0_i32_2 = arith.constant 0 : i32
    return %arg0, %c0_i32, %c0_i32_0, %c0_i32_1 : i32, i32, i32, i32
  }
}

</mosaic_0001>

<llo_original>
// kernel: double_conv.1
$region0: #{double_conv.1}
  #allocation0 [shape = 'u32[]', space=smem, size = 0x4, offset = 0x4, fixed_abs, tag = 'smem constant byte address 0x4 - core index']
  #allocation1 [shape = 'u32[72,128]{1,0:T(1,128)}', space=vmem, size = 0x9000, scoped, tag = 'internal scratch']
  #allocation2 [shape = 'f32[18,18,32]{2,1,0:T(8,128)}', space=vmem, size = 0x36000, scoped, tag = 'scratch operand']
  #allocation3 [shape = 'f32[18,18,64]{2,1,0:T(8,128)}', space=vmem, size = 0x36000, scoped, tag = 'scratch operand']
  #allocation4 [shape = 'f32[18,18,32]{2,1,0:T(8,128)}', space=vmem, size = 0x36000, scoped, tag = 'scratch operand']
  %s0 = inlined_call_operand.vmem [shape: bf16[2,18,18,4], index: 0, kind: input, shape index: {}]
  %s1 = inlined_call_operand.vmem [shape: bf16[9,4,32], index: 1, kind: input, shape index: {}]
  %s2 = inlined_call_operand.vmem [shape: f32[1,32], index: 2, kind: input, shape index: {}]
  %s3 = inlined_call_operand.vmem [shape: f32[1,32], index: 3, kind: input, shape index: {}]
  %s4 = inlined_call_operand.vmem [shape: f32[9,1,32], index: 4, kind: input, shape index: {}]
  %s5 = inlined_call_operand.vmem [shape: f32[1,32], index: 5, kind: input, shape index: {}]
  %s6 = inlined_call_operand.vmem [shape: f32[1,32], index: 6, kind: input, shape index: {}]
  %s7 = inlined_call_operand.vmem [shape: bf16[9,64,32], index: 7, kind: input, shape index: {}]
  %s8 = inlined_call_operand.vmem [shape: f32[1,32], index: 8, kind: input, shape index: {}]
  %s9 = inlined_call_operand.vmem [shape: f32[1,32], index: 9, kind: input, shape index: {}]
  %s10 = inlined_call_operand.vmem [shape: f32[9,1,32], index: 10, kind: input, shape index: {}]
  %s11 = inlined_call_operand.vmem [shape: f32[1,32], index: 11, kind: input, shape index: {}]
  %s12 = inlined_call_operand.vmem [shape: f32[1,32], index: 12, kind: input, shape index: {}]
  %s13 = inlined_call_operand.hbm [shape: f32[2,16,16,64], index: 13, kind: output, shape index: {}]
  %s14 = sld [smem:[#allocation0]]
  $region85: #{double_conv.1} parent=0
    _
  %s16 = ssub.s32 1, %s14
  %s17 = scalar_select 0, %s16, %s14
  $region1: #{double_conv.1} parent=0
    #allocation5 [shape = 'u8[262144]{0}', space=vmem, size = 0x40000, scoped, tag = 'output window, operand 0']
    #allocation6 [shape = 's32[2]{0}', space=sflag, size = 0x8, scoped, tag = 'scoped memory for double_conv.1']
    %18 = vsyncpa [#allocation6], 0
    %s19 = scalar_lea.sflag [#allocation6], 1
    %20 = vsyncpa %s19, 0
    loop: start=0, step=1, limit=4
    $region2: #{double_conv.1} parent=1 // loop_pre_header
      _
    $region3: #{double_conv.1} parent=1 // loop_header
      %s22 = sphi 0, %s26
      %p23 = scmp.ge.s32.totalorder %s22, 4
      %s32 = sphi 0, %s34
      %s35 = sphi 0, %s32
      %s36 = sphi 0, %s35
      %s52 = sphi 0, %s36
      %s56 = sphi 0, %s56
      %s58 = sphi 0, %s56
      %s59 = sphi 0, %s58
      %s73 = sphi 0, %s59
      %s77 = sphi 0, %s77
      %s79 = sphi 0, %s77
      %s80 = sphi 0, %s79
      %s94 = sphi 0, %s80
      %s98 = sphi 0, %s98
      %s100 = sphi 0, %s98
      %s101 = sphi 0, %s100
      %s115 = sphi 0, %s101
      %s119 = sphi 0, %s119
      %s121 = sphi 0, %s119
      %s122 = sphi 0, %s121
      %s136 = sphi 0, %s122
      %s140 = sphi 0, %s140
      %s142 = sphi 0, %s140
      %s143 = sphi 0, %s142
      %s157 = sphi 0, %s143
      %s161 = sphi 0, %s161
      %s163 = sphi 0, %s161
      %s164 = sphi 0, %s163
      %s178 = sphi 0, %s164
      %s182 = sphi 0, %s182
      %s184 = sphi 0, %s182
      %s185 = sphi 0, %s184
      %s199 = sphi 0, %s185
      %s203 = sphi 0, %s203
      %s205 = sphi 0, %s203
      %s206 = sphi 0, %s205
      %s220 = sphi 0, %s206
      %s224 = sphi 0, %s224
      %s226 = sphi 0, %s224
      %s227 = sphi 0, %s226
      %s241 = sphi 0, %s227
      %s245 = sphi 0, %s245
      %s247 = sphi 0, %s245
      %s248 = sphi 0, %s247
      %s262 = sphi 0, %s248
      %s266 = sphi 0, %s266
      %s268 = sphi 0, %s266
      %s269 = sphi 0, %s268
      %s283 = sphi 0, %s269
      %s287 = sphi 0, %s287
      %s289 = sphi 0, %s287
      %s290 = sphi 0, %s289
      %s304 = sphi 0, %s290
      %s310 = sphi 0, %s312
      %s313 = sphi 0, %s310
      %s314 = sphi 0, %s313
      %s330 = sphi 0, %s314
    $region4: #{double_conv.1} parent=1 // loop_header_branch
      %25 = sbr.rel (%p23) target = $region8
    $region5: #{double_conv.1} parent=1 // loop_body
      %s27 = ssub.s32 %s22, 1
      %s28 = ssub.s32 %s22, 2
      %s29 = sadd.s32 %s22, 1
      %s30 = ssub.s32 %s22, %s29
      %p31 = scmp.eq.s32.totalorder %s30, 0
      %s33 = sadd.s32 %s32, 1
      %s34 = scalar_select %p31, %s32, %s33
      %p37 = pneg %p31
      %p38 = scmp.eq.s32.totalorder %s22, 1
      %p39 = por %p37, %p38
      %p40 = scmp.ne.s32.totalorder %s32, %s35
      %p41 = scmp.eq.s32.totalorder %s22, 0
      %p42 = por %p40, %p41
      %p43 = scmp.ne.s32.totalorder %s32, %s35
      %p44 = scmp.eq.s32.totalorder %s27, 1
      %p45 = por %p43, %p44
      %p46 = scmp.ne.s32.totalorder %s35, %s36
      %p47 = scmp.eq.s32.totalorder %s27, 0
      %p48 = por %p46, %p47
      %p49 = scmp.ne.s32.totalorder %s35, %s36
      %p50 = scmp.eq.s32.totalorder %s28, 1
      %p51 = por %p49, %p50
      %p53 = scmp.ne.s32.totalorder %s36, %s52
      %p54 = scmp.eq.s32.totalorder %s28, 0
      %p55 = por %p53, %p54
      %s57 = sadd.s32 %s56, 1
      %p60 = scmp.eq.s32.totalorder %s22, 1
      %p61 = scmp.ne.s32.totalorder %s56, %s58
      %p62 = scmp.eq.s32.totalorder %s22, 0
      %p63 = por %p61, %p62
      %p64 = scmp.ne.s32.totalorder %s56, %s58
      %p65 = scmp.eq.s32.totalorder %s27, 1
      %p66 = por %p64, %p65
      %p67 = scmp.ne.s32.totalorder %s58, %s59
      %p68 = scmp.eq.s32.totalorder %s27, 0
      %p69 = por %p67, %p68
      %p70 = scmp.ne.s32.totalorder %s58, %s59
      %p71 = scmp.eq.s32.totalorder %s28, 1
      %p72 = por %p70, %p71
      %p74 = scmp.ne.s32.totalorder %s59, %s73
      %p75 = scmp.eq.s32.totalorder %s28, 0
      %p76 = por %p74, %p75
      %s78 = sadd.s32 %s77, 1
      %p81 = scmp.eq.s32.totalorder %s22, 1
      %p82 = scmp.ne.s32.totalorder %s77, %s79
      %p83 = scmp.eq.s32.totalorder %s22, 0
      %p84 = por %p82, %p83
      %p85 = scmp.ne.s32.totalorder %s77, %s79
      %p86 = scmp.eq.s32.totalorder %s27, 1
      %p87 = por %p85, %p86
      %p88 = scmp.ne.s32.totalorder %s79, %s80
      %p89 = scmp.eq.s32.totalorder %s27, 0
      %p90 = por %p88, %p89
      %p91 = scmp.ne.s32.totalorder %s79, %s80
      %p92 = scmp.eq.s32.totalorder %s28, 1
      %p93 = por %p91, %p92
      %p95 = scmp.ne.s32.totalorder %s80, %s94
      %p96 = scmp.eq.s32.totalorder %s28, 0
      %p97 = por %p95, %p96
      %s99 = sadd.s32 %s98, 1
      %p102 = scmp.eq.s32.totalorder %s22, 1
      %p103 = scmp.ne.s32.totalorder %s98, %s100
      %p104 = scmp.eq.s32.totalorder %s22, 0
      %p105 = por %p103, %p104
      %p106 = scmp.ne.s32.totalorder %s98, %s100
      %p107 = scmp.eq.s32.totalorder %s27, 1
      %p108 = por %p106, %p107
      %p109 = scmp.ne.s32.totalorder %s100, %s101
      %p110 = scmp.eq.s32.totalorder %s27, 0
      %p111 = por %p109, %p110
      %p112 = scmp.ne.s32.totalorder %s100, %s101
      %p113 = scmp.eq.s32.totalorder %s28, 1
      %p114 = por %p112, %p113
      %p116 = scmp.ne.s32.totalorder %s101, %s115
      %p117 = scmp.eq.s32.totalorder %s28, 0
      %p118 = por %p116, %p117
      %s120 = sadd.s32 %s119, 1
      %p123 = scmp.eq.s32.totalorder %s22, 1
      %p124 = scmp.ne.s32.totalorder %s119, %s121
      %p125 = scmp.eq.s32.totalorder %s22, 0
      %p126 = por %p124, %p125
      %p127 = scmp.ne.s32.totalorder %s119, %s121
      %p128 = scmp.eq.s32.totalorder %s27, 1
      %p129 = por %p127, %p128
      %p130 = scmp.ne.s32.totalorder %s121, %s122
      %p131 = scmp.eq.s32.totalorder %s27, 0
      %p132 = por %p130, %p131
      %p133 = scmp.ne.s32.totalorder %s121, %s122
      %p134 = scmp.eq.s32.totalorder %s28, 1
      %p135 = por %p133, %p134
      %p137 = scmp.ne.s32.totalorder %s122, %s136
      %p138 = scmp.eq.s32.totalorder %s28, 0
      %p139 = por %p137, %p138
      %s141 = sadd.s32 %s140, 1
      %p144 = scmp.eq.s32.totalorder %s22, 1
      %p145 = scmp.ne.s32.totalorder %s140, %s142
      %p146 = scmp.eq.s32.totalorder %s22, 0
      %p147 = por %p145, %p146
      %p148 = scmp.ne.s32.totalorder %s140, %s142
      %p149 = scmp.eq.s32.totalorder %s27, 1
      %p150 = por %p148, %p149
      %p151 = scmp.ne.s32.totalorder %s142, %s143
      %p152 = scmp.eq.s32.totalorder %s27, 0
      %p153 = por %p151, %p152
      %p154 = scmp.ne.s32.totalorder %s142, %s143
      %p155 = scmp.eq.s32.totalorder %s28, 1
      %p156 = por %p154, %p155
      %p158 = scmp.ne.s32.totalorder %s143, %s157
      %p159 = scmp.eq.s32.totalorder %s28, 0
      %p160 = por %p158, %p159
      %s162 = sadd.s32 %s161, 1
      %p165 = scmp.eq.s32.totalorder %s22, 1
      %p166 = scmp.ne.s32.totalorder %s161, %s163
      %p167 = scmp.eq.s32.totalorder %s22, 0
      %p168 = por %p166, %p167
      %p169 = scmp.ne.s32.totalorder %s161, %s163
      %p170 = scmp.eq.s32.totalorder %s27, 1
      %p171 = por %p169, %p170
      %p172 = scmp.ne.s32.totalorder %s163, %s164
      %p173 = scmp.eq.s32.totalorder %s27, 0
      %p174 = por %p172, %p173
      %p175 = scmp.ne.s32.totalorder %s163, %s164
      %p176 = scmp.eq.s32.totalorder %s28, 1
      %p177 = por %p175, %p176
      %p179 = scmp.ne.s32.totalorder %s164, %s178
      %p180 = scmp.eq.s32.totalorder %s28, 0
      %p181 = por %p179, %p180
      %s183 = sadd.s32 %s182, 1
      %p186 = scmp.eq.s32.totalorder %s22, 1
      %p187 = scmp.ne.s32.totalorder %s182, %s184
      %p188 = scmp.eq.s32.totalorder %s22, 0
      %p189 = por %p187, %p188
      %p190 = scmp.ne.s32.totalorder %s182, %s184
      %p191 = scmp.eq.s32.totalorder %s27, 1
      %p192 = por %p190, %p191
      %p193 = scmp.ne.s32.totalorder %s184, %s185
      %p194 = scmp.eq.s32.totalorder %s27, 0
      %p195 = por %p193, %p194
      %p196 = scmp.ne.s32.totalorder %s184, %s185
      %p197 = scmp.eq.s32.totalorder %s28, 1
      %p198 = por %p196, %p197
      %p200 = scmp.ne.s32.totalorder %s185, %s199
      %p201 = scmp.eq.s32.totalorder %s28, 0
      %p202 = por %p200, %p201
      %s204 = sadd.s32 %s203, 1
      %p207 = scmp.eq.s32.totalorder %s22, 1
      %p208 = scmp.ne.s32.totalorder %s203, %s205
      %p209 = scmp.eq.s32.totalorder %s22, 0
      %p210 = por %p208, %p209
      %p211 = scmp.ne.s32.totalorder %s203, %s205
      %p212 = scmp.eq.s32.totalorder %s27, 1
      %p213 = por %p211, %p212
      %p214 = scmp.ne.s32.totalorder %s205, %s206
      %p215 = scmp.eq.s32.totalorder %s27, 0
      %p216 = por %p214, %p215
      %p217 = scmp.ne.s32.totalorder %s205, %s206
      %p218 = scmp.eq.s32.totalorder %s28, 1
      %p219 = por %p217, %p218
      %p221 = scmp.ne.s32.totalorder %s206, %s220
      %p222 = scmp.eq.s32.totalorder %s28, 0
      %p223 = por %p221, %p222
      %s225 = sadd.s32 %s224, 1
      %p228 = scmp.eq.s32.totalorder %s22, 1
      %p229 = scmp.ne.s32.totalorder %s224, %s226
      %p230 = scmp.eq.s32.totalorder %s22, 0
      %p231 = por %p229, %p230
      %p232 = scmp.ne.s32.totalorder %s224, %s226
      %p233 = scmp.eq.s32.totalorder %s27, 1
      %p234 = por %p232, %p233
      %p235 = scmp.ne.s32.totalorder %s226, %s227
      %p236 = scmp.eq.s32.totalorder %s27, 0
      %p237 = por %p235, %p236
      %p238 = scmp.ne.s32.totalorder %s226, %s227
      %p239 = scmp.eq.s32.totalorder %s28, 1
      %p240 = por %p238, %p239
      %p242 = scmp.ne.s32.totalorder %s227, %s241
      %p243 = scmp.eq.s32.totalorder %s28, 0
      %p244 = por %p242, %p243
      %s246 = sadd.s32 %s245, 1
      %p249 = scmp.eq.s32.totalorder %s22, 1
      %p250 = scmp.ne.s32.totalorder %s245, %s247
      %p251 = scmp.eq.s32.totalorder %s22, 0
      %p252 = por %p250, %p251
      %p253 = scmp.ne.s32.totalorder %s245, %s247
      %p254 = scmp.eq.s32.totalorder %s27, 1
      %p255 = por %p253, %p254
      %p256 = scmp.ne.s32.totalorder %s247, %s248
      %p257 = scmp.eq.s32.totalorder %s27, 0
      %p258 = por %p256, %p257
      %p259 = scmp.ne.s32.totalorder %s247, %s248
      %p260 = scmp.eq.s32.totalorder %s28, 1
      %p261 = por %p259, %p260
      %p263 = scmp.ne.s32.totalorder %s248, %s262
      %p264 = scmp.eq.s32.totalorder %s28, 0
      %p265 = por %p263, %p264
      %s267 = sadd.s32 %s266, 1
      %p270 = scmp.eq.s32.totalorder %s22, 1
      %p271 = scmp.ne.s32.totalorder %s266, %s268
      %p272 = scmp.eq.s32.totalorder %s22, 0
      %p273 = por %p271, %p272
      %p274 = scmp.ne.s32.totalorder %s266, %s268
      %p275 = scmp.eq.s32.totalorder %s27, 1
      %p276 = por %p274, %p275
      %p277 = scmp.ne.s32.totalorder %s268, %s269
      %p278 = scmp.eq.s32.totalorder %s27, 0
      %p279 = por %p277, %p278
      %p280 = scmp.ne.s32.totalorder %s268, %s269
      %p281 = scmp.eq.s32.totalorder %s28, 1
      %p282 = por %p280, %p281
      %p284 = scmp.ne.s32.totalorder %s269, %s283
      %p285 = scmp.eq.s32.totalorder %s28, 0
      %p286 = por %p284, %p285
      %s288 = sadd.s32 %s287, 1
      %p291 = scmp.eq.s32.totalorder %s22, 1
      %p292 = scmp.ne.s32.totalorder %s287, %s289
      %p293 = scmp.eq.s32.totalorder %s22, 0
      %p294 = por %p292, %p293
      %p295 = scmp.ne.s32.totalorder %s287, %s289
      %p296 = scmp.eq.s32.totalorder %s27, 1
      %p297 = por %p295, %p296
      %p298 = scmp.ne.s32.totalorder %s289, %s290
      %p299 = scmp.eq.s32.totalorder %s27, 0
      %p300 = por %p298, %p299
      %p301 = scmp.ne.s32.totalorder %s289, %s290
      %p302 = scmp.eq.s32.totalorder %s28, 1
      %p303 = por %p301, %p302
      %p305 = scmp.ne.s32.totalorder %s290, %s304
      %p306 = scmp.eq.s32.totalorder %s28, 0
      %p307 = por %p305, %p306
      %s308 = ssub.s32 %s22, %s29
      %p309 = scmp.eq.s32.totalorder %s308, 0
      %s311 = sadd.s32 %s310, 1
      %s312 = scalar_select %p309, %s310, %s311
      %p315 = pneg %p309
      %p316 = scmp.eq.s32.totalorder %s22, 1
      %p317 = por %p315, %p316
      %p318 = scmp.ne.s32.totalorder %s310, %s313
      %p319 = scmp.eq.s32.totalorder %s22, 0
      %p320 = por %p318, %p319
      %p321 = scmp.ne.s32.totalorder %s310, %s313
      %p322 = scmp.eq.s32.totalorder %s27, 1
      %p323 = por %p321, %p322
      %p324 = scmp.ne.s32.totalorder %s313, %s314
      %p325 = scmp.eq.s32.totalorder %s27, 0
      %p326 = por %p324, %p325
      %p327 = scmp.ne.s32.totalorder %s313, %s314
      %p328 = scmp.eq.s32.totalorder %s28, 1
      %p329 = por %p327, %p328
      %p331 = scmp.ne.s32.totalorder %s314, %s330
      %p332 = scmp.eq.s32.totalorder %s28, 0
      %p333 = por %p331, %p332
      %p334 = scmp.le.s32.totalorder 1, %s22
      %p335 = scmp.lt.s32.totalorder %s22, 3
      %p336 = pnand %p334, %p335
      %p337 = pneg %p336
      // Predicated region
      $region9: #{double_conv.1} parent=5 // pred_check
        _
      $region10: #{double_conv.1} parent=5 // pred_check_branch
        %339 = sbr.rel (%p336) target = $region12
      $region11: #{double_conv.1} parent=5 // pred_region
        %s340 = ssub.s32 %s22, 1
        // Predicated region
        $region13: #{double_conv.1} parent=11 // pred_check
          %p341 = pneg %p69
        $region14: #{double_conv.1} parent=11 // pred_check_branch
          %343 = sbr.rel (%p341) target = $region16
        $region15: #{double_conv.1} parent=11 // pred_region
          _
        $region16: #{double_conv.1} parent=11 // pred_fallthru
          _
        // Predicated region
        $region17: #{double_conv.1} parent=11 // pred_check
          %p344 = pneg %p90
        $region18: #{double_conv.1} parent=11 // pred_check_branch
          %346 = sbr.rel (%p344) target = $region20
        $region19: #{double_conv.1} parent=11 // pred_region
          _
        $region20: #{double_conv.1} parent=11 // pred_fallthru
          _
        // Predicated region
        $region21: #{double_conv.1} parent=11 // pred_check
          %p347 = pneg %p111
        $region22: #{double_conv.1} parent=11 // pred_check_branch
          %349 = sbr.rel (%p347) target = $region24
        $region23: #{double_conv.1} parent=11 // pred_region
          _
        $region24: #{double_conv.1} parent=11 // pred_fallthru
          _
        // Predicated region
        $region25: #{double_conv.1} parent=11 // pred_check
          %p350 = pneg %p132
        $region26: #{double_conv.1} parent=11 // pred_check_branch
          %352 = sbr.rel (%p350) target = $region28
        $region27: #{double_conv.1} parent=11 // pred_region
          _
        $region28: #{double_conv.1} parent=11 // pred_fallthru
          _
        // Predicated region
        $region29: #{double_conv.1} parent=11 // pred_check
          %p353 = pneg %p153
        $region30: #{double_conv.1} parent=11 // pred_check_branch
          %355 = sbr.rel (%p353) target = $region32
        $region31: #{double_conv.1} parent=11 // pred_region
          _
        $region32: #{double_conv.1} parent=11 // pred_fallthru
          _
        // Predicated region
        $region33: #{double_conv.1} parent=11 // pred_check
          %p356 = pneg %p174
        $region34: #{double_conv.1} parent=11 // pred_check_branch
          %358 = sbr.rel (%p356) target = $region36
        $region35: #{double_conv.1} parent=11 // pred_region
          _
        $region36: #{double_conv.1} parent=11 // pred_fallthru
          _
        // Predicated region
        $region37: #{double_conv.1} parent=11 // pred_check
          %p359 = pneg %p195
        $region38: #{double_conv.1} parent=11 // pred_check_branch
          %361 = sbr.rel (%p359) target = $region40
        $region39: #{double_conv.1} parent=11 // pred_region
          _
        $region40: #{double_conv.1} parent=11 // pred_fallthru
          _
        // Predicated region
        $region41: #{double_conv.1} parent=11 // pred_check
          %p362 = pneg %p216
        $region42: #{double_conv.1} parent=11 // pred_check_branch
          %364 = sbr.rel (%p362) target = $region44
        $region43: #{double_conv.1} parent=11 // pred_region
          _
        $region44: #{double_conv.1} parent=11 // pred_fallthru
          _
        // Predicated region
        $region45: #{double_conv.1} parent=11 // pred_check
          %p365 = pneg %p237
        $region46: #{double_conv.1} parent=11 // pred_check_branch
          %367 = sbr.rel (%p365) target = $region48
        $region47: #{double_conv.1} parent=11 // pred_region
          _
        $region48: #{double_conv.1} parent=11 // pred_fallthru
          _
        // Predicated region
        $region49: #{double_conv.1} parent=11 // pred_check
          %p368 = pneg %p258
        $region50: #{double_conv.1} parent=11 // pred_check_branch
          %370 = sbr.rel (%p368) target = $region52
        $region51: #{double_conv.1} parent=11 // pred_region
          _
        $region52: #{double_conv.1} parent=11 // pred_fallthru
          _
        // Predicated region
        $region53: #{double_conv.1} parent=11 // pred_check
          %p371 = pneg %p279
        $region54: #{double_conv.1} parent=11 // pred_check_branch
          %373 = sbr.rel (%p371) target = $region56
        $region55: #{double_conv.1} parent=11 // pred_region
          _
        $region56: #{double_conv.1} parent=11 // pred_fallthru
          _
        // Predicated region
        $region57: #{double_conv.1} parent=11 // pred_check
          %p374 = pneg %p300
        $region58: #{double_conv.1} parent=11 // pred_check_branch
          %376 = sbr.rel (%p374) target = $region60
        $region59: #{double_conv.1} parent=11 // pred_region
          _
        $region60: #{double_conv.1} parent=11 // pred_fallthru
          _
      $region12: #{double_conv.1} parent=5 // pred_fallthru
        _
      %p377 = scmp.lt.s32.totalorder %s22, 2
      // Predicated region
      $region61: #{double_conv.1} parent=5 // pred_check
        %p378 = pneg %p377
      $region62: #{double_conv.1} parent=5 // pred_check_branch
        %380 = sbr.rel (%p378) target = $region64
      $region63: #{double_conv.1} parent=5 // pred_region
        // Predicated region
        $region65: #{double_conv.1} parent=63 // pred_check
          %p381 = pneg %p42
        $region66: #{double_conv.1} parent=63 // pred_check_branch
          %383 = sbr.rel (%p381) target = $region68
        $region67: #{double_conv.1} parent=63 // pred_region
          %p384 = scmp.lt.s32.totalorder %s22, 1
          %s385 = scalar_select %p384, %s22, 1
          %s386 = smul.addr %s385, 54
          %s387 = smul.addr %s386, 4
          %s388 = scalar_lea.vmem %s0, %s387
        $region68: #{double_conv.1} parent=63 // pred_fallthru
          _
      $region64: #{double_conv.1} parent=5 // pred_fallthru
        _
      %p389 = scmp.le.s32.totalorder 1, %s22
      %p390 = scmp.lt.s32.totalorder %s22, 3
      %p391 = pnand %p389, %p390
      %p392 = pneg %p391
      // Predicated region
      $region69: #{double_conv.1} parent=5 // pred_check
        _
      $region70: #{double_conv.1} parent=5 // pred_check_branch
        %394 = sbr.rel (%p391) target = $region72
      $region71: #{double_conv.1} parent=5 // pred_region
        %s395 = ssub.s32 %s22, 1
        %p396 = scmp.lt.s32.totalorder %s27, 1
        %s397 = scalar_select %p396, %s27, 1
        %s398 = smul.addr %s397, 54
        %s399 = smul.addr %s398, 4
        %s400 = scalar_lea.vmem %s0, %s399
        %p401 = pneg %p48
        %p402 = pneg %p45
        %p403 = pneg %p69
        %p404 = pneg %p66
        %p405 = pneg %p90
        %p406 = pneg %p87
        %p407 = pneg %p111
        %p408 = pneg %p108
        %p409 = pneg %p132
        %p410 = pneg %p129
        %p411 = pneg %p153
        %p412 = pneg %p150
        %p413 = pneg %p174
        %p414 = pneg %p171
        %p415 = pneg %p195
        %p416 = pneg %p192
        %p417 = pneg %p216
        %p418 = pneg %p213
        %p419 = pneg %p237
        %p420 = pneg %p234
        %p421 = pneg %p258
        %p422 = pneg %p255
        %p423 = pneg %p279
        %p424 = pneg %p276
        %p425 = pneg %p300
        %p426 = pneg %p297
        %p427 = pneg %p326
        %p428 = pneg %p323
        %s429 = sand.u32 %s313, 1
        %s430 = scalar_lea.sflag [#allocation6], %s429
        %s431 = sand.u32 %s313, 1
        %s432 = smul.addr %s431, 256
        %s433 = scalar_lea.vmem [#allocation5], %s432
        %p434 = scmp.lt.s32.totalorder %s27, 1
        %s435 = scalar_select %p434, %s27, 1
        %s436 = smul.addr %s435, 54
        %s437 = smul.addr %s436, 4
        %s438 = scalar_lea.vmem %s0, %s437
        %v440 = vld [vmem:[%s438] sm:$0xf]
        %v441 = vld [vmem:[%s438 + $0x4] sm:$0xf]
        %v442 = vld [vmem:[%s438 + $0x8] sm:$0x1]
        %v443 = vld [vmem:[%s438 + $0xc] sm:$0xf]
        %v444 = vld [vmem:[%s438 + $0x10] sm:$0xf]
        %v445 = vld [vmem:[%s438 + $0x14] sm:$0x1]
        %v446 = vld [vmem:[%s438 + $0x18] sm:$0xf]
        %v447 = vld [vmem:[%s438 + $0x1c] sm:$0xf]
        %v448 = vld [vmem:[%s438 + $0x20] sm:$0x1]
        %v449 = vld [vmem:[%s438 + $0x24] sm:$0xf]
        %v450 = vld [vmem:[%s438 + $0x28] sm:$0xf]
        %v451 = vld [vmem:[%s438 + $0x2c] sm:$0x1]
        %v452 = vld [vmem:[%s438 + $0x30] sm:$0xf]
        %v453 = vld [vmem:[%s438 + $0x34] sm:$0xf]
        %v454 = vld [vmem:[%s438 + $0x38] sm:$0x1]
        %v455 = vld [vmem:[%s438 + $0x3c] sm:$0xf]
        %v456 = vld [vmem:[%s438 + $0x40] sm:$0xf]
        %v457 = vld [vmem:[%s438 + $0x44] sm:$0x1]
        %v458 = vld [vmem:[%s438 + $0x48] sm:$0xf]
        %v459 = vld [vmem:[%s438 + $0x4c] sm:$0xf]
        %v460 = vld [vmem:[%s438 + $0x50] sm:$0x1]
        %v461 = vld [vmem:[%s438 + $0x54] sm:$0xf]
        %v462 = vld [vmem:[%s438 + $0x58] sm:$0xf]
        %v463 = vld [vmem:[%s438 + $0x5c] sm:$0x1]
        %v464 = vld [vmem:[%s438 + $0x60] sm:$0xf]
        %v465 = vld [vmem:[%s438 + $0x64] sm:$0xf]
        %v466 = vld [vmem:[%s438 + $0x68] sm:$0x1]
        %v467 = vld [vmem:[%s438 + $0x6c] sm:$0xf]
        %v468 = vld [vmem:[%s438 + $0x70] sm:$0xf]
        %v469 = vld [vmem:[%s438 + $0x74] sm:$0x1]
        %v470 = vld [vmem:[%s438 + $0x78] sm:$0xf]
        %v471 = vld [vmem:[%s438 + $0x7c] sm:$0xf]
        %v472 = vld [vmem:[%s438 + $0x80] sm:$0x1]
        %v473 = vld [vmem:[%s438 + $0x84] sm:$0xf]
        %v474 = vld [vmem:[%s438 + $0x88] sm:$0xf]
        %v475 = vld [vmem:[%s438 + $0x8c] sm:$0x1]
        %v476 = vld [vmem:[%s438 + $0x90] sm:$0xf]
        %v477 = vld [vmem:[%s438 + $0x94] sm:$0xf]
        %v478 = vld [vmem:[%s438 + $0x98] sm:$0x1]
        %v479 = vld [vmem:[%s438 + $0x9c] sm:$0xf]
        %v480 = vld [vmem:[%s438 + $0xa0] sm:$0xf]
        %v481 = vld [vmem:[%s438 + $0xa4] sm:$0x1]
        %v482 = vld [vmem:[%s438 + $0xa8] sm:$0xf]
        %v483 = vld [vmem:[%s438 + $0xac] sm:$0xf]
        %v484 = vld [vmem:[%s438 + $0xb0] sm:$0x1]
        %v485 = vld [vmem:[%s438 + $0xb4] sm:$0xf]
        %v486 = vld [vmem:[%s438 + $0xb8] sm:$0xf]
        %v487 = vld [vmem:[%s438 + $0xbc] sm:$0x1]
        %v488 = vld [vmem:[%s438 + $0xc0] sm:$0xf]
        %v489 = vld [vmem:[%s438 + $0xc4] sm:$0xf]
        %v490 = vld [vmem:[%s438 + $0xc8] sm:$0x1]
        %v491 = vld [vmem:[%s438 + $0xcc] sm:$0xf]
        %v492 = vld [vmem:[%s438 + $0xd0] sm:$0xf]
        %v493 = vld [vmem:[%s438 + $0xd4] sm:$0x1]
        %v494 = vld [vmem:[%s1] sm:$0x3]
        %vm495 = vsmask.f32 3328
        %vm496 = vsmask.f32 7440
        %vm497 = vmor %vm495, %vm496
        %v499 = vshrl.u32 %v440, 16
        %v501 = vrot.slane %v499, 4
        %v502 = vshll.u32 %v440, 16
        %v504 = vrot.slane %v502, 5
        %v505 = vor.u32 %v501, %v504
        %v506 = vrot.slane %v505, 4
        %v508 = vshll.u32 %v441, 16
        %v510 = vrot.slane %v508, 5
        %v511 = vsel %vm497, %v506, %v510
        %v512 = vshrl.u32 %v441, 16
        %v514 = vrot.slane %v512, 4
        %v515 = vor.u32 %v514, %v510
        %v516 = vrot.slane %v515, 4
        %v518 = vshll.u32 %v442, 16
        %v520 = vrot.slane %v518, 5
        %v521 = vsel %vm497, %v516, %v520
        %v523 = vshrl.u32 %v443, 16
        %v525 = vrot.slane %v523, 4
        %v526 = vshll.u32 %v443, 16
        %v528 = vrot.slane %v526, 5
        %v529 = vor.u32 %v525, %v528
        %v530 = vrot.slane %v529, 4
        %v532 = vshll.u32 %v444, 16
        %v534 = vrot.slane %v532, 5
        %v535 = vsel %vm497, %v530, %v534
        %v536 = vshrl.u32 %v444, 16
        %v538 = vrot.slane %v536, 4
        %v539 = vor.u32 %v538, %v534
        %v540 = vrot.slane %v539, 4
        %v542 = vshll.u32 %v445, 16
        %v544 = vrot.slane %v542, 5
        %v545 = vsel %vm497, %v540, %v544
        %v547 = vshrl.u32 %v446, 16
        %v549 = vrot.slane %v547, 4
        %v550 = vshll.u32 %v446, 16
        %v552 = vrot.slane %v550, 5
        %v553 = vor.u32 %v549, %v552
        %v554 = vrot.slane %v553, 4
        %v556 = vshll.u32 %v447, 16
        %v558 = vrot.slane %v556, 5
        %v559 = vsel %vm497, %v554, %v558
        %v560 = vshrl.u32 %v447, 16
        %v562 = vrot.slane %v560, 4
        %v563 = vor.u32 %v562, %v558
        %v564 = vrot.slane %v563, 4
        %v566 = vshll.u32 %v448, 16
        %v568 = vrot.slane %v566, 5
        %v569 = vsel %vm497, %v564, %v568
        %v571 = vshrl.u32 %v449, 16
        %v573 = vrot.slane %v571, 4
        %v574 = vshll.u32 %v449, 16
        %v576 = vrot.slane %v574, 5
        %v577 = vor.u32 %v573, %v576
        %v578 = vrot.slane %v577, 4
        %v580 = vshll.u32 %v450, 16
        %v582 = vrot.slane %v580, 5
        %v583 = vsel %vm497, %v578, %v582
        %v584 = vshrl.u32 %v450, 16
        %v586 = vrot.slane %v584, 4
        %v587 = vor.u32 %v586, %v582
        %v588 = vrot.slane %v587, 4
        %v590 = vshll.u32 %v451, 16
        %v592 = vrot.slane %v590, 5
        %v593 = vsel %vm497, %v588, %v592
        %v595 = vshrl.u32 %v452, 16
        %v597 = vrot.slane %v595, 4
        %v598 = vshll.u32 %v452, 16
        %v600 = vrot.slane %v598, 5
        %v601 = vor.u32 %v597, %v600
        %v602 = vrot.slane %v601, 4
        %v604 = vshll.u32 %v453, 16
        %v606 = vrot.slane %v604, 5
        %v607 = vsel %vm497, %v602, %v606
        %v608 = vshrl.u32 %v453, 16
        %v610 = vrot.slane %v608, 4
        %v611 = vor.u32 %v610, %v606
        %v612 = vrot.slane %v611, 4
        %v614 = vshll.u32 %v454, 16
        %v616 = vrot.slane %v614, 5
        %v617 = vsel %vm497, %v612, %v616
        %v619 = vshrl.u32 %v455, 16
        %v621 = vrot.slane %v619, 4
        %v622 = vshll.u32 %v455, 16
        %v624 = vrot.slane %v622, 5
        %v625 = vor.u32 %v621, %v624
        %v626 = vrot.slane %v625, 4
        %v628 = vshll.u32 %v456, 16
        %v630 = vrot.slane %v628, 5
        %v631 = vsel %vm497, %v626, %v630
        %v632 = vshrl.u32 %v456, 16
        %v634 = vrot.slane %v632, 4
        %v635 = vor.u32 %v634, %v630
        %v636 = vrot.slane %v635, 4
        %v638 = vshll.u32 %v457, 16
        %v640 = vrot.slane %v638, 5
        %v641 = vsel %vm497, %v636, %v640
        %v643 = vshrl.u32 %v458, 16
        %v645 = vrot.slane %v643, 4
        %v646 = vshll.u32 %v458, 16
        %v648 = vrot.slane %v646, 5
        %v649 = vor.u32 %v645, %v648
        %v650 = vrot.slane %v649, 4
        %v652 = vshll.u32 %v459, 16
        %v654 = vrot.slane %v652, 5
        %v655 = vsel %vm497, %v650, %v654
        %v656 = vshrl.u32 %v459, 16
        %v658 = vrot.slane %v656, 4
        %v659 = vor.u32 %v658, %v654
        %v660 = vrot.slane %v659, 4
        %v662 = vshll.u32 %v460, 16
        %v664 = vrot.slane %v662, 5
        %v665 = vsel %vm497, %v660, %v664
        %v667 = vshrl.u32 %v461, 16
        %v669 = vrot.slane %v667, 4
        %v670 = vshll.u32 %v461, 16
        %v672 = vrot.slane %v670, 5
        %v673 = vor.u32 %v669, %v672
        %v674 = vrot.slane %v673, 4
        %v676 = vshll.u32 %v462, 16
        %v678 = vrot.slane %v676, 5
        %v679 = vsel %vm497, %v674, %v678
        %v680 = vshrl.u32 %v462, 16
        %v682 = vrot.slane %v680, 4
        %v683 = vor.u32 %v682, %v678
        %v684 = vrot.slane %v683, 4
        %v686 = vshll.u32 %v463, 16
        %v688 = vrot.slane %v686, 5
        %v689 = vsel %vm497, %v684, %v688
        %v691 = vshrl.u32 %v464, 16
        %v693 = vrot.slane %v691, 4
        %v694 = vshll.u32 %v464, 16
        %v696 = vrot.slane %v694, 5
        %v697 = vor.u32 %v693, %v696
        %v698 = vrot.slane %v697, 4
        %v700 = vshll.u32 %v465, 16
        %v702 = vrot.slane %v700, 5
        %v703 = vsel %vm497, %v698, %v702
        %v704 = vshrl.u32 %v465, 16
        %v706 = vrot.slane %v704, 4
        %v707 = vor.u32 %v706, %v702
        %v708 = vrot.slane %v707, 4
        %v710 = vshll.u32 %v466, 16
        %v712 = vrot.slane %v710, 5
        %v713 = vsel %vm497, %v708, %v712
        %v715 = vshrl.u32 %v467, 16
        %v717 = vrot.slane %v715, 4
        %v718 = vshll.u32 %v467, 16
        %v720 = vrot.slane %v718, 5
        %v721 = vor.u32 %v717, %v720
        %v722 = vrot.slane %v721, 4
        %v724 = vshll.u32 %v468, 16
        %v726 = vrot.slane %v724, 5
        %v727 = vsel %vm497, %v722, %v726
        %v728 = vshrl.u32 %v468, 16
        %v730 = vrot.slane %v728, 4
        %v731 = vor.u32 %v730, %v726
        %v732 = vrot.slane %v731, 4
        %v734 = vshll.u32 %v469, 16
        %v736 = vrot.slane %v734, 5
        %v737 = vsel %vm497, %v732, %v736
        %v739 = vshrl.u32 %v470, 16
        %v741 = vrot.slane %v739, 4
        %v742 = vshll.u32 %v470, 16
        %v744 = vrot.slane %v742, 5
        %v745 = vor.u32 %v741, %v744
        %v746 = vrot.slane %v745, 4
        %v748 = vshll.u32 %v471, 16
        %v750 = vrot.slane %v748, 5
        %v751 = vsel %vm497, %v746, %v750
        %v752 = vshrl.u32 %v471, 16
        %v754 = vrot.slane %v752, 4
        %v755 = vor.u32 %v754, %v750
        %v756 = vrot.slane %v755, 4
        %v758 = vshll.u32 %v472, 16
        %v760 = vrot.slane %v758, 5
        %v761 = vsel %vm497, %v756, %v760
        %v763 = vshrl.u32 %v473, 16
        %v765 = vrot.slane %v763, 4
        %v766 = vshll.u32 %v473, 16
        %v768 = vrot.slane %v766, 5
        %v769 = vor.u32 %v765, %v768
        %v770 = vrot.slane %v769, 4
        %v772 = vshll.u32 %v474, 16
        %v774 = vrot.slane %v772, 5
        %v775 = vsel %vm497, %v770, %v774
        %v776 = vshrl.u32 %v474, 16
        %v778 = vrot.slane %v776, 4
        %v779 = vor.u32 %v778, %v774
        %v780 = vrot.slane %v779, 4
        %v782 = vshll.u32 %v475, 16
        %v784 = vrot.slane %v782, 5
        %v785 = vsel %vm497, %v780, %v784
        %v787 = vshrl.u32 %v476, 16
        %v789 = vrot.slane %v787, 4
        %v790 = vshll.u32 %v476, 16
        %v792 = vrot.slane %v790, 5
        %v793 = vor.u32 %v789, %v792
        %v794 = vrot.slane %v793, 4
        %v796 = vshll.u32 %v477, 16
        %v798 = vrot.slane %v796, 5
        %v799 = vsel %vm497, %v794, %v798
        %v800 = vshrl.u32 %v477, 16
        %v802 = vrot.slane %v800, 4
        %v803 = vor.u32 %v802, %v798
        %v804 = vrot.slane %v803, 4
        %v806 = vshll.u32 %v478, 16
        %v808 = vrot.slane %v806, 5
        %v809 = vsel %vm497, %v804, %v808
        %v811 = vshrl.u32 %v479, 16
        %v813 = vrot.slane %v811, 4
        %v814 = vshll.u32 %v479, 16
        %v816 = vrot.slane %v814, 5
        %v817 = vor.u32 %v813, %v816
        %v818 = vrot.slane %v817, 4
        %v820 = vshll.u32 %v480, 16
        %v822 = vrot.slane %v820, 5
        %v823 = vsel %vm497, %v818, %v822
        %v824 = vshrl.u32 %v480, 16
        %v826 = vrot.slane %v824, 4
        %v827 = vor.u32 %v826, %v822
        %v828 = vrot.slane %v827, 4
        %v830 = vshll.u32 %v481, 16
        %v832 = vrot.slane %v830, 5
        %v833 = vsel %vm497, %v828, %v832
        %v835 = vshrl.u32 %v482, 16
        %v837 = vrot.slane %v835, 4
        %v838 = vshll.u32 %v482, 16
        %v840 = vrot.slane %v838, 5
        %v841 = vor.u32 %v837, %v840
        %v842 = vrot.slane %v841, 4
        %v844 = vshll.u32 %v483, 16
        %v846 = vrot.slane %v844, 5
        %v847 = vsel %vm497, %v842, %v846
        %v848 = vshrl.u32 %v483, 16
        %v850 = vrot.slane %v848, 4
        %v851 = vor.u32 %v850, %v846
        %v852 = vrot.slane %v851, 4
        %v854 = vshll.u32 %v484, 16
        %v856 = vrot.slane %v854, 5
        %v857 = vsel %vm497, %v852, %v856
        %v859 = vshrl.u32 %v485, 16
        %v861 = vrot.slane %v859, 4
        %v862 = vshll.u32 %v485, 16
        %v864 = vrot.slane %v862, 5
        %v865 = vor.u32 %v861, %v864
        %v866 = vrot.slane %v865, 4
        %v868 = vshll.u32 %v486, 16
        %v870 = vrot.slane %v868, 5
        %v871 = vsel %vm497, %v866, %v870
        %v872 = vshrl.u32 %v486, 16
        %v874 = vrot.slane %v872, 4
        %v875 = vor.u32 %v874, %v870
        %v876 = vrot.slane %v875, 4
        %v878 = vshll.u32 %v487, 16
        %v880 = vrot.slane %v878, 5
        %v881 = vsel %vm497, %v876, %v880
        %s882 = scalar_lea.vmem %s1, 2
        %v883 = vld [vmem:[%s882] sm:$0x3]
        %v884 = vunpack.c.l.b16 %v511
        %v885 = vunpack.c.l.b16 %v521
        %v886 = vunpack.c.l.b16 %v535
        %v887 = vunpack.c.l.b16 %v545
        %v888 = vunpack.c.l.b16 %v559
        %v889 = vunpack.c.l.b16 %v569
        %v890 = vunpack.c.l.b16 %v583
        %v891 = vunpack.c.l.b16 %v593
        %v892 = vunpack.c.l.b16 %v607
        %v893 = vunpack.c.l.b16 %v617
        %v894 = vunpack.c.l.b16 %v631
        %v895 = vunpack.c.l.b16 %v641
        %v896 = vunpack.c.l.b16 %v655
        %v897 = vunpack.c.l.b16 %v665
        %v898 = vunpack.c.l.b16 %v679
        %v899 = vunpack.c.l.b16 %v689
        %v900 = vunpack.c.l.b16 %v703
        %v901 = vunpack.c.l.b16 %v713
        %v902 = vunpack.c.l.b16 %v727
        %v903 = vunpack.c.l.b16 %v737
        %v904 = vunpack.c.l.b16 %v751
        %v905 = vunpack.c.l.b16 %v761
        %v906 = vunpack.c.l.b16 %v775
        %v907 = vunpack.c.l.b16 %v785
        %v908 = vunpack.c.l.b16 %v799
        %v909 = vunpack.c.l.b16 %v809
        %v910 = vunpack.c.l.b16 %v823
        %v911 = vunpack.c.l.b16 %v833
        %v912 = vunpack.c.l.b16 %v847
        %v913 = vunpack.c.l.b16 %v857
        %v914 = vunpack.c.l.b16 %v871
        %v915 = vunpack.c.l.b16 %v881
        %v916 = vpack.c.b16 %v885, %v884
        %v917 = vpack.c.b16 %v887, %v886
        %v918 = vpack.c.b16 %v889, %v888
        %v919 = vpack.c.b16 %v891, %v890
        %v920 = vpack.c.b16 %v893, %v892
        %v921 = vpack.c.b16 %v895, %v894
        %v922 = vpack.c.b16 %v897, %v896
        %v923 = vpack.c.b16 %v899, %v898
        %v924 = vpack.c.b16 %v901, %v900
        %v925 = vpack.c.b16 %v903, %v902
        %v926 = vpack.c.b16 %v905, %v904
        %v927 = vpack.c.b16 %v907, %v906
        %v928 = vpack.c.b16 %v909, %v908
        %v929 = vpack.c.b16 %v911, %v910
        %v930 = vpack.c.b16 %v913, %v912
        %v931 = vpack.c.b16 %v915, %v914
        %vm932 = vcmask 31744
        %v934 = vsel %vm932, %v916, 0
        %v937 = vsel %vm932, %v917, 0
        %v940 = vsel %vm932, %v918, 0
        %v943 = vsel %vm932, %v919, 0
        %v946 = vsel %vm932, %v920, 0
        %v949 = vsel %vm932, %v921, 0
        %v952 = vsel %vm932, %v922, 0
        %v955 = vsel %vm932, %v923, 0
        %v958 = vsel %vm932, %v924, 0
        %v961 = vsel %vm932, %v925, 0
        %v964 = vsel %vm932, %v926, 0
        %v967 = vsel %vm932, %v927, 0
        %v970 = vsel %vm932, %v928, 0
        %v973 = vsel %vm932, %v929, 0
        %v976 = vsel %vm932, %v930, 0
        %v979 = vsel %vm932, %v931, 0
        %vm981 = vcmask 1041408
        %v983 = vsel %vm981, %v883, 0
        %985 = vmatpush.bf16.msra.mxu0 0
        %986 = vmatpush.bf16.msra.mxu0 0
        %987 = vmatpush.bf16.msra.mxu0 0
        %988 = vmatpush.bf16.msra.mxu0 0
        %989 = vmatpush.bf16.msra.mxu0 0
        %990 = vmatpush.bf16.msra.mxu0 0
        %991 = vmatpush.bf16.msra.mxu0 0
        %992 = vmatpush.bf16.msra.mxu0 %v983
        %993 = vmatmul.bf16.gmra.mxu0 %v934
        %v994 = vpop.f32.mrf.mxu0
        %v995 = vadd.f32 0.0, %v994
        %v996 = vpop.f32.mrf.mxu0
        %v997 = vadd.f32 0.0, %v996
        %998 = vmatmul.bf16.gmra.mxu0 %v937
        %v999 = vpop.f32.mrf.mxu0
        %v1000 = vadd.f32 0.0, %v999
        %v1001 = vpop.f32.mrf.mxu0
        %v1002 = vadd.f32 0.0, %v1001
        %1003 = vmatmul.bf16.gmra.mxu0 %v940
        %v1004 = vpop.f32.mrf.mxu0
        %v1005 = vadd.f32 0.0, %v1004
        %v1006 = vpop.f32.mrf.mxu0
        %v1007 = vadd.f32 0.0, %v1006
        %1008 = vmatmul.bf16.gmra.mxu0 %v943
        %v1009 = vpop.f32.mrf.mxu0
        %v1010 = vadd.f32 0.0, %v1009
        %v1011 = vpop.f32.mrf.mxu0
        %v1012 = vadd.f32 0.0, %v1011
        %1013 = vmatmul.bf16.gmra.mxu0 %v946
        %v1014 = vpop.f32.mrf.mxu0
        %v1015 = vadd.f32 0.0, %v1014
        %v1016 = vpop.f32.mrf.mxu0
        %v1017 = vadd.f32 0.0, %v1016
        %1018 = vmatmul.bf16.gmra.mxu0 %v949
        %v1019 = vpop.f32.mrf.mxu0
        %v1020 = vadd.f32 0.0, %v1019
        %v1021 = vpop.f32.mrf.mxu0
        %v1022 = vadd.f32 0.0, %v1021
        %1023 = vmatmul.bf16.gmra.mxu0 %v952
        %v1024 = vpop.f32.mrf.mxu0
        %v1025 = vadd.f32 0.0, %v1024
        %v1026 = vpop.f32.mrf.mxu0
        %v1027 = vadd.f32 0.0, %v1026
        %1028 = vmatmul.bf16.gmra.mxu0 %v955
        %v1029 = vpop.f32.mrf.mxu0
        %v1030 = vadd.f32 0.0, %v1029
        %v1031 = vpop.f32.mrf.mxu0
        %v1032 = vadd.f32 0.0, %v1031
        %1033 = vmatmul.bf16.gmra.mxu0 %v958
        %v1034 = vpop.f32.mrf.mxu0
        %v1035 = vadd.f32 0.0, %v1034
        %v1036 = vpop.f32.mrf.mxu0
        %v1037 = vadd.f32 0.0, %v1036
        %1038 = vmatmul.bf16.gmra.mxu0 %v961
        %v1039 = vpop.f32.mrf.mxu0
        %v1040 = vadd.f32 0.0, %v1039
        %v1041 = vpop.f32.mrf.mxu0
        %v1042 = vadd.f32 0.0, %v1041
        %1043 = vmatmul.bf16.gmra.mxu0 %v964
        %v1044 = vpop.f32.mrf.mxu0
        %v1045 = vadd.f32 0.0, %v1044
        %v1046 = vpop.f32.mrf.mxu0
        %v1047 = vadd.f32 0.0, %v1046
        %1048 = vmatmul.bf16.gmra.mxu0 %v967
        %v1049 = vpop.f32.mrf.mxu0
        %v1050 = vadd.f32 0.0, %v1049
        %v1051 = vpop.f32.mrf.mxu0
        %v1052 = vadd.f32 0.0, %v1051
        %1053 = vmatmul.bf16.gmra.mxu0 %v970
        %v1054 = vpop.f32.mrf.mxu0
        %v1055 = vadd.f32 0.0, %v1054
        %v1056 = vpop.f32.mrf.mxu0
        %v1057 = vadd.f32 0.0, %v1056
        %1058 = vmatmul.bf16.gmra.mxu0 %v973
        %v1059 = vpop.f32.mrf.mxu0
        %v1060 = vadd.f32 0.0, %v1059
        %v1061 = vpop.f32.mrf.mxu0
        %v1062 = vadd.f32 0.0, %v1061
        %1063 = vmatmul.bf16.gmra.mxu0 %v976
        %v1064 = vpop.f32.mrf.mxu0
        %v1065 = vadd.f32 0.0, %v1064
        %v1066 = vpop.f32.mrf.mxu0
        %v1067 = vadd.f32 0.0, %v1066
        %1068 = vmatmul.bf16.gmra.mxu0 %v979
        %v1069 = vpop.f32.mrf.mxu0
        %v1070 = vadd.f32 0.0, %v1069
        %v1071 = vpop.f32.mrf.mxu0
        %v1072 = vadd.f32 0.0, %v1071
        %1073 = vdwg.mxu0
        %v1106 = vunpack.c.l.b16 %v440
        %v1107 = vunpack.c.l.b16 %v441
        %v1108 = vunpack.c.l.b16 %v443
        %v1109 = vunpack.c.l.b16 %v444
        %v1110 = vunpack.c.l.b16 %v446
        %v1111 = vunpack.c.l.b16 %v447
        %v1112 = vunpack.c.l.b16 %v449
        %v1113 = vunpack.c.l.b16 %v450
        %v1114 = vunpack.c.l.b16 %v452
        %v1115 = vunpack.c.l.b16 %v453
        %v1116 = vunpack.c.l.b16 %v455
        %v1117 = vunpack.c.l.b16 %v456
        %v1118 = vunpack.c.l.b16 %v458
        %v1119 = vunpack.c.l.b16 %v459
        %v1120 = vunpack.c.l.b16 %v461
        %v1121 = vunpack.c.l.b16 %v462
        %v1122 = vunpack.c.l.b16 %v464
        %v1123 = vunpack.c.l.b16 %v465
        %v1124 = vunpack.c.l.b16 %v467
        %v1125 = vunpack.c.l.b16 %v468
        %v1126 = vunpack.c.l.b16 %v470
        %v1127 = vunpack.c.l.b16 %v471
        %v1128 = vunpack.c.l.b16 %v473
        %v1129 = vunpack.c.l.b16 %v474
        %v1130 = vunpack.c.l.b16 %v476
        %v1131 = vunpack.c.l.b16 %v477
        %v1132 = vunpack.c.l.b16 %v479
        %v1133 = vunpack.c.l.b16 %v480
        %v1134 = vunpack.c.l.b16 %v482
        %v1135 = vunpack.c.l.b16 %v483
        %v1136 = vunpack.c.l.b16 %v485
        %v1137 = vunpack.c.l.b16 %v486
        %v1138 = vpack.c.b16 %v1107, %v1106
        %v1139 = vpack.c.b16 %v1109, %v1108
        %v1140 = vpack.c.b16 %v1111, %v1110
        %v1141 = vpack.c.b16 %v1113, %v1112
        %v1142 = vpack.c.b16 %v1115, %v1114
        %v1143 = vpack.c.b16 %v1117, %v1116
        %v1144 = vpack.c.b16 %v1119, %v1118
        %v1145 = vpack.c.b16 %v1121, %v1120
        %v1146 = vpack.c.b16 %v1123, %v1122
        %v1147 = vpack.c.b16 %v1125, %v1124
        %v1148 = vpack.c.b16 %v1127, %v1126
        %v1149 = vpack.c.b16 %v1129, %v1128
        %v1150 = vpack.c.b16 %v1131, %v1130
        %v1151 = vpack.c.b16 %v1133, %v1132
        %v1152 = vpack.c.b16 %v1135, %v1134
        %v1153 = vpack.c.b16 %v1137, %v1136
        %v1155 = vsel %vm932, %v1138, 0
        %v1158 = vsel %vm932, %v1139, 0
        %v1161 = vsel %vm932, %v1140, 0
        %v1164 = vsel %vm932, %v1141, 0
        %v1167 = vsel %vm932, %v1142, 0
        %v1170 = vsel %vm932, %v1143, 0
        %v1173 = vsel %vm932, %v1144, 0
        %v1176 = vsel %vm932, %v1145, 0
        %v1179 = vsel %vm932, %v1146, 0
        %v1182 = vsel %vm932, %v1147, 0
        %v1185 = vsel %vm932, %v1148, 0
        %v1188 = vsel %vm932, %v1149, 0
        %v1191 = vsel %vm932, %v1150, 0
        %v1194 = vsel %vm932, %v1151, 0
        %v1197 = vsel %vm932, %v1152, 0
        %v1200 = vsel %vm932, %v1153, 0
        %v1203 = vsel %vm981, %v494, 0
        %1205 = vmatpush.bf16.msra.mxu0 0
        %1206 = vmatpush.bf16.msra.mxu0 0
        %1207 = vmatpush.bf16.msra.mxu0 0
        %1208 = vmatpush.bf16.msra.mxu0 0
        %1209 = vmatpush.bf16.msra.mxu0 0
        %1210 = vmatpush.bf16.msra.mxu0 0
        %1211 = vmatpush.bf16.msra.mxu0 0
        %1212 = vmatpush.bf16.msra.mxu0 %v1203
        %1213 = vmatmul.bf16.gmra.mxu0 %v1155
        %v1214 = vpop.f32.mrf.mxu0
        %v1215 = vadd.f32 %v995, %v1214
        %v1216 = vpop.f32.mrf.mxu0
        %v1217 = vadd.f32 %v997, %v1216
        %1218 = vmatmul.bf16.gmra.mxu0 %v1158
        %v1219 = vpop.f32.mrf.mxu0
        %v1220 = vadd.f32 %v1000, %v1219
        %v1221 = vpop.f32.mrf.mxu0
        %v1222 = vadd.f32 %v1002, %v1221
        %1223 = vmatmul.bf16.gmra.mxu0 %v1161
        %v1224 = vpop.f32.mrf.mxu0
        %v1225 = vadd.f32 %v1005, %v1224
        %v1226 = vpop.f32.mrf.mxu0
        %v1227 = vadd.f32 %v1007, %v1226
        %1228 = vmatmul.bf16.gmra.mxu0 %v1164
        %v1229 = vpop.f32.mrf.mxu0
        %v1230 = vadd.f32 %v1010, %v1229
        %v1231 = vpop.f32.mrf.mxu0
        %v1232 = vadd.f32 %v1012, %v1231
        %1233 = vmatmul.bf16.gmra.mxu0 %v1167
        %v1234 = vpop.f32.mrf.mxu0
        %v1235 = vadd.f32 %v1015, %v1234
        %v1236 = vpop.f32.mrf.mxu0
        %v1237 = vadd.f32 %v1017, %v1236
        %1238 = vmatmul.bf16.gmra.mxu0 %v1170
        %v1239 = vpop.f32.mrf.mxu0
        %v1240 = vadd.f32 %v1020, %v1239
        %v1241 = vpop.f32.mrf.mxu0
        %v1242 = vadd.f32 %v1022, %v1241
        %1243 = vmatmul.bf16.gmra.mxu0 %v1173
        %v1244 = vpop.f32.mrf.mxu0
        %v1245 = vadd.f32 %v1025, %v1244
        %v1246 = vpop.f32.mrf.mxu0
        %v1247 = vadd.f32 %v1027, %v1246
        %1248 = vmatmul.bf16.gmra.mxu0 %v1176
        %v1249 = vpop.f32.mrf.mxu0
        %v1250 = vadd.f32 %v1030, %v1249
        %v1251 = vpop.f32.mrf.mxu0
        %v1252 = vadd.f32 %v1032, %v1251
        %1253 = vmatmul.bf16.gmra.mxu0 %v1179
        %v1254 = vpop.f32.mrf.mxu0
        %v1255 = vadd.f32 %v1035, %v1254
        %v1256 = vpop.f32.mrf.mxu0
        %v1257 = vadd.f32 %v1037, %v1256
        %1258 = vmatmul.bf16.gmra.mxu0 %v1182
        %v1259 = vpop.f32.mrf.mxu0
        %v1260 = vadd.f32 %v1040, %v1259
        %v1261 = vpop.f32.mrf.mxu0
        %v1262 = vadd.f32 %v1042, %v1261
        %1263 = vmatmul.bf16.gmra.mxu0 %v1185
        %v1264 = vpop.f32.mrf.mxu0
        %v1265 = vadd.f32 %v1045, %v1264
        %v1266 = vpop.f32.mrf.mxu0
        %v1267 = vadd.f32 %v1047, %v1266
        %1268 = vmatmul.bf16.gmra.mxu0 %v1188
        %v1269 = vpop.f32.mrf.mxu0
        %v1270 = vadd.f32 %v1050, %v1269
        %v1271 = vpop.f32.mrf.mxu0
        %v1272 = vadd.f32 %v1052, %v1271
        %1273 = vmatmul.bf16.gmra.mxu0 %v1191
        %v1274 = vpop.f32.mrf.mxu0
        %v1275 = vadd.f32 %v1055, %v1274
        %v1276 = vpop.f32.mrf.mxu0
        %v1277 = vadd.f32 %v1057, %v1276
        %1278 = vmatmul.bf16.gmra.mxu0 %v1194
        %v1279 = vpop.f32.mrf.mxu0
        %v1280 = vadd.f32 %v1060, %v1279
        %v1281 = vpop.f32.mrf.mxu0
        %v1282 = vadd.f32 %v1062, %v1281
        %1283 = vmatmul.bf16.gmra.mxu0 %v1197
        %v1284 = vpop.f32.mrf.mxu0
        %v1285 = vadd.f32 %v1065, %v1284
        %v1286 = vpop.f32.mrf.mxu0
        %v1287 = vadd.f32 %v1067, %v1286
        %1288 = vmatmul.bf16.gmra.mxu0 %v1200
        %v1289 = vpop.f32.mrf.mxu0
        %v1290 = vadd.f32 %v1070, %v1289
        %v1291 = vpop.f32.mrf.mxu0
        %v1292 = vadd.f32 %v1072, %v1291
        %1293 = vdwg.mxu0
        %vm1310 = vcmask 1042432
        %vm1311 = vcmask 1046532
        %vm1312 = vmor %vm1310, %vm1311
        %v1313 = vrot.slane %v440, 5
        %v1314 = vrot.slane %v1313, 4
        %v1315 = vrot.slane %v441, 5
        %v1316 = vsel %vm1312, %v1314, %v1315
        %v1317 = vrot.slane %v1315, 4
        %v1318 = vrot.slane %v442, 5
        %v1319 = vsel %vm1312, %v1317, %v1318
        %v1320 = vrot.slane %v443, 5
        %v1321 = vrot.slane %v1320, 4
        %v1322 = vrot.slane %v444, 5
        %v1323 = vsel %vm1312, %v1321, %v1322
        %v1324 = vrot.slane %v1322, 4
        %v1325 = vrot.slane %v445, 5
        %v1326 = vsel %vm1312, %v1324, %v1325
        %v1327 = vrot.slane %v446, 5
        %v1328 = vrot.slane %v1327, 4
        %v1329 = vrot.slane %v447, 5
        %v1330 = vsel %vm1312, %v1328, %v1329
        %v1331 = vrot.slane %v1329, 4
        %v1332 = vrot.slane %v448, 5
        %v1333 = vsel %vm1312, %v1331, %v1332
        %v1334 = vrot.slane %v449, 5
        %v1335 = vrot.slane %v1334, 4
        %v1336 = vrot.slane %v450, 5
        %v1337 = vsel %vm1312, %v1335, %v1336
        %v1338 = vrot.slane %v1336, 4
        %v1339 = vrot.slane %v451, 5
        %v1340 = vsel %vm1312, %v1338, %v1339
        %v1341 = vrot.slane %v452, 5
        %v1342 = vrot.slane %v1341, 4
        %v1343 = vrot.slane %v453, 5
        %v1344 = vsel %vm1312, %v1342, %v1343
        %v1345 = vrot.slane %v1343, 4
        %v1346 = vrot.slane %v454, 5
        %v1347 = vsel %vm1312, %v1345, %v1346
        %v1348 = vrot.slane %v455, 5
        %v1349 = vrot.slane %v1348, 4
        %v1350 = vrot.slane %v456, 5
        %v1351 = vsel %vm1312, %v1349, %v1350
        %v1352 = vrot.slane %v1350, 4
        %v1353 = vrot.slane %v457, 5
        %v1354 = vsel %vm1312, %v1352, %v1353
        %v1355 = vrot.slane %v458, 5
        %v1356 = vrot.slane %v1355, 4
        %v1357 = vrot.slane %v459, 5
        %v1358 = vsel %vm1312, %v1356, %v1357
        %v1359 = vrot.slane %v1357, 4
        %v1360 = vrot.slane %v460, 5
        %v1361 = vsel %vm1312, %v1359, %v1360
        %v1362 = vrot.slane %v461, 5
        %v1363 = vrot.slane %v1362, 4
        %v1364 = vrot.slane %v462, 5
        %v1365 = vsel %vm1312, %v1363, %v1364
        %v1366 = vrot.slane %v1364, 4
        %v1367 = vrot.slane %v463, 5
        %v1368 = vsel %vm1312, %v1366, %v1367
        %v1369 = vrot.slane %v464, 5
        %v1370 = vrot.slane %v1369, 4
        %v1371 = vrot.slane %v465, 5
        %v1372 = vsel %vm1312, %v1370, %v1371
        %v1373 = vrot.slane %v1371, 4
        %v1374 = vrot.slane %v466, 5
        %v1375 = vsel %vm1312, %v1373, %v1374
        %v1376 = vrot.slane %v467, 5
        %v1377 = vrot.slane %v1376, 4
        %v1378 = vrot.slane %v468, 5
        %v1379 = vsel %vm1312, %v1377, %v1378
        %v1380 = vrot.slane %v1378, 4
        %v1381 = vrot.slane %v469, 5
        %v1382 = vsel %vm1312, %v1380, %v1381
        %v1383 = vrot.slane %v470, 5
        %v1384 = vrot.slane %v1383, 4
        %v1385 = vrot.slane %v471, 5
        %v1386 = vsel %vm1312, %v1384, %v1385
        %v1387 = vrot.slane %v1385, 4
        %v1388 = vrot.slane %v472, 5
        %v1389 = vsel %vm1312, %v1387, %v1388
        %v1390 = vrot.slane %v473, 5
        %v1391 = vrot.slane %v1390, 4
        %v1392 = vrot.slane %v474, 5
        %v1393 = vsel %vm1312, %v1391, %v1392
        %v1394 = vrot.slane %v1392, 4
        %v1395 = vrot.slane %v475, 5
        %v1396 = vsel %vm1312, %v1394, %v1395
        %v1397 = vrot.slane %v476, 5
        %v1398 = vrot.slane %v1397, 4
        %v1399 = vrot.slane %v477, 5
        %v1400 = vsel %vm1312, %v1398, %v1399
        %v1401 = vrot.slane %v1399, 4
        %v1402 = vrot.slane %v478, 5
        %v1403 = vsel %vm1312, %v1401, %v1402
        %v1404 = vrot.slane %v479, 5
        %v1405 = vrot.slane %v1404, 4
        %v1406 = vrot.slane %v480, 5
        %v1407 = vsel %vm1312, %v1405, %v1406
        %v1408 = vrot.slane %v1406, 4
        %v1409 = vrot.slane %v481, 5
        %v1410 = vsel %vm1312, %v1408, %v1409
        %v1411 = vrot.slane %v482, 5
        %v1412 = vrot.slane %v1411, 4
        %v1413 = vrot.slane %v483, 5
        %v1414 = vsel %vm1312, %v1412, %v1413
        %v1415 = vrot.slane %v1413, 4
        %v1416 = vrot.slane %v484, 5
        %v1417 = vsel %vm1312, %v1415, %v1416
        %v1418 = vrot.slane %v485, 5
        %v1419 = vrot.slane %v1418, 4
        %v1420 = vrot.slane %v486, 5
        %v1421 = vsel %vm1312, %v1419, %v1420
        %v1422 = vrot.slane %v1420, 4
        %v1423 = vrot.slane %v487, 5
        %v1424 = vsel %vm1312, %v1422, %v1423
        %s1425 = scalar_lea.vmem %s1, 4
        %v1426 = vld [vmem:[%s1425] sm:$0x3]
        %v1427 = vunpack.c.l.b16 %v1316
        %v1428 = vunpack.c.l.b16 %v1319
        %v1429 = vunpack.c.l.b16 %v1323
        %v1430 = vunpack.c.l.b16 %v1326
        %v1431 = vunpack.c.l.b16 %v1330
        %v1432 = vunpack.c.l.b16 %v1333
        %v1433 = vunpack.c.l.b16 %v1337
        %v1434 = vunpack.c.l.b16 %v1340
        %v1435 = vunpack.c.l.b16 %v1344
        %v1436 = vunpack.c.l.b16 %v1347
        %v1437 = vunpack.c.l.b16 %v1351
        %v1438 = vunpack.c.l.b16 %v1354
        %v1439 = vunpack.c.l.b16 %v1358
        %v1440 = vunpack.c.l.b16 %v1361
        %v1441 = vunpack.c.l.b16 %v1365
        %v1442 = vunpack.c.l.b16 %v1368
        %v1443 = vunpack.c.l.b16 %v1372
        %v1444 = vunpack.c.l.b16 %v1375
        %v1445 = vunpack.c.l.b16 %v1379
        %v1446 = vunpack.c.l.b16 %v1382
        %v1447 = vunpack.c.l.b16 %v1386
        %v1448 = vunpack.c.l.b16 %v1389
        %v1449 = vunpack.c.l.b16 %v1393
        %v1450 = vunpack.c.l.b16 %v1396
        %v1451 = vunpack.c.l.b16 %v1400
        %v1452 = vunpack.c.l.b16 %v1403
        %v1453 = vunpack.c.l.b16 %v1407
        %v1454 = vunpack.c.l.b16 %v1410
        %v1455 = vunpack.c.l.b16 %v1414
        %v1456 = vunpack.c.l.b16 %v1417
        %v1457 = vunpack.c.l.b16 %v1421
        %v1458 = vunpack.c.l.b16 %v1424
        %v1459 = vpack.c.b16 %v1428, %v1427
        %v1460 = vpack.c.b16 %v1430, %v1429
        %v1461 = vpack.c.b16 %v1432, %v1431
        %v1462 = vpack.c.b16 %v1434, %v1433
        %v1463 = vpack.c.b16 %v1436, %v1435
        %v1464 = vpack.c.b16 %v1438, %v1437
        %v1465 = vpack.c.b16 %v1440, %v1439
        %v1466 = vpack.c.b16 %v1442, %v1441
        %v1467 = vpack.c.b16 %v1444, %v1443
        %v1468 = vpack.c.b16 %v1446, %v1445
        %v1469 = vpack.c.b16 %v1448, %v1447
        %v1470 = vpack.c.b16 %v1450, %v1449
        %v1471 = vpack.c.b16 %v1452, %v1451
        %v1472 = vpack.c.b16 %v1454, %v1453
        %v1473 = vpack.c.b16 %v1456, %v1455
        %v1474 = vpack.c.b16 %v1458, %v1457
        %v1476 = vsel %vm932, %v1459, 0
        %v1479 = vsel %vm932, %v1460, 0
        %v1482 = vsel %vm932, %v1461, 0
        %v1485 = vsel %vm932, %v1462, 0
        %v1488 = vsel %vm932, %v1463, 0
        %v1491 = vsel %vm932, %v1464, 0
        %v1494 = vsel %vm932, %v1465, 0
        %v1497 = vsel %vm932, %v1466, 0
        %v1500 = vsel %vm932, %v1467, 0
        %v1503 = vsel %vm932, %v1468, 0
        %v1506 = vsel %vm932, %v1469, 0
        %v1509 = vsel %vm932, %v1470, 0
        %v1512 = vsel %vm932, %v1471, 0
        %v1515 = vsel %vm932, %v1472, 0
        %v1518 = vsel %vm932, %v1473, 0
        %v1521 = vsel %vm932, %v1474, 0
        %v1524 = vsel %vm981, %v1426, 0
        %1526 = vmatpush.bf16.msra.mxu0 0
        %1527 = vmatpush.bf16.msra.mxu0 0
        %1528 = vmatpush.bf16.msra.mxu0 0
        %1529 = vmatpush.bf16.msra.mxu0 0
        %1530 = vmatpush.bf16.msra.mxu0 0
        %1531 = vmatpush.bf16.msra.mxu0 0
        %1532 = vmatpush.bf16.msra.mxu0 0
        %1533 = vmatpush.bf16.msra.mxu0 %v1524
        %1534 = vmatmul.bf16.gmra.mxu0 %v1476
        %v1535 = vpop.f32.mrf.mxu0
        %v1536 = vadd.f32 0.0, %v1535
        %v1537 = vpop.f32.mrf.mxu0
        %v1538 = vadd.f32 0.0, %v1537
        %1539 = vmatmul.bf16.gmra.mxu0 %v1479
        %v1540 = vpop.f32.mrf.mxu0
        %v1541 = vadd.f32 0.0, %v1540
        %v1542 = vpop.f32.mrf.mxu0
        %v1543 = vadd.f32 0.0, %v1542
        %1544 = vmatmul.bf16.gmra.mxu0 %v1482
        %v1545 = vpop.f32.mrf.mxu0
        %v1546 = vadd.f32 0.0, %v1545
        %v1547 = vpop.f32.mrf.mxu0
        %v1548 = vadd.f32 0.0, %v1547
        %1549 = vmatmul.bf16.gmra.mxu0 %v1485
        %v1550 = vpop.f32.mrf.mxu0
        %v1551 = vadd.f32 0.0, %v1550
        %v1552 = vpop.f32.mrf.mxu0
        %v1553 = vadd.f32 0.0, %v1552
        %1554 = vmatmul.bf16.gmra.mxu0 %v1488
        %v1555 = vpop.f32.mrf.mxu0
        %v1556 = vadd.f32 0.0, %v1555
        %v1557 = vpop.f32.mrf.mxu0
        %v1558 = vadd.f32 0.0, %v1557
        %1559 = vmatmul.bf16.gmra.mxu0 %v1491
        %v1560 = vpop.f32.mrf.mxu0
        %v1561 = vadd.f32 0.0, %v1560
        %v1562 = vpop.f32.mrf.mxu0
        %v1563 = vadd.f32 0.0, %v1562
        %1564 = vmatmul.bf16.gmra.mxu0 %v1494
        %v1565 = vpop.f32.mrf.mxu0
        %v1566 = vadd.f32 0.0, %v1565
        %v1567 = vpop.f32.mrf.mxu0
        %v1568 = vadd.f32 0.0, %v1567
        %1569 = vmatmul.bf16.gmra.mxu0 %v1497
        %v1570 = vpop.f32.mrf.mxu0
        %v1571 = vadd.f32 0.0, %v1570
        %v1572 = vpop.f32.mrf.mxu0
        %v1573 = vadd.f32 0.0, %v1572
        %1574 = vmatmul.bf16.gmra.mxu0 %v1500
        %v1575 = vpop.f32.mrf.mxu0
        %v1576 = vadd.f32 0.0, %v1575
        %v1577 = vpop.f32.mrf.mxu0
        %v1578 = vadd.f32 0.0, %v1577
        %1579 = vmatmul.bf16.gmra.mxu0 %v1503
        %v1580 = vpop.f32.mrf.mxu0
        %v1581 = vadd.f32 0.0, %v1580
        %v1582 = vpop.f32.mrf.mxu0
        %v1583 = vadd.f32 0.0, %v1582
        %1584 = vmatmul.bf16.gmra.mxu0 %v1506
        %v1585 = vpop.f32.mrf.mxu0
        %v1586 = vadd.f32 0.0, %v1585
        %v1587 = vpop.f32.mrf.mxu0
        %v1588 = vadd.f32 0.0, %v1587
        %1589 = vmatmul.bf16.gmra.mxu0 %v1509
        %v1590 = vpop.f32.mrf.mxu0
        %v1591 = vadd.f32 0.0, %v1590
        %v1592 = vpop.f32.mrf.mxu0
        %v1593 = vadd.f32 0.0, %v1592
        %1594 = vmatmul.bf16.gmra.mxu0 %v1512
        %v1595 = vpop.f32.mrf.mxu0
        %v1596 = vadd.f32 0.0, %v1595
        %v1597 = vpop.f32.mrf.mxu0
        %v1598 = vadd.f32 0.0, %v1597
        %1599 = vmatmul.bf16.gmra.mxu0 %v1515
        %v1600 = vpop.f32.mrf.mxu0
        %v1601 = vadd.f32 0.0, %v1600
        %v1602 = vpop.f32.mrf.mxu0
        %v1603 = vadd.f32 0.0, %v1602
        %1604 = vmatmul.bf16.gmra.mxu0 %v1518
        %v1605 = vpop.f32.mrf.mxu0
        %v1606 = vadd.f32 0.0, %v1605
        %v1607 = vpop.f32.mrf.mxu0
        %v1608 = vadd.f32 0.0, %v1607
        %1609 = vmatmul.bf16.gmra.mxu0 %v1521
        %v1610 = vpop.f32.mrf.mxu0
        %v1611 = vadd.f32 0.0, %v1610
        %v1612 = vpop.f32.mrf.mxu0
        %v1613 = vadd.f32 0.0, %v1612
        %1614 = vdwg.mxu0
        %v1615 = vadd.f32 %v1215, %v1536
        %v1616 = vadd.f32 %v1217, %v1538
        %v1617 = vadd.f32 %v1220, %v1541
        %v1618 = vadd.f32 %v1222, %v1543
        %v1619 = vadd.f32 %v1225, %v1546
        %v1620 = vadd.f32 %v1227, %v1548
        %v1621 = vadd.f32 %v1230, %v1551
        %v1622 = vadd.f32 %v1232, %v1553
        %v1623 = vadd.f32 %v1235, %v1556
        %v1624 = vadd.f32 %v1237, %v1558
        %v1625 = vadd.f32 %v1240, %v1561
        %v1626 = vadd.f32 %v1242, %v1563
        %v1627 = vadd.f32 %v1245, %v1566
        %v1628 = vadd.f32 %v1247, %v1568
        %v1629 = vadd.f32 %v1250, %v1571
        %v1630 = vadd.f32 %v1252, %v1573
        %v1631 = vadd.f32 %v1255, %v1576
        %v1632 = vadd.f32 %v1257, %v1578
        %v1633 = vadd.f32 %v1260, %v1581
        %v1634 = vadd.f32 %v1262, %v1583
        %v1635 = vadd.f32 %v1265, %v1586
        %v1636 = vadd.f32 %v1267, %v1588
        %v1637 = vadd.f32 %v1270, %v1591
        %v1638 = vadd.f32 %v1272, %v1593
        %v1639 = vadd.f32 %v1275, %v1596
        %v1640 = vadd.f32 %v1277, %v1598
        %v1641 = vadd.f32 %v1280, %v1601
        %v1642 = vadd.f32 %v1282, %v1603
        %v1643 = vadd.f32 %v1285, %v1606
        %v1644 = vadd.f32 %v1287, %v1608
        %v1645 = vadd.f32 %v1290, %v1611
        %v1646 = vadd.f32 %v1292, %v1613
        %s1647 = scalar_lea.vmem %s1, 6
        %v1648 = vld [vmem:[%s1647] sm:$0x3]
        %v1651 = vunpack.c.l.b16 %v488
        %v1652 = vunpack.c.l.b16 %v489
        %v1653 = vpack.c.b16 %v1652, %v1651
        %v1655 = vsel %vm932, %v1653, 0
        %v1658 = vsel %vm981, %v1648, 0
        %1660 = vmatpush.bf16.msra.mxu0 0
        %1661 = vmatpush.bf16.msra.mxu0 0
        %1662 = vmatpush.bf16.msra.mxu0 0
        %1663 = vmatpush.bf16.msra.mxu0 0
        %1664 = vmatpush.bf16.msra.mxu0 0
        %1665 = vmatpush.bf16.msra.mxu0 0
        %1666 = vmatpush.bf16.msra.mxu0 0
        %1667 = vmatpush.bf16.msra.mxu0 %v1658
        %1668 = vmatmul.bf16.gmra.mxu0 %v1158
        %v1669 = vpop.f32.mrf.mxu0
        %v1670 = vadd.f32 0.0, %v1669
        %v1671 = vpop.f32.mrf.mxu0
        %v1672 = vadd.f32 0.0, %v1671
        %1673 = vmatmul.bf16.gmra.mxu0 %v1161
        %v1674 = vpop.f32.mrf.mxu0
        %v1675 = vadd.f32 0.0, %v1674
        %v1676 = vpop.f32.mrf.mxu0
        %v1677 = vadd.f32 0.0, %v1676
        %1678 = vmatmul.bf16.gmra.mxu0 %v1164
        %v1679 = vpop.f32.mrf.mxu0
        %v1680 = vadd.f32 0.0, %v1679
        %v1681 = vpop.f32.mrf.mxu0
        %v1682 = vadd.f32 0.0, %v1681
        %1683 = vmatmul.bf16.gmra.mxu0 %v1167
        %v1684 = vpop.f32.mrf.mxu0
        %v1685 = vadd.f32 0.0, %v1684
        %v1686 = vpop.f32.mrf.mxu0
        %v1687 = vadd.f32 0.0, %v1686
        %1688 = vmatmul.bf16.gmra.mxu0 %v1170
        %v1689 = vpop.f32.mrf.mxu0
        %v1690 = vadd.f32 0.0, %v1689
        %v1691 = vpop.f32.mrf.mxu0
        %v1692 = vadd.f32 0.0, %v1691
        %1693 = vmatmul.bf16.gmra.mxu0 %v1173
        %v1694 = vpop.f32.mrf.mxu0
        %v1695 = vadd.f32 0.0, %v1694
        %v1696 = vpop.f32.mrf.mxu0
        %v1697 = vadd.f32 0.0, %v1696
        %1698 = vmatmul.bf16.gmra.mxu0 %v1176
        %v1699 = vpop.f32.mrf.mxu0
        %v1700 = vadd.f32 0.0, %v1699
        %v1701 = vpop.f32.mrf.mxu0
        %v1702 = vadd.f32 0.0, %v1701
        %1703 = vmatmul.bf16.gmra.mxu0 %v1179
        %v1704 = vpop.f32.mrf.mxu0
        %v1705 = vadd.f32 0.0, %v1704
        %v1706 = vpop.f32.mrf.mxu0
        %v1707 = vadd.f32 0.0, %v1706
        %1708 = vmatmul.bf16.gmra.mxu0 %v1182
        %v1709 = vpop.f32.mrf.mxu0
        %v1710 = vadd.f32 0.0, %v1709
        %v1711 = vpop.f32.mrf.mxu0
        %v1712 = vadd.f32 0.0, %v1711
        %1713 = vmatmul.bf16.gmra.mxu0 %v1185
        %v1714 = vpop.f32.mrf.mxu0
        %v1715 = vadd.f32 0.0, %v1714
        %v1716 = vpop.f32.mrf.mxu0
        %v1717 = vadd.f32 0.0, %v1716
        %1718 = vmatmul.bf16.gmra.mxu0 %v1188
        %v1719 = vpop.f32.mrf.mxu0
        %v1720 = vadd.f32 0.0, %v1719
        %v1721 = vpop.f32.mrf.mxu0
        %v1722 = vadd.f32 0.0, %v1721
        %1723 = vmatmul.bf16.gmra.mxu0 %v1191
        %v1724 = vpop.f32.mrf.mxu0
        %v1725 = vadd.f32 0.0, %v1724
        %v1726 = vpop.f32.mrf.mxu0
        %v1727 = vadd.f32 0.0, %v1726
        %1728 = vmatmul.bf16.gmra.mxu0 %v1194
        %v1729 = vpop.f32.mrf.mxu0
        %v1730 = vadd.f32 0.0, %v1729
        %v1731 = vpop.f32.mrf.mxu0
        %v1732 = vadd.f32 0.0, %v1731
        %1733 = vmatmul.bf16.gmra.mxu0 %v1197
        %v1734 = vpop.f32.mrf.mxu0
        %v1735 = vadd.f32 0.0, %v1734
        %v1736 = vpop.f32.mrf.mxu0
        %v1737 = vadd.f32 0.0, %v1736
        %1738 = vmatmul.bf16.gmra.mxu0 %v1200
        %v1739 = vpop.f32.mrf.mxu0
        %v1740 = vadd.f32 0.0, %v1739
        %v1741 = vpop.f32.mrf.mxu0
        %v1742 = vadd.f32 0.0, %v1741
        %1743 = vmatmul.bf16.gmra.mxu0 %v1655
        %v1744 = vpop.f32.mrf.mxu0
        %v1745 = vadd.f32 0.0, %v1744
        %v1746 = vpop.f32.mrf.mxu0
        %v1747 = vadd.f32 0.0, %v1746
        %1748 = vdwg.mxu0
        %v1749 = vadd.f32 %v1615, %v1670
        %v1750 = vadd.f32 %v1616, %v1672
        %v1751 = vadd.f32 %v1617, %v1675
        %v1752 = vadd.f32 %v1618, %v1677
        %v1753 = vadd.f32 %v1619, %v1680
        %v1754 = vadd.f32 %v1620, %v1682
        %v1755 = vadd.f32 %v1621, %v1685
        %v1756 = vadd.f32 %v1622, %v1687
        %v1757 = vadd.f32 %v1623, %v1690
        %v1758 = vadd.f32 %v1624, %v1692
        %v1759 = vadd.f32 %v1625, %v1695
        %v1760 = vadd.f32 %v1626, %v1697
        %v1761 = vadd.f32 %v1627, %v1700
        %v1762 = vadd.f32 %v1628, %v1702
        %v1763 = vadd.f32 %v1629, %v1705
        %v1764 = vadd.f32 %v1630, %v1707
        %v1765 = vadd.f32 %v1631, %v1710
        %v1766 = vadd.f32 %v1632, %v1712
        %v1767 = vadd.f32 %v1633, %v1715
        %v1768 = vadd.f32 %v1634, %v1717
        %v1769 = vadd.f32 %v1635, %v1720
        %v1770 = vadd.f32 %v1636, %v1722
        %v1771 = vadd.f32 %v1637, %v1725
        %v1772 = vadd.f32 %v1638, %v1727
        %v1773 = vadd.f32 %v1639, %v1730
        %v1774 = vadd.f32 %v1640, %v1732
        %v1775 = vadd.f32 %v1641, %v1735
        %v1776 = vadd.f32 %v1642, %v1737
        %v1777 = vadd.f32 %v1643, %v1740
        %v1778 = vadd.f32 %v1644, %v1742
        %v1779 = vadd.f32 %v1645, %v1745
        %v1780 = vadd.f32 %v1646, %v1747
        %v1782 = vshrl.u32 %v488, 16
        %v1784 = vrot.slane %v1782, 4
        %v1785 = vshll.u32 %v488, 16
        %v1787 = vrot.slane %v1785, 5
        %v1788 = vor.u32 %v1784, %v1787
        %v1789 = vrot.slane %v1788, 4
        %v1791 = vshll.u32 %v489, 16
        %v1793 = vrot.slane %v1791, 5
        %v1794 = vsel %vm497, %v1789, %v1793
        %v1795 = vshrl.u32 %v489, 16
        %v1797 = vrot.slane %v1795, 4
        %v1798 = vor.u32 %v1797, %v1793
        %v1799 = vrot.slane %v1798, 4
        %v1801 = vshll.u32 %v490, 16
        %v1803 = vrot.slane %v1801, 5
        %v1804 = vsel %vm497, %v1799, %v1803
        %s1805 = scalar_lea.vmem %s1, 8
        %v1806 = vld [vmem:[%s1805] sm:$0x3]
        %v1807 = vunpack.c.l.b16 %v1794
        %v1808 = vunpack.c.l.b16 %v1804
        %v1809 = vpack.c.b16 %v1808, %v1807
        %v1811 = vsel %vm932, %v1809, 0
        %v1814 = vsel %vm981, %v1806, 0
        %1816 = vmatpush.bf16.msra.mxu0 0
        %1817 = vmatpush.bf16.msra.mxu0 0
        %1818 = vmatpush.bf16.msra.mxu0 0
        %1819 = vmatpush.bf16.msra.mxu0 0
        %1820 = vmatpush.bf16.msra.mxu0 0
        %1821 = vmatpush.bf16.msra.mxu0 0
        %1822 = vmatpush.bf16.msra.mxu0 0
        %1823 = vmatpush.bf16.msra.mxu0 %v1814
        %1824 = vmatmul.bf16.gmra.mxu0 %v937
        %v1825 = vpop.f32.mrf.mxu0
        %v1826 = vadd.f32 0.0, %v1825
        %v1827 = vpop.f32.mrf.mxu0
        %v1828 = vadd.f32 0.0, %v1827
        %1829 = vmatmul.bf16.gmra.mxu0 %v940
        %v1830 = vpop.f32.mrf.mxu0
        %v1831 = vadd.f32 0.0, %v1830
        %v1832 = vpop.f32.mrf.mxu0
        %v1833 = vadd.f32 0.0, %v1832
        %1834 = vmatmul.bf16.gmra.mxu0 %v943
        %v1835 = vpop.f32.mrf.mxu0
        %v1836 = vadd.f32 0.0, %v1835
        %v1837 = vpop.f32.mrf.mxu0
        %v1838 = vadd.f32 0.0, %v1837
        %1839 = vmatmul.bf16.gmra.mxu0 %v946
        %v1840 = vpop.f32.mrf.mxu0
        %v1841 = vadd.f32 0.0, %v1840
        %v1842 = vpop.f32.mrf.mxu0
        %v1843 = vadd.f32 0.0, %v1842
        %1844 = vmatmul.bf16.gmra.mxu0 %v949
        %v1845 = vpop.f32.mrf.mxu0
        %v1846 = vadd.f32 0.0, %v1845
        %v1847 = vpop.f32.mrf.mxu0
        %v1848 = vadd.f32 0.0, %v1847
        %1849 = vmatmul.bf16.gmra.mxu0 %v952
        %v1850 = vpop.f32.mrf.mxu0
        %v1851 = vadd.f32 0.0, %v1850
        %v1852 = vpop.f32.mrf.mxu0
        %v1853 = vadd.f32 0.0, %v1852
        %1854 = vmatmul.bf16.gmra.mxu0 %v955
        %v1855 = vpop.f32.mrf.mxu0
        %v1856 = vadd.f32 0.0, %v1855
        %v1857 = vpop.f32.mrf.mxu0
        %v1858 = vadd.f32 0.0, %v1857
        %1859 = vmatmul.bf16.gmra.mxu0 %v958
        %v1860 = vpop.f32.mrf.mxu0
        %v1861 = vadd.f32 0.0, %v1860
        %v1862 = vpop.f32.mrf.mxu0
        %v1863 = vadd.f32 0.0, %v1862
        %1864 = vmatmul.bf16.gmra.mxu0 %v961
        %v1865 = vpop.f32.mrf.mxu0
        %v1866 = vadd.f32 0.0, %v1865
        %v1867 = vpop.f32.mrf.mxu0
        %v1868 = vadd.f32 0.0, %v1867
        %1869 = vmatmul.bf16.gmra.mxu0 %v964
        %v1870 = vpop.f32.mrf.mxu0
        %v1871 = vadd.f32 0.0, %v1870
        %v1872 = vpop.f32.mrf.mxu0
        %v1873 = vadd.f32 0.0, %v1872
        %1874 = vmatmul.bf16.gmra.mxu0 %v967
        %v1875 = vpop.f32.mrf.mxu0
        %v1876 = vadd.f32 0.0, %v1875
        %v1877 = vpop.f32.mrf.mxu0
        %v1878 = vadd.f32 0.0, %v1877
        %1879 = vmatmul.bf16.gmra.mxu0 %v970
        %v1880 = vpop.f32.mrf.mxu0
        %v1881 = vadd.f32 0.0, %v1880
        %v1882 = vpop.f32.mrf.mxu0
        %v1883 = vadd.f32 0.0, %v1882
        %1884 = vmatmul.bf16.gmra.mxu0 %v973
        %v1885 = vpop.f32.mrf.mxu0
        %v1886 = vadd.f32 0.0, %v1885
        %v1887 = vpop.f32.mrf.mxu0
        %v1888 = vadd.f32 0.0, %v1887
        %1889 = vmatmul.bf16.gmra.mxu0 %v976
        %v1890 = vpop.f32.mrf.mxu0
        %v1891 = vadd.f32 0.0, %v1890
        %v1892 = vpop.f32.mrf.mxu0
        %v1893 = vadd.f32 0.0, %v1892
        %1894 = vmatmul.bf16.gmra.mxu0 %v979
        %v1895 = vpop.f32.mrf.mxu0
        %v1896 = vadd.f32 0.0, %v1895
        %v1897 = vpop.f32.mrf.mxu0
        %v1898 = vadd.f32 0.0, %v1897
        %1899 = vmatmul.bf16.gmra.mxu0 %v1811
        %v1900 = vpop.f32.mrf.mxu0
        %v1901 = vadd.f32 0.0, %v1900
        %v1902 = vpop.f32.mrf.mxu0
        %v1903 = vadd.f32 0.0, %v1902
        %1904 = vdwg.mxu0
        %v1905 = vadd.f32 %v1749, %v1826
        %v1906 = vadd.f32 %v1750, %v1828
        %v1907 = vadd.f32 %v1751, %v1831
        %v1908 = vadd.f32 %v1752, %v1833
        %v1909 = vadd.f32 %v1753, %v1836
        %v1910 = vadd.f32 %v1754, %v1838
        %v1911 = vadd.f32 %v1755, %v1841
        %v1912 = vadd.f32 %v1756, %v1843
        %v1913 = vadd.f32 %v1757, %v1846
        %v1914 = vadd.f32 %v1758, %v1848
        %v1915 = vadd.f32 %v1759, %v1851
        %v1916 = vadd.f32 %v1760, %v1853
        %v1917 = vadd.f32 %v1761, %v1856
        %v1918 = vadd.f32 %v1762, %v1858
        %v1919 = vadd.f32 %v1763, %v1861
        %v1920 = vadd.f32 %v1764, %v1863
        %v1921 = vadd.f32 %v1765, %v1866
        %v1922 = vadd.f32 %v1766, %v1868
        %v1923 = vadd.f32 %v1767, %v1871
        %v1924 = vadd.f32 %v1768, %v1873
        %v1925 = vadd.f32 %v1769, %v1876
        %v1926 = vadd.f32 %v1770, %v1878
        %v1927 = vadd.f32 %v1771, %v1881
        %v1928 = vadd.f32 %v1772, %v1883
        %v1929 = vadd.f32 %v1773, %v1886
        %v1930 = vadd.f32 %v1774, %v1888
        %v1931 = vadd.f32 %v1775, %v1891
        %v1932 = vadd.f32 %v1776, %v1893
        %v1933 = vadd.f32 %v1777, %v1896
        %v1934 = vadd.f32 %v1778, %v1898
        %v1935 = vadd.f32 %v1779, %v1901
        %v1936 = vadd.f32 %v1780, %v1903
        %v1938 = vrot.slane %v488, 5
        %v1939 = vrot.slane %v1938, 4
        %v1940 = vrot.slane %v489, 5
        %v1941 = vsel %vm1312, %v1939, %v1940
        %v1942 = vrot.slane %v1940, 4
        %v1943 = vrot.slane %v490, 5
        %v1944 = vsel %vm1312, %v1942, %v1943
        %s1945 = scalar_lea.vmem %s1, 10
        %v1946 = vld [vmem:[%s1945] sm:$0x3]
        %v1947 = vunpack.c.l.b16 %v1941
        %v1948 = vunpack.c.l.b16 %v1944
        %v1949 = vpack.c.b16 %v1948, %v1947
        %v1951 = vsel %vm932, %v1949, 0
        %v1954 = vsel %vm981, %v1946, 0
        %1956 = vmatpush.bf16.msra.mxu0 0
        %1957 = vmatpush.bf16.msra.mxu0 0
        %1958 = vmatpush.bf16.msra.mxu0 0
        %1959 = vmatpush.bf16.msra.mxu0 0
        %1960 = vmatpush.bf16.msra.mxu0 0
        %1961 = vmatpush.bf16.msra.mxu0 0
        %1962 = vmatpush.bf16.msra.mxu0 0
        %1963 = vmatpush.bf16.msra.mxu0 %v1954
        %1964 = vmatmul.bf16.gmra.mxu0 %v1479
        %v1965 = vpop.f32.mrf.mxu0
        %v1966 = vadd.f32 0.0, %v1965
        %v1967 = vpop.f32.mrf.mxu0
        %v1968 = vadd.f32 0.0, %v1967
        %1969 = vmatmul.bf16.gmra.mxu0 %v1482
        %v1970 = vpop.f32.mrf.mxu0
        %v1971 = vadd.f32 0.0, %v1970
        %v1972 = vpop.f32.mrf.mxu0
        %v1973 = vadd.f32 0.0, %v1972
        %1974 = vmatmul.bf16.gmra.mxu0 %v1485
        %v1975 = vpop.f32.mrf.mxu0
        %v1976 = vadd.f32 0.0, %v1975
        %v1977 = vpop.f32.mrf.mxu0
        %v1978 = vadd.f32 0.0, %v1977
        %1979 = vmatmul.bf16.gmra.mxu0 %v1488
        %v1980 = vpop.f32.mrf.mxu0
        %v1981 = vadd.f32 0.0, %v1980
        %v1982 = vpop.f32.mrf.mxu0
        %v1983 = vadd.f32 0.0, %v1982
        %1984 = vmatmul.bf16.gmra.mxu0 %v1491
        %v1985 = vpop.f32.mrf.mxu0
        %v1986 = vadd.f32 0.0, %v1985
        %v1987 = vpop.f32.mrf.mxu0
        %v1988 = vadd.f32 0.0, %v1987
        %1989 = vmatmul.bf16.gmra.mxu0 %v1494
        %v1990 = vpop.f32.mrf.mxu0
        %v1991 = vadd.f32 0.0, %v1990
        %v1992 = vpop.f32.mrf.mxu0
        %v1993 = vadd.f32 0.0, %v1992
        %1994 = vmatmul.bf16.gmra.mxu0 %v1497
        %v1995 = vpop.f32.mrf.mxu0
        %v1996 = vadd.f32 0.0, %v1995
        %v1997 = vpop.f32.mrf.mxu0
        %v1998 = vadd.f32 0.0, %v1997
        %1999 = vmatmul.bf16.gmra.mxu0 %v1500
        %v2000 = vpop.f32.mrf.mxu0
        %v2001 = vadd.f32 0.0, %v2000
        %v2002 = vpop.f32.mrf.mxu0
        %v2003 = vadd.f32 0.0, %v2002
        %2004 = vmatmul.bf16.gmra.mxu0 %v1503
        %v2005 = vpop.f32.mrf.mxu0
        %v2006 = vadd.f32 0.0, %v2005
        %v2007 = vpop.f32.mrf.mxu0
        %v2008 = vadd.f32 0.0, %v2007
        %2009 = vmatmul.bf16.gmra.mxu0 %v1506
        %v2010 = vpop.f32.mrf.mxu0
        %v2011 = vadd.f32 0.0, %v2010
        %v2012 = vpop.f32.mrf.mxu0
        %v2013 = vadd.f32 0.0, %v2012
        %2014 = vmatmul.bf16.gmra.mxu0 %v1509
        %v2015 = vpop.f32.mrf.mxu0
        %v2016 = vadd.f32 0.0, %v2015
        %v2017 = vpop.f32.mrf.mxu0
        %v2018 = vadd.f32 0.0, %v2017
        %2019 = vmatmul.bf16.gmra.mxu0 %v1512
        %v2020 = vpop.f32.mrf.mxu0
        %v2021 = vadd.f32 0.0, %v2020
        %v2022 = vpop.f32.mrf.mxu0
        %v2023 = vadd.f32 0.0, %v2022
        %2024 = vmatmul.bf16.gmra.mxu0 %v1515
        %v2025 = vpop.f32.mrf.mxu0
        %v2026 = vadd.f32 0.0, %v2025
        %v2027 = vpop.f32.mrf.mxu0
        %v2028 = vadd.f32 0.0, %v2027
        %2029 = vmatmul.bf16.gmra.mxu0 %v1518
        %v2030 = vpop.f32.mrf.mxu0
        %v2031 = vadd.f32 0.0, %v2030
        %v2032 = vpop.f32.mrf.mxu0
        %v2033 = vadd.f32 0.0, %v2032
        %2034 = vmatmul.bf16.gmra.mxu0 %v1521
        %v2035 = vpop.f32.mrf.mxu0
        %v2036 = vadd.f32 0.0, %v2035
        %v2037 = vpop.f32.mrf.mxu0
        %v2038 = vadd.f32 0.0, %v2037
        %2039 = vmatmul.bf16.gmra.mxu0 %v1951
        %v2040 = vpop.f32.mrf.mxu0
        %v2041 = vadd.f32 0.0, %v2040
        %v2042 = vpop.f32.mrf.mxu0
        %v2043 = vadd.f32 0.0, %v2042
        %2044 = vdwg.mxu0
        %v2045 = vadd.f32 %v1905, %v1966
        %v2046 = vadd.f32 %v1906, %v1968
        %v2047 = vadd.f32 %v1907, %v1971
        %v2048 = vadd.f32 %v1908, %v1973
        %v2049 = vadd.f32 %v1909, %v1976
        %v2050 = vadd.f32 %v1910, %v1978
        %v2051 = vadd.f32 %v1911, %v1981
        %v2052 = vadd.f32 %v1912, %v1983
        %v2053 = vadd.f32 %v1913, %v1986
        %v2054 = vadd.f32 %v1914, %v1988
        %v2055 = vadd.f32 %v1915, %v1991
        %v2056 = vadd.f32 %v1916, %v1993
        %v2057 = vadd.f32 %v1917, %v1996
        %v2058 = vadd.f32 %v1918, %v1998
        %v2059 = vadd.f32 %v1919, %v2001
        %v2060 = vadd.f32 %v1920, %v2003
        %v2061 = vadd.f32 %v1921, %v2006
        %v2062 = vadd.f32 %v1922, %v2008
        %v2063 = vadd.f32 %v1923, %v2011
        %v2064 = vadd.f32 %v1924, %v2013
        %v2065 = vadd.f32 %v1925, %v2016
        %v2066 = vadd.f32 %v1926, %v2018
        %v2067 = vadd.f32 %v1927, %v2021
        %v2068 = vadd.f32 %v1928, %v2023
        %v2069 = vadd.f32 %v1929, %v2026
        %v2070 = vadd.f32 %v1930, %v2028
        %v2071 = vadd.f32 %v1931, %v2031
        %v2072 = vadd.f32 %v1932, %v2033
        %v2073 = vadd.f32 %v1933, %v2036
        %v2074 = vadd.f32 %v1934, %v2038
        %v2075 = vadd.f32 %v1935, %v2041
        %v2076 = vadd.f32 %v1936, %v2043
        %s2077 = scalar_lea.vmem %s1, 12
        %v2078 = vld [vmem:[%s2077] sm:$0x3]
        %v2081 = vunpack.c.l.b16 %v491
        %v2082 = vunpack.c.l.b16 %v492
        %v2083 = vpack.c.b16 %v2082, %v2081
        %v2085 = vsel %vm932, %v2083, 0
        %v2088 = vsel %vm981, %v2078, 0
        %2090 = vmatpush.bf16.msra.mxu0 0
        %2091 = vmatpush.bf16.msra.mxu0 0
        %2092 = vmatpush.bf16.msra.mxu0 0
        %2093 = vmatpush.bf16.msra.mxu0 0
        %2094 = vmatpush.bf16.msra.mxu0 0
        %2095 = vmatpush.bf16.msra.mxu0 0
        %2096 = vmatpush.bf16.msra.mxu0 0
        %2097 = vmatpush.bf16.msra.mxu0 %v2088
        %2098 = vmatmul.bf16.gmra.mxu0 %v1161
        %v2099 = vpop.f32.mrf.mxu0
        %v2100 = vadd.f32 0.0, %v2099
        %v2101 = vpop.f32.mrf.mxu0
        %v2102 = vadd.f32 0.0, %v2101
        %2103 = vmatmul.bf16.gmra.mxu0 %v1164
        %v2104 = vpop.f32.mrf.mxu0
        %v2105 = vadd.f32 0.0, %v2104
        %v2106 = vpop.f32.mrf.mxu0
        %v2107 = vadd.f32 0.0, %v2106
        %2108 = vmatmul.bf16.gmra.mxu0 %v1167
        %v2109 = vpop.f32.mrf.mxu0
        %v2110 = vadd.f32 0.0, %v2109
        %v2111 = vpop.f32.mrf.mxu0
        %v2112 = vadd.f32 0.0, %v2111
        %2113 = vmatmul.bf16.gmra.mxu0 %v1170
        %v2114 = vpop.f32.mrf.mxu0
        %v2115 = vadd.f32 0.0, %v2114
        %v2116 = vpop.f32.mrf.mxu0
        %v2117 = vadd.f32 0.0, %v2116
        %2118 = vmatmul.bf16.gmra.mxu0 %v1173
        %v2119 = vpop.f32.mrf.mxu0
        %v2120 = vadd.f32 0.0, %v2119
        %v2121 = vpop.f32.mrf.mxu0
        %v2122 = vadd.f32 0.0, %v2121
        %2123 = vmatmul.bf16.gmra.mxu0 %v1176
        %v2124 = vpop.f32.mrf.mxu0
        %v2125 = vadd.f32 0.0, %v2124
        %v2126 = vpop.f32.mrf.mxu0
        %v2127 = vadd.f32 0.0, %v2126
        %2128 = vmatmul.bf16.gmra.mxu0 %v1179
        %v2129 = vpop.f32.mrf.mxu0
        %v2130 = vadd.f32 0.0, %v2129
        %v2131 = vpop.f32.mrf.mxu0
        %v2132 = vadd.f32 0.0, %v2131
        %2133 = vmatmul.bf16.gmra.mxu0 %v1182
        %v2134 = vpop.f32.mrf.mxu0
        %v2135 = vadd.f32 0.0, %v2134
        %v2136 = vpop.f32.mrf.mxu0
        %v2137 = vadd.f32 0.0, %v2136
        %2138 = vmatmul.bf16.gmra.mxu0 %v1185
        %v2139 = vpop.f32.mrf.mxu0
        %v2140 = vadd.f32 0.0, %v2139
        %v2141 = vpop.f32.mrf.mxu0
        %v2142 = vadd.f32 0.0, %v2141
        %2143 = vmatmul.bf16.gmra.mxu0 %v1188
        %v2144 = vpop.f32.mrf.mxu0
        %v2145 = vadd.f32 0.0, %v2144
        %v2146 = vpop.f32.mrf.mxu0
        %v2147 = vadd.f32 0.0, %v2146
        %2148 = vmatmul.bf16.gmra.mxu0 %v1191
        %v2149 = vpop.f32.mrf.mxu0
        %v2150 = vadd.f32 0.0, %v2149
        %v2151 = vpop.f32.mrf.mxu0
        %v2152 = vadd.f32 0.0, %v2151
        %2153 = vmatmul.bf16.gmra.mxu0 %v1194
        %v2154 = vpop.f32.mrf.mxu0
        %v2155 = vadd.f32 0.0, %v2154
        %v2156 = vpop.f32.mrf.mxu0
        %v2157 = vadd.f32 0.0, %v2156
        %2158 = vmatmul.bf16.gmra.mxu0 %v1197
        %v2159 = vpop.f32.mrf.mxu0
        %v2160 = vadd.f32 0.0, %v2159
        %v2161 = vpop.f32.mrf.mxu0
        %v2162 = vadd.f32 0.0, %v2161
        %2163 = vmatmul.bf16.gmra.mxu0 %v1200
        %v2164 = vpop.f32.mrf.mxu0
        %v2165 = vadd.f32 0.0, %v2164
        %v2166 = vpop.f32.mrf.mxu0
        %v2167 = vadd.f32 0.0, %v2166
        %2168 = vmatmul.bf16.gmra.mxu0 %v1655
        %v2169 = vpop.f32.mrf.mxu0
        %v2170 = vadd.f32 0.0, %v2169
        %v2171 = vpop.f32.mrf.mxu0
        %v2172 = vadd.f32 0.0, %v2171
        %2173 = vmatmul.bf16.gmra.mxu0 %v2085
        %v2174 = vpop.f32.mrf.mxu0
        %v2175 = vadd.f32 0.0, %v2174
        %v2176 = vpop.f32.mrf.mxu0
        %v2177 = vadd.f32 0.0, %v2176
        %2178 = vdwg.mxu0
        %v2179 = vadd.f32 %v2045, %v2100
        %v2180 = vadd.f32 %v2046, %v2102
        %v2181 = vadd.f32 %v2047, %v2105
        %v2182 = vadd.f32 %v2048, %v2107
        %v2183 = vadd.f32 %v2049, %v2110
        %v2184 = vadd.f32 %v2050, %v2112
        %v2185 = vadd.f32 %v2051, %v2115
        %v2186 = vadd.f32 %v2052, %v2117
        %v2187 = vadd.f32 %v2053, %v2120
        %v2188 = vadd.f32 %v2054, %v2122
        %v2189 = vadd.f32 %v2055, %v2125
        %v2190 = vadd.f32 %v2056, %v2127
        %v2191 = vadd.f32 %v2057, %v2130
        %v2192 = vadd.f32 %v2058, %v2132
        %v2193 = vadd.f32 %v2059, %v2135
        %v2194 = vadd.f32 %v2060, %v2137
        %v2195 = vadd.f32 %v2061, %v2140
        %v2196 = vadd.f32 %v2062, %v2142
        %v2197 = vadd.f32 %v2063, %v2145
        %v2198 = vadd.f32 %v2064, %v2147
        %v2199 = vadd.f32 %v2065, %v2150
        %v2200 = vadd.f32 %v2066, %v2152
        %v2201 = vadd.f32 %v2067, %v2155
        %v2202 = vadd.f32 %v2068, %v2157
        %v2203 = vadd.f32 %v2069, %v2160
        %v2204 = vadd.f32 %v2070, %v2162
        %v2205 = vadd.f32 %v2071, %v2165
        %v2206 = vadd.f32 %v2072, %v2167
        %v2207 = vadd.f32 %v2073, %v2170
        %v2208 = vadd.f32 %v2074, %v2172
        %v2209 = vadd.f32 %v2075, %v2175
        %v2210 = vadd.f32 %v2076, %v2177
        %v2212 = vshrl.u32 %v491, 16
        %v2214 = vrot.slane %v2212, 4
        %v2215 = vshll.u32 %v491, 16
        %v2217 = vrot.slane %v2215, 5
        %v2218 = vor.u32 %v2214, %v2217
        %v2219 = vrot.slane %v2218, 4
        %v2221 = vshll.u32 %v492, 16
        %v2223 = vrot.slane %v2221, 5
        %v2224 = vsel %vm497, %v2219, %v2223
        %v2225 = vshrl.u32 %v492, 16
        %v2227 = vrot.slane %v2225, 4
        %v2228 = vor.u32 %v2227, %v2223
        %v2229 = vrot.slane %v2228, 4
        %v2231 = vshll.u32 %v493, 16
        %v2233 = vrot.slane %v2231, 5
        %v2234 = vsel %vm497, %v2229, %v2233
        %s2235 = scalar_lea.vmem %s1, 14
        %v2236 = vld [vmem:[%s2235] sm:$0x3]
        %v2237 = vunpack.c.l.b16 %v2224
        %v2238 = vunpack.c.l.b16 %v2234
        %v2239 = vpack.c.b16 %v2238, %v2237
        %v2241 = vsel %vm932, %v2239, 0
        %v2244 = vsel %vm981, %v2236, 0
        %2246 = vmatpush.bf16.msra.mxu0 0
        %2247 = vmatpush.bf16.msra.mxu0 0
        %2248 = vmatpush.bf16.msra.mxu0 0
        %2249 = vmatpush.bf16.msra.mxu0 0
        %2250 = vmatpush.bf16.msra.mxu0 0
        %2251 = vmatpush.bf16.msra.mxu0 0
        %2252 = vmatpush.bf16.msra.mxu0 0
        %2253 = vmatpush.bf16.msra.mxu0 %v2244
        %2254 = vmatmul.bf16.gmra.mxu0 %v940
        %v2255 = vpop.f32.mrf.mxu0
        %v2256 = vadd.f32 0.0, %v2255
        %v2257 = vpop.f32.mrf.mxu0
        %v2258 = vadd.f32 0.0, %v2257
        %2259 = vmatmul.bf16.gmra.mxu0 %v943
        %v2260 = vpop.f32.mrf.mxu0
        %v2261 = vadd.f32 0.0, %v2260
        %v2262 = vpop.f32.mrf.mxu0
        %v2263 = vadd.f32 0.0, %v2262
        %2264 = vmatmul.bf16.gmra.mxu0 %v946
        %v2265 = vpop.f32.mrf.mxu0
        %v2266 = vadd.f32 0.0, %v2265
        %v2267 = vpop.f32.mrf.mxu0
        %v2268 = vadd.f32 0.0, %v2267
        %2269 = vmatmul.bf16.gmra.mxu0 %v949
        %v2270 = vpop.f32.mrf.mxu0
        %v2271 = vadd.f32 0.0, %v2270
        %v2272 = vpop.f32.mrf.mxu0
        %v2273 = vadd.f32 0.0, %v2272
        %2274 = vmatmul.bf16.gmra.mxu0 %v952
        %v2275 = vpop.f32.mrf.mxu0
        %v2276 = vadd.f32 0.0, %v2275
        %v2277 = vpop.f32.mrf.mxu0
        %v2278 = vadd.f32 0.0, %v2277
        %2279 = vmatmul.bf16.gmra.mxu0 %v955
        %v2280 = vpop.f32.mrf.mxu0
        %v2281 = vadd.f32 0.0, %v2280
        %v2282 = vpop.f32.mrf.mxu0
        %v2283 = vadd.f32 0.0, %v2282
        %2284 = vmatmul.bf16.gmra.mxu0 %v958
        %v2285 = vpop.f32.mrf.mxu0
        %v2286 = vadd.f32 0.0, %v2285
        %v2287 = vpop.f32.mrf.mxu0
        %v2288 = vadd.f32 0.0, %v2287
        %2289 = vmatmul.bf16.gmra.mxu0 %v961
        %v2290 = vpop.f32.mrf.mxu0
        %v2291 = vadd.f32 0.0, %v2290
        %v2292 = vpop.f32.mrf.mxu0
        %v2293 = vadd.f32 0.0, %v2292
        %2294 = vmatmul.bf16.gmra.mxu0 %v964
        %v2295 = vpop.f32.mrf.mxu0
        %v2296 = vadd.f32 0.0, %v2295
        %v2297 = vpop.f32.mrf.mxu0
        %v2298 = vadd.f32 0.0, %v2297
        %2299 = vmatmul.bf16.gmra.mxu0 %v967
        %v2300 = vpop.f32.mrf.mxu0
        %v2301 = vadd.f32 0.0, %v2300
        %v2302 = vpop.f32.mrf.mxu0
        %v2303 = vadd.f32 0.0, %v2302
        %2304 = vmatmul.bf16.gmra.mxu0 %v970
        %v2305 = vpop.f32.mrf.mxu0
        %v2306 = vadd.f32 0.0, %v2305
        %v2307 = vpop.f32.mrf.mxu0
        %v2308 = vadd.f32 0.0, %v2307
        %2309 = vmatmul.bf16.gmra.mxu0 %v973
        %v2310 = vpop.f32.mrf.mxu0
        %v2311 = vadd.f32 0.0, %v2310
        %v2312 = vpop.f32.mrf.mxu0
        %v2313 = vadd.f32 0.0, %v2312
        %2314 = vmatmul.bf16.gmra.mxu0 %v976
        %v2315 = vpop.f32.mrf.mxu0
        %v2316 = vadd.f32 0.0, %v2315
        %v2317 = vpop.f32.mrf.mxu0
        %v2318 = vadd.f32 0.0, %v2317
        %2319 = vmatmul.bf16.gmra.mxu0 %v979
        %v2320 = vpop.f32.mrf.mxu0
        %v2321 = vadd.f32 0.0, %v2320
        %v2322 = vpop.f32.mrf.mxu0
        %v2323 = vadd.f32 0.0, %v2322
        %2324 = vmatmul.bf16.gmra.mxu0 %v1811
        %v2325 = vpop.f32.mrf.mxu0
        %v2326 = vadd.f32 0.0, %v2325
        %v2327 = vpop.f32.mrf.mxu0
        %v2328 = vadd.f32 0.0, %v2327
        %2329 = vmatmul.bf16.gmra.mxu0 %v2241
        %v2330 = vpop.f32.mrf.mxu0
        %v2331 = vadd.f32 0.0, %v2330
        %v2332 = vpop.f32.mrf.mxu0
        %v2333 = vadd.f32 0.0, %v2332
        %2334 = vdwg.mxu0
        %v2335 = vadd.f32 %v2179, %v2256
        %v2336 = vadd.f32 %v2180, %v2258
        %v2337 = vadd.f32 %v2181, %v2261
        %v2338 = vadd.f32 %v2182, %v2263
        %v2339 = vadd.f32 %v2183, %v2266
        %v2340 = vadd.f32 %v2184, %v2268
        %v2341 = vadd.f32 %v2185, %v2271
        %v2342 = vadd.f32 %v2186, %v2273
        %v2343 = vadd.f32 %v2187, %v2276
        %v2344 = vadd.f32 %v2188, %v2278
        %v2345 = vadd.f32 %v2189, %v2281
        %v2346 = vadd.f32 %v2190, %v2283
        %v2347 = vadd.f32 %v2191, %v2286
        %v2348 = vadd.f32 %v2192, %v2288
        %v2349 = vadd.f32 %v2193, %v2291
        %v2350 = vadd.f32 %v2194, %v2293
        %v2351 = vadd.f32 %v2195, %v2296
        %v2352 = vadd.f32 %v2196, %v2298
        %v2353 = vadd.f32 %v2197, %v2301
        %v2354 = vadd.f32 %v2198, %v2303
        %v2355 = vadd.f32 %v2199, %v2306
        %v2356 = vadd.f32 %v2200, %v2308
        %v2357 = vadd.f32 %v2201, %v2311
        %v2358 = vadd.f32 %v2202, %v2313
        %v2359 = vadd.f32 %v2203, %v2316
        %v2360 = vadd.f32 %v2204, %v2318
        %v2361 = vadd.f32 %v2205, %v2321
        %v2362 = vadd.f32 %v2206, %v2323
        %v2363 = vadd.f32 %v2207, %v2326
        %v2364 = vadd.f32 %v2208, %v2328
        %v2365 = vadd.f32 %v2209, %v2331
        %v2366 = vadd.f32 %v2210, %v2333
        %v2368 = vrot.slane %v491, 5
        %v2369 = vrot.slane %v2368, 4
        %v2370 = vrot.slane %v492, 5
        %v2371 = vsel %vm1312, %v2369, %v2370
        %v2372 = vrot.slane %v2370, 4
        %v2373 = vrot.slane %v493, 5
        %v2374 = vsel %vm1312, %v2372, %v2373
        %s2375 = scalar_lea.vmem %s1, 16
        %v2376 = vld [vmem:[%s2375] sm:$0x3]
        %v2377 = vunpack.c.l.b16 %v2371
        %v2378 = vunpack.c.l.b16 %v2374
        %v2379 = vpack.c.b16 %v2378, %v2377
        %v2381 = vsel %vm932, %v2379, 0
        %v2384 = vsel %vm981, %v2376, 0
        %2386 = vmatpush.bf16.msra.mxu0 0
        %2387 = vmatpush.bf16.msra.mxu0 0
        %2388 = vmatpush.bf16.msra.mxu0 0
        %2389 = vmatpush.bf16.msra.mxu0 0
        %2390 = vmatpush.bf16.msra.mxu0 0
        %2391 = vmatpush.bf16.msra.mxu0 0
        %2392 = vmatpush.bf16.msra.mxu0 0
        %2393 = vmatpush.bf16.msra.mxu0 %v2384
        %2394 = vmatmul.bf16.gmra.mxu0 %v1482
        %v2395 = vpop.f32.mrf.mxu0
        %v2396 = vadd.f32 0.0, %v2395
        %v2397 = vpop.f32.mrf.mxu0
        %v2398 = vadd.f32 0.0, %v2397
        %2399 = vmatmul.bf16.gmra.mxu0 %v1485
        %v2400 = vpop.f32.mrf.mxu0
        %v2401 = vadd.f32 0.0, %v2400
        %v2402 = vpop.f32.mrf.mxu0
        %v2403 = vadd.f32 0.0, %v2402
        %2404 = vmatmul.bf16.gmra.mxu0 %v1488
        %v2405 = vpop.f32.mrf.mxu0
        %v2406 = vadd.f32 0.0, %v2405
        %v2407 = vpop.f32.mrf.mxu0
        %v2408 = vadd.f32 0.0, %v2407
        %2409 = vmatmul.bf16.gmra.mxu0 %v1491
        %v2410 = vpop.f32.mrf.mxu0
        %v2411 = vadd.f32 0.0, %v2410
        %v2412 = vpop.f32.mrf.mxu0
        %v2413 = vadd.f32 0.0, %v2412
        %2414 = vmatmul.bf16.gmra.mxu0 %v1494
        %v2415 = vpop.f32.mrf.mxu0
        %v2416 = vadd.f32 0.0, %v2415
        %v2417 = vpop.f32.mrf.mxu0
        %v2418 = vadd.f32 0.0, %v2417
        %2419 = vmatmul.bf16.gmra.mxu0 %v1497
        %v2420 = vpop.f32.mrf.mxu0
        %v2421 = vadd.f32 0.0, %v2420
        %v2422 = vpop.f32.mrf.mxu0
        %v2423 = vadd.f32 0.0, %v2422
        %2424 = vmatmul.bf16.gmra.mxu0 %v1500
        %v2425 = vpop.f32.mrf.mxu0
        %v2426 = vadd.f32 0.0, %v2425
        %v2427 = vpop.f32.mrf.mxu0
        %v2428 = vadd.f32 0.0, %v2427
        %2429 = vmatmul.bf16.gmra.mxu0 %v1503
        %v2430 = vpop.f32.mrf.mxu0
        %v2431 = vadd.f32 0.0, %v2430
        %v2432 = vpop.f32.mrf.mxu0
        %v2433 = vadd.f32 0.0, %v2432
        %2434 = vmatmul.bf16.gmra.mxu0 %v1506
        %v2435 = vpop.f32.mrf.mxu0
        %v2436 = vadd.f32 0.0, %v2435
        %v2437 = vpop.f32.mrf.mxu0
        %v2438 = vadd.f32 0.0, %v2437
        %2439 = vmatmul.bf16.gmra.mxu0 %v1509
        %v2440 = vpop.f32.mrf.mxu0
        %v2441 = vadd.f32 0.0, %v2440
        %v2442 = vpop.f32.mrf.mxu0
        %v2443 = vadd.f32 0.0, %v2442
        %2444 = vmatmul.bf16.gmra.mxu0 %v1512
        %v2445 = vpop.f32.mrf.mxu0
        %v2446 = vadd.f32 0.0, %v2445
        %v2447 = vpop.f32.mrf.mxu0
        %v2448 = vadd.f32 0.0, %v2447
        %2449 = vmatmul.bf16.gmra.mxu0 %v1515
        %v2450 = vpop.f32.mrf.mxu0
        %v2451 = vadd.f32 0.0, %v2450
        %v2452 = vpop.f32.mrf.mxu0
        %v2453 = vadd.f32 0.0, %v2452
        %2454 = vmatmul.bf16.gmra.mxu0 %v1518
        %v2455 = vpop.f32.mrf.mxu0
        %v2456 = vadd.f32 0.0, %v2455
        %v2457 = vpop.f32.mrf.mxu0
        %v2458 = vadd.f32 0.0, %v2457
        %2459 = vmatmul.bf16.gmra.mxu0 %v1521
        %v2460 = vpop.f32.mrf.mxu0
        %v2461 = vadd.f32 0.0, %v2460
        %v2462 = vpop.f32.mrf.mxu0
        %v2463 = vadd.f32 0.0, %v2462
        %2464 = vmatmul.bf16.gmra.mxu0 %v1951
        %v2465 = vpop.f32.mrf.mxu0
        %v2466 = vadd.f32 0.0, %v2465
        %v2467 = vpop.f32.mrf.mxu0
        %v2468 = vadd.f32 0.0, %v2467
        %2469 = vmatmul.bf16.gmra.mxu0 %v2381
        %v2470 = vpop.f32.mrf.mxu0
        %v2471 = vadd.f32 0.0, %v2470
        %v2472 = vpop.f32.mrf.mxu0
        %v2473 = vadd.f32 0.0, %v2472
        %2474 = vdwg.mxu0
        %v2475 = vadd.f32 %v2335, %v2396
        %v2476 = vadd.f32 %v2336, %v2398
        %v2477 = vadd.f32 %v2337, %v2401
        %v2478 = vadd.f32 %v2338, %v2403
        %v2479 = vadd.f32 %v2339, %v2406
        %v2480 = vadd.f32 %v2340, %v2408
        %v2481 = vadd.f32 %v2341, %v2411
        %v2482 = vadd.f32 %v2342, %v2413
        %v2483 = vadd.f32 %v2343, %v2416
        %v2484 = vadd.f32 %v2344, %v2418
        %v2485 = vadd.f32 %v2345, %v2421
        %v2486 = vadd.f32 %v2346, %v2423
        %v2487 = vadd.f32 %v2347, %v2426
        %v2488 = vadd.f32 %v2348, %v2428
        %v2489 = vadd.f32 %v2349, %v2431
        %v2490 = vadd.f32 %v2350, %v2433
        %v2491 = vadd.f32 %v2351, %v2436
        %v2492 = vadd.f32 %v2352, %v2438
        %v2493 = vadd.f32 %v2353, %v2441
        %v2494 = vadd.f32 %v2354, %v2443
        %v2495 = vadd.f32 %v2355, %v2446
        %v2496 = vadd.f32 %v2356, %v2448
        %v2497 = vadd.f32 %v2357, %v2451
        %v2498 = vadd.f32 %v2358, %v2453
        %v2499 = vadd.f32 %v2359, %v2456
        %v2500 = vadd.f32 %v2360, %v2458
        %v2501 = vadd.f32 %v2361, %v2461
        %v2502 = vadd.f32 %v2362, %v2463
        %v2503 = vadd.f32 %v2363, %v2466
        %v2504 = vadd.f32 %v2364, %v2468
        %v2505 = vadd.f32 %v2365, %v2471
        %v2506 = vadd.f32 %v2366, %v2473
        %v2507 = vld [vmem:[%s2] sm:$0x1]
        %v2509 = vperm.slane %v2507, 0
        %v2511 = vmul.f32 %v2475, %v2509
        %v2512 = vmul.f32 %v2476, %v2509
        %v2513 = vmul.f32 %v2477, %v2509
        %v2514 = vmul.f32 %v2478, %v2509
        %v2515 = vmul.f32 %v2479, %v2509
        %v2516 = vmul.f32 %v2480, %v2509
        %v2517 = vmul.f32 %v2481, %v2509
        %v2518 = vmul.f32 %v2482, %v2509
        %v2519 = vmul.f32 %v2483, %v2509
        %v2520 = vmul.f32 %v2484, %v2509
        %v2521 = vmul.f32 %v2485, %v2509
        %v2522 = vmul.f32 %v2486, %v2509
        %v2523 = vmul.f32 %v2487, %v2509
        %v2524 = vmul.f32 %v2488, %v2509
        %v2525 = vmul.f32 %v2489, %v2509
        %v2526 = vmul.f32 %v2490, %v2509
        %v2527 = vmul.f32 %v2491, %v2509
        %v2528 = vmul.f32 %v2492, %v2509
        %v2529 = vmul.f32 %v2493, %v2509
        %v2530 = vmul.f32 %v2494, %v2509
        %v2531 = vmul.f32 %v2495, %v2509
        %v2532 = vmul.f32 %v2496, %v2509
        %v2533 = vmul.f32 %v2497, %v2509
        %v2534 = vmul.f32 %v2498, %v2509
        %v2535 = vmul.f32 %v2499, %v2509
        %v2536 = vmul.f32 %v2500, %v2509
        %v2537 = vmul.f32 %v2501, %v2509
        %v2538 = vmul.f32 %v2502, %v2509
        %v2539 = vmul.f32 %v2503, %v2509
        %v2540 = vmul.f32 %v2504, %v2509
        %v2541 = vmul.f32 %v2505, %v2509
        %v2542 = vmul.f32 %v2506, %v2509
        %v2543 = vld [vmem:[%s3] sm:$0x1]
        %v2545 = vperm.slane %v2543, 0
        %v2547 = vadd.f32 %v2511, %v2545
        %v2548 = vadd.f32 %v2512, %v2545
        %v2549 = vadd.f32 %v2513, %v2545
        %v2550 = vadd.f32 %v2514, %v2545
        %v2551 = vadd.f32 %v2515, %v2545
        %v2552 = vadd.f32 %v2516, %v2545
        %v2553 = vadd.f32 %v2517, %v2545
        %v2554 = vadd.f32 %v2518, %v2545
        %v2555 = vadd.f32 %v2519, %v2545
        %v2556 = vadd.f32 %v2520, %v2545
        %v2557 = vadd.f32 %v2521, %v2545
        %v2558 = vadd.f32 %v2522, %v2545
        %v2559 = vadd.f32 %v2523, %v2545
        %v2560 = vadd.f32 %v2524, %v2545
        %v2561 = vadd.f32 %v2525, %v2545
        %v2562 = vadd.f32 %v2526, %v2545
        %v2563 = vadd.f32 %v2527, %v2545
        %v2564 = vadd.f32 %v2528, %v2545
        %v2565 = vadd.f32 %v2529, %v2545
        %v2566 = vadd.f32 %v2530, %v2545
        %v2567 = vadd.f32 %v2531, %v2545
        %v2568 = vadd.f32 %v2532, %v2545
        %v2569 = vadd.f32 %v2533, %v2545
        %v2570 = vadd.f32 %v2534, %v2545
        %v2571 = vadd.f32 %v2535, %v2545
        %v2572 = vadd.f32 %v2536, %v2545
        %v2573 = vadd.f32 %v2537, %v2545
        %v2574 = vadd.f32 %v2538, %v2545
        %v2575 = vadd.f32 %v2539, %v2545
        %v2576 = vadd.f32 %v2540, %v2545
        %v2577 = vadd.f32 %v2541, %v2545
        %v2578 = vadd.f32 %v2542, %v2545
        %v2579 = vmax.f32 %v2547, 0.0
        %v2580 = vmax.f32 %v2548, 0.0
        %v2581 = vmax.f32 %v2549, 0.0
        %v2582 = vmax.f32 %v2550, 0.0
        %v2583 = vmax.f32 %v2551, 0.0
        %v2584 = vmax.f32 %v2552, 0.0
        %v2585 = vmax.f32 %v2553, 0.0
        %v2586 = vmax.f32 %v2554, 0.0
        %v2587 = vmax.f32 %v2555, 0.0
        %v2588 = vmax.f32 %v2556, 0.0
        %v2589 = vmax.f32 %v2557, 0.0
        %v2590 = vmax.f32 %v2558, 0.0
        %v2591 = vmax.f32 %v2559, 0.0
        %v2592 = vmax.f32 %v2560, 0.0
        %v2593 = vmax.f32 %v2561, 0.0
        %v2594 = vmax.f32 %v2562, 0.0
        %v2595 = vmax.f32 %v2563, 0.0
        %v2596 = vmax.f32 %v2564, 0.0
        %v2597 = vmax.f32 %v2565, 0.0
        %v2598 = vmax.f32 %v2566, 0.0
        %v2599 = vmax.f32 %v2567, 0.0
        %v2600 = vmax.f32 %v2568, 0.0
        %v2601 = vmax.f32 %v2569, 0.0
        %v2602 = vmax.f32 %v2570, 0.0
        %v2603 = vmax.f32 %v2571, 0.0
        %v2604 = vmax.f32 %v2572, 0.0
        %v2605 = vmax.f32 %v2573, 0.0
        %v2606 = vmax.f32 %v2574, 0.0
        %v2607 = vmax.f32 %v2575, 0.0
        %v2608 = vmax.f32 %v2576, 0.0
        %v2609 = vmax.f32 %v2577, 0.0
        %v2610 = vmax.f32 %v2578, 0.0
        %vm2611 = vcmask 261120
        %2612 = vst.msk [vmem:[#allocation2] sm:$0xff] %vm2611, 0.0
        %2613 = vst.msk [vmem:[#allocation2 + $0x8] sm:$0xff] %vm2611, 0.0
        %vm2614 = vcmask 254976
        %2615 = vst.msk [vmem:[#allocation2 + $0x10] sm:$0x3] %vm2614, 0.0
        %2616 = vst.msk [vmem:[#allocation2 + $0x18] sm:$0xff] %vm2611, 0.0
        %2617 = vst.msk [vmem:[#allocation2 + $0x20] sm:$0xff] %vm2611, 0.0
        %2618 = vst.msk [vmem:[#allocation2 + $0x28] sm:$0x3] %vm2614, 0.0
        %2619 = vst.msk [vmem:[#allocation2 + $0x30] sm:$0xff] %vm2611, 0.0
        %2620 = vst.msk [vmem:[#allocation2 + $0x38] sm:$0xff] %vm2611, 0.0
        %2621 = vst.msk [vmem:[#allocation2 + $0x40] sm:$0x3] %vm2614, 0.0
        %2622 = vst.msk [vmem:[#allocation2 + $0x48] sm:$0xff] %vm2611, 0.0
        %2623 = vst.msk [vmem:[#allocation2 + $0x50] sm:$0xff] %vm2611, 0.0
        %2624 = vst.msk [vmem:[#allocation2 + $0x58] sm:$0x3] %vm2614, 0.0
        %2625 = vst.msk [vmem:[#allocation2 + $0x60] sm:$0xff] %vm2611, 0.0
        %2626 = vst.msk [vmem:[#allocation2 + $0x68] sm:$0xff] %vm2611, 0.0
        %2627 = vst.msk [vmem:[#allocation2 + $0x70] sm:$0x3] %vm2614, 0.0
        %2628 = vst.msk [vmem:[#allocation2 + $0x78] sm:$0xff] %vm2611, 0.0
        %2629 = vst.msk [vmem:[#allocation2 + $0x80] sm:$0xff] %vm2611, 0.0
        %2630 = vst.msk [vmem:[#allocation2 + $0x88] sm:$0x3] %vm2614, 0.0
        %2631 = vst.msk [vmem:[#allocation2 + $0x90] sm:$0xff] %vm2611, 0.0
        %2632 = vst.msk [vmem:[#allocation2 + $0x98] sm:$0xff] %vm2611, 0.0
        %2633 = vst.msk [vmem:[#allocation2 + $0xa0] sm:$0x3] %vm2614, 0.0
        %2634 = vst.msk [vmem:[#allocation2 + $0xa8] sm:$0xff] %vm2611, 0.0
        %2635 = vst.msk [vmem:[#allocation2 + $0xb0] sm:$0xff] %vm2611, 0.0
        %2636 = vst.msk [vmem:[#allocation2 + $0xb8] sm:$0x3] %vm2614, 0.0
        %2637 = vst.msk [vmem:[#allocation2 + $0xc0] sm:$0xff] %vm2611, 0.0
        %2638 = vst.msk [vmem:[#allocation2 + $0xc8] sm:$0xff] %vm2611, 0.0
        %2639 = vst.msk [vmem:[#allocation2 + $0xd0] sm:$0x3] %vm2614, 0.0
        %2640 = vst.msk [vmem:[#allocation2 + $0xd8] sm:$0xff] %vm2611, 0.0
        %2641 = vst.msk [vmem:[#allocation2 + $0xe0] sm:$0xff] %vm2611, 0.0
        %2642 = vst.msk [vmem:[#allocation2 + $0xe8] sm:$0x3] %vm2614, 0.0
        %2643 = vst.msk [vmem:[#allocation2 + $0xf0] sm:$0xff] %vm2611, 0.0
        %2644 = vst.msk [vmem:[#allocation2 + $0xf8] sm:$0xff] %vm2611, 0.0
        %2645 = vst.msk [vmem:[#allocation2 + $0x100] sm:$0x3] %vm2614, 0.0
        %2646 = vst.msk [vmem:[#allocation2 + $0x108] sm:$0xff] %vm2611, 0.0
        %2647 = vst.msk [vmem:[#allocation2 + $0x110] sm:$0xff] %vm2611, 0.0
        %2648 = vst.msk [vmem:[#allocation2 + $0x118] sm:$0x3] %vm2614, 0.0
        %2649 = vst.msk [vmem:[#allocation2 + $0x120] sm:$0xff] %vm2611, 0.0
        %2650 = vst.msk [vmem:[#allocation2 + $0x128] sm:$0xff] %vm2611, 0.0
        %2651 = vst.msk [vmem:[#allocation2 + $0x130] sm:$0x3] %vm2614, 0.0
        %2652 = vst.msk [vmem:[#allocation2 + $0x138] sm:$0xff] %vm2611, 0.0
        %2653 = vst.msk [vmem:[#allocation2 + $0x140] sm:$0xff] %vm2611, 0.0
        %2654 = vst.msk [vmem:[#allocation2 + $0x148] sm:$0x3] %vm2614, 0.0
        %2655 = vst.msk [vmem:[#allocation2 + $0x150] sm:$0xff] %vm2611, 0.0
        %2656 = vst.msk [vmem:[#allocation2 + $0x158] sm:$0xff] %vm2611, 0.0
        %2657 = vst.msk [vmem:[#allocation2 + $0x160] sm:$0x3] %vm2614, 0.0
        %2658 = vst.msk [vmem:[#allocation2 + $0x168] sm:$0xff] %vm2611, 0.0
        %2659 = vst.msk [vmem:[#allocation2 + $0x170] sm:$0xff] %vm2611, 0.0
        %2660 = vst.msk [vmem:[#allocation2 + $0x178] sm:$0x3] %vm2614, 0.0
        %2661 = vst.msk [vmem:[#allocation2 + $0x180] sm:$0xff] %vm2611, 0.0
        %2662 = vst.msk [vmem:[#allocation2 + $0x188] sm:$0xff] %vm2611, 0.0
        %2663 = vst.msk [vmem:[#allocation2 + $0x190] sm:$0x3] %vm2614, 0.0
        %2664 = vst.msk [vmem:[#allocation2 + $0x198] sm:$0xff] %vm2611, 0.0
        %2665 = vst.msk [vmem:[#allocation2 + $0x1a0] sm:$0xff] %vm2611, 0.0
        %2666 = vst.msk [vmem:[#allocation2 + $0x1a8] sm:$0x3] %vm2614, 0.0
        %s2667 = scalar_lea.vmem [#allocation2], 24
        %2668 = vst.msk [vmem:[%s2667 + $0x1] sm:$0xff] %vm2611, %v2579
        %2669 = vst.msk [vmem:[%s2667 + $0x9] sm:$0xff] %vm2611, %v2580
        %2670 = vst.msk [vmem:[%s2667 + $0x19] sm:$0xff] %vm2611, %v2581
        %2671 = vst.msk [vmem:[%s2667 + $0x21] sm:$0xff] %vm2611, %v2582
        %2672 = vst.msk [vmem:[%s2667 + $0x31] sm:$0xff] %vm2611, %v2583
        %2673 = vst.msk [vmem:[%s2667 + $0x39] sm:$0xff] %vm2611, %v2584
        %2674 = vst.msk [vmem:[%s2667 + $0x49] sm:$0xff] %vm2611, %v2585
        %2675 = vst.msk [vmem:[%s2667 + $0x51] sm:$0xff] %vm2611, %v2586
        %2676 = vst.msk [vmem:[%s2667 + $0x61] sm:$0xff] %vm2611, %v2587
        %2677 = vst.msk [vmem:[%s2667 + $0x69] sm:$0xff] %vm2611, %v2588
        %2678 = vst.msk [vmem:[%s2667 + $0x79] sm:$0xff] %vm2611, %v2589
        %2679 = vst.msk [vmem:[%s2667 + $0x81] sm:$0xff] %vm2611, %v2590
        %2680 = vst.msk [vmem:[%s2667 + $0x91] sm:$0xff] %vm2611, %v2591
        %2681 = vst.msk [vmem:[%s2667 + $0x99] sm:$0xff] %vm2611, %v2592
        %2682 = vst.msk [vmem:[%s2667 + $0xa9] sm:$0xff] %vm2611, %v2593
        %2683 = vst.msk [vmem:[%s2667 + $0xb1] sm:$0xff] %vm2611, %v2594
        %2684 = vst.msk [vmem:[%s2667 + $0xc1] sm:$0xff] %vm2611, %v2595
        %2685 = vst.msk [vmem:[%s2667 + $0xc9] sm:$0xff] %vm2611, %v2596
        %2686 = vst.msk [vmem:[%s2667 + $0xd9] sm:$0xff] %vm2611, %v2597
        %2687 = vst.msk [vmem:[%s2667 + $0xe1] sm:$0xff] %vm2611, %v2598
        %2688 = vst.msk [vmem:[%s2667 + $0xf1] sm:$0xff] %vm2611, %v2599
        %2689 = vst.msk [vmem:[%s2667 + $0xf9] sm:$0xff] %vm2611, %v2600
        %2690 = vst.msk [vmem:[%s2667 + $0x109] sm:$0xff] %vm2611, %v2601
        %2691 = vst.msk [vmem:[%s2667 + $0x111] sm:$0xff] %vm2611, %v2602
        %2692 = vst.msk [vmem:[%s2667 + $0x121] sm:$0xff] %vm2611, %v2603
        %2693 = vst.msk [vmem:[%s2667 + $0x129] sm:$0xff] %vm2611, %v2604
        %2694 = vst.msk [vmem:[%s2667 + $0x139] sm:$0xff] %vm2611, %v2605
        %2695 = vst.msk [vmem:[%s2667 + $0x141] sm:$0xff] %vm2611, %v2606
        %2696 = vst.msk [vmem:[%s2667 + $0x151] sm:$0xff] %vm2611, %v2607
        %2697 = vst.msk [vmem:[%s2667 + $0x159] sm:$0xff] %vm2611, %v2608
        %2698 = vst.msk [vmem:[%s2667 + $0x169] sm:$0xff] %vm2611, %v2609
        %2699 = vst.msk [vmem:[%s2667 + $0x171] sm:$0xff] %vm2611, %v2610
        %v2700 = vld [vmem:[#allocation2] sm:$0xff]
        %v2701 = vld [vmem:[#allocation2 + $0x8] sm:$0xff]
        %v2702 = vld [vmem:[#allocation2 + $0x18] sm:$0xff]
        %v2703 = vld [vmem:[#allocation2 + $0x20] sm:$0xff]
        %v2704 = vld [vmem:[#allocation2 + $0x30] sm:$0xff]
        %v2705 = vld [vmem:[#allocation2 + $0x38] sm:$0xff]
        %v2706 = vld [vmem:[#allocation2 + $0x48] sm:$0xff]
        %v2707 = vld [vmem:[#allocation2 + $0x50] sm:$0xff]
        %v2708 = vld [vmem:[#allocation2 + $0x60] sm:$0xff]
        %v2709 = vld [vmem:[#allocation2 + $0x68] sm:$0xff]
        %v2710 = vld [vmem:[#allocation2 + $0x78] sm:$0xff]
        %v2711 = vld [vmem:[#allocation2 + $0x80] sm:$0xff]
        %v2712 = vld [vmem:[#allocation2 + $0x90] sm:$0xff]
        %v2713 = vld [vmem:[#allocation2 + $0x98] sm:$0xff]
        %v2714 = vld [vmem:[#allocation2 + $0xa8] sm:$0xff]
        %v2715 = vld [vmem:[#allocation2 + $0xb0] sm:$0xff]
        %v2716 = vld [vmem:[#allocation2 + $0xc0] sm:$0xff]
        %v2717 = vld [vmem:[#allocation2 + $0xc8] sm:$0xff]
        %v2718 = vld [vmem:[#allocation2 + $0xd8] sm:$0xff]
        %v2719 = vld [vmem:[#allocation2 + $0xe0] sm:$0xff]
        %v2720 = vld [vmem:[#allocation2 + $0xf0] sm:$0xff]
        %v2721 = vld [vmem:[#allocation2 + $0xf8] sm:$0xff]
        %v2722 = vld [vmem:[#allocation2 + $0x108] sm:$0xff]
        %v2723 = vld [vmem:[#allocation2 + $0x110] sm:$0xff]
        %v2724 = vld [vmem:[#allocation2 + $0x120] sm:$0xff]
        %v2725 = vld [vmem:[#allocation2 + $0x128] sm:$0xff]
        %v2726 = vld [vmem:[#allocation2 + $0x138] sm:$0xff]
        %v2727 = vld [vmem:[#allocation2 + $0x140] sm:$0xff]
        %v2728 = vld [vmem:[#allocation2 + $0x150] sm:$0xff]
        %v2729 = vld [vmem:[#allocation2 + $0x158] sm:$0xff]
        %v2730 = vld [vmem:[#allocation2 + $0x168] sm:$0xff]
        %v2731 = vld [vmem:[#allocation2 + $0x170] sm:$0xff]
        %v2732 = vld [vmem:[%s4] sm:$0x1]
        %v2734 = vperm.slane %v2732, 0
        %v2736 = vmul.f32 %v2700, %v2734
        %v2737 = vmul.f32 %v2701, %v2734
        %v2738 = vmul.f32 %v2702, %v2734
        %v2739 = vmul.f32 %v2703, %v2734
        %v2740 = vmul.f32 %v2704, %v2734
        %v2741 = vmul.f32 %v2705, %v2734
        %v2742 = vmul.f32 %v2706, %v2734
        %v2743 = vmul.f32 %v2707, %v2734
        %v2744 = vmul.f32 %v2708, %v2734
        %v2745 = vmul.f32 %v2709, %v2734
        %v2746 = vmul.f32 %v2710, %v2734
        %v2747 = vmul.f32 %v2711, %v2734
        %v2748 = vmul.f32 %v2712, %v2734
        %v2749 = vmul.f32 %v2713, %v2734
        %v2750 = vmul.f32 %v2714, %v2734
        %v2751 = vmul.f32 %v2715, %v2734
        %v2752 = vmul.f32 %v2716, %v2734
        %v2753 = vmul.f32 %v2717, %v2734
        %v2754 = vmul.f32 %v2718, %v2734
        %v2755 = vmul.f32 %v2719, %v2734
        %v2756 = vmul.f32 %v2720, %v2734
        %v2757 = vmul.f32 %v2721, %v2734
        %v2758 = vmul.f32 %v2722, %v2734
        %v2759 = vmul.f32 %v2723, %v2734
        %v2760 = vmul.f32 %v2724, %v2734
        %v2761 = vmul.f32 %v2725, %v2734
        %v2762 = vmul.f32 %v2726, %v2734
        %v2763 = vmul.f32 %v2727, %v2734
        %v2764 = vmul.f32 %v2728, %v2734
        %v2765 = vmul.f32 %v2729, %v2734
        %v2766 = vmul.f32 %v2730, %v2734
        %v2767 = vmul.f32 %v2731, %v2734
        %v2768 = vadd.f32 %v2736, 0.0
        %v2769 = vadd.f32 %v2737, 0.0
        %v2770 = vadd.f32 %v2738, 0.0
        %v2771 = vadd.f32 %v2739, 0.0
        %v2772 = vadd.f32 %v2740, 0.0
        %v2773 = vadd.f32 %v2741, 0.0
        %v2774 = vadd.f32 %v2742, 0.0
        %v2775 = vadd.f32 %v2743, 0.0
        %v2776 = vadd.f32 %v2744, 0.0
        %v2777 = vadd.f32 %v2745, 0.0
        %v2778 = vadd.f32 %v2746, 0.0
        %v2779 = vadd.f32 %v2747, 0.0
        %v2780 = vadd.f32 %v2748, 0.0
        %v2781 = vadd.f32 %v2749, 0.0
        %v2782 = vadd.f32 %v2750, 0.0
        %v2783 = vadd.f32 %v2751, 0.0
        %v2784 = vadd.f32 %v2752, 0.0
        %v2785 = vadd.f32 %v2753, 0.0
        %v2786 = vadd.f32 %v2754, 0.0
        %v2787 = vadd.f32 %v2755, 0.0
        %v2788 = vadd.f32 %v2756, 0.0
        %v2789 = vadd.f32 %v2757, 0.0
        %v2790 = vadd.f32 %v2758, 0.0
        %v2791 = vadd.f32 %v2759, 0.0
        %v2792 = vadd.f32 %v2760, 0.0
        %v2793 = vadd.f32 %v2761, 0.0
        %v2794 = vadd.f32 %v2762, 0.0
        %v2795 = vadd.f32 %v2763, 0.0
        %v2796 = vadd.f32 %v2764, 0.0
        %v2797 = vadd.f32 %v2765, 0.0
        %v2798 = vadd.f32 %v2766, 0.0
        %v2799 = vadd.f32 %v2767, 0.0
        %v2800 = vld [vmem:[#allocation2 + $0x1] sm:$0xff]
        %v2801 = vld [vmem:[#allocation2 + $0x9] sm:$0xff]
        %v2802 = vld [vmem:[#allocation2 + $0x19] sm:$0xff]
        %v2803 = vld [vmem:[#allocation2 + $0x21] sm:$0xff]
        %v2804 = vld [vmem:[#allocation2 + $0x31] sm:$0xff]
        %v2805 = vld [vmem:[#allocation2 + $0x39] sm:$0xff]
        %v2806 = vld [vmem:[#allocation2 + $0x49] sm:$0xff]
        %v2807 = vld [vmem:[#allocation2 + $0x51] sm:$0xff]
        %v2808 = vld [vmem:[#allocation2 + $0x61] sm:$0xff]
        %v2809 = vld [vmem:[#allocation2 + $0x69] sm:$0xff]
        %v2810 = vld [vmem:[#allocation2 + $0x79] sm:$0xff]
        %v2811 = vld [vmem:[#allocation2 + $0x81] sm:$0xff]
        %v2812 = vld [vmem:[#allocation2 + $0x91] sm:$0xff]
        %v2813 = vld [vmem:[#allocation2 + $0x99] sm:$0xff]
        %v2814 = vld [vmem:[#allocation2 + $0xa9] sm:$0xff]
        %v2815 = vld [vmem:[#allocation2 + $0xb1] sm:$0xff]
        %v2816 = vld [vmem:[#allocation2 + $0xc1] sm:$0xff]
        %v2817 = vld [vmem:[#allocation2 + $0xc9] sm:$0xff]
        %v2818 = vld [vmem:[#allocation2 + $0xd9] sm:$0xff]
        %v2819 = vld [vmem:[#allocation2 + $0xe1] sm:$0xff]
        %v2820 = vld [vmem:[#allocation2 + $0xf1] sm:$0xff]
        %v2821 = vld [vmem:[#allocation2 + $0xf9] sm:$0xff]
        %v2822 = vld [vmem:[#allocation2 + $0x109] sm:$0xff]
        %v2823 = vld [vmem:[#allocation2 + $0x111] sm:$0xff]
        %v2824 = vld [vmem:[#allocation2 + $0x121] sm:$0xff]
        %v2825 = vld [vmem:[#allocation2 + $0x129] sm:$0xff]
        %v2826 = vld [vmem:[#allocation2 + $0x139] sm:$0xff]
        %v2827 = vld [vmem:[#allocation2 + $0x141] sm:$0xff]
        %v2828 = vld [vmem:[#allocation2 + $0x151] sm:$0xff]
        %v2829 = vld [vmem:[#allocation2 + $0x159] sm:$0xff]
        %v2830 = vld [vmem:[#allocation2 + $0x169] sm:$0xff]
        %v2831 = vld [vmem:[#allocation2 + $0x171] sm:$0xff]
        %s2832 = scalar_lea.vmem %s4, 1
        %v2833 = vld [vmem:[%s2832] sm:$0x1]
        %v2835 = vperm.slane %v2833, 0
        %v2837 = vmul.f32 %v2800, %v2835
        %v2838 = vmul.f32 %v2801, %v2835
        %v2839 = vmul.f32 %v2802, %v2835
        %v2840 = vmul.f32 %v2803, %v2835
        %v2841 = vmul.f32 %v2804, %v2835
        %v2842 = vmul.f32 %v2805, %v2835
        %v2843 = vmul.f32 %v2806, %v2835
        %v2844 = vmul.f32 %v2807, %v2835
        %v2845 = vmul.f32 %v2808, %v2835
        %v2846 = vmul.f32 %v2809, %v2835
        %v2847 = vmul.f32 %v2810, %v2835
        %v2848 = vmul.f32 %v2811, %v2835
        %v2849 = vmul.f32 %v2812, %v2835
        %v2850 = vmul.f32 %v2813, %v2835
        %v2851 = vmul.f32 %v2814, %v2835
        %v2852 = vmul.f32 %v2815, %v2835
        %v2853 = vmul.f32 %v2816, %v2835
        %v2854 = vmul.f32 %v2817, %v2835
        %v2855 = vmul.f32 %v2818, %v2835
        %v2856 = vmul.f32 %v2819, %v2835
        %v2857 = vmul.f32 %v2820, %v2835
        %v2858 = vmul.f32 %v2821, %v2835
        %v2859 = vmul.f32 %v2822, %v2835
        %v2860 = vmul.f32 %v2823, %v2835
        %v2861 = vmul.f32 %v2824, %v2835
        %v2862 = vmul.f32 %v2825, %v2835
        %v2863 = vmul.f32 %v2826, %v2835
        %v2864 = vmul.f32 %v2827, %v2835
        %v2865 = vmul.f32 %v2828, %v2835
        %v2866 = vmul.f32 %v2829, %v2835
        %v2867 = vmul.f32 %v2830, %v2835
        %v2868 = vmul.f32 %v2831, %v2835
        %v2869 = vadd.f32 %v2768, %v2837
        %v2870 = vadd.f32 %v2769, %v2838
        %v2871 = vadd.f32 %v2770, %v2839
        %v2872 = vadd.f32 %v2771, %v2840
        %v2873 = vadd.f32 %v2772, %v2841
        %v2874 = vadd.f32 %v2773, %v2842
        %v2875 = vadd.f32 %v2774, %v2843
        %v2876 = vadd.f32 %v2775, %v2844
        %v2877 = vadd.f32 %v2776, %v2845
        %v2878 = vadd.f32 %v2777, %v2846
        %v2879 = vadd.f32 %v2778, %v2847
        %v2880 = vadd.f32 %v2779, %v2848
        %v2881 = vadd.f32 %v2780, %v2849
        %v2882 = vadd.f32 %v2781, %v2850
        %v2883 = vadd.f32 %v2782, %v2851
        %v2884 = vadd.f32 %v2783, %v2852
        %v2885 = vadd.f32 %v2784, %v2853
        %v2886 = vadd.f32 %v2785, %v2854
        %v2887 = vadd.f32 %v2786, %v2855
        %v2888 = vadd.f32 %v2787, %v2856
        %v2889 = vadd.f32 %v2788, %v2857
        %v2890 = vadd.f32 %v2789, %v2858
        %v2891 = vadd.f32 %v2790, %v2859
        %v2892 = vadd.f32 %v2791, %v2860
        %v2893 = vadd.f32 %v2792, %v2861
        %v2894 = vadd.f32 %v2793, %v2862
        %v2895 = vadd.f32 %v2794, %v2863
        %v2896 = vadd.f32 %v2795, %v2864
        %v2897 = vadd.f32 %v2796, %v2865
        %v2898 = vadd.f32 %v2797, %v2866
        %v2899 = vadd.f32 %v2798, %v2867
        %v2900 = vadd.f32 %v2799, %v2868
        %v2901 = vld [vmem:[#allocation2 + $0x2] sm:$0xff]
        %v2902 = vld [vmem:[#allocation2 + $0xa] sm:$0xff]
        %v2903 = vld [vmem:[#allocation2 + $0x1a] sm:$0xff]
        %v2904 = vld [vmem:[#allocation2 + $0x22] sm:$0xff]
        %v2905 = vld [vmem:[#allocation2 + $0x32] sm:$0xff]
        %v2906 = vld [vmem:[#allocation2 + $0x3a] sm:$0xff]
        %v2907 = vld [vmem:[#allocation2 + $0x4a] sm:$0xff]
        %v2908 = vld [vmem:[#allocation2 + $0x52] sm:$0xff]
        %v2909 = vld [vmem:[#allocation2 + $0x62] sm:$0xff]
        %v2910 = vld [vmem:[#allocation2 + $0x6a] sm:$0xff]
        %v2911 = vld [vmem:[#allocation2 + $0x7a] sm:$0xff]
        %v2912 = vld [vmem:[#allocation2 + $0x82] sm:$0xff]
        %v2913 = vld [vmem:[#allocation2 + $0x92] sm:$0xff]
        %v2914 = vld [vmem:[#allocation2 + $0x9a] sm:$0xff]
        %v2915 = vld [vmem:[#allocation2 + $0xaa] sm:$0xff]
        %v2916 = vld [vmem:[#allocation2 + $0xb2] sm:$0xff]
        %v2917 = vld [vmem:[#allocation2 + $0xc2] sm:$0xff]
        %v2918 = vld [vmem:[#allocation2 + $0xca] sm:$0xff]
        %v2919 = vld [vmem:[#allocation2 + $0xda] sm:$0xff]
        %v2920 = vld [vmem:[#allocation2 + $0xe2] sm:$0xff]
        %v2921 = vld [vmem:[#allocation2 + $0xf2] sm:$0xff]
        %v2922 = vld [vmem:[#allocation2 + $0xfa] sm:$0xff]
        %v2923 = vld [vmem:[#allocation2 + $0x10a] sm:$0xff]
        %v2924 = vld [vmem:[#allocation2 + $0x112] sm:$0xff]
        %v2925 = vld [vmem:[#allocation2 + $0x122] sm:$0xff]
        %v2926 = vld [vmem:[#allocation2 + $0x12a] sm:$0xff]
        %v2927 = vld [vmem:[#allocation2 + $0x13a] sm:$0xff]
        %v2928 = vld [vmem:[#allocation2 + $0x142] sm:$0xff]
        %v2929 = vld [vmem:[#allocation2 + $0x152] sm:$0xff]
        %v2930 = vld [vmem:[#allocation2 + $0x15a] sm:$0xff]
        %v2931 = vld [vmem:[#allocation2 + $0x16a] sm:$0xff]
        %v2932 = vld [vmem:[#allocation2 + $0x172] sm:$0xff]
        %s2933 = scalar_lea.vmem %s4, 2
        %v2934 = vld [vmem:[%s2933] sm:$0x1]
        %v2936 = vperm.slane %v2934, 0
        %v2938 = vmul.f32 %v2901, %v2936
        %v2939 = vmul.f32 %v2902, %v2936
        %v2940 = vmul.f32 %v2903, %v2936
        %v2941 = vmul.f32 %v2904, %v2936
        %v2942 = vmul.f32 %v2905, %v2936
        %v2943 = vmul.f32 %v2906, %v2936
        %v2944 = vmul.f32 %v2907, %v2936
        %v2945 = vmul.f32 %v2908, %v2936
        %v2946 = vmul.f32 %v2909, %v2936
        %v2947 = vmul.f32 %v2910, %v2936
        %v2948 = vmul.f32 %v2911, %v2936
        %v2949 = vmul.f32 %v2912, %v2936
        %v2950 = vmul.f32 %v2913, %v2936
        %v2951 = vmul.f32 %v2914, %v2936
        %v2952 = vmul.f32 %v2915, %v2936
        %v2953 = vmul.f32 %v2916, %v2936
        %v2954 = vmul.f32 %v2917, %v2936
        %v2955 = vmul.f32 %v2918, %v2936
        %v2956 = vmul.f32 %v2919, %v2936
        %v2957 = vmul.f32 %v2920, %v2936
        %v2958 = vmul.f32 %v2921, %v2936
        %v2959 = vmul.f32 %v2922, %v2936
        %v2960 = vmul.f32 %v2923, %v2936
        %v2961 = vmul.f32 %v2924, %v2936
        %v2962 = vmul.f32 %v2925, %v2936
        %v2963 = vmul.f32 %v2926, %v2936
        %v2964 = vmul.f32 %v2927, %v2936
        %v2965 = vmul.f32 %v2928, %v2936
        %v2966 = vmul.f32 %v2929, %v2936
        %v2967 = vmul.f32 %v2930, %v2936
        %v2968 = vmul.f32 %v2931, %v2936
        %v2969 = vmul.f32 %v2932, %v2936
        %v2970 = vadd.f32 %v2869, %v2938
        %v2971 = vadd.f32 %v2870, %v2939
        %v2972 = vadd.f32 %v2871, %v2940
        %v2973 = vadd.f32 %v2872, %v2941
        %v2974 = vadd.f32 %v2873, %v2942
        %v2975 = vadd.f32 %v2874, %v2943
        %v2976 = vadd.f32 %v2875, %v2944
        %v2977 = vadd.f32 %v2876, %v2945
        %v2978 = vadd.f32 %v2877, %v2946
        %v2979 = vadd.f32 %v2878, %v2947
        %v2980 = vadd.f32 %v2879, %v2948
        %v2981 = vadd.f32 %v2880, %v2949
        %v2982 = vadd.f32 %v2881, %v2950
        %v2983 = vadd.f32 %v2882, %v2951
        %v2984 = vadd.f32 %v2883, %v2952
        %v2985 = vadd.f32 %v2884, %v2953
        %v2986 = vadd.f32 %v2885, %v2954
        %v2987 = vadd.f32 %v2886, %v2955
        %v2988 = vadd.f32 %v2887, %v2956
        %v2989 = vadd.f32 %v2888, %v2957
        %v2990 = vadd.f32 %v2889, %v2958
        %v2991 = vadd.f32 %v2890, %v2959
        %v2992 = vadd.f32 %v2891, %v2960
        %v2993 = vadd.f32 %v2892, %v2961
        %v2994 = vadd.f32 %v2893, %v2962
        %v2995 = vadd.f32 %v2894, %v2963
        %v2996 = vadd.f32 %v2895, %v2964
        %v2997 = vadd.f32 %v2896, %v2965
        %v2998 = vadd.f32 %v2897, %v2966
        %v2999 = vadd.f32 %v2898, %v2967
        %v3000 = vadd.f32 %v2899, %v2968
        %v3001 = vadd.f32 %v2900, %v2969
        %v3002 = vld [vmem:[%s2667] sm:$0xff]
        %v3003 = vld [vmem:[%s2667 + $0x8] sm:$0xff]
        %v3004 = vld [vmem:[%s2667 + $0x18] sm:$0xff]
        %v3005 = vld [vmem:[%s2667 + $0x20] sm:$0xff]
        %v3006 = vld [vmem:[%s2667 + $0x30] sm:$0xff]
        %v3007 = vld [vmem:[%s2667 + $0x38] sm:$0xff]
        %v3008 = vld [vmem:[%s2667 + $0x48] sm:$0xff]
        %v3009 = vld [vmem:[%s2667 + $0x50] sm:$0xff]
        %v3010 = vld [vmem:[%s2667 + $0x60] sm:$0xff]
        %v3011 = vld [vmem:[%s2667 + $0x68] sm:$0xff]
        %v3012 = vld [vmem:[%s2667 + $0x78] sm:$0xff]
        %v3013 = vld [vmem:[%s2667 + $0x80] sm:$0xff]
        %v3014 = vld [vmem:[%s2667 + $0x90] sm:$0xff]
        %v3015 = vld [vmem:[%s2667 + $0x98] sm:$0xff]
        %v3016 = vld [vmem:[%s2667 + $0xa8] sm:$0xff]
        %v3017 = vld [vmem:[%s2667 + $0xb0] sm:$0xff]
        %v3018 = vld [vmem:[%s2667 + $0xc0] sm:$0xff]
        %v3019 = vld [vmem:[%s2667 + $0xc8] sm:$0xff]
        %v3020 = vld [vmem:[%s2667 + $0xd8] sm:$0xff]
        %v3021 = vld [vmem:[%s2667 + $0xe0] sm:$0xff]
        %v3022 = vld [vmem:[%s2667 + $0xf0] sm:$0xff]
        %v3023 = vld [vmem:[%s2667 + $0xf8] sm:$0xff]
        %v3024 = vld [vmem:[%s2667 + $0x108] sm:$0xff]
        %v3025 = vld [vmem:[%s2667 + $0x110] sm:$0xff]
        %v3026 = vld [vmem:[%s2667 + $0x120] sm:$0xff]
        %v3027 = vld [vmem:[%s2667 + $0x128] sm:$0xff]
        %v3028 = vld [vmem:[%s2667 + $0x138] sm:$0xff]
        %v3029 = vld [vmem:[%s2667 + $0x140] sm:$0xff]
        %v3030 = vld [vmem:[%s2667 + $0x150] sm:$0xff]
        %v3031 = vld [vmem:[%s2667 + $0x158] sm:$0xff]
        %v3032 = vld [vmem:[%s2667 + $0x168] sm:$0xff]
        %v3033 = vld [vmem:[%s2667 + $0x170] sm:$0xff]
        %s3034 = scalar_lea.vmem %s4, 3
        %v3035 = vld [vmem:[%s3034] sm:$0x1]
        %v3037 = vperm.slane %v3035, 0
        %v3039 = vmul.f32 %v3002, %v3037
        %v3040 = vmul.f32 %v3003, %v3037
        %v3041 = vmul.f32 %v3004, %v3037
        %v3042 = vmul.f32 %v3005, %v3037
        %v3043 = vmul.f32 %v3006, %v3037
        %v3044 = vmul.f32 %v3007, %v3037
        %v3045 = vmul.f32 %v3008, %v3037
        %v3046 = vmul.f32 %v3009, %v3037
        %v3047 = vmul.f32 %v3010, %v3037
        %v3048 = vmul.f32 %v3011, %v3037
        %v3049 = vmul.f32 %v3012, %v3037
        %v3050 = vmul.f32 %v3013, %v3037
        %v3051 = vmul.f32 %v3014, %v3037
        %v3052 = vmul.f32 %v3015, %v3037
        %v3053 = vmul.f32 %v3016, %v3037
        %v3054 = vmul.f32 %v3017, %v3037
        %v3055 = vmul.f32 %v3018, %v3037
        %v3056 = vmul.f32 %v3019, %v3037
        %v3057 = vmul.f32 %v3020, %v3037
        %v3058 = vmul.f32 %v3021, %v3037
        %v3059 = vmul.f32 %v3022, %v3037
        %v3060 = vmul.f32 %v3023, %v3037
        %v3061 = vmul.f32 %v3024, %v3037
        %v3062 = vmul.f32 %v3025, %v3037
        %v3063 = vmul.f32 %v3026, %v3037
        %v3064 = vmul.f32 %v3027, %v3037
        %v3065 = vmul.f32 %v3028, %v3037
        %v3066 = vmul.f32 %v3029, %v3037
        %v3067 = vmul.f32 %v3030, %v3037
        %v3068 = vmul.f32 %v3031, %v3037
        %v3069 = vmul.f32 %v3032, %v3037
        %v3070 = vmul.f32 %v3033, %v3037
        %v3071 = vadd.f32 %v2970, %v3039
        %v3072 = vadd.f32 %v2971, %v3040
        %v3073 = vadd.f32 %v2972, %v3041
        %v3074 = vadd.f32 %v2973, %v3042
        %v3075 = vadd.f32 %v2974, %v3043
        %v3076 = vadd.f32 %v2975, %v3044
        %v3077 = vadd.f32 %v2976, %v3045
        %v3078 = vadd.f32 %v2977, %v3046
        %v3079 = vadd.f32 %v2978, %v3047
        %v3080 = vadd.f32 %v2979, %v3048
        %v3081 = vadd.f32 %v2980, %v3049
        %v3082 = vadd.f32 %v2981, %v3050
        %v3083 = vadd.f32 %v2982, %v3051
        %v3084 = vadd.f32 %v2983, %v3052
        %v3085 = vadd.f32 %v2984, %v3053
        %v3086 = vadd.f32 %v2985, %v3054
        %v3087 = vadd.f32 %v2986, %v3055
        %v3088 = vadd.f32 %v2987, %v3056
        %v3089 = vadd.f32 %v2988, %v3057
        %v3090 = vadd.f32 %v2989, %v3058
        %v3091 = vadd.f32 %v2990, %v3059
        %v3092 = vadd.f32 %v2991, %v3060
        %v3093 = vadd.f32 %v2992, %v3061
        %v3094 = vadd.f32 %v2993, %v3062
        %v3095 = vadd.f32 %v2994, %v3063
        %v3096 = vadd.f32 %v2995, %v3064
        %v3097 = vadd.f32 %v2996, %v3065
        %v3098 = vadd.f32 %v2997, %v3066
        %v3099 = vadd.f32 %v2998, %v3067
        %v3100 = vadd.f32 %v2999, %v3068
        %v3101 = vadd.f32 %v3000, %v3069
        %v3102 = vadd.f32 %v3001, %v3070
        %v3103 = vld [vmem:[%s2667 + $0x1] sm:$0xff]
        %v3104 = vld [vmem:[%s2667 + $0x9] sm:$0xff]
        %v3105 = vld [vmem:[%s2667 + $0x19] sm:$0xff]
        %v3106 = vld [vmem:[%s2667 + $0x21] sm:$0xff]
        %v3107 = vld [vmem:[%s2667 + $0x31] sm:$0xff]
        %v3108 = vld [vmem:[%s2667 + $0x39] sm:$0xff]
        %v3109 = vld [vmem:[%s2667 + $0x49] sm:$0xff]
        %v3110 = vld [vmem:[%s2667 + $0x51] sm:$0xff]
        %v3111 = vld [vmem:[%s2667 + $0x61] sm:$0xff]
        %v3112 = vld [vmem:[%s2667 + $0x69] sm:$0xff]
        %v3113 = vld [vmem:[%s2667 + $0x79] sm:$0xff]
        %v3114 = vld [vmem:[%s2667 + $0x81] sm:$0xff]
        %v3115 = vld [vmem:[%s2667 + $0x91] sm:$0xff]
        %v3116 = vld [vmem:[%s2667 + $0x99] sm:$0xff]
        %v3117 = vld [vmem:[%s2667 + $0xa9] sm:$0xff]
        %v3118 = vld [vmem:[%s2667 + $0xb1] sm:$0xff]
        %v3119 = vld [vmem:[%s2667 + $0xc1] sm:$0xff]
        %v3120 = vld [vmem:[%s2667 + $0xc9] sm:$0xff]
        %v3121 = vld [vmem:[%s2667 + $0xd9] sm:$0xff]
        %v3122 = vld [vmem:[%s2667 + $0xe1] sm:$0xff]
        %v3123 = vld [vmem:[%s2667 + $0xf1] sm:$0xff]
        %v3124 = vld [vmem:[%s2667 + $0xf9] sm:$0xff]
        %v3125 = vld [vmem:[%s2667 + $0x109] sm:$0xff]
        %v3126 = vld [vmem:[%s2667 + $0x111] sm:$0xff]
        %v3127 = vld [vmem:[%s2667 + $0x121] sm:$0xff]
        %v3128 = vld [vmem:[%s2667 + $0x129] sm:$0xff]
        %v3129 = vld [vmem:[%s2667 + $0x139] sm:$0xff]
        %v3130 = vld [vmem:[%s2667 + $0x141] sm:$0xff]
        %v3131 = vld [vmem:[%s2667 + $0x151] sm:$0xff]
        %v3132 = vld [vmem:[%s2667 + $0x159] sm:$0xff]
        %v3133 = vld [vmem:[%s2667 + $0x169] sm:$0xff]
        %v3134 = vld [vmem:[%s2667 + $0x171] sm:$0xff]
        %s3135 = scalar_lea.vmem %s4, 4
        %v3136 = vld [vmem:[%s3135] sm:$0x1]
        %v3138 = vperm.slane %v3136, 0
        %v3140 = vmul.f32 %v3103, %v3138
        %v3141 = vmul.f32 %v3104, %v3138
        %v3142 = vmul.f32 %v3105, %v3138
        %v3143 = vmul.f32 %v3106, %v3138
        %v3144 = vmul.f32 %v3107, %v3138
        %v3145 = vmul.f32 %v3108, %v3138
        %v3146 = vmul.f32 %v3109, %v3138
        %v3147 = vmul.f32 %v3110, %v3138
        %v3148 = vmul.f32 %v3111, %v3138
        %v3149 = vmul.f32 %v3112, %v3138
        %v3150 = vmul.f32 %v3113, %v3138
        %v3151 = vmul.f32 %v3114, %v3138
        %v3152 = vmul.f32 %v3115, %v3138
        %v3153 = vmul.f32 %v3116, %v3138
        %v3154 = vmul.f32 %v3117, %v3138
        %v3155 = vmul.f32 %v3118, %v3138
        %v3156 = vmul.f32 %v3119, %v3138
        %v3157 = vmul.f32 %v3120, %v3138
        %v3158 = vmul.f32 %v3121, %v3138
        %v3159 = vmul.f32 %v3122, %v3138
        %v3160 = vmul.f32 %v3123, %v3138
        %v3161 = vmul.f32 %v3124, %v3138
        %v3162 = vmul.f32 %v3125, %v3138
        %v3163 = vmul.f32 %v3126, %v3138
        %v3164 = vmul.f32 %v3127, %v3138
        %v3165 = vmul.f32 %v3128, %v3138
        %v3166 = vmul.f32 %v3129, %v3138
        %v3167 = vmul.f32 %v3130, %v3138
        %v3168 = vmul.f32 %v3131, %v3138
        %v3169 = vmul.f32 %v3132, %v3138
        %v3170 = vmul.f32 %v3133, %v3138
        %v3171 = vmul.f32 %v3134, %v3138
        %v3172 = vadd.f32 %v3071, %v3140
        %v3173 = vadd.f32 %v3072, %v3141
        %v3174 = vadd.f32 %v3073, %v3142
        %v3175 = vadd.f32 %v3074, %v3143
        %v3176 = vadd.f32 %v3075, %v3144
        %v3177 = vadd.f32 %v3076, %v3145
        %v3178 = vadd.f32 %v3077, %v3146
        %v3179 = vadd.f32 %v3078, %v3147
        %v3180 = vadd.f32 %v3079, %v3148
        %v3181 = vadd.f32 %v3080, %v3149
        %v3182 = vadd.f32 %v3081, %v3150
        %v3183 = vadd.f32 %v3082, %v3151
        %v3184 = vadd.f32 %v3083, %v3152
        %v3185 = vadd.f32 %v3084, %v3153
        %v3186 = vadd.f32 %v3085, %v3154
        %v3187 = vadd.f32 %v3086, %v3155
        %v3188 = vadd.f32 %v3087, %v3156
        %v3189 = vadd.f32 %v3088, %v3157
        %v3190 = vadd.f32 %v3089, %v3158
        %v3191 = vadd.f32 %v3090, %v3159
        %v3192 = vadd.f32 %v3091, %v3160
        %v3193 = vadd.f32 %v3092, %v3161
        %v3194 = vadd.f32 %v3093, %v3162
        %v3195 = vadd.f32 %v3094, %v3163
        %v3196 = vadd.f32 %v3095, %v3164
        %v3197 = vadd.f32 %v3096, %v3165
        %v3198 = vadd.f32 %v3097, %v3166
        %v3199 = vadd.f32 %v3098, %v3167
        %v3200 = vadd.f32 %v3099, %v3168
        %v3201 = vadd.f32 %v3100, %v3169
        %v3202 = vadd.f32 %v3101, %v3170
        %v3203 = vadd.f32 %v3102, %v3171
        %v3204 = vld [vmem:[%s2667 + $0x2] sm:$0xff]
        %v3205 = vld [vmem:[%s2667 + $0xa] sm:$0xff]
        %v3206 = vld [vmem:[%s2667 + $0x1a] sm:$0xff]
        %v3207 = vld [vmem:[%s2667 + $0x22] sm:$0xff]
        %v3208 = vld [vmem:[%s2667 + $0x32] sm:$0xff]
        %v3209 = vld [vmem:[%s2667 + $0x3a] sm:$0xff]
        %v3210 = vld [vmem:[%s2667 + $0x4a] sm:$0xff]
        %v3211 = vld [vmem:[%s2667 + $0x52] sm:$0xff]
        %v3212 = vld [vmem:[%s2667 + $0x62] sm:$0xff]
        %v3213 = vld [vmem:[%s2667 + $0x6a] sm:$0xff]
        %v3214 = vld [vmem:[%s2667 + $0x7a] sm:$0xff]
        %v3215 = vld [vmem:[%s2667 + $0x82] sm:$0xff]
        %v3216 = vld [vmem:[%s2667 + $0x92] sm:$0xff]
        %v3217 = vld [vmem:[%s2667 + $0x9a] sm:$0xff]
        %v3218 = vld [vmem:[%s2667 + $0xaa] sm:$0xff]
        %v3219 = vld [vmem:[%s2667 + $0xb2] sm:$0xff]
        %v3220 = vld [vmem:[%s2667 + $0xc2] sm:$0xff]
        %v3221 = vld [vmem:[%s2667 + $0xca] sm:$0xff]
        %v3222 = vld [vmem:[%s2667 + $0xda] sm:$0xff]
        %v3223 = vld [vmem:[%s2667 + $0xe2] sm:$0xff]
        %v3224 = vld [vmem:[%s2667 + $0xf2] sm:$0xff]
        %v3225 = vld [vmem:[%s2667 + $0xfa] sm:$0xff]
        %v3226 = vld [vmem:[%s2667 + $0x10a] sm:$0xff]
        %v3227 = vld [vmem:[%s2667 + $0x112] sm:$0xff]
        %v3228 = vld [vmem:[%s2667 + $0x122] sm:$0xff]
        %v3229 = vld [vmem:[%s2667 + $0x12a] sm:$0xff]
        %v3230 = vld [vmem:[%s2667 + $0x13a] sm:$0xff]
        %v3231 = vld [vmem:[%s2667 + $0x142] sm:$0xff]
        %v3232 = vld [vmem:[%s2667 + $0x152] sm:$0xff]
        %v3233 = vld [vmem:[%s2667 + $0x15a] sm:$0xff]
        %v3234 = vld [vmem:[%s2667 + $0x16a] sm:$0xff]
        %v3235 = vld [vmem:[%s2667 + $0x172] sm:$0xff]
        %s3236 = scalar_lea.vmem %s4, 5
        %v3237 = vld [vmem:[%s3236] sm:$0x1]
        %v3239 = vperm.slane %v3237, 0
        %v3241 = vmul.f32 %v3204, %v3239
        %v3242 = vmul.f32 %v3205, %v3239
        %v3243 = vmul.f32 %v3206, %v3239
        %v3244 = vmul.f32 %v3207, %v3239
        %v3245 = vmul.f32 %v3208, %v3239
        %v3246 = vmul.f32 %v3209, %v3239
        %v3247 = vmul.f32 %v3210, %v3239
        %v3248 = vmul.f32 %v3211, %v3239
        %v3249 = vmul.f32 %v3212, %v3239
        %v3250 = vmul.f32 %v3213, %v3239
        %v3251 = vmul.f32 %v3214, %v3239
        %v3252 = vmul.f32 %v3215, %v3239
        %v3253 = vmul.f32 %v3216, %v3239
        %v3254 = vmul.f32 %v3217, %v3239
        %v3255 = vmul.f32 %v3218, %v3239
        %v3256 = vmul.f32 %v3219, %v3239
        %v3257 = vmul.f32 %v3220, %v3239
        %v3258 = vmul.f32 %v3221, %v3239
        %v3259 = vmul.f32 %v3222, %v3239
        %v3260 = vmul.f32 %v3223, %v3239
        %v3261 = vmul.f32 %v3224, %v3239
        %v3262 = vmul.f32 %v3225, %v3239
        %v3263 = vmul.f32 %v3226, %v3239
        %v3264 = vmul.f32 %v3227, %v3239
        %v3265 = vmul.f32 %v3228, %v3239
        %v3266 = vmul.f32 %v3229, %v3239
        %v3267 = vmul.f32 %v3230, %v3239
        %v3268 = vmul.f32 %v3231, %v3239
        %v3269 = vmul.f32 %v3232, %v3239
        %v3270 = vmul.f32 %v3233, %v3239
        %v3271 = vmul.f32 %v3234, %v3239
        %v3272 = vmul.f32 %v3235, %v3239
        %v3273 = vadd.f32 %v3172, %v3241
        %v3274 = vadd.f32 %v3173, %v3242
        %v3275 = vadd.f32 %v3174, %v3243
        %v3276 = vadd.f32 %v3175, %v3244
        %v3277 = vadd.f32 %v3176, %v3245
        %v3278 = vadd.f32 %v3177, %v3246
        %v3279 = vadd.f32 %v3178, %v3247
        %v3280 = vadd.f32 %v3179, %v3248
        %v3281 = vadd.f32 %v3180, %v3249
        %v3282 = vadd.f32 %v3181, %v3250
        %v3283 = vadd.f32 %v3182, %v3251
        %v3284 = vadd.f32 %v3183, %v3252
        %v3285 = vadd.f32 %v3184, %v3253
        %v3286 = vadd.f32 %v3185, %v3254
        %v3287 = vadd.f32 %v3186, %v3255
        %v3288 = vadd.f32 %v3187, %v3256
        %v3289 = vadd.f32 %v3188, %v3257
        %v3290 = vadd.f32 %v3189, %v3258
        %v3291 = vadd.f32 %v3190, %v3259
        %v3292 = vadd.f32 %v3191, %v3260
        %v3293 = vadd.f32 %v3192, %v3261
        %v3294 = vadd.f32 %v3193, %v3262
        %v3295 = vadd.f32 %v3194, %v3263
        %v3296 = vadd.f32 %v3195, %v3264
        %v3297 = vadd.f32 %v3196, %v3265
        %v3298 = vadd.f32 %v3197, %v3266
        %v3299 = vadd.f32 %v3198, %v3267
        %v3300 = vadd.f32 %v3199, %v3268
        %v3301 = vadd.f32 %v3200, %v3269
        %v3302 = vadd.f32 %v3201, %v3270
        %v3303 = vadd.f32 %v3202, %v3271
        %v3304 = vadd.f32 %v3203, %v3272
        %s3305 = scalar_lea.vmem [#allocation2], 48
        %v3306 = vld [vmem:[%s3305] sm:$0xff]
        %v3307 = vld [vmem:[%s3305 + $0x8] sm:$0xff]
        %v3308 = vld [vmem:[%s3305 + $0x18] sm:$0xff]
        %v3309 = vld [vmem:[%s3305 + $0x20] sm:$0xff]
        %v3310 = vld [vmem:[%s3305 + $0x30] sm:$0xff]
        %v3311 = vld [vmem:[%s3305 + $0x38] sm:$0xff]
        %v3312 = vld [vmem:[%s3305 + $0x48] sm:$0xff]
        %v3313 = vld [vmem:[%s3305 + $0x50] sm:$0xff]
        %v3314 = vld [vmem:[%s3305 + $0x60] sm:$0xff]
        %v3315 = vld [vmem:[%s3305 + $0x68] sm:$0xff]
        %v3316 = vld [vmem:[%s3305 + $0x78] sm:$0xff]
        %v3317 = vld [vmem:[%s3305 + $0x80] sm:$0xff]
        %v3318 = vld [vmem:[%s3305 + $0x90] sm:$0xff]
        %v3319 = vld [vmem:[%s3305 + $0x98] sm:$0xff]
        %v3320 = vld [vmem:[%s3305 + $0xa8] sm:$0xff]
        %v3321 = vld [vmem:[%s3305 + $0xb0] sm:$0xff]
        %v3322 = vld [vmem:[%s3305 + $0xc0] sm:$0xff]
        %v3323 = vld [vmem:[%s3305 + $0xc8] sm:$0xff]
        %v3324 = vld [vmem:[%s3305 + $0xd8] sm:$0xff]
        %v3325 = vld [vmem:[%s3305 + $0xe0] sm:$0xff]
        %v3326 = vld [vmem:[%s3305 + $0xf0] sm:$0xff]
        %v3327 = vld [vmem:[%s3305 + $0xf8] sm:$0xff]
        %v3328 = vld [vmem:[%s3305 + $0x108] sm:$0xff]
        %v3329 = vld [vmem:[%s3305 + $0x110] sm:$0xff]
        %v3330 = vld [vmem:[%s3305 + $0x120] sm:$0xff]
        %v3331 = vld [vmem:[%s3305 + $0x128] sm:$0xff]
        %v3332 = vld [vmem:[%s3305 + $0x138] sm:$0xff]
        %v3333 = vld [vmem:[%s3305 + $0x140] sm:$0xff]
        %v3334 = vld [vmem:[%s3305 + $0x150] sm:$0xff]
        %v3335 = vld [vmem:[%s3305 + $0x158] sm:$0xff]
        %v3336 = vld [vmem:[%s3305 + $0x168] sm:$0xff]
        %v3337 = vld [vmem:[%s3305 + $0x170] sm:$0xff]
        %s3338 = scalar_lea.vmem %s4, 6
        %v3339 = vld [vmem:[%s3338] sm:$0x1]
        %v3341 = vperm.slane %v3339, 0
        %v3343 = vmul.f32 %v3306, %v3341
        %v3344 = vmul.f32 %v3307, %v3341
        %v3345 = vmul.f32 %v3308, %v3341
        %v3346 = vmul.f32 %v3309, %v3341
        %v3347 = vmul.f32 %v3310, %v3341
        %v3348 = vmul.f32 %v3311, %v3341
        %v3349 = vmul.f32 %v3312, %v3341
        %v3350 = vmul.f32 %v3313, %v3341
        %v3351 = vmul.f32 %v3314, %v3341
        %v3352 = vmul.f32 %v3315, %v3341
        %v3353 = vmul.f32 %v3316, %v3341
        %v3354 = vmul.f32 %v3317, %v3341
        %v3355 = vmul.f32 %v3318, %v3341
        %v3356 = vmul.f32 %v3319, %v3341
        %v3357 = vmul.f32 %v3320, %v3341
        %v3358 = vmul.f32 %v3321, %v3341
        %v3359 = vmul.f32 %v3322, %v3341
        %v3360 = vmul.f32 %v3323, %v3341
        %v3361 = vmul.f32 %v3324, %v3341
        %v3362 = vmul.f32 %v3325, %v3341
        %v3363 = vmul.f32 %v3326, %v3341
        %v3364 = vmul.f32 %v3327, %v3341
        %v3365 = vmul.f32 %v3328, %v3341
        %v3366 = vmul.f32 %v3329, %v3341
        %v3367 = vmul.f32 %v3330, %v3341
        %v3368 = vmul.f32 %v3331, %v3341
        %v3369 = vmul.f32 %v3332, %v3341
        %v3370 = vmul.f32 %v3333, %v3341
        %v3371 = vmul.f32 %v3334, %v3341
        %v3372 = vmul.f32 %v3335, %v3341
        %v3373 = vmul.f32 %v3336, %v3341
        %v3374 = vmul.f32 %v3337, %v3341
        %v3375 = vadd.f32 %v3273, %v3343
        %v3376 = vadd.f32 %v3274, %v3344
        %v3377 = vadd.f32 %v3275, %v3345
        %v3378 = vadd.f32 %v3276, %v3346
        %v3379 = vadd.f32 %v3277, %v3347
        %v3380 = vadd.f32 %v3278, %v3348
        %v3381 = vadd.f32 %v3279, %v3349
        %v3382 = vadd.f32 %v3280, %v3350
        %v3383 = vadd.f32 %v3281, %v3351
        %v3384 = vadd.f32 %v3282, %v3352
        %v3385 = vadd.f32 %v3283, %v3353
        %v3386 = vadd.f32 %v3284, %v3354
        %v3387 = vadd.f32 %v3285, %v3355
        %v3388 = vadd.f32 %v3286, %v3356
        %v3389 = vadd.f32 %v3287, %v3357
        %v3390 = vadd.f32 %v3288, %v3358
        %v3391 = vadd.f32 %v3289, %v3359
        %v3392 = vadd.f32 %v3290, %v3360
        %v3393 = vadd.f32 %v3291, %v3361
        %v3394 = vadd.f32 %v3292, %v3362
        %v3395 = vadd.f32 %v3293, %v3363
        %v3396 = vadd.f32 %v3294, %v3364
        %v3397 = vadd.f32 %v3295, %v3365
        %v3398 = vadd.f32 %v3296, %v3366
        %v3399 = vadd.f32 %v3297, %v3367
        %v3400 = vadd.f32 %v3298, %v3368
        %v3401 = vadd.f32 %v3299, %v3369
        %v3402 = vadd.f32 %v3300, %v3370
        %v3403 = vadd.f32 %v3301, %v3371
        %v3404 = vadd.f32 %v3302, %v3372
        %v3405 = vadd.f32 %v3303, %v3373
        %v3406 = vadd.f32 %v3304, %v3374
        %v3407 = vld [vmem:[%s3305 + $0x1] sm:$0xff]
        %v3408 = vld [vmem:[%s3305 + $0x9] sm:$0xff]
        %v3409 = vld [vmem:[%s3305 + $0x19] sm:$0xff]
        %v3410 = vld [vmem:[%s3305 + $0x21] sm:$0xff]
        %v3411 = vld [vmem:[%s3305 + $0x31] sm:$0xff]
        %v3412 = vld [vmem:[%s3305 + $0x39] sm:$0xff]
        %v3413 = vld [vmem:[%s3305 + $0x49] sm:$0xff]
        %v3414 = vld [vmem:[%s3305 + $0x51] sm:$0xff]
        %v3415 = vld [vmem:[%s3305 + $0x61] sm:$0xff]
        %v3416 = vld [vmem:[%s3305 + $0x69] sm:$0xff]
        %v3417 = vld [vmem:[%s3305 + $0x79] sm:$0xff]
        %v3418 = vld [vmem:[%s3305 + $0x81] sm:$0xff]
        %v3419 = vld [vmem:[%s3305 + $0x91] sm:$0xff]
        %v3420 = vld [vmem:[%s3305 + $0x99] sm:$0xff]
        %v3421 = vld [vmem:[%s3305 + $0xa9] sm:$0xff]
        %v3422 = vld [vmem:[%s3305 + $0xb1] sm:$0xff]
        %v3423 = vld [vmem:[%s3305 + $0xc1] sm:$0xff]
        %v3424 = vld [vmem:[%s3305 + $0xc9] sm:$0xff]
        %v3425 = vld [vmem:[%s3305 + $0xd9] sm:$0xff]
        %v3426 = vld [vmem:[%s3305 + $0xe1] sm:$0xff]
        %v3427 = vld [vmem:[%s3305 + $0xf1] sm:$0xff]
        %v3428 = vld [vmem:[%s3305 + $0xf9] sm:$0xff]
        %v3429 = vld [vmem:[%s3305 + $0x109] sm:$0xff]
        %v3430 = vld [vmem:[%s3305 + $0x111] sm:$0xff]
        %v3431 = vld [vmem:[%s3305 + $0x121] sm:$0xff]
        %v3432 = vld [vmem:[%s3305 + $0x129] sm:$0xff]
        %v3433 = vld [vmem:[%s3305 + $0x139] sm:$0xff]
        %v3434 = vld [vmem:[%s3305 + $0x141] sm:$0xff]
        %v3435 = vld [vmem:[%s3305 + $0x151] sm:$0xff]
        %v3436 = vld [vmem:[%s3305 + $0x159] sm:$0xff]
        %v3437 = vld [vmem:[%s3305 + $0x169] sm:$0xff]
        %v3438 = vld [vmem:[%s3305 + $0x171] sm:$0xff]
        %s3439 = scalar_lea.vmem %s4, 7
        %v3440 = vld [vmem:[%s3439] sm:$0x1]
        %v3442 = vperm.slane %v3440, 0
        %v3444 = vmul.f32 %v3407, %v3442
        %v3445 = vmul.f32 %v3408, %v3442
        %v3446 = vmul.f32 %v3409, %v3442
        %v3447 = vmul.f32 %v3410, %v3442
        %v3448 = vmul.f32 %v3411, %v3442
        %v3449 = vmul.f32 %v3412, %v3442
        %v3450 = vmul.f32 %v3413, %v3442
        %v3451 = vmul.f32 %v3414, %v3442
        %v3452 = vmul.f32 %v3415, %v3442
        %v3453 = vmul.f32 %v3416, %v3442
        %v3454 = vmul.f32 %v3417, %v3442
        %v3455 = vmul.f32 %v3418, %v3442
        %v3456 = vmul.f32 %v3419, %v3442
        %v3457 = vmul.f32 %v3420, %v3442
        %v3458 = vmul.f32 %v3421, %v3442
        %v3459 = vmul.f32 %v3422, %v3442
        %v3460 = vmul.f32 %v3423, %v3442
        %v3461 = vmul.f32 %v3424, %v3442
        %v3462 = vmul.f32 %v3425, %v3442
        %v3463 = vmul.f32 %v3426, %v3442
        %v3464 = vmul.f32 %v3427, %v3442
        %v3465 = vmul.f32 %v3428, %v3442
        %v3466 = vmul.f32 %v3429, %v3442
        %v3467 = vmul.f32 %v3430, %v3442
        %v3468 = vmul.f32 %v3431, %v3442
        %v3469 = vmul.f32 %v3432, %v3442
        %v3470 = vmul.f32 %v3433, %v3442
        %v3471 = vmul.f32 %v3434, %v3442
        %v3472 = vmul.f32 %v3435, %v3442
        %v3473 = vmul.f32 %v3436, %v3442
        %v3474 = vmul.f32 %v3437, %v3442
        %v3475 = vmul.f32 %v3438, %v3442
        %v3476 = vadd.f32 %v3375, %v3444
        %v3477 = vadd.f32 %v3376, %v3445
        %v3478 = vadd.f32 %v3377, %v3446
        %v3479 = vadd.f32 %v3378, %v3447
        %v3480 = vadd.f32 %v3379, %v3448
        %v3481 = vadd.f32 %v3380, %v3449
        %v3482 = vadd.f32 %v3381, %v3450
        %v3483 = vadd.f32 %v3382, %v3451
        %v3484 = vadd.f32 %v3383, %v3452
        %v3485 = vadd.f32 %v3384, %v3453
        %v3486 = vadd.f32 %v3385, %v3454
        %v3487 = vadd.f32 %v3386, %v3455
        %v3488 = vadd.f32 %v3387, %v3456
        %v3489 = vadd.f32 %v3388, %v3457
        %v3490 = vadd.f32 %v3389, %v3458
        %v3491 = vadd.f32 %v3390, %v3459
        %v3492 = vadd.f32 %v3391, %v3460
        %v3493 = vadd.f32 %v3392, %v3461
        %v3494 = vadd.f32 %v3393, %v3462
        %v3495 = vadd.f32 %v3394, %v3463
        %v3496 = vadd.f32 %v3395, %v3464
        %v3497 = vadd.f32 %v3396, %v3465
        %v3498 = vadd.f32 %v3397, %v3466
        %v3499 = vadd.f32 %v3398, %v3467
        %v3500 = vadd.f32 %v3399, %v3468
        %v3501 = vadd.f32 %v3400, %v3469
        %v3502 = vadd.f32 %v3401, %v3470
        %v3503 = vadd.f32 %v3402, %v3471
        %v3504 = vadd.f32 %v3403, %v3472
        %v3505 = vadd.f32 %v3404, %v3473
        %v3506 = vadd.f32 %v3405, %v3474
        %v3507 = vadd.f32 %v3406, %v3475
        %v3508 = vld [vmem:[%s3305 + $0x2] sm:$0xff]
        %v3509 = vld [vmem:[%s3305 + $0xa] sm:$0xff]
        %v3510 = vld [vmem:[%s3305 + $0x1a] sm:$0xff]
        %v3511 = vld [vmem:[%s3305 + $0x22] sm:$0xff]
        %v3512 = vld [vmem:[%s3305 + $0x32] sm:$0xff]
        %v3513 = vld [vmem:[%s3305 + $0x3a] sm:$0xff]
        %v3514 = vld [vmem:[%s3305 + $0x4a] sm:$0xff]
        %v3515 = vld [vmem:[%s3305 + $0x52] sm:$0xff]
        %v3516 = vld [vmem:[%s3305 + $0x62] sm:$0xff]
        %v3517 = vld [vmem:[%s3305 + $0x6a] sm:$0xff]
        %v3518 = vld [vmem:[%s3305 + $0x7a] sm:$0xff]
        %v3519 = vld [vmem:[%s3305 + $0x82] sm:$0xff]
        %v3520 = vld [vmem:[%s3305 + $0x92] sm:$0xff]
        %v3521 = vld [vmem:[%s3305 + $0x9a] sm:$0xff]
        %v3522 = vld [vmem:[%s3305 + $0xaa] sm:$0xff]
        %v3523 = vld [vmem:[%s3305 + $0xb2] sm:$0xff]
        %v3524 = vld [vmem:[%s3305 + $0xc2] sm:$0xff]
        %v3525 = vld [vmem:[%s3305 + $0xca] sm:$0xff]
        %v3526 = vld [vmem:[%s3305 + $0xda] sm:$0xff]
        %v3527 = vld [vmem:[%s3305 + $0xe2] sm:$0xff]
        %v3528 = vld [vmem:[%s3305 + $0xf2] sm:$0xff]
        %v3529 = vld [vmem:[%s3305 + $0xfa] sm:$0xff]
        %v3530 = vld [vmem:[%s3305 + $0x10a] sm:$0xff]
        %v3531 = vld [vmem:[%s3305 + $0x112] sm:$0xff]
        %v3532 = vld [vmem:[%s3305 + $0x122] sm:$0xff]
        %v3533 = vld [vmem:[%s3305 + $0x12a] sm:$0xff]
        %v3534 = vld [vmem:[%s3305 + $0x13a] sm:$0xff]
        %v3535 = vld [vmem:[%s3305 + $0x142] sm:$0xff]
        %v3536 = vld [vmem:[%s3305 + $0x152] sm:$0xff]
        %v3537 = vld [vmem:[%s3305 + $0x15a] sm:$0xff]
        %v3538 = vld [vmem:[%s3305 + $0x16a] sm:$0xff]
        %v3539 = vld [vmem:[%s3305 + $0x172] sm:$0xff]
        %s3540 = scalar_lea.vmem %s4, 8
        %v3541 = vld [vmem:[%s3540] sm:$0x1]
        %v3543 = vperm.slane %v3541, 0
        %v3545 = vmul.f32 %v3508, %v3543
        %v3546 = vmul.f32 %v3509, %v3543
        %v3547 = vmul.f32 %v3510, %v3543
        %v3548 = vmul.f32 %v3511, %v3543
        %v3549 = vmul.f32 %v3512, %v3543
        %v3550 = vmul.f32 %v3513, %v3543
        %v3551 = vmul.f32 %v3514, %v3543
        %v3552 = vmul.f32 %v3515, %v3543
        %v3553 = vmul.f32 %v3516, %v3543
        %v3554 = vmul.f32 %v3517, %v3543
        %v3555 = vmul.f32 %v3518, %v3543
        %v3556 = vmul.f32 %v3519, %v3543
        %v3557 = vmul.f32 %v3520, %v3543
        %v3558 = vmul.f32 %v3521, %v3543
        %v3559 = vmul.f32 %v3522, %v3543
        %v3560 = vmul.f32 %v3523, %v3543
        %v3561 = vmul.f32 %v3524, %v3543
        %v3562 = vmul.f32 %v3525, %v3543
        %v3563 = vmul.f32 %v3526, %v3543
        %v3564 = vmul.f32 %v3527, %v3543
        %v3565 = vmul.f32 %v3528, %v3543
        %v3566 = vmul.f32 %v3529, %v3543
        %v3567 = vmul.f32 %v3530, %v3543
        %v3568 = vmul.f32 %v3531, %v3543
        %v3569 = vmul.f32 %v3532, %v3543
        %v3570 = vmul.f32 %v3533, %v3543
        %v3571 = vmul.f32 %v3534, %v3543
        %v3572 = vmul.f32 %v3535, %v3543
        %v3573 = vmul.f32 %v3536, %v3543
        %v3574 = vmul.f32 %v3537, %v3543
        %v3575 = vmul.f32 %v3538, %v3543
        %v3576 = vmul.f32 %v3539, %v3543
        %v3577 = vadd.f32 %v3476, %v3545
        %v3578 = vadd.f32 %v3477, %v3546
        %v3579 = vadd.f32 %v3478, %v3547
        %v3580 = vadd.f32 %v3479, %v3548
        %v3581 = vadd.f32 %v3480, %v3549
        %v3582 = vadd.f32 %v3481, %v3550
        %v3583 = vadd.f32 %v3482, %v3551
        %v3584 = vadd.f32 %v3483, %v3552
        %v3585 = vadd.f32 %v3484, %v3553
        %v3586 = vadd.f32 %v3485, %v3554
        %v3587 = vadd.f32 %v3486, %v3555
        %v3588 = vadd.f32 %v3487, %v3556
        %v3589 = vadd.f32 %v3488, %v3557
        %v3590 = vadd.f32 %v3489, %v3558
        %v3591 = vadd.f32 %v3490, %v3559
        %v3592 = vadd.f32 %v3491, %v3560
        %v3593 = vadd.f32 %v3492, %v3561
        %v3594 = vadd.f32 %v3493, %v3562
        %v3595 = vadd.f32 %v3494, %v3563
        %v3596 = vadd.f32 %v3495, %v3564
        %v3597 = vadd.f32 %v3496, %v3565
        %v3598 = vadd.f32 %v3497, %v3566
        %v3599 = vadd.f32 %v3498, %v3567
        %v3600 = vadd.f32 %v3499, %v3568
        %v3601 = vadd.f32 %v3500, %v3569
        %v3602 = vadd.f32 %v3501, %v3570
        %v3603 = vadd.f32 %v3502, %v3571
        %v3604 = vadd.f32 %v3503, %v3572
        %v3605 = vadd.f32 %v3504, %v3573
        %v3606 = vadd.f32 %v3505, %v3574
        %v3607 = vadd.f32 %v3506, %v3575
        %v3608 = vadd.f32 %v3507, %v3576
        %v3609 = vld [vmem:[%s5] sm:$0x1]
        %v3611 = vperm.slane %v3609, 0
        %v3613 = vmul.f32 %v3577, %v3611
        %v3614 = vmul.f32 %v3578, %v3611
        %v3615 = vmul.f32 %v3579, %v3611
        %v3616 = vmul.f32 %v3580, %v3611
        %v3617 = vmul.f32 %v3581, %v3611
        %v3618 = vmul.f32 %v3582, %v3611
        %v3619 = vmul.f32 %v3583, %v3611
        %v3620 = vmul.f32 %v3584, %v3611
        %v3621 = vmul.f32 %v3585, %v3611
        %v3622 = vmul.f32 %v3586, %v3611
        %v3623 = vmul.f32 %v3587, %v3611
        %v3624 = vmul.f32 %v3588, %v3611
        %v3625 = vmul.f32 %v3589, %v3611
        %v3626 = vmul.f32 %v3590, %v3611
        %v3627 = vmul.f32 %v3591, %v3611
        %v3628 = vmul.f32 %v3592, %v3611
        %v3629 = vmul.f32 %v3593, %v3611
        %v3630 = vmul.f32 %v3594, %v3611
        %v3631 = vmul.f32 %v3595, %v3611
        %v3632 = vmul.f32 %v3596, %v3611
        %v3633 = vmul.f32 %v3597, %v3611
        %v3634 = vmul.f32 %v3598, %v3611
        %v3635 = vmul.f32 %v3599, %v3611
        %v3636 = vmul.f32 %v3600, %v3611
        %v3637 = vmul.f32 %v3601, %v3611
        %v3638 = vmul.f32 %v3602, %v3611
        %v3639 = vmul.f32 %v3603, %v3611
        %v3640 = vmul.f32 %v3604, %v3611
        %v3641 = vmul.f32 %v3605, %v3611
        %v3642 = vmul.f32 %v3606, %v3611
        %v3643 = vmul.f32 %v3607, %v3611
        %v3644 = vmul.f32 %v3608, %v3611
        %v3645 = vld [vmem:[%s6] sm:$0x1]
        %v3647 = vperm.slane %v3645, 0
        %v3649 = vadd.f32 %v3613, %v3647
        %v3650 = vadd.f32 %v3614, %v3647
        %v3651 = vadd.f32 %v3615, %v3647
        %v3652 = vadd.f32 %v3616, %v3647
        %v3653 = vadd.f32 %v3617, %v3647
        %v3654 = vadd.f32 %v3618, %v3647
        %v3655 = vadd.f32 %v3619, %v3647
        %v3656 = vadd.f32 %v3620, %v3647
        %v3657 = vadd.f32 %v3621, %v3647
        %v3658 = vadd.f32 %v3622, %v3647
        %v3659 = vadd.f32 %v3623, %v3647
        %v3660 = vadd.f32 %v3624, %v3647
        %v3661 = vadd.f32 %v3625, %v3647
        %v3662 = vadd.f32 %v3626, %v3647
        %v3663 = vadd.f32 %v3627, %v3647
        %v3664 = vadd.f32 %v3628, %v3647
        %v3665 = vadd.f32 %v3629, %v3647
        %v3666 = vadd.f32 %v3630, %v3647
        %v3667 = vadd.f32 %v3631, %v3647
        %v3668 = vadd.f32 %v3632, %v3647
        %v3669 = vadd.f32 %v3633, %v3647
        %v3670 = vadd.f32 %v3634, %v3647
        %v3671 = vadd.f32 %v3635, %v3647
        %v3672 = vadd.f32 %v3636, %v3647
        %v3673 = vadd.f32 %v3637, %v3647
        %v3674 = vadd.f32 %v3638, %v3647
        %v3675 = vadd.f32 %v3639, %v3647
        %v3676 = vadd.f32 %v3640, %v3647
        %v3677 = vadd.f32 %v3641, %v3647
        %v3678 = vadd.f32 %v3642, %v3647
        %v3679 = vadd.f32 %v3643, %v3647
        %v3680 = vadd.f32 %v3644, %v3647
        %v3681 = vmax.f32 %v3649, 0.0
        %v3682 = vmax.f32 %v3650, 0.0
        %v3683 = vmax.f32 %v3651, 0.0
        %v3684 = vmax.f32 %v3652, 0.0
        %v3685 = vmax.f32 %v3653, 0.0
        %v3686 = vmax.f32 %v3654, 0.0
        %v3687 = vmax.f32 %v3655, 0.0
        %v3688 = vmax.f32 %v3656, 0.0
        %v3689 = vmax.f32 %v3657, 0.0
        %v3690 = vmax.f32 %v3658, 0.0
        %v3691 = vmax.f32 %v3659, 0.0
        %v3692 = vmax.f32 %v3660, 0.0
        %v3693 = vmax.f32 %v3661, 0.0
        %v3694 = vmax.f32 %v3662, 0.0
        %v3695 = vmax.f32 %v3663, 0.0
        %v3696 = vmax.f32 %v3664, 0.0
        %v3697 = vmax.f32 %v3665, 0.0
        %v3698 = vmax.f32 %v3666, 0.0
        %v3699 = vmax.f32 %v3667, 0.0
        %v3700 = vmax.f32 %v3668, 0.0
        %v3701 = vmax.f32 %v3669, 0.0
        %v3702 = vmax.f32 %v3670, 0.0
        %v3703 = vmax.f32 %v3671, 0.0
        %v3704 = vmax.f32 %v3672, 0.0
        %v3705 = vmax.f32 %v3673, 0.0
        %v3706 = vmax.f32 %v3674, 0.0
        %v3707 = vmax.f32 %v3675, 0.0
        %v3708 = vmax.f32 %v3676, 0.0
        %v3709 = vmax.f32 %v3677, 0.0
        %v3710 = vmax.f32 %v3678, 0.0
        %v3711 = vmax.f32 %v3679, 0.0
        %v3712 = vmax.f32 %v3680, 0.0
        %3745 = vrot.lane.b32.xlu0 %v3681, 32
        %v3746 = vpop.permute.xlu0 %3745
        %3747 = vrot.lane.b32.xlu0 %v3682, 32
        %v3748 = vpop.permute.xlu0 %3747
        %3749 = vrot.lane.b32.xlu0 %v3683, 32
        %v3750 = vpop.permute.xlu0 %3749
        %3751 = vrot.lane.b32.xlu0 %v3684, 32
        %v3752 = vpop.permute.xlu0 %3751
        %3753 = vrot.lane.b32.xlu0 %v3685, 32
        %v3754 = vpop.permute.xlu0 %3753
        %3755 = vrot.lane.b32.xlu0 %v3686, 32
        %v3756 = vpop.permute.xlu0 %3755
        %3757 = vrot.lane.b32.xlu0 %v3687, 32
        %v3758 = vpop.permute.xlu0 %3757
        %3759 = vrot.lane.b32.xlu0 %v3688, 32
        %v3760 = vpop.permute.xlu0 %3759
        %3761 = vrot.lane.b32.xlu0 %v3689, 32
        %v3762 = vpop.permute.xlu0 %3761
        %3763 = vrot.lane.b32.xlu0 %v3690, 32
        %v3764 = vpop.permute.xlu0 %3763
        %3765 = vrot.lane.b32.xlu0 %v3691, 32
        %v3766 = vpop.permute.xlu0 %3765
        %3767 = vrot.lane.b32.xlu0 %v3692, 32
        %v3768 = vpop.permute.xlu0 %3767
        %3769 = vrot.lane.b32.xlu0 %v3693, 32
        %v3770 = vpop.permute.xlu0 %3769
        %3771 = vrot.lane.b32.xlu0 %v3694, 32
        %v3772 = vpop.permute.xlu0 %3771
        %3773 = vrot.lane.b32.xlu0 %v3695, 32
        %v3774 = vpop.permute.xlu0 %3773
        %3775 = vrot.lane.b32.xlu0 %v3696, 32
        %v3776 = vpop.permute.xlu0 %3775
        %3777 = vrot.lane.b32.xlu0 %v3697, 32
        %v3778 = vpop.permute.xlu0 %3777
        %3779 = vrot.lane.b32.xlu0 %v3698, 32
        %v3780 = vpop.permute.xlu0 %3779
        %3781 = vrot.lane.b32.xlu0 %v3699, 32
        %v3782 = vpop.permute.xlu0 %3781
        %3783 = vrot.lane.b32.xlu0 %v3700, 32
        %v3784 = vpop.permute.xlu0 %3783
        %3785 = vrot.lane.b32.xlu0 %v3701, 32
        %v3786 = vpop.permute.xlu0 %3785
        %3787 = vrot.lane.b32.xlu0 %v3702, 32
        %v3788 = vpop.permute.xlu0 %3787
        %3789 = vrot.lane.b32.xlu0 %v3703, 32
        %v3790 = vpop.permute.xlu0 %3789
        %3791 = vrot.lane.b32.xlu0 %v3704, 32
        %v3792 = vpop.permute.xlu0 %3791
        %3793 = vrot.lane.b32.xlu0 %v3705, 32
        %v3794 = vpop.permute.xlu0 %3793
        %3795 = vrot.lane.b32.xlu0 %v3706, 32
        %v3796 = vpop.permute.xlu0 %3795
        %3797 = vrot.lane.b32.xlu0 %v3707, 32
        %v3798 = vpop.permute.xlu0 %3797
        %3799 = vrot.lane.b32.xlu0 %v3708, 32
        %v3800 = vpop.permute.xlu0 %3799
        %3801 = vrot.lane.b32.xlu0 %v3709, 32
        %v3802 = vpop.permute.xlu0 %3801
        %3803 = vrot.lane.b32.xlu0 %v3710, 32
        %v3804 = vpop.permute.xlu0 %3803
        %3805 = vrot.lane.b32.xlu0 %v3711, 32
        %v3806 = vpop.permute.xlu0 %3805
        %3807 = vrot.lane.b32.xlu0 %v3712, 32
        %v3808 = vpop.permute.xlu0 %3807
        %v3841 = vsel %vm2611, %v2579, %v3746
        %v3842 = vsel %vm2611, %v2580, %v3748
        %v3843 = vsel %vm2611, %v2581, %v3750
        %v3844 = vsel %vm2611, %v2582, %v3752
        %v3845 = vsel %vm2611, %v2583, %v3754
        %v3846 = vsel %vm2611, %v2584, %v3756
        %v3847 = vsel %vm2611, %v2585, %v3758
        %v3848 = vsel %vm2611, %v2586, %v3760
        %v3849 = vsel %vm2611, %v2587, %v3762
        %v3850 = vsel %vm2611, %v2588, %v3764
        %v3851 = vsel %vm2611, %v2589, %v3766
        %v3852 = vsel %vm2611, %v2590, %v3768
        %v3853 = vsel %vm2611, %v2591, %v3770
        %v3854 = vsel %vm2611, %v2592, %v3772
        %v3855 = vsel %vm2611, %v2593, %v3774
        %v3856 = vsel %vm2611, %v2594, %v3776
        %v3857 = vsel %vm2611, %v2595, %v3778
        %v3858 = vsel %vm2611, %v2596, %v3780
        %v3859 = vsel %vm2611, %v2597, %v3782
        %v3860 = vsel %vm2611, %v2598, %v3784
        %v3861 = vsel %vm2611, %v2599, %v3786
        %v3862 = vsel %vm2611, %v2600, %v3788
        %v3863 = vsel %vm2611, %v2601, %v3790
        %v3864 = vsel %vm2611, %v2602, %v3792
        %v3865 = vsel %vm2611, %v2603, %v3794
        %v3866 = vsel %vm2611, %v2604, %v3796
        %v3867 = vsel %vm2611, %v2605, %v3798
        %v3868 = vsel %vm2611, %v2606, %v3800
        %v3869 = vsel %vm2611, %v2607, %v3802
        %v3870 = vsel %vm2611, %v2608, %v3804
        %v3871 = vsel %vm2611, %v2609, %v3806
        %v3872 = vsel %vm2611, %v2610, %v3808
        %vm3873 = vcmask 523264
        %3874 = vst.msk [vmem:[#allocation3] sm:$0xff] %vm3873, 0.0
        %3875 = vst.msk [vmem:[#allocation3 + $0x8] sm:$0xff] %vm3873, 0.0
        %vm3876 = vcmask 517120
        %3877 = vst.msk [vmem:[#allocation3 + $0x10] sm:$0x3] %vm3876, 0.0
        %3878 = vst.msk [vmem:[#allocation3 + $0x18] sm:$0xff] %vm3873, 0.0
        %3879 = vst.msk [vmem:[#allocation3 + $0x20] sm:$0xff] %vm3873, 0.0
        %3880 = vst.msk [vmem:[#allocation3 + $0x28] sm:$0x3] %vm3876, 0.0
        %3881 = vst.msk [vmem:[#allocation3 + $0x30] sm:$0xff] %vm3873, 0.0
        %3882 = vst.msk [vmem:[#allocation3 + $0x38] sm:$0xff] %vm3873, 0.0
        %3883 = vst.msk [vmem:[#allocation3 + $0x40] sm:$0x3] %vm3876, 0.0
        %3884 = vst.msk [vmem:[#allocation3 + $0x48] sm:$0xff] %vm3873, 0.0
        %3885 = vst.msk [vmem:[#allocation3 + $0x50] sm:$0xff] %vm3873, 0.0
        %3886 = vst.msk [vmem:[#allocation3 + $0x58] sm:$0x3] %vm3876, 0.0
        %3887 = vst.msk [vmem:[#allocation3 + $0x60] sm:$0xff] %vm3873, 0.0
        %3888 = vst.msk [vmem:[#allocation3 + $0x68] sm:$0xff] %vm3873, 0.0
        %3889 = vst.msk [vmem:[#allocation3 + $0x70] sm:$0x3] %vm3876, 0.0
        %3890 = vst.msk [vmem:[#allocation3 + $0x78] sm:$0xff] %vm3873, 0.0
        %3891 = vst.msk [vmem:[#allocation3 + $0x80] sm:$0xff] %vm3873, 0.0
        %3892 = vst.msk [vmem:[#allocation3 + $0x88] sm:$0x3] %vm3876, 0.0
        %3893 = vst.msk [vmem:[#allocation3 + $0x90] sm:$0xff] %vm3873, 0.0
        %3894 = vst.msk [vmem:[#allocation3 + $0x98] sm:$0xff] %vm3873, 0.0
        %3895 = vst.msk [vmem:[#allocation3 + $0xa0] sm:$0x3] %vm3876, 0.0
        %3896 = vst.msk [vmem:[#allocation3 + $0xa8] sm:$0xff] %vm3873, 0.0
        %3897 = vst.msk [vmem:[#allocation3 + $0xb0] sm:$0xff] %vm3873, 0.0
        %3898 = vst.msk [vmem:[#allocation3 + $0xb8] sm:$0x3] %vm3876, 0.0
        %3899 = vst.msk [vmem:[#allocation3 + $0xc0] sm:$0xff] %vm3873, 0.0
        %3900 = vst.msk [vmem:[#allocation3 + $0xc8] sm:$0xff] %vm3873, 0.0
        %3901 = vst.msk [vmem:[#allocation3 + $0xd0] sm:$0x3] %vm3876, 0.0
        %3902 = vst.msk [vmem:[#allocation3 + $0xd8] sm:$0xff] %vm3873, 0.0
        %3903 = vst.msk [vmem:[#allocation3 + $0xe0] sm:$0xff] %vm3873, 0.0
        %3904 = vst.msk [vmem:[#allocation3 + $0xe8] sm:$0x3] %vm3876, 0.0
        %3905 = vst.msk [vmem:[#allocation3 + $0xf0] sm:$0xff] %vm3873, 0.0
        %3906 = vst.msk [vmem:[#allocation3 + $0xf8] sm:$0xff] %vm3873, 0.0
        %3907 = vst.msk [vmem:[#allocation3 + $0x100] sm:$0x3] %vm3876, 0.0
        %3908 = vst.msk [vmem:[#allocation3 + $0x108] sm:$0xff] %vm3873, 0.0
        %3909 = vst.msk [vmem:[#allocation3 + $0x110] sm:$0xff] %vm3873, 0.0
        %3910 = vst.msk [vmem:[#allocation3 + $0x118] sm:$0x3] %vm3876, 0.0
        %3911 = vst.msk [vmem:[#allocation3 + $0x120] sm:$0xff] %vm3873, 0.0
        %3912 = vst.msk [vmem:[#allocation3 + $0x128] sm:$0xff] %vm3873, 0.0
        %3913 = vst.msk [vmem:[#allocation3 + $0x130] sm:$0x3] %vm3876, 0.0
        %3914 = vst.msk [vmem:[#allocation3 + $0x138] sm:$0xff] %vm3873, 0.0
        %3915 = vst.msk [vmem:[#allocation3 + $0x140] sm:$0xff] %vm3873, 0.0
        %3916 = vst.msk [vmem:[#allocation3 + $0x148] sm:$0x3] %vm3876, 0.0
        %3917 = vst.msk [vmem:[#allocation3 + $0x150] sm:$0xff] %vm3873, 0.0
        %3918 = vst.msk [vmem:[#allocation3 + $0x158] sm:$0xff] %vm3873, 0.0
        %3919 = vst.msk [vmem:[#allocation3 + $0x160] sm:$0x3] %vm3876, 0.0
        %3920 = vst.msk [vmem:[#allocation3 + $0x168] sm:$0xff] %vm3873, 0.0
        %3921 = vst.msk [vmem:[#allocation3 + $0x170] sm:$0xff] %vm3873, 0.0
        %3922 = vst.msk [vmem:[#allocation3 + $0x178] sm:$0x3] %vm3876, 0.0
        %3923 = vst.msk [vmem:[#allocation3 + $0x180] sm:$0xff] %vm3873, 0.0
        %3924 = vst.msk [vmem:[#allocation3 + $0x188] sm:$0xff] %vm3873, 0.0
        %3925 = vst.msk [vmem:[#allocation3 + $0x190] sm:$0x3] %vm3876, 0.0
        %3926 = vst.msk [vmem:[#allocation3 + $0x198] sm:$0xff] %vm3873, 0.0
        %3927 = vst.msk [vmem:[#allocation3 + $0x1a0] sm:$0xff] %vm3873, 0.0
        %3928 = vst.msk [vmem:[#allocation3 + $0x1a8] sm:$0x3] %vm3876, 0.0
        %s3929 = scalar_lea.vmem [#allocation3], 24
        %3930 = vst.msk [vmem:[%s3929 + $0x1] sm:$0xff] %vm3873, %v3841
        %3931 = vst.msk [vmem:[%s3929 + $0x9] sm:$0xff] %vm3873, %v3842
        %3932 = vst.msk [vmem:[%s3929 + $0x19] sm:$0xff] %vm3873, %v3843
        %3933 = vst.msk [vmem:[%s3929 + $0x21] sm:$0xff] %vm3873, %v3844
        %3934 = vst.msk [vmem:[%s3929 + $0x31] sm:$0xff] %vm3873, %v3845
        %3935 = vst.msk [vmem:[%s3929 + $0x39] sm:$0xff] %vm3873, %v3846
        %3936 = vst.msk [vmem:[%s3929 + $0x49] sm:$0xff] %vm3873, %v3847
        %3937 = vst.msk [vmem:[%s3929 + $0x51] sm:$0xff] %vm3873, %v3848
        %3938 = vst.msk [vmem:[%s3929 + $0x61] sm:$0xff] %vm3873, %v3849
        %3939 = vst.msk [vmem:[%s3929 + $0x69] sm:$0xff] %vm3873, %v3850
        %3940 = vst.msk [vmem:[%s3929 + $0x79] sm:$0xff] %vm3873, %v3851
        %3941 = vst.msk [vmem:[%s3929 + $0x81] sm:$0xff] %vm3873, %v3852
        %3942 = vst.msk [vmem:[%s3929 + $0x91] sm:$0xff] %vm3873, %v3853
        %3943 = vst.msk [vmem:[%s3929 + $0x99] sm:$0xff] %vm3873, %v3854
        %3944 = vst.msk [vmem:[%s3929 + $0xa9] sm:$0xff] %vm3873, %v3855
        %3945 = vst.msk [vmem:[%s3929 + $0xb1] sm:$0xff] %vm3873, %v3856
        %3946 = vst.msk [vmem:[%s3929 + $0xc1] sm:$0xff] %vm3873, %v3857
        %3947 = vst.msk [vmem:[%s3929 + $0xc9] sm:$0xff] %vm3873, %v3858
        %3948 = vst.msk [vmem:[%s3929 + $0xd9] sm:$0xff] %vm3873, %v3859
        %3949 = vst.msk [vmem:[%s3929 + $0xe1] sm:$0xff] %vm3873, %v3860
        %3950 = vst.msk [vmem:[%s3929 + $0xf1] sm:$0xff] %vm3873, %v3861
        %3951 = vst.msk [vmem:[%s3929 + $0xf9] sm:$0xff] %vm3873, %v3862
        %3952 = vst.msk [vmem:[%s3929 + $0x109] sm:$0xff] %vm3873, %v3863
        %3953 = vst.msk [vmem:[%s3929 + $0x111] sm:$0xff] %vm3873, %v3864
        %3954 = vst.msk [vmem:[%s3929 + $0x121] sm:$0xff] %vm3873, %v3865
        %3955 = vst.msk [vmem:[%s3929 + $0x129] sm:$0xff] %vm3873, %v3866
        %3956 = vst.msk [vmem:[%s3929 + $0x139] sm:$0xff] %vm3873, %v3867
        %3957 = vst.msk [vmem:[%s3929 + $0x141] sm:$0xff] %vm3873, %v3868
        %3958 = vst.msk [vmem:[%s3929 + $0x151] sm:$0xff] %vm3873, %v3869
        %3959 = vst.msk [vmem:[%s3929 + $0x159] sm:$0xff] %vm3873, %v3870
        %3960 = vst.msk [vmem:[%s3929 + $0x169] sm:$0xff] %vm3873, %v3871
        %3961 = vst.msk [vmem:[%s3929 + $0x171] sm:$0xff] %vm3873, %v3872
        %v3962 = vld [vmem:[#allocation3] sm:$0xff]
        %v3963 = vld [vmem:[#allocation3 + $0x8] sm:$0xff]
        %v3964 = vld [vmem:[#allocation3 + $0x10] sm:$0x3]
        %v3965 = vld [vmem:[#allocation3 + $0x18] sm:$0xff]
        %v3966 = vld [vmem:[#allocation3 + $0x20] sm:$0xff]
        %v3967 = vld [vmem:[#allocation3 + $0x28] sm:$0x3]
        %v3968 = vld [vmem:[#allocation3 + $0x30] sm:$0xff]
        %v3969 = vld [vmem:[#allocation3 + $0x38] sm:$0xff]
        %v3970 = vld [vmem:[#allocation3 + $0x40] sm:$0x3]
        %v3971 = vld [vmem:[#allocation3 + $0x48] sm:$0xff]
        %v3972 = vld [vmem:[#allocation3 + $0x50] sm:$0xff]
        %v3973 = vld [vmem:[#allocation3 + $0x58] sm:$0x3]
        %v3974 = vld [vmem:[#allocation3 + $0x60] sm:$0xff]
        %v3975 = vld [vmem:[#allocation3 + $0x68] sm:$0xff]
        %v3976 = vld [vmem:[#allocation3 + $0x70] sm:$0x3]
        %v3977 = vld [vmem:[#allocation3 + $0x78] sm:$0xff]
        %v3978 = vld [vmem:[#allocation3 + $0x80] sm:$0xff]
        %v3979 = vld [vmem:[#allocation3 + $0x88] sm:$0x3]
        %v3980 = vld [vmem:[#allocation3 + $0x90] sm:$0xff]
        %v3981 = vld [vmem:[#allocation3 + $0x98] sm:$0xff]
        %v3982 = vld [vmem:[#allocation3 + $0xa0] sm:$0x3]
        %v3983 = vld [vmem:[#allocation3 + $0xa8] sm:$0xff]
        %v3984 = vld [vmem:[#allocation3 + $0xb0] sm:$0xff]
        %v3985 = vld [vmem:[#allocation3 + $0xb8] sm:$0x3]
        %v3986 = vld [vmem:[#allocation3 + $0xc0] sm:$0xff]
        %v3987 = vld [vmem:[#allocation3 + $0xc8] sm:$0xff]
        %v3988 = vld [vmem:[#allocation3 + $0xd0] sm:$0x3]
        %v3989 = vld [vmem:[#allocation3 + $0xd8] sm:$0xff]
        %v3990 = vld [vmem:[#allocation3 + $0xe0] sm:$0xff]
        %v3991 = vld [vmem:[#allocation3 + $0xe8] sm:$0x3]
        %v3992 = vld [vmem:[#allocation3 + $0xf0] sm:$0xff]
        %v3993 = vld [vmem:[#allocation3 + $0xf8] sm:$0xff]
        %v3994 = vld [vmem:[#allocation3 + $0x100] sm:$0x3]
        %v3995 = vld [vmem:[#allocation3 + $0x108] sm:$0xff]
        %v3996 = vld [vmem:[#allocation3 + $0x110] sm:$0xff]
        %v3997 = vld [vmem:[#allocation3 + $0x118] sm:$0x3]
        %v3998 = vld [vmem:[#allocation3 + $0x120] sm:$0xff]
        %v3999 = vld [vmem:[#allocation3 + $0x128] sm:$0xff]
        %v4000 = vld [vmem:[#allocation3 + $0x130] sm:$0x3]
        %v4001 = vld [vmem:[#allocation3 + $0x138] sm:$0xff]
        %v4002 = vld [vmem:[#allocation3 + $0x140] sm:$0xff]
        %v4003 = vld [vmem:[#allocation3 + $0x148] sm:$0x3]
        %v4004 = vld [vmem:[#allocation3 + $0x150] sm:$0xff]
        %v4005 = vld [vmem:[#allocation3 + $0x158] sm:$0xff]
        %v4006 = vld [vmem:[#allocation3 + $0x160] sm:$0x3]
        %v4007 = vld [vmem:[#allocation3 + $0x168] sm:$0xff]
        %v4008 = vld [vmem:[#allocation3 + $0x170] sm:$0xff]
        %v4009 = vld [vmem:[#allocation3 + $0x178] sm:$0x3]
        %v4010 = vld [vmem:[#allocation3 + $0x180] sm:$0xff]
        %v4011 = vld [vmem:[#allocation3 + $0x188] sm:$0xff]
        %v4012 = vld [vmem:[#allocation3 + $0x190] sm:$0x3]
        %v4013 = vld [vmem:[#allocation3 + $0x198] sm:$0xff]
        %v4014 = vld [vmem:[#allocation3 + $0x1a0] sm:$0xff]
        %v4015 = vld [vmem:[#allocation3 + $0x1a8] sm:$0x3]
        %v4016 = vpack.c.bf16 %v3962, %v3962
        %v4017 = vpack.c.bf16 %v3963, %v3963
        %v4018 = vpack.c.bf16 %v3964, %v3964
        %v4019 = vpack.c.bf16 %v3965, %v3965
        %v4020 = vpack.c.bf16 %v3966, %v3966
        %v4021 = vpack.c.bf16 %v3967, %v3967
        %v4022 = vpack.c.bf16 %v3968, %v3968
        %v4023 = vpack.c.bf16 %v3969, %v3969
        %v4024 = vpack.c.bf16 %v3970, %v3970
        %v4025 = vpack.c.bf16 %v3971, %v3971
        %v4026 = vpack.c.bf16 %v3972, %v3972
        %v4027 = vpack.c.bf16 %v3973, %v3973
        %v4028 = vpack.c.bf16 %v3974, %v3974
        %v4029 = vpack.c.bf16 %v3975, %v3975
        %v4030 = vpack.c.bf16 %v3976, %v3976
        %v4031 = vpack.c.bf16 %v3977, %v3977
        %v4032 = vpack.c.bf16 %v3978, %v3978
        %v4033 = vpack.c.bf16 %v3979, %v3979
        %v4034 = vpack.c.bf16 %v3980, %v3980
        %v4035 = vpack.c.bf16 %v3981, %v3981
        %v4036 = vpack.c.bf16 %v3982, %v3982
        %v4037 = vpack.c.bf16 %v3983, %v3983
        %v4038 = vpack.c.bf16 %v3984, %v3984
        %v4039 = vpack.c.bf16 %v3985, %v3985
        %v4040 = vpack.c.bf16 %v3986, %v3986
        %v4041 = vpack.c.bf16 %v3987, %v3987
        %v4042 = vpack.c.bf16 %v3988, %v3988
        %v4043 = vpack.c.bf16 %v3989, %v3989
        %v4044 = vpack.c.bf16 %v3990, %v3990
        %v4045 = vpack.c.bf16 %v3991, %v3991
        %v4046 = vpack.c.bf16 %v3992, %v3992
        %v4047 = vpack.c.bf16 %v3993, %v3993
        %v4048 = vpack.c.bf16 %v3994, %v3994
        %v4049 = vpack.c.bf16 %v3995, %v3995
        %v4050 = vpack.c.bf16 %v3996, %v3996
        %v4051 = vpack.c.bf16 %v3997, %v3997
        %v4052 = vpack.c.bf16 %v3998, %v3998
        %v4053 = vpack.c.bf16 %v3999, %v3999
        %v4054 = vpack.c.bf16 %v4000, %v4000
        %v4055 = vpack.c.bf16 %v4001, %v4001
        %v4056 = vpack.c.bf16 %v4002, %v4002
        %v4057 = vpack.c.bf16 %v4003, %v4003
        %v4058 = vpack.c.bf16 %v4004, %v4004
        %v4059 = vpack.c.bf16 %v4005, %v4005
        %v4060 = vpack.c.bf16 %v4006, %v4006
        %v4061 = vpack.c.bf16 %v4007, %v4007
        %v4062 = vpack.c.bf16 %v4008, %v4008
        %v4063 = vpack.c.bf16 %v4009, %v4009
        %v4064 = vpack.c.bf16 %v4010, %v4010
        %v4065 = vpack.c.bf16 %v4011, %v4011
        %v4066 = vpack.c.bf16 %v4012, %v4012
        %v4067 = vpack.c.bf16 %v4013, %v4013
        %v4068 = vpack.c.bf16 %v4014, %v4014
        %v4069 = vpack.c.bf16 %v4015, %v4015
        %v4070 = vld [vmem:[%s7] sm:$0xf]
        %v4071 = vld [vmem:[%s7 + $0x4] sm:$0xf]
        %v4072 = vld [vmem:[%s7 + $0x8] sm:$0xf]
        %v4073 = vld [vmem:[%s7 + $0xc] sm:$0xf]
        %v4074 = vld [vmem:[%s7 + $0x10] sm:$0xf]
        %v4075 = vld [vmem:[%s7 + $0x14] sm:$0xf]
        %v4076 = vld [vmem:[%s7 + $0x18] sm:$0xf]
        %v4077 = vld [vmem:[%s7 + $0x1c] sm:$0xf]
        %v4079 = vshrl.u32 %v4016, 16
        %v4081 = vrot.slane %v4079, 4
        %v4082 = vshll.u32 %v4016, 16
        %v4084 = vrot.slane %v4082, 5
        %v4085 = vor.u32 %v4081, %v4084
        %v4086 = vrot.slane %v4085, 4
        %v4088 = vshll.u32 %v4017, 16
        %v4090 = vrot.slane %v4088, 5
        %v4091 = vsel %vm497, %v4086, %v4090
        %v4092 = vshrl.u32 %v4017, 16
        %v4094 = vrot.slane %v4092, 4
        %v4095 = vor.u32 %v4094, %v4090
        %v4096 = vrot.slane %v4095, 4
        %v4098 = vshll.u32 %v4018, 16
        %v4100 = vrot.slane %v4098, 5
        %v4101 = vsel %vm497, %v4096, %v4100
        %v4103 = vshrl.u32 %v4019, 16
        %v4105 = vrot.slane %v4103, 4
        %v4106 = vshll.u32 %v4019, 16
        %v4108 = vrot.slane %v4106, 5
        %v4109 = vor.u32 %v4105, %v4108
        %v4110 = vrot.slane %v4109, 4
        %v4112 = vshll.u32 %v4020, 16
        %v4114 = vrot.slane %v4112, 5
        %v4115 = vsel %vm497, %v4110, %v4114
        %v4116 = vshrl.u32 %v4020, 16
        %v4118 = vrot.slane %v4116, 4
        %v4119 = vor.u32 %v4118, %v4114
        %v4120 = vrot.slane %v4119, 4
        %v4122 = vshll.u32 %v4021, 16
        %v4124 = vrot.slane %v4122, 5
        %v4125 = vsel %vm497, %v4120, %v4124
        %v4127 = vshrl.u32 %v4022, 16
        %v4129 = vrot.slane %v4127, 4
        %v4130 = vshll.u32 %v4022, 16
        %v4132 = vrot.slane %v4130, 5
        %v4133 = vor.u32 %v4129, %v4132
        %v4134 = vrot.slane %v4133, 4
        %v4136 = vshll.u32 %v4023, 16
        %v4138 = vrot.slane %v4136, 5
        %v4139 = vsel %vm497, %v4134, %v4138
        %v4140 = vshrl.u32 %v4023, 16
        %v4142 = vrot.slane %v4140, 4
        %v4143 = vor.u32 %v4142, %v4138
        %v4144 = vrot.slane %v4143, 4
        %v4146 = vshll.u32 %v4024, 16
        %v4148 = vrot.slane %v4146, 5
        %v4149 = vsel %vm497, %v4144, %v4148
        %v4151 = vshrl.u32 %v4025, 16
        %v4153 = vrot.slane %v4151, 4
        %v4154 = vshll.u32 %v4025, 16
        %v4156 = vrot.slane %v4154, 5
        %v4157 = vor.u32 %v4153, %v4156
        %v4158 = vrot.slane %v4157, 4
        %v4160 = vshll.u32 %v4026, 16
        %v4162 = vrot.slane %v4160, 5
        %v4163 = vsel %vm497, %v4158, %v4162
        %v4164 = vshrl.u32 %v4026, 16
        %v4166 = vrot.slane %v4164, 4
        %v4167 = vor.u32 %v4166, %v4162
        %v4168 = vrot.slane %v4167, 4
        %v4170 = vshll.u32 %v4027, 16
        %v4172 = vrot.slane %v4170, 5
        %v4173 = vsel %vm497, %v4168, %v4172
        %v4175 = vshrl.u32 %v4028, 16
        %v4177 = vrot.slane %v4175, 4
        %v4178 = vshll.u32 %v4028, 16
        %v4180 = vrot.slane %v4178, 5
        %v4181 = vor.u32 %v4177, %v4180
        %v4182 = vrot.slane %v4181, 4
        %v4184 = vshll.u32 %v4029, 16
        %v4186 = vrot.slane %v4184, 5
        %v4187 = vsel %vm497, %v4182, %v4186
        %v4188 = vshrl.u32 %v4029, 16
        %v4190 = vrot.slane %v4188, 4
        %v4191 = vor.u32 %v4190, %v4186
        %v4192 = vrot.slane %v4191, 4
        %v4194 = vshll.u32 %v4030, 16
        %v4196 = vrot.slane %v4194, 5
        %v4197 = vsel %vm497, %v4192, %v4196
        %v4199 = vshrl.u32 %v4031, 16
        %v4201 = vrot.slane %v4199, 4
        %v4202 = vshll.u32 %v4031, 16
        %v4204 = vrot.slane %v4202, 5
        %v4205 = vor.u32 %v4201, %v4204
        %v4206 = vrot.slane %v4205, 4
        %v4208 = vshll.u32 %v4032, 16
        %v4210 = vrot.slane %v4208, 5
        %v4211 = vsel %vm497, %v4206, %v4210
        %v4212 = vshrl.u32 %v4032, 16
        %v4214 = vrot.slane %v4212, 4
        %v4215 = vor.u32 %v4214, %v4210
        %v4216 = vrot.slane %v4215, 4
        %v4218 = vshll.u32 %v4033, 16
        %v4220 = vrot.slane %v4218, 5
        %v4221 = vsel %vm497, %v4216, %v4220
        %v4223 = vshrl.u32 %v4034, 16
        %v4225 = vrot.slane %v4223, 4
        %v4226 = vshll.u32 %v4034, 16
        %v4228 = vrot.slane %v4226, 5
        %v4229 = vor.u32 %v4225, %v4228
        %v4230 = vrot.slane %v4229, 4
        %v4232 = vshll.u32 %v4035, 16
        %v4234 = vrot.slane %v4232, 5
        %v4235 = vsel %vm497, %v4230, %v4234
        %v4236 = vshrl.u32 %v4035, 16
        %v4238 = vrot.slane %v4236, 4
        %v4239 = vor.u32 %v4238, %v4234
        %v4240 = vrot.slane %v4239, 4
        %v4242 = vshll.u32 %v4036, 16
        %v4244 = vrot.slane %v4242, 5
        %v4245 = vsel %vm497, %v4240, %v4244
        %v4247 = vshrl.u32 %v4037, 16
        %v4249 = vrot.slane %v4247, 4
        %v4250 = vshll.u32 %v4037, 16
        %v4252 = vrot.slane %v4250, 5
        %v4253 = vor.u32 %v4249, %v4252
        %v4254 = vrot.slane %v4253, 4
        %v4256 = vshll.u32 %v4038, 16
        %v4258 = vrot.slane %v4256, 5
        %v4259 = vsel %vm497, %v4254, %v4258
        %v4260 = vshrl.u32 %v4038, 16
        %v4262 = vrot.slane %v4260, 4
        %v4263 = vor.u32 %v4262, %v4258
        %v4264 = vrot.slane %v4263, 4
        %v4266 = vshll.u32 %v4039, 16
        %v4268 = vrot.slane %v4266, 5
        %v4269 = vsel %vm497, %v4264, %v4268
        %v4271 = vshrl.u32 %v4040, 16
        %v4273 = vrot.slane %v4271, 4
        %v4274 = vshll.u32 %v4040, 16
        %v4276 = vrot.slane %v4274, 5
        %v4277 = vor.u32 %v4273, %v4276
        %v4278 = vrot.slane %v4277, 4
        %v4280 = vshll.u32 %v4041, 16
        %v4282 = vrot.slane %v4280, 5
        %v4283 = vsel %vm497, %v4278, %v4282
        %v4284 = vshrl.u32 %v4041, 16
        %v4286 = vrot.slane %v4284, 4
        %v4287 = vor.u32 %v4286, %v4282
        %v4288 = vrot.slane %v4287, 4
        %v4290 = vshll.u32 %v4042, 16
        %v4292 = vrot.slane %v4290, 5
        %v4293 = vsel %vm497, %v4288, %v4292
        %v4295 = vshrl.u32 %v4043, 16
        %v4297 = vrot.slane %v4295, 4
        %v4298 = vshll.u32 %v4043, 16
        %v4300 = vrot.slane %v4298, 5
        %v4301 = vor.u32 %v4297, %v4300
        %v4302 = vrot.slane %v4301, 4
        %v4304 = vshll.u32 %v4044, 16
        %v4306 = vrot.slane %v4304, 5
        %v4307 = vsel %vm497, %v4302, %v4306
        %v4308 = vshrl.u32 %v4044, 16
        %v4310 = vrot.slane %v4308, 4
        %v4311 = vor.u32 %v4310, %v4306
        %v4312 = vrot.slane %v4311, 4
        %v4314 = vshll.u32 %v4045, 16
        %v4316 = vrot.slane %v4314, 5
        %v4317 = vsel %vm497, %v4312, %v4316
        %v4319 = vshrl.u32 %v4046, 16
        %v4321 = vrot.slane %v4319, 4
        %v4322 = vshll.u32 %v4046, 16
        %v4324 = vrot.slane %v4322, 5
        %v4325 = vor.u32 %v4321, %v4324
        %v4326 = vrot.slane %v4325, 4
        %v4328 = vshll.u32 %v4047, 16
        %v4330 = vrot.slane %v4328, 5
        %v4331 = vsel %vm497, %v4326, %v4330
        %v4332 = vshrl.u32 %v4047, 16
        %v4334 = vrot.slane %v4332, 4
        %v4335 = vor.u32 %v4334, %v4330
        %v4336 = vrot.slane %v4335, 4
        %v4338 = vshll.u32 %v4048, 16
        %v4340 = vrot.slane %v4338, 5
        %v4341 = vsel %vm497, %v4336, %v4340
        %v4343 = vshrl.u32 %v4049, 16
        %v4345 = vrot.slane %v4343, 4
        %v4346 = vshll.u32 %v4049, 16
        %v4348 = vrot.slane %v4346, 5
        %v4349 = vor.u32 %v4345, %v4348
        %v4350 = vrot.slane %v4349, 4
        %v4352 = vshll.u32 %v4050, 16
        %v4354 = vrot.slane %v4352, 5
        %v4355 = vsel %vm497, %v4350, %v4354
        %v4356 = vshrl.u32 %v4050, 16
        %v4358 = vrot.slane %v4356, 4
        %v4359 = vor.u32 %v4358, %v4354
        %v4360 = vrot.slane %v4359, 4
        %v4362 = vshll.u32 %v4051, 16
        %v4364 = vrot.slane %v4362, 5
        %v4365 = vsel %vm497, %v4360, %v4364
        %v4367 = vshrl.u32 %v4052, 16
        %v4369 = vrot.slane %v4367, 4
        %v4370 = vshll.u32 %v4052, 16
        %v4372 = vrot.slane %v4370, 5
        %v4373 = vor.u32 %v4369, %v4372
        %v4374 = vrot.slane %v4373, 4
        %v4376 = vshll.u32 %v4053, 16
        %v4378 = vrot.slane %v4376, 5
        %v4379 = vsel %vm497, %v4374, %v4378
        %v4380 = vshrl.u32 %v4053, 16
        %v4382 = vrot.slane %v4380, 4
        %v4383 = vor.u32 %v4382, %v4378
        %v4384 = vrot.slane %v4383, 4
        %v4386 = vshll.u32 %v4054, 16
        %v4388 = vrot.slane %v4386, 5
        %v4389 = vsel %vm497, %v4384, %v4388
        %v4391 = vshrl.u32 %v4055, 16
        %v4393 = vrot.slane %v4391, 4
        %v4394 = vshll.u32 %v4055, 16
        %v4396 = vrot.slane %v4394, 5
        %v4397 = vor.u32 %v4393, %v4396
        %v4398 = vrot.slane %v4397, 4
        %v4400 = vshll.u32 %v4056, 16
        %v4402 = vrot.slane %v4400, 5
        %v4403 = vsel %vm497, %v4398, %v4402
        %v4404 = vshrl.u32 %v4056, 16
        %v4406 = vrot.slane %v4404, 4
        %v4407 = vor.u32 %v4406, %v4402
        %v4408 = vrot.slane %v4407, 4
        %v4410 = vshll.u32 %v4057, 16
        %v4412 = vrot.slane %v4410, 5
        %v4413 = vsel %vm497, %v4408, %v4412
        %v4415 = vshrl.u32 %v4058, 16
        %v4417 = vrot.slane %v4415, 4
        %v4418 = vshll.u32 %v4058, 16
        %v4420 = vrot.slane %v4418, 5
        %v4421 = vor.u32 %v4417, %v4420
        %v4422 = vrot.slane %v4421, 4
        %v4424 = vshll.u32 %v4059, 16
        %v4426 = vrot.slane %v4424, 5
        %v4427 = vsel %vm497, %v4422, %v4426
        %v4428 = vshrl.u32 %v4059, 16
        %v4430 = vrot.slane %v4428, 4
        %v4431 = vor.u32 %v4430, %v4426
        %v4432 = vrot.slane %v4431, 4
        %v4434 = vshll.u32 %v4060, 16
        %v4436 = vrot.slane %v4434, 5
        %v4437 = vsel %vm497, %v4432, %v4436
        %v4439 = vshrl.u32 %v4061, 16
        %v4441 = vrot.slane %v4439, 4
        %v4442 = vshll.u32 %v4061, 16
        %v4444 = vrot.slane %v4442, 5
        %v4445 = vor.u32 %v4441, %v4444
        %v4446 = vrot.slane %v4445, 4
        %v4448 = vshll.u32 %v4062, 16
        %v4450 = vrot.slane %v4448, 5
        %v4451 = vsel %vm497, %v4446, %v4450
        %v4452 = vshrl.u32 %v4062, 16
        %v4454 = vrot.slane %v4452, 4
        %v4455 = vor.u32 %v4454, %v4450
        %v4456 = vrot.slane %v4455, 4
        %v4458 = vshll.u32 %v4063, 16
        %v4460 = vrot.slane %v4458, 5
        %v4461 = vsel %vm497, %v4456, %v4460
        %s4462 = scalar_lea.vmem %s7, 32
        %v4463 = vld [vmem:[%s4462] sm:$0xf]
        %v4464 = vld [vmem:[%s4462 + $0x4] sm:$0xf]
        %v4465 = vld [vmem:[%s4462 + $0x8] sm:$0xf]
        %v4466 = vld [vmem:[%s4462 + $0xc] sm:$0xf]
        %v4467 = vld [vmem:[%s4462 + $0x10] sm:$0xf]
        %v4468 = vld [vmem:[%s4462 + $0x14] sm:$0xf]
        %v4469 = vld [vmem:[%s4462 + $0x18] sm:$0xf]
        %v4470 = vld [vmem:[%s4462 + $0x1c] sm:$0xf]
        %v4471 = vunpack.c.l.b16 %v4091
        %v4472 = vunpack.c.l.b16 %v4101
        %v4473 = vunpack.c.l.b16 %v4115
        %v4474 = vunpack.c.l.b16 %v4125
        %v4475 = vunpack.c.l.b16 %v4139
        %v4476 = vunpack.c.l.b16 %v4149
        %v4477 = vunpack.c.l.b16 %v4163
        %v4478 = vunpack.c.l.b16 %v4173
        %v4479 = vunpack.c.l.b16 %v4187
        %v4480 = vunpack.c.l.b16 %v4197
        %v4481 = vunpack.c.l.b16 %v4211
        %v4482 = vunpack.c.l.b16 %v4221
        %v4483 = vunpack.c.l.b16 %v4235
        %v4484 = vunpack.c.l.b16 %v4245
        %v4485 = vunpack.c.l.b16 %v4259
        %v4486 = vunpack.c.l.b16 %v4269
        %v4487 = vunpack.c.l.b16 %v4283
        %v4488 = vunpack.c.l.b16 %v4293
        %v4489 = vunpack.c.l.b16 %v4307
        %v4490 = vunpack.c.l.b16 %v4317
        %v4491 = vunpack.c.l.b16 %v4331
        %v4492 = vunpack.c.l.b16 %v4341
        %v4493 = vunpack.c.l.b16 %v4355
        %v4494 = vunpack.c.l.b16 %v4365
        %v4495 = vunpack.c.l.b16 %v4379
        %v4496 = vunpack.c.l.b16 %v4389
        %v4497 = vunpack.c.l.b16 %v4403
        %v4498 = vunpack.c.l.b16 %v4413
        %v4499 = vunpack.c.l.b16 %v4427
        %v4500 = vunpack.c.l.b16 %v4437
        %v4501 = vunpack.c.l.b16 %v4451
        %v4502 = vunpack.c.l.b16 %v4461
        %v4503 = vpack.c.b16 %v4472, %v4471
        %v4504 = vpack.c.b16 %v4474, %v4473
        %v4505 = vpack.c.b16 %v4476, %v4475
        %v4506 = vpack.c.b16 %v4478, %v4477
        %v4507 = vpack.c.b16 %v4480, %v4479
        %v4508 = vpack.c.b16 %v4482, %v4481
        %v4509 = vpack.c.b16 %v4484, %v4483
        %v4510 = vpack.c.b16 %v4486, %v4485
        %v4511 = vpack.c.b16 %v4488, %v4487
        %v4512 = vpack.c.b16 %v4490, %v4489
        %v4513 = vpack.c.b16 %v4492, %v4491
        %v4514 = vpack.c.b16 %v4494, %v4493
        %v4515 = vpack.c.b16 %v4496, %v4495
        %v4516 = vpack.c.b16 %v4498, %v4497
        %v4517 = vpack.c.b16 %v4500, %v4499
        %v4518 = vpack.c.b16 %v4502, %v4501
        %v4527 = vunpack.c.l.b16 %v4463
        %v4528 = vunpack.c.l.b16 %v4464
        %v4529 = vunpack.c.l.b16 %v4465
        %v4530 = vunpack.c.l.b16 %v4466
        %v4531 = vunpack.c.l.b16 %v4467
        %v4532 = vunpack.c.l.b16 %v4468
        %v4533 = vunpack.c.l.b16 %v4469
        %v4534 = vunpack.c.l.b16 %v4470
        %v4535 = vpack.c.b16 %v4528, %v4527
        %v4536 = vpack.c.b16 %v4530, %v4529
        %v4537 = vpack.c.b16 %v4532, %v4531
        %v4538 = vpack.c.b16 %v4534, %v4533
        %v4544 = vsel %vm3873, %v4503, 0
        %v4547 = vsel %vm3873, %v4504, 0
        %v4550 = vsel %vm3873, %v4505, 0
        %v4553 = vsel %vm3873, %v4506, 0
        %v4556 = vsel %vm3873, %v4507, 0
        %v4559 = vsel %vm3873, %v4508, 0
        %v4562 = vsel %vm3873, %v4509, 0
        %v4565 = vsel %vm3873, %v4510, 0
        %v4568 = vsel %vm3873, %v4511, 0
        %v4571 = vsel %vm3873, %v4512, 0
        %v4574 = vsel %vm3873, %v4513, 0
        %v4577 = vsel %vm3873, %v4514, 0
        %v4580 = vsel %vm3873, %v4515, 0
        %v4583 = vsel %vm3873, %v4516, 0
        %v4586 = vsel %vm3873, %v4517, 0
        %v4589 = vsel %vm3873, %v4518, 0
        %4591 = vmatpush.bf16.msra.mxu0 0
        %4592 = vmatpush.bf16.msra.mxu0 0
        %4593 = vmatpush.bf16.msra.mxu0 0
        %4594 = vmatpush.bf16.msra.mxu0 0
        %4595 = vmatpush.bf16.msra.mxu0 %v4538
        %4596 = vmatpush.bf16.msra.mxu0 %v4537
        %4597 = vmatpush.bf16.msra.mxu0 %v4536
        %4598 = vmatpush.bf16.msra.mxu0 %v4535
        %4599 = vmatmul.bf16.gmra.mxu0 %v4544
        %v4600 = vpop.f32.mrf.mxu0
        %v4601 = vadd.f32 0.0, %v4600
        %v4602 = vpop.f32.mrf.mxu0
        %v4603 = vadd.f32 0.0, %v4602
        %4604 = vmatmul.bf16.gmra.mxu0 %v4547
        %v4605 = vpop.f32.mrf.mxu0
        %v4606 = vadd.f32 0.0, %v4605
        %v4607 = vpop.f32.mrf.mxu0
        %v4608 = vadd.f32 0.0, %v4607
        %4609 = vmatmul.bf16.gmra.mxu0 %v4550
        %v4610 = vpop.f32.mrf.mxu0
        %v4611 = vadd.f32 0.0, %v4610
        %v4612 = vpop.f32.mrf.mxu0
        %v4613 = vadd.f32 0.0, %v4612
        %4614 = vmatmul.bf16.gmra.mxu0 %v4553
        %v4615 = vpop.f32.mrf.mxu0
        %v4616 = vadd.f32 0.0, %v4615
        %v4617 = vpop.f32.mrf.mxu0
        %v4618 = vadd.f32 0.0, %v4617
        %4619 = vmatmul.bf16.gmra.mxu0 %v4556
        %v4620 = vpop.f32.mrf.mxu0
        %v4621 = vadd.f32 0.0, %v4620
        %v4622 = vpop.f32.mrf.mxu0
        %v4623 = vadd.f32 0.0, %v4622
        %4624 = vmatmul.bf16.gmra.mxu0 %v4559
        %v4625 = vpop.f32.mrf.mxu0
        %v4626 = vadd.f32 0.0, %v4625
        %v4627 = vpop.f32.mrf.mxu0
        %v4628 = vadd.f32 0.0, %v4627
        %4629 = vmatmul.bf16.gmra.mxu0 %v4562
        %v4630 = vpop.f32.mrf.mxu0
        %v4631 = vadd.f32 0.0, %v4630
        %v4632 = vpop.f32.mrf.mxu0
        %v4633 = vadd.f32 0.0, %v4632
        %4634 = vmatmul.bf16.gmra.mxu0 %v4565
        %v4635 = vpop.f32.mrf.mxu0
        %v4636 = vadd.f32 0.0, %v4635
        %v4637 = vpop.f32.mrf.mxu0
        %v4638 = vadd.f32 0.0, %v4637
        %4639 = vmatmul.bf16.gmra.mxu0 %v4568
        %v4640 = vpop.f32.mrf.mxu0
        %v4641 = vadd.f32 0.0, %v4640
        %v4642 = vpop.f32.mrf.mxu0
        %v4643 = vadd.f32 0.0, %v4642
        %4644 = vmatmul.bf16.gmra.mxu0 %v4571
        %v4645 = vpop.f32.mrf.mxu0
        %v4646 = vadd.f32 0.0, %v4645
        %v4647 = vpop.f32.mrf.mxu0
        %v4648 = vadd.f32 0.0, %v4647
        %4649 = vmatmul.bf16.gmra.mxu0 %v4574
        %v4650 = vpop.f32.mrf.mxu0
        %v4651 = vadd.f32 0.0, %v4650
        %v4652 = vpop.f32.mrf.mxu0
        %v4653 = vadd.f32 0.0, %v4652
        %4654 = vmatmul.bf16.gmra.mxu0 %v4577
        %v4655 = vpop.f32.mrf.mxu0
        %v4656 = vadd.f32 0.0, %v4655
        %v4657 = vpop.f32.mrf.mxu0
        %v4658 = vadd.f32 0.0, %v4657
        %4659 = vmatmul.bf16.gmra.mxu0 %v4580
        %v4660 = vpop.f32.mrf.mxu0
        %v4661 = vadd.f32 0.0, %v4660
        %v4662 = vpop.f32.mrf.mxu0
        %v4663 = vadd.f32 0.0, %v4662
        %4664 = vmatmul.bf16.gmra.mxu0 %v4583
        %v4665 = vpop.f32.mrf.mxu0
        %v4666 = vadd.f32 0.0, %v4665
        %v4667 = vpop.f32.mrf.mxu0
        %v4668 = vadd.f32 0.0, %v4667
        %4669 = vmatmul.bf16.gmra.mxu0 %v4586
        %v4670 = vpop.f32.mrf.mxu0
        %v4671 = vadd.f32 0.0, %v4670
        %v4672 = vpop.f32.mrf.mxu0
        %v4673 = vadd.f32 0.0, %v4672
        %4674 = vmatmul.bf16.gmra.mxu0 %v4589
        %v4675 = vpop.f32.mrf.mxu0
        %v4676 = vadd.f32 0.0, %v4675
        %v4677 = vpop.f32.mrf.mxu0
        %v4678 = vadd.f32 0.0, %v4677
        %4679 = vdwg.mxu0
        %v4712 = vunpack.c.l.b16 %v4016
        %v4713 = vunpack.c.l.b16 %v4017
        %v4714 = vunpack.c.l.b16 %v4019
        %v4715 = vunpack.c.l.b16 %v4020
        %v4716 = vunpack.c.l.b16 %v4022
        %v4717 = vunpack.c.l.b16 %v4023
        %v4718 = vunpack.c.l.b16 %v4025
        %v4719 = vunpack.c.l.b16 %v4026
        %v4720 = vunpack.c.l.b16 %v4028
        %v4721 = vunpack.c.l.b16 %v4029
        %v4722 = vunpack.c.l.b16 %v4031
        %v4723 = vunpack.c.l.b16 %v4032
        %v4724 = vunpack.c.l.b16 %v4034
        %v4725 = vunpack.c.l.b16 %v4035
        %v4726 = vunpack.c.l.b16 %v4037
        %v4727 = vunpack.c.l.b16 %v4038
        %v4728 = vunpack.c.l.b16 %v4040
        %v4729 = vunpack.c.l.b16 %v4041
        %v4730 = vunpack.c.l.b16 %v4043
        %v4731 = vunpack.c.l.b16 %v4044
        %v4732 = vunpack.c.l.b16 %v4046
        %v4733 = vunpack.c.l.b16 %v4047
        %v4734 = vunpack.c.l.b16 %v4049
        %v4735 = vunpack.c.l.b16 %v4050
        %v4736 = vunpack.c.l.b16 %v4052
        %v4737 = vunpack.c.l.b16 %v4053
        %v4738 = vunpack.c.l.b16 %v4055
        %v4739 = vunpack.c.l.b16 %v4056
        %v4740 = vunpack.c.l.b16 %v4058
        %v4741 = vunpack.c.l.b16 %v4059
        %v4742 = vunpack.c.l.b16 %v4061
        %v4743 = vunpack.c.l.b16 %v4062
        %v4744 = vpack.c.b16 %v4713, %v4712
        %v4745 = vpack.c.b16 %v4715, %v4714
        %v4746 = vpack.c.b16 %v4717, %v4716
        %v4747 = vpack.c.b16 %v4719, %v4718
        %v4748 = vpack.c.b16 %v4721, %v4720
        %v4749 = vpack.c.b16 %v4723, %v4722
        %v4750 = vpack.c.b16 %v4725, %v4724
        %v4751 = vpack.c.b16 %v4727, %v4726
        %v4752 = vpack.c.b16 %v4729, %v4728
        %v4753 = vpack.c.b16 %v4731, %v4730
        %v4754 = vpack.c.b16 %v4733, %v4732
        %v4755 = vpack.c.b16 %v4735, %v4734
        %v4756 = vpack.c.b16 %v4737, %v4736
        %v4757 = vpack.c.b16 %v4739, %v4738
        %v4758 = vpack.c.b16 %v4741, %v4740
        %v4759 = vpack.c.b16 %v4743, %v4742
        %v4768 = vunpack.c.l.b16 %v4070
        %v4769 = vunpack.c.l.b16 %v4071
        %v4770 = vunpack.c.l.b16 %v4072
        %v4771 = vunpack.c.l.b16 %v4073
        %v4772 = vunpack.c.l.b16 %v4074
        %v4773 = vunpack.c.l.b16 %v4075
        %v4774 = vunpack.c.l.b16 %v4076
        %v4775 = vunpack.c.l.b16 %v4077
        %v4776 = vpack.c.b16 %v4769, %v4768
        %v4777 = vpack.c.b16 %v4771, %v4770
        %v4778 = vpack.c.b16 %v4773, %v4772
        %v4779 = vpack.c.b16 %v4775, %v4774
        %v4785 = vsel %vm3873, %v4744, 0
        %v4788 = vsel %vm3873, %v4745, 0
        %v4791 = vsel %vm3873, %v4746, 0
        %v4794 = vsel %vm3873, %v4747, 0
        %v4797 = vsel %vm3873, %v4748, 0
        %v4800 = vsel %vm3873, %v4749, 0
        %v4803 = vsel %vm3873, %v4750, 0
        %v4806 = vsel %vm3873, %v4751, 0
        %v4809 = vsel %vm3873, %v4752, 0
        %v4812 = vsel %vm3873, %v4753, 0
        %v4815 = vsel %vm3873, %v4754, 0
        %v4818 = vsel %vm3873, %v4755, 0
        %v4821 = vsel %vm3873, %v4756, 0
        %v4824 = vsel %vm3873, %v4757, 0
        %v4827 = vsel %vm3873, %v4758, 0
        %v4830 = vsel %vm3873, %v4759, 0
        %4832 = vmatpush.bf16.msra.mxu0 0
        %4833 = vmatpush.bf16.msra.mxu0 0
        %4834 = vmatpush.bf16.msra.mxu0 0
        %4835 = vmatpush.bf16.msra.mxu0 0
        %4836 = vmatpush.bf16.msra.mxu0 %v4779
        %4837 = vmatpush.bf16.msra.mxu0 %v4778
        %4838 = vmatpush.bf16.msra.mxu0 %v4777
        %4839 = vmatpush.bf16.msra.mxu0 %v4776
        %4840 = vmatmul.bf16.gmra.mxu0 %v4785
        %v4841 = vpop.f32.mrf.mxu0
        %v4842 = vadd.f32 %v4601, %v4841
        %v4843 = vpop.f32.mrf.mxu0
        %v4844 = vadd.f32 %v4603, %v4843
        %4845 = vmatmul.bf16.gmra.mxu0 %v4788
        %v4846 = vpop.f32.mrf.mxu0
        %v4847 = vadd.f32 %v4606, %v4846
        %v4848 = vpop.f32.mrf.mxu0
        %v4849 = vadd.f32 %v4608, %v4848
        %4850 = vmatmul.bf16.gmra.mxu0 %v4791
        %v4851 = vpop.f32.mrf.mxu0
        %v4852 = vadd.f32 %v4611, %v4851
        %v4853 = vpop.f32.mrf.mxu0
        %v4854 = vadd.f32 %v4613, %v4853
        %4855 = vmatmul.bf16.gmra.mxu0 %v4794
        %v4856 = vpop.f32.mrf.mxu0
        %v4857 = vadd.f32 %v4616, %v4856
        %v4858 = vpop.f32.mrf.mxu0
        %v4859 = vadd.f32 %v4618, %v4858
        %4860 = vmatmul.bf16.gmra.mxu0 %v4797
        %v4861 = vpop.f32.mrf.mxu0
        %v4862 = vadd.f32 %v4621, %v4861
        %v4863 = vpop.f32.mrf.mxu0
        %v4864 = vadd.f32 %v4623, %v4863
        %4865 = vmatmul.bf16.gmra.mxu0 %v4800
        %v4866 = vpop.f32.mrf.mxu0
        %v4867 = vadd.f32 %v4626, %v4866
        %v4868 = vpop.f32.mrf.mxu0
        %v4869 = vadd.f32 %v4628, %v4868
        %4870 = vmatmul.bf16.gmra.mxu0 %v4803
        %v4871 = vpop.f32.mrf.mxu0
        %v4872 = vadd.f32 %v4631, %v4871
        %v4873 = vpop.f32.mrf.mxu0
        %v4874 = vadd.f32 %v4633, %v4873
        %4875 = vmatmul.bf16.gmra.mxu0 %v4806
        %v4876 = vpop.f32.mrf.mxu0
        %v4877 = vadd.f32 %v4636, %v4876
        %v4878 = vpop.f32.mrf.mxu0
        %v4879 = vadd.f32 %v4638, %v4878
        %4880 = vmatmul.bf16.gmra.mxu0 %v4809
        %v4881 = vpop.f32.mrf.mxu0
        %v4882 = vadd.f32 %v4641, %v4881
        %v4883 = vpop.f32.mrf.mxu0
        %v4884 = vadd.f32 %v4643, %v4883
        %4885 = vmatmul.bf16.gmra.mxu0 %v4812
        %v4886 = vpop.f32.mrf.mxu0
        %v4887 = vadd.f32 %v4646, %v4886
        %v4888 = vpop.f32.mrf.mxu0
        %v4889 = vadd.f32 %v4648, %v4888
        %4890 = vmatmul.bf16.gmra.mxu0 %v4815
        %v4891 = vpop.f32.mrf.mxu0
        %v4892 = vadd.f32 %v4651, %v4891
        %v4893 = vpop.f32.mrf.mxu0
        %v4894 = vadd.f32 %v4653, %v4893
        %4895 = vmatmul.bf16.gmra.mxu0 %v4818
        %v4896 = vpop.f32.mrf.mxu0
        %v4897 = vadd.f32 %v4656, %v4896
        %v4898 = vpop.f32.mrf.mxu0
        %v4899 = vadd.f32 %v4658, %v4898
        %4900 = vmatmul.bf16.gmra.mxu0 %v4821
        %v4901 = vpop.f32.mrf.mxu0
        %v4902 = vadd.f32 %v4661, %v4901
        %v4903 = vpop.f32.mrf.mxu0
        %v4904 = vadd.f32 %v4663, %v4903
        %4905 = vmatmul.bf16.gmra.mxu0 %v4824
        %v4906 = vpop.f32.mrf.mxu0
        %v4907 = vadd.f32 %v4666, %v4906
        %v4908 = vpop.f32.mrf.mxu0
        %v4909 = vadd.f32 %v4668, %v4908
        %4910 = vmatmul.bf16.gmra.mxu0 %v4827
        %v4911 = vpop.f32.mrf.mxu0
        %v4912 = vadd.f32 %v4671, %v4911
        %v4913 = vpop.f32.mrf.mxu0
        %v4914 = vadd.f32 %v4673, %v4913
        %4915 = vmatmul.bf16.gmra.mxu0 %v4830
        %v4916 = vpop.f32.mrf.mxu0
        %v4917 = vadd.f32 %v4676, %v4916
        %v4918 = vpop.f32.mrf.mxu0
        %v4919 = vadd.f32 %v4678, %v4918
        %4920 = vdwg.mxu0
        %v4937 = vrot.slane %v4016, 5
        %v4938 = vrot.slane %v4937, 4
        %v4939 = vrot.slane %v4017, 5
        %v4940 = vsel %vm1312, %v4938, %v4939
        %v4941 = vrot.slane %v4939, 4
        %v4942 = vrot.slane %v4018, 5
        %v4943 = vsel %vm1312, %v4941, %v4942
        %v4944 = vrot.slane %v4019, 5
        %v4945 = vrot.slane %v4944, 4
        %v4946 = vrot.slane %v4020, 5
        %v4947 = vsel %vm1312, %v4945, %v4946
        %v4948 = vrot.slane %v4946, 4
        %v4949 = vrot.slane %v4021, 5
        %v4950 = vsel %vm1312, %v4948, %v4949
        %v4951 = vrot.slane %v4022, 5
        %v4952 = vrot.slane %v4951, 4
        %v4953 = vrot.slane %v4023, 5
        %v4954 = vsel %vm1312, %v4952, %v4953
        %v4955 = vrot.slane %v4953, 4
        %v4956 = vrot.slane %v4024, 5
        %v4957 = vsel %vm1312, %v4955, %v4956
        %v4958 = vrot.slane %v4025, 5
        %v4959 = vrot.slane %v4958, 4
        %v4960 = vrot.slane %v4026, 5
        %v4961 = vsel %vm1312, %v4959, %v4960
        %v4962 = vrot.slane %v4960, 4
        %v4963 = vrot.slane %v4027, 5
        %v4964 = vsel %vm1312, %v4962, %v4963
        %v4965 = vrot.slane %v4028, 5
        %v4966 = vrot.slane %v4965, 4
        %v4967 = vrot.slane %v4029, 5
        %v4968 = vsel %vm1312, %v4966, %v4967
        %v4969 = vrot.slane %v4967, 4
        %v4970 = vrot.slane %v4030, 5
        %v4971 = vsel %vm1312, %v4969, %v4970
        %v4972 = vrot.slane %v4031, 5
        %v4973 = vrot.slane %v4972, 4
        %v4974 = vrot.slane %v4032, 5
        %v4975 = vsel %vm1312, %v4973, %v4974
        %v4976 = vrot.slane %v4974, 4
        %v4977 = vrot.slane %v4033, 5
        %v4978 = vsel %vm1312, %v4976, %v4977
        %v4979 = vrot.slane %v4034, 5
        %v4980 = vrot.slane %v4979, 4
        %v4981 = vrot.slane %v4035, 5
        %v4982 = vsel %vm1312, %v4980, %v4981
        %v4983 = vrot.slane %v4981, 4
        %v4984 = vrot.slane %v4036, 5
        %v4985 = vsel %vm1312, %v4983, %v4984
        %v4986 = vrot.slane %v4037, 5
        %v4987 = vrot.slane %v4986, 4
        %v4988 = vrot.slane %v4038, 5
        %v4989 = vsel %vm1312, %v4987, %v4988
        %v4990 = vrot.slane %v4988, 4
        %v4991 = vrot.slane %v4039, 5
        %v4992 = vsel %vm1312, %v4990, %v4991
        %v4993 = vrot.slane %v4040, 5
        %v4994 = vrot.slane %v4993, 4
        %v4995 = vrot.slane %v4041, 5
        %v4996 = vsel %vm1312, %v4994, %v4995
        %v4997 = vrot.slane %v4995, 4
        %v4998 = vrot.slane %v4042, 5
        %v4999 = vsel %vm1312, %v4997, %v4998
        %v5000 = vrot.slane %v4043, 5
        %v5001 = vrot.slane %v5000, 4
        %v5002 = vrot.slane %v4044, 5
        %v5003 = vsel %vm1312, %v5001, %v5002
        %v5004 = vrot.slane %v5002, 4
        %v5005 = vrot.slane %v4045, 5
        %v5006 = vsel %vm1312, %v5004, %v5005
        %v5007 = vrot.slane %v4046, 5
        %v5008 = vrot.slane %v5007, 4
        %v5009 = vrot.slane %v4047, 5
        %v5010 = vsel %vm1312, %v5008, %v5009
        %v5011 = vrot.slane %v5009, 4
        %v5012 = vrot.slane %v4048, 5
        %v5013 = vsel %vm1312, %v5011, %v5012
        %v5014 = vrot.slane %v4049, 5
        %v5015 = vrot.slane %v5014, 4
        %v5016 = vrot.slane %v4050, 5
        %v5017 = vsel %vm1312, %v5015, %v5016
        %v5018 = vrot.slane %v5016, 4
        %v5019 = vrot.slane %v4051, 5
        %v5020 = vsel %vm1312, %v5018, %v5019
        %v5021 = vrot.slane %v4052, 5
        %v5022 = vrot.slane %v5021, 4
        %v5023 = vrot.slane %v4053, 5
        %v5024 = vsel %vm1312, %v5022, %v5023
        %v5025 = vrot.slane %v5023, 4
        %v5026 = vrot.slane %v4054, 5
        %v5027 = vsel %vm1312, %v5025, %v5026
        %v5028 = vrot.slane %v4055, 5
        %v5029 = vrot.slane %v5028, 4
        %v5030 = vrot.slane %v4056, 5
        %v5031 = vsel %vm1312, %v5029, %v5030
        %v5032 = vrot.slane %v5030, 4
        %v5033 = vrot.slane %v4057, 5
        %v5034 = vsel %vm1312, %v5032, %v5033
        %v5035 = vrot.slane %v4058, 5
        %v5036 = vrot.slane %v5035, 4
        %v5037 = vrot.slane %v4059, 5
        %v5038 = vsel %vm1312, %v5036, %v5037
        %v5039 = vrot.slane %v5037, 4
        %v5040 = vrot.slane %v4060, 5
        %v5041 = vsel %vm1312, %v5039, %v5040
        %v5042 = vrot.slane %v4061, 5
        %v5043 = vrot.slane %v5042, 4
        %v5044 = vrot.slane %v4062, 5
        %v5045 = vsel %vm1312, %v5043, %v5044
        %v5046 = vrot.slane %v5044, 4
        %v5047 = vrot.slane %v4063, 5
        %v5048 = vsel %vm1312, %v5046, %v5047
        %s5049 = scalar_lea.vmem %s7, 64
        %v5050 = vld [vmem:[%s5049] sm:$0xf]
        %v5051 = vld [vmem:[%s5049 + $0x4] sm:$0xf]
        %v5052 = vld [vmem:[%s5049 + $0x8] sm:$0xf]
        %v5053 = vld [vmem:[%s5049 + $0xc] sm:$0xf]
        %v5054 = vld [vmem:[%s5049 + $0x10] sm:$0xf]
        %v5055 = vld [vmem:[%s5049 + $0x14] sm:$0xf]
        %v5056 = vld [vmem:[%s5049 + $0x18] sm:$0xf]
        %v5057 = vld [vmem:[%s5049 + $0x1c] sm:$0xf]
        %v5058 = vunpack.c.l.b16 %v4940
        %v5059 = vunpack.c.l.b16 %v4943
        %v5060 = vunpack.c.l.b16 %v4947
        %v5061 = vunpack.c.l.b16 %v4950
        %v5062 = vunpack.c.l.b16 %v4954
        %v5063 = vunpack.c.l.b16 %v4957
        %v5064 = vunpack.c.l.b16 %v4961
        %v5065 = vunpack.c.l.b16 %v4964
        %v5066 = vunpack.c.l.b16 %v4968
        %v5067 = vunpack.c.l.b16 %v4971
        %v5068 = vunpack.c.l.b16 %v4975
        %v5069 = vunpack.c.l.b16 %v4978
        %v5070 = vunpack.c.l.b16 %v4982
        %v5071 = vunpack.c.l.b16 %v4985
        %v5072 = vunpack.c.l.b16 %v4989
        %v5073 = vunpack.c.l.b16 %v4992
        %v5074 = vunpack.c.l.b16 %v4996
        %v5075 = vunpack.c.l.b16 %v4999
        %v5076 = vunpack.c.l.b16 %v5003
        %v5077 = vunpack.c.l.b16 %v5006
        %v5078 = vunpack.c.l.b16 %v5010
        %v5079 = vunpack.c.l.b16 %v5013
        %v5080 = vunpack.c.l.b16 %v5017
        %v5081 = vunpack.c.l.b16 %v5020
        %v5082 = vunpack.c.l.b16 %v5024
        %v5083 = vunpack.c.l.b16 %v5027
        %v5084 = vunpack.c.l.b16 %v5031
        %v5085 = vunpack.c.l.b16 %v5034
        %v5086 = vunpack.c.l.b16 %v5038
        %v5087 = vunpack.c.l.b16 %v5041
        %v5088 = vunpack.c.l.b16 %v5045
        %v5089 = vunpack.c.l.b16 %v5048
        %v5090 = vpack.c.b16 %v5059, %v5058
        %v5091 = vpack.c.b16 %v5061, %v5060
        %v5092 = vpack.c.b16 %v5063, %v5062
        %v5093 = vpack.c.b16 %v5065, %v5064
        %v5094 = vpack.c.b16 %v5067, %v5066
        %v5095 = vpack.c.b16 %v5069, %v5068
        %v5096 = vpack.c.b16 %v5071, %v5070
        %v5097 = vpack.c.b16 %v5073, %v5072
        %v5098 = vpack.c.b16 %v5075, %v5074
        %v5099 = vpack.c.b16 %v5077, %v5076
        %v5100 = vpack.c.b16 %v5079, %v5078
        %v5101 = vpack.c.b16 %v5081, %v5080
        %v5102 = vpack.c.b16 %v5083, %v5082
        %v5103 = vpack.c.b16 %v5085, %v5084
        %v5104 = vpack.c.b16 %v5087, %v5086
        %v5105 = vpack.c.b16 %v5089, %v5088
        %v5114 = vunpack.c.l.b16 %v5050
        %v5115 = vunpack.c.l.b16 %v5051
        %v5116 = vunpack.c.l.b16 %v5052
        %v5117 = vunpack.c.l.b16 %v5053
        %v5118 = vunpack.c.l.b16 %v5054
        %v5119 = vunpack.c.l.b16 %v5055
        %v5120 = vunpack.c.l.b16 %v5056
        %v5121 = vunpack.c.l.b16 %v5057
        %v5122 = vpack.c.b16 %v5115, %v5114
        %v5123 = vpack.c.b16 %v5117, %v5116
        %v5124 = vpack.c.b16 %v5119, %v5118
        %v5125 = vpack.c.b16 %v5121, %v5120
        %v5131 = vsel %vm3873, %v5090, 0
        %v5134 = vsel %vm3873, %v5091, 0
        %v5137 = vsel %vm3873, %v5092, 0
        %v5140 = vsel %vm3873, %v5093, 0
        %v5143 = vsel %vm3873, %v5094, 0
        %v5146 = vsel %vm3873, %v5095, 0
        %v5149 = vsel %vm3873, %v5096, 0
        %v5152 = vsel %vm3873, %v5097, 0
        %v5155 = vsel %vm3873, %v5098, 0
        %v5158 = vsel %vm3873, %v5099, 0
        %v5161 = vsel %vm3873, %v5100, 0
        %v5164 = vsel %vm3873, %v5101, 0
        %v5167 = vsel %vm3873, %v5102, 0
        %v5170 = vsel %vm3873, %v5103, 0
        %v5173 = vsel %vm3873, %v5104, 0
        %v5176 = vsel %vm3873, %v5105, 0
        %5178 = vmatpush.bf16.msra.mxu0 0
        %5179 = vmatpush.bf16.msra.mxu0 0
        %5180 = vmatpush.bf16.msra.mxu0 0
        %5181 = vmatpush.bf16.msra.mxu0 0
        %5182 = vmatpush.bf16.msra.mxu0 %v5125
        %5183 = vmatpush.bf16.msra.mxu0 %v5124
        %5184 = vmatpush.bf16.msra.mxu0 %v5123
        %5185 = vmatpush.bf16.msra.mxu0 %v5122
        %5186 = vmatmul.bf16.gmra.mxu0 %v5131
        %v5187 = vpop.f32.mrf.mxu0
        %v5188 = vadd.f32 0.0, %v5187
        %v5189 = vpop.f32.mrf.mxu0
        %v5190 = vadd.f32 0.0, %v5189
        %5191 = vmatmul.bf16.gmra.mxu0 %v5134
        %v5192 = vpop.f32.mrf.mxu0
        %v5193 = vadd.f32 0.0, %v5192
        %v5194 = vpop.f32.mrf.mxu0
        %v5195 = vadd.f32 0.0, %v5194
        %5196 = vmatmul.bf16.gmra.mxu0 %v5137
        %v5197 = vpop.f32.mrf.mxu0
        %v5198 = vadd.f32 0.0, %v5197
        %v5199 = vpop.f32.mrf.mxu0
        %v5200 = vadd.f32 0.0, %v5199
        %5201 = vmatmul.bf16.gmra.mxu0 %v5140
        %v5202 = vpop.f32.mrf.mxu0
        %v5203 = vadd.f32 0.0, %v5202
        %v5204 = vpop.f32.mrf.mxu0
        %v5205 = vadd.f32 0.0, %v5204
        %5206 = vmatmul.bf16.gmra.mxu0 %v5143
        %v5207 = vpop.f32.mrf.mxu0
        %v5208 = vadd.f32 0.0, %v5207
        %v5209 = vpop.f32.mrf.mxu0
        %v5210 = vadd.f32 0.0, %v5209
        %5211 = vmatmul.bf16.gmra.mxu0 %v5146
        %v5212 = vpop.f32.mrf.mxu0
        %v5213 = vadd.f32 0.0, %v5212
        %v5214 = vpop.f32.mrf.mxu0
        %v5215 = vadd.f32 0.0, %v5214
        %5216 = vmatmul.bf16.gmra.mxu0 %v5149
        %v5217 = vpop.f32.mrf.mxu0
        %v5218 = vadd.f32 0.0, %v5217
        %v5219 = vpop.f32.mrf.mxu0
        %v5220 = vadd.f32 0.0, %v5219
        %5221 = vmatmul.bf16.gmra.mxu0 %v5152
        %v5222 = vpop.f32.mrf.mxu0
        %v5223 = vadd.f32 0.0, %v5222
        %v5224 = vpop.f32.mrf.mxu0
        %v5225 = vadd.f32 0.0, %v5224
        %5226 = vmatmul.bf16.gmra.mxu0 %v5155
        %v5227 = vpop.f32.mrf.mxu0
        %v5228 = vadd.f32 0.0, %v5227
        %v5229 = vpop.f32.mrf.mxu0
        %v5230 = vadd.f32 0.0, %v5229
        %5231 = vmatmul.bf16.gmra.mxu0 %v5158
        %v5232 = vpop.f32.mrf.mxu0
        %v5233 = vadd.f32 0.0, %v5232
        %v5234 = vpop.f32.mrf.mxu0
        %v5235 = vadd.f32 0.0, %v5234
        %5236 = vmatmul.bf16.gmra.mxu0 %v5161
        %v5237 = vpop.f32.mrf.mxu0
        %v5238 = vadd.f32 0.0, %v5237
        %v5239 = vpop.f32.mrf.mxu0
        %v5240 = vadd.f32 0.0, %v5239
        %5241 = vmatmul.bf16.gmra.mxu0 %v5164
        %v5242 = vpop.f32.mrf.mxu0
        %v5243 = vadd.f32 0.0, %v5242
        %v5244 = vpop.f32.mrf.mxu0
        %v5245 = vadd.f32 0.0, %v5244
        %5246 = vmatmul.bf16.gmra.mxu0 %v5167
        %v5247 = vpop.f32.mrf.mxu0
        %v5248 = vadd.f32 0.0, %v5247
        %v5249 = vpop.f32.mrf.mxu0
        %v5250 = vadd.f32 0.0, %v5249
        %5251 = vmatmul.bf16.gmra.mxu0 %v5170
        %v5252 = vpop.f32.mrf.mxu0
        %v5253 = vadd.f32 0.0, %v5252
        %v5254 = vpop.f32.mrf.mxu0
        %v5255 = vadd.f32 0.0, %v5254
        %5256 = vmatmul.bf16.gmra.mxu0 %v5173
        %v5257 = vpop.f32.mrf.mxu0
        %v5258 = vadd.f32 0.0, %v5257
        %v5259 = vpop.f32.mrf.mxu0
        %v5260 = vadd.f32 0.0, %v5259
        %5261 = vmatmul.bf16.gmra.mxu0 %v5176
        %v5262 = vpop.f32.mrf.mxu0
        %v5263 = vadd.f32 0.0, %v5262
        %v5264 = vpop.f32.mrf.mxu0
        %v5265 = vadd.f32 0.0, %v5264
        %5266 = vdwg.mxu0
        %v5267 = vadd.f32 %v4842, %v5188
        %v5268 = vadd.f32 %v4844, %v5190
        %v5269 = vadd.f32 %v4847, %v5193
        %v5270 = vadd.f32 %v4849, %v5195
        %v5271 = vadd.f32 %v4852, %v5198
        %v5272 = vadd.f32 %v4854, %v5200
        %v5273 = vadd.f32 %v4857, %v5203
        %v5274 = vadd.f32 %v4859, %v5205
        %v5275 = vadd.f32 %v4862, %v5208
        %v5276 = vadd.f32 %v4864, %v5210
        %v5277 = vadd.f32 %v4867, %v5213
        %v5278 = vadd.f32 %v4869, %v5215
        %v5279 = vadd.f32 %v4872, %v5218
        %v5280 = vadd.f32 %v4874, %v5220
        %v5281 = vadd.f32 %v4877, %v5223
        %v5282 = vadd.f32 %v4879, %v5225
        %v5283 = vadd.f32 %v4882, %v5228
        %v5284 = vadd.f32 %v4884, %v5230
        %v5285 = vadd.f32 %v4887, %v5233
        %v5286 = vadd.f32 %v4889, %v5235
        %v5287 = vadd.f32 %v4892, %v5238
        %v5288 = vadd.f32 %v4894, %v5240
        %v5289 = vadd.f32 %v4897, %v5243
        %v5290 = vadd.f32 %v4899, %v5245
        %v5291 = vadd.f32 %v4902, %v5248
        %v5292 = vadd.f32 %v4904, %v5250
        %v5293 = vadd.f32 %v4907, %v5253
        %v5294 = vadd.f32 %v4909, %v5255
        %v5295 = vadd.f32 %v4912, %v5258
        %v5296 = vadd.f32 %v4914, %v5260
        %v5297 = vadd.f32 %v4917, %v5263
        %v5298 = vadd.f32 %v4919, %v5265
        %s5299 = scalar_lea.vmem %s7, 96
        %v5300 = vld [vmem:[%s5299] sm:$0xf]
        %v5301 = vld [vmem:[%s5299 + $0x4] sm:$0xf]
        %v5302 = vld [vmem:[%s5299 + $0x8] sm:$0xf]
        %v5303 = vld [vmem:[%s5299 + $0xc] sm:$0xf]
        %v5304 = vld [vmem:[%s5299 + $0x10] sm:$0xf]
        %v5305 = vld [vmem:[%s5299 + $0x14] sm:$0xf]
        %v5306 = vld [vmem:[%s5299 + $0x18] sm:$0xf]
        %v5307 = vld [vmem:[%s5299 + $0x1c] sm:$0xf]
        %v5310 = vunpack.c.l.b16 %v4064
        %v5311 = vunpack.c.l.b16 %v4065
        %v5312 = vpack.c.b16 %v5311, %v5310
        %v5321 = vunpack.c.l.b16 %v5300
        %v5322 = vunpack.c.l.b16 %v5301
        %v5323 = vunpack.c.l.b16 %v5302
        %v5324 = vunpack.c.l.b16 %v5303
        %v5325 = vunpack.c.l.b16 %v5304
        %v5326 = vunpack.c.l.b16 %v5305
        %v5327 = vunpack.c.l.b16 %v5306
        %v5328 = vunpack.c.l.b16 %v5307
        %v5329 = vpack.c.b16 %v5322, %v5321
        %v5330 = vpack.c.b16 %v5324, %v5323
        %v5331 = vpack.c.b16 %v5326, %v5325
        %v5332 = vpack.c.b16 %v5328, %v5327
        %v5338 = vsel %vm3873, %v5312, 0
        %5340 = vmatpush.bf16.msra.mxu0 0
        %5341 = vmatpush.bf16.msra.mxu0 0
        %5342 = vmatpush.bf16.msra.mxu0 0
        %5343 = vmatpush.bf16.msra.mxu0 0
        %5344 = vmatpush.bf16.msra.mxu0 %v5332
        %5345 = vmatpush.bf16.msra.mxu0 %v5331
        %5346 = vmatpush.bf16.msra.mxu0 %v5330
        %5347 = vmatpush.bf16.msra.mxu0 %v5329
        %5348 = vmatmul.bf16.gmra.mxu0 %v4788
        %v5349 = vpop.f32.mrf.mxu0
        %v5350 = vadd.f32 0.0, %v5349
        %v5351 = vpop.f32.mrf.mxu0
        %v5352 = vadd.f32 0.0, %v5351
        %5353 = vmatmul.bf16.gmra.mxu0 %v4791
        %v5354 = vpop.f32.mrf.mxu0
        %v5355 = vadd.f32 0.0, %v5354
        %v5356 = vpop.f32.mrf.mxu0
        %v5357 = vadd.f32 0.0, %v5356
        %5358 = vmatmul.bf16.gmra.mxu0 %v4794
        %v5359 = vpop.f32.mrf.mxu0
        %v5360 = vadd.f32 0.0, %v5359
        %v5361 = vpop.f32.mrf.mxu0
        %v5362 = vadd.f32 0.0, %v5361
        %5363 = vmatmul.bf16.gmra.mxu0 %v4797
        %v5364 = vpop.f32.mrf.mxu0
        %v5365 = vadd.f32 0.0, %v5364
        %v5366 = vpop.f32.mrf.mxu0
        %v5367 = vadd.f32 0.0, %v5366
        %5368 = vmatmul.bf16.gmra.mxu0 %v4800
        %v5369 = vpop.f32.mrf.mxu0
        %v5370 = vadd.f32 0.0, %v5369
        %v5371 = vpop.f32.mrf.mxu0
        %v5372 = vadd.f32 0.0, %v5371
        %5373 = vmatmul.bf16.gmra.mxu0 %v4803
        %v5374 = vpop.f32.mrf.mxu0
        %v5375 = vadd.f32 0.0, %v5374
        %v5376 = vpop.f32.mrf.mxu0
        %v5377 = vadd.f32 0.0, %v5376
        %5378 = vmatmul.bf16.gmra.mxu0 %v4806
        %v5379 = vpop.f32.mrf.mxu0
        %v5380 = vadd.f32 0.0, %v5379
        %v5381 = vpop.f32.mrf.mxu0
        %v5382 = vadd.f32 0.0, %v5381
        %5383 = vmatmul.bf16.gmra.mxu0 %v4809
        %v5384 = vpop.f32.mrf.mxu0
        %v5385 = vadd.f32 0.0, %v5384
        %v5386 = vpop.f32.mrf.mxu0
        %v5387 = vadd.f32 0.0, %v5386
        %5388 = vmatmul.bf16.gmra.mxu0 %v4812
        %v5389 = vpop.f32.mrf.mxu0
        %v5390 = vadd.f32 0.0, %v5389
        %v5391 = vpop.f32.mrf.mxu0
        %v5392 = vadd.f32 0.0, %v5391
        %5393 = vmatmul.bf16.gmra.mxu0 %v4815
        %v5394 = vpop.f32.mrf.mxu0
        %v5395 = vadd.f32 0.0, %v5394
        %v5396 = vpop.f32.mrf.mxu0
        %v5397 = vadd.f32 0.0, %v5396
        %5398 = vmatmul.bf16.gmra.mxu0 %v4818
        %v5399 = vpop.f32.mrf.mxu0
        %v5400 = vadd.f32 0.0, %v5399
        %v5401 = vpop.f32.mrf.mxu0
        %v5402 = vadd.f32 0.0, %v5401
        %5403 = vmatmul.bf16.gmra.mxu0 %v4821
        %v5404 = vpop.f32.mrf.mxu0
        %v5405 = vadd.f32 0.0, %v5404
        %v5406 = vpop.f32.mrf.mxu0
        %v5407 = vadd.f32 0.0, %v5406
        %5408 = vmatmul.bf16.gmra.mxu0 %v4824
        %v5409 = vpop.f32.mrf.mxu0
        %v5410 = vadd.f32 0.0, %v5409
        %v5411 = vpop.f32.mrf.mxu0
        %v5412 = vadd.f32 0.0, %v5411
        %5413 = vmatmul.bf16.gmra.mxu0 %v4827
        %v5414 = vpop.f32.mrf.mxu0
        %v5415 = vadd.f32 0.0, %v5414
        %v5416 = vpop.f32.mrf.mxu0
        %v5417 = vadd.f32 0.0, %v5416
        %5418 = vmatmul.bf16.gmra.mxu0 %v4830
        %v5419 = vpop.f32.mrf.mxu0
        %v5420 = vadd.f32 0.0, %v5419
        %v5421 = vpop.f32.mrf.mxu0
        %v5422 = vadd.f32 0.0, %v5421
        %5423 = vmatmul.bf16.gmra.mxu0 %v5338
        %v5424 = vpop.f32.mrf.mxu0
        %v5425 = vadd.f32 0.0, %v5424
        %v5426 = vpop.f32.mrf.mxu0
        %v5427 = vadd.f32 0.0, %v5426
        %5428 = vdwg.mxu0
        %v5429 = vadd.f32 %v5267, %v5350
        %v5430 = vadd.f32 %v5268, %v5352
        %v5431 = vadd.f32 %v5269, %v5355
        %v5432 = vadd.f32 %v5270, %v5357
        %v5433 = vadd.f32 %v5271, %v5360
        %v5434 = vadd.f32 %v5272, %v5362
        %v5435 = vadd.f32 %v5273, %v5365
        %v5436 = vadd.f32 %v5274, %v5367
        %v5437 = vadd.f32 %v5275, %v5370
        %v5438 = vadd.f32 %v5276, %v5372
        %v5439 = vadd.f32 %v5277, %v5375
        %v5440 = vadd.f32 %v5278, %v5377
        %v5441 = vadd.f32 %v5279, %v5380
        %v5442 = vadd.f32 %v5280, %v5382
        %v5443 = vadd.f32 %v5281, %v5385
        %v5444 = vadd.f32 %v5282, %v5387
        %v5445 = vadd.f32 %v5283, %v5390
        %v5446 = vadd.f32 %v5284, %v5392
        %v5447 = vadd.f32 %v5285, %v5395
        %v5448 = vadd.f32 %v5286, %v5397
        %v5449 = vadd.f32 %v5287, %v5400
        %v5450 = vadd.f32 %v5288, %v5402
        %v5451 = vadd.f32 %v5289, %v5405
        %v5452 = vadd.f32 %v5290, %v5407
        %v5453 = vadd.f32 %v5291, %v5410
        %v5454 = vadd.f32 %v5292, %v5412
        %v5455 = vadd.f32 %v5293, %v5415
        %v5456 = vadd.f32 %v5294, %v5417
        %v5457 = vadd.f32 %v5295, %v5420
        %v5458 = vadd.f32 %v5296, %v5422
        %v5459 = vadd.f32 %v5297, %v5425
        %v5460 = vadd.f32 %v5298, %v5427
        %v5462 = vshrl.u32 %v4064, 16
        %v5464 = vrot.slane %v5462, 4
        %v5465 = vshll.u32 %v4064, 16
        %v5467 = vrot.slane %v5465, 5
        %v5468 = vor.u32 %v5464, %v5467
        %v5469 = vrot.slane %v5468, 4
        %v5471 = vshll.u32 %v4065, 16
        %v5473 = vrot.slane %v5471, 5
        %v5474 = vsel %vm497, %v5469, %v5473
        %v5475 = vshrl.u32 %v4065, 16
        %v5477 = vrot.slane %v5475, 4
        %v5478 = vor.u32 %v5477, %v5473
        %v5479 = vrot.slane %v5478, 4
        %v5481 = vshll.u32 %v4066, 16
        %v5483 = vrot.slane %v5481, 5
        %v5484 = vsel %vm497, %v5479, %v5483
        %s5485 = scalar_lea.vmem %s7, 128
        %v5486 = vld [vmem:[%s5485] sm:$0xf]
        %v5487 = vld [vmem:[%s5485 + $0x4] sm:$0xf]
        %v5488 = vld [vmem:[%s5485 + $0x8] sm:$0xf]
        %v5489 = vld [vmem:[%s5485 + $0xc] sm:$0xf]
        %v5490 = vld [vmem:[%s5485 + $0x10] sm:$0xf]
        %v5491 = vld [vmem:[%s5485 + $0x14] sm:$0xf]
        %v5492 = vld [vmem:[%s5485 + $0x18] sm:$0xf]
        %v5493 = vld [vmem:[%s5485 + $0x1c] sm:$0xf]
        %v5494 = vunpack.c.l.b16 %v5474
        %v5495 = vunpack.c.l.b16 %v5484
        %v5496 = vpack.c.b16 %v5495, %v5494
        %v5505 = vunpack.c.l.b16 %v5486
        %v5506 = vunpack.c.l.b16 %v5487
        %v5507 = vunpack.c.l.b16 %v5488
        %v5508 = vunpack.c.l.b16 %v5489
        %v5509 = vunpack.c.l.b16 %v5490
        %v5510 = vunpack.c.l.b16 %v5491
        %v5511 = vunpack.c.l.b16 %v5492
        %v5512 = vunpack.c.l.b16 %v5493
        %v5513 = vpack.c.b16 %v5506, %v5505
        %v5514 = vpack.c.b16 %v5508, %v5507
        %v5515 = vpack.c.b16 %v5510, %v5509
        %v5516 = vpack.c.b16 %v5512, %v5511
        %v5522 = vsel %vm3873, %v5496, 0
        %5524 = vmatpush.bf16.msra.mxu0 0
        %5525 = vmatpush.bf16.msra.mxu0 0
        %5526 = vmatpush.bf16.msra.mxu0 0
        %5527 = vmatpush.bf16.msra.mxu0 0
        %5528 = vmatpush.bf16.msra.mxu0 %v5516
        %5529 = vmatpush.bf16.msra.mxu0 %v5515
        %5530 = vmatpush.bf16.msra.mxu0 %v5514
        %5531 = vmatpush.bf16.msra.mxu0 %v5513
        %5532 = vmatmul.bf16.gmra.mxu0 %v4547
        %v5533 = vpop.f32.mrf.mxu0
        %v5534 = vadd.f32 0.0, %v5533
        %v5535 = vpop.f32.mrf.mxu0
        %v5536 = vadd.f32 0.0, %v5535
        %5537 = vmatmul.bf16.gmra.mxu0 %v4550
        %v5538 = vpop.f32.mrf.mxu0
        %v5539 = vadd.f32 0.0, %v5538
        %v5540 = vpop.f32.mrf.mxu0
        %v5541 = vadd.f32 0.0, %v5540
        %5542 = vmatmul.bf16.gmra.mxu0 %v4553
        %v5543 = vpop.f32.mrf.mxu0
        %v5544 = vadd.f32 0.0, %v5543
        %v5545 = vpop.f32.mrf.mxu0
        %v5546 = vadd.f32 0.0, %v5545
        %5547 = vmatmul.bf16.gmra.mxu0 %v4556
        %v5548 = vpop.f32.mrf.mxu0
        %v5549 = vadd.f32 0.0, %v5548
        %v5550 = vpop.f32.mrf.mxu0
        %v5551 = vadd.f32 0.0, %v5550
        %5552 = vmatmul.bf16.gmra.mxu0 %v4559
        %v5553 = vpop.f32.mrf.mxu0
        %v5554 = vadd.f32 0.0, %v5553
        %v5555 = vpop.f32.mrf.mxu0
        %v5556 = vadd.f32 0.0, %v5555
        %5557 = vmatmul.bf16.gmra.mxu0 %v4562
        %v5558 = vpop.f32.mrf.mxu0
        %v5559 = vadd.f32 0.0, %v5558
        %v5560 = vpop.f32.mrf.mxu0
        %v5561 = vadd.f32 0.0, %v5560
        %5562 = vmatmul.bf16.gmra.mxu0 %v4565
        %v5563 = vpop.f32.mrf.mxu0
        %v5564 = vadd.f32 0.0, %v5563
        %v5565 = vpop.f32.mrf.mxu0
        %v5566 = vadd.f32 0.0, %v5565
        %5567 = vmatmul.bf16.gmra.mxu0 %v4568
        %v5568 = vpop.f32.mrf.mxu0
        %v5569 = vadd.f32 0.0, %v5568
        %v5570 = vpop.f32.mrf.mxu0
        %v5571 = vadd.f32 0.0, %v5570
        %5572 = vmatmul.bf16.gmra.mxu0 %v4571
        %v5573 = vpop.f32.mrf.mxu0
        %v5574 = vadd.f32 0.0, %v5573
        %v5575 = vpop.f32.mrf.mxu0
        %v5576 = vadd.f32 0.0, %v5575
        %5577 = vmatmul.bf16.gmra.mxu0 %v4574
        %v5578 = vpop.f32.mrf.mxu0
        %v5579 = vadd.f32 0.0, %v5578
        %v5580 = vpop.f32.mrf.mxu0
        %v5581 = vadd.f32 0.0, %v5580
        %5582 = vmatmul.bf16.gmra.mxu0 %v4577
        %v5583 = vpop.f32.mrf.mxu0
        %v5584 = vadd.f32 0.0, %v5583
        %v5585 = vpop.f32.mrf.mxu0
        %v5586 = vadd.f32 0.0, %v5585
        %5587 = vmatmul.bf16.gmra.mxu0 %v4580
        %v5588 = vpop.f32.mrf.mxu0
        %v5589 = vadd.f32 0.0, %v5588
        %v5590 = vpop.f32.mrf.mxu0
        %v5591 = vadd.f32 0.0, %v5590
        %5592 = vmatmul.bf16.gmra.mxu0 %v4583
        %v5593 = vpop.f32.mrf.mxu0
        %v5594 = vadd.f32 0.0, %v5593
        %v5595 = vpop.f32.mrf.mxu0
        %v5596 = vadd.f32 0.0, %v5595
        %5597 = vmatmul.bf16.gmra.mxu0 %v4586
        %v5598 = vpop.f32.mrf.mxu0
        %v5599 = vadd.f32 0.0, %v5598
        %v5600 = vpop.f32.mrf.mxu0
        %v5601 = vadd.f32 0.0, %v5600
        %5602 = vmatmul.bf16.gmra.mxu0 %v4589
        %v5603 = vpop.f32.mrf.mxu0
        %v5604 = vadd.f32 0.0, %v5603
        %v5605 = vpop.f32.mrf.mxu0
        %v5606 = vadd.f32 0.0, %v5605
        %5607 = vmatmul.bf16.gmra.mxu0 %v5522
        %v5608 = vpop.f32.mrf.mxu0
        %v5609 = vadd.f32 0.0, %v5608
        %v5610 = vpop.f32.mrf.mxu0
        %v5611 = vadd.f32 0.0, %v5610
        %5612 = vdwg.mxu0
        %v5613 = vadd.f32 %v5429, %v5534
        %v5614 = vadd.f32 %v5430, %v5536
        %v5615 = vadd.f32 %v5431, %v5539
        %v5616 = vadd.f32 %v5432, %v5541
        %v5617 = vadd.f32 %v5433, %v5544
        %v5618 = vadd.f32 %v5434, %v5546
        %v5619 = vadd.f32 %v5435, %v5549
        %v5620 = vadd.f32 %v5436, %v5551
        %v5621 = vadd.f32 %v5437, %v5554
        %v5622 = vadd.f32 %v5438, %v5556
        %v5623 = vadd.f32 %v5439, %v5559
        %v5624 = vadd.f32 %v5440, %v5561
        %v5625 = vadd.f32 %v5441, %v5564
        %v5626 = vadd.f32 %v5442, %v5566
        %v5627 = vadd.f32 %v5443, %v5569
        %v5628 = vadd.f32 %v5444, %v5571
        %v5629 = vadd.f32 %v5445, %v5574
        %v5630 = vadd.f32 %v5446, %v5576
        %v5631 = vadd.f32 %v5447, %v5579
        %v5632 = vadd.f32 %v5448, %v5581
        %v5633 = vadd.f32 %v5449, %v5584
        %v5634 = vadd.f32 %v5450, %v5586
        %v5635 = vadd.f32 %v5451, %v5589
        %v5636 = vadd.f32 %v5452, %v5591
        %v5637 = vadd.f32 %v5453, %v5594
        %v5638 = vadd.f32 %v5454, %v5596
        %v5639 = vadd.f32 %v5455, %v5599
        %v5640 = vadd.f32 %v5456, %v5601
        %v5641 = vadd.f32 %v5457, %v5604
        %v5642 = vadd.f32 %v5458, %v5606
        %v5643 = vadd.f32 %v5459, %v5609
        %v5644 = vadd.f32 %v5460, %v5611
        %v5646 = vrot.slane %v4064, 5
        %v5647 = vrot.slane %v5646, 4
        %v5648 = vrot.slane %v4065, 5
        %v5649 = vsel %vm1312, %v5647, %v5648
        %v5650 = vrot.slane %v5648, 4
        %v5651 = vrot.slane %v4066, 5
        %v5652 = vsel %vm1312, %v5650, %v5651
        %s5653 = scalar_lea.vmem %s7, 160
        %v5654 = vld [vmem:[%s5653] sm:$0xf]
        %v5655 = vld [vmem:[%s5653 + $0x4] sm:$0xf]
        %v5656 = vld [vmem:[%s5653 + $0x8] sm:$0xf]
        %v5657 = vld [vmem:[%s5653 + $0xc] sm:$0xf]
        %v5658 = vld [vmem:[%s5653 + $0x10] sm:$0xf]
        %v5659 = vld [vmem:[%s5653 + $0x14] sm:$0xf]
        %v5660 = vld [vmem:[%s5653 + $0x18] sm:$0xf]
        %v5661 = vld [vmem:[%s5653 + $0x1c] sm:$0xf]
        %v5662 = vunpack.c.l.b16 %v5649
        %v5663 = vunpack.c.l.b16 %v5652
        %v5664 = vpack.c.b16 %v5663, %v5662
        %v5673 = vunpack.c.l.b16 %v5654
        %v5674 = vunpack.c.l.b16 %v5655
        %v5675 = vunpack.c.l.b16 %v5656
        %v5676 = vunpack.c.l.b16 %v5657
        %v5677 = vunpack.c.l.b16 %v5658
        %v5678 = vunpack.c.l.b16 %v5659
        %v5679 = vunpack.c.l.b16 %v5660
        %v5680 = vunpack.c.l.b16 %v5661
        %v5681 = vpack.c.b16 %v5674, %v5673
        %v5682 = vpack.c.b16 %v5676, %v5675
        %v5683 = vpack.c.b16 %v5678, %v5677
        %v5684 = vpack.c.b16 %v5680, %v5679
        %v5690 = vsel %vm3873, %v5664, 0
        %5692 = vmatpush.bf16.msra.mxu0 0
        %5693 = vmatpush.bf16.msra.mxu0 0
        %5694 = vmatpush.bf16.msra.mxu0 0
        %5695 = vmatpush.bf16.msra.mxu0 0
        %5696 = vmatpush.bf16.msra.mxu0 %v5684
        %5697 = vmatpush.bf16.msra.mxu0 %v5683
        %5698 = vmatpush.bf16.msra.mxu0 %v5682
        %5699 = vmatpush.bf16.msra.mxu0 %v5681
        %5700 = vmatmul.bf16.gmra.mxu0 %v5134
        %v5701 = vpop.f32.mrf.mxu0
        %v5702 = vadd.f32 0.0, %v5701
        %v5703 = vpop.f32.mrf.mxu0
        %v5704 = vadd.f32 0.0, %v5703
        %5705 = vmatmul.bf16.gmra.mxu0 %v5137
        %v5706 = vpop.f32.mrf.mxu0
        %v5707 = vadd.f32 0.0, %v5706
        %v5708 = vpop.f32.mrf.mxu0
        %v5709 = vadd.f32 0.0, %v5708
        %5710 = vmatmul.bf16.gmra.mxu0 %v5140
        %v5711 = vpop.f32.mrf.mxu0
        %v5712 = vadd.f32 0.0, %v5711
        %v5713 = vpop.f32.mrf.mxu0
        %v5714 = vadd.f32 0.0, %v5713
        %5715 = vmatmul.bf16.gmra.mxu0 %v5143
        %v5716 = vpop.f32.mrf.mxu0
        %v5717 = vadd.f32 0.0, %v5716
        %v5718 = vpop.f32.mrf.mxu0
        %v5719 = vadd.f32 0.0, %v5718
        %5720 = vmatmul.bf16.gmra.mxu0 %v5146
        %v5721 = vpop.f32.mrf.mxu0
        %v5722 = vadd.f32 0.0, %v5721
        %v5723 = vpop.f32.mrf.mxu0
        %v5724 = vadd.f32 0.0, %v5723
        %5725 = vmatmul.bf16.gmra.mxu0 %v5149
        %v5726 = vpop.f32.mrf.mxu0
        %v5727 = vadd.f32 0.0, %v5726
        %v5728 = vpop.f32.mrf.mxu0
        %v5729 = vadd.f32 0.0, %v5728
        %5730 = vmatmul.bf16.gmra.mxu0 %v5152
        %v5731 = vpop.f32.mrf.mxu0
        %v5732 = vadd.f32 0.0, %v5731
        %v5733 = vpop.f32.mrf.mxu0
        %v5734 = vadd.f32 0.0, %v5733
        %5735 = vmatmul.bf16.gmra.mxu0 %v5155
        %v5736 = vpop.f32.mrf.mxu0
        %v5737 = vadd.f32 0.0, %v5736
        %v5738 = vpop.f32.mrf.mxu0
        %v5739 = vadd.f32 0.0, %v5738
        %5740 = vmatmul.bf16.gmra.mxu0 %v5158
        %v5741 = vpop.f32.mrf.mxu0
        %v5742 = vadd.f32 0.0, %v5741
        %v5743 = vpop.f32.mrf.mxu0
        %v5744 = vadd.f32 0.0, %v5743
        %5745 = vmatmul.bf16.gmra.mxu0 %v5161
        %v5746 = vpop.f32.mrf.mxu0
        %v5747 = vadd.f32 0.0, %v5746
        %v5748 = vpop.f32.mrf.mxu0
        %v5749 = vadd.f32 0.0, %v5748
        %5750 = vmatmul.bf16.gmra.mxu0 %v5164
        %v5751 = vpop.f32.mrf.mxu0
        %v5752 = vadd.f32 0.0, %v5751
        %v5753 = vpop.f32.mrf.mxu0
        %v5754 = vadd.f32 0.0, %v5753
        %5755 = vmatmul.bf16.gmra.mxu0 %v5167
        %v5756 = vpop.f32.mrf.mxu0
        %v5757 = vadd.f32 0.0, %v5756
        %v5758 = vpop.f32.mrf.mxu0
        %v5759 = vadd.f32 0.0, %v5758
        %5760 = vmatmul.bf16.gmra.mxu0 %v5170
        %v5761 = vpop.f32.mrf.mxu0
        %v5762 = vadd.f32 0.0, %v5761
        %v5763 = vpop.f32.mrf.mxu0
        %v5764 = vadd.f32 0.0, %v5763
        %5765 = vmatmul.bf16.gmra.mxu0 %v5173
        %v5766 = vpop.f32.mrf.mxu0
        %v5767 = vadd.f32 0.0, %v5766
        %v5768 = vpop.f32.mrf.mxu0
        %v5769 = vadd.f32 0.0, %v5768
        %5770 = vmatmul.bf16.gmra.mxu0 %v5176
        %v5771 = vpop.f32.mrf.mxu0
        %v5772 = vadd.f32 0.0, %v5771
        %v5773 = vpop.f32.mrf.mxu0
        %v5774 = vadd.f32 0.0, %v5773
        %5775 = vmatmul.bf16.gmra.mxu0 %v5690
        %v5776 = vpop.f32.mrf.mxu0
        %v5777 = vadd.f32 0.0, %v5776
        %v5778 = vpop.f32.mrf.mxu0
        %v5779 = vadd.f32 0.0, %v5778
        %5780 = vdwg.mxu0
        %v5781 = vadd.f32 %v5613, %v5702
        %v5782 = vadd.f32 %v5614, %v5704
        %v5783 = vadd.f32 %v5615, %v5707
        %v5784 = vadd.f32 %v5616, %v5709
        %v5785 = vadd.f32 %v5617, %v5712
        %v5786 = vadd.f32 %v5618, %v5714
        %v5787 = vadd.f32 %v5619, %v5717
        %v5788 = vadd.f32 %v5620, %v5719
        %v5789 = vadd.f32 %v5621, %v5722
        %v5790 = vadd.f32 %v5622, %v5724
        %v5791 = vadd.f32 %v5623, %v5727
        %v5792 = vadd.f32 %v5624, %v5729
        %v5793 = vadd.f32 %v5625, %v5732
        %v5794 = vadd.f32 %v5626, %v5734
        %v5795 = vadd.f32 %v5627, %v5737
        %v5796 = vadd.f32 %v5628, %v5739
        %v5797 = vadd.f32 %v5629, %v5742
        %v5798 = vadd.f32 %v5630, %v5744
        %v5799 = vadd.f32 %v5631, %v5747
        %v5800 = vadd.f32 %v5632, %v5749
        %v5801 = vadd.f32 %v5633, %v5752
        %v5802 = vadd.f32 %v5634, %v5754
        %v5803 = vadd.f32 %v5635, %v5757
        %v5804 = vadd.f32 %v5636, %v5759
        %v5805 = vadd.f32 %v5637, %v5762
        %v5806 = vadd.f32 %v5638, %v5764
        %v5807 = vadd.f32 %v5639, %v5767
        %v5808 = vadd.f32 %v5640, %v5769
        %v5809 = vadd.f32 %v5641, %v5772
        %v5810 = vadd.f32 %v5642, %v5774
        %v5811 = vadd.f32 %v5643, %v5777
        %v5812 = vadd.f32 %v5644, %v5779
        %s5813 = scalar_lea.vmem %s7, 192
        %v5814 = vld [vmem:[%s5813] sm:$0xf]
        %v5815 = vld [vmem:[%s5813 + $0x4] sm:$0xf]
        %v5816 = vld [vmem:[%s5813 + $0x8] sm:$0xf]
        %v5817 = vld [vmem:[%s5813 + $0xc] sm:$0xf]
        %v5818 = vld [vmem:[%s5813 + $0x10] sm:$0xf]
        %v5819 = vld [vmem:[%s5813 + $0x14] sm:$0xf]
        %v5820 = vld [vmem:[%s5813 + $0x18] sm:$0xf]
        %v5821 = vld [vmem:[%s5813 + $0x1c] sm:$0xf]
        %v5824 = vunpack.c.l.b16 %v4067
        %v5825 = vunpack.c.l.b16 %v4068
        %v5826 = vpack.c.b16 %v5825, %v5824
        %v5835 = vunpack.c.l.b16 %v5814
        %v5836 = vunpack.c.l.b16 %v5815
        %v5837 = vunpack.c.l.b16 %v5816
        %v5838 = vunpack.c.l.b16 %v5817
        %v5839 = vunpack.c.l.b16 %v5818
        %v5840 = vunpack.c.l.b16 %v5819
        %v5841 = vunpack.c.l.b16 %v5820
        %v5842 = vunpack.c.l.b16 %v5821
        %v5843 = vpack.c.b16 %v5836, %v5835
        %v5844 = vpack.c.b16 %v5838, %v5837
        %v5845 = vpack.c.b16 %v5840, %v5839
        %v5846 = vpack.c.b16 %v5842, %v5841
        %v5852 = vsel %vm3873, %v5826, 0
        %5854 = vmatpush.bf16.msra.mxu0 0
        %5855 = vmatpush.bf16.msra.mxu0 0
        %5856 = vmatpush.bf16.msra.mxu0 0
        %5857 = vmatpush.bf16.msra.mxu0 0
        %5858 = vmatpush.bf16.msra.mxu0 %v5846
        %5859 = vmatpush.bf16.msra.mxu0 %v5845
        %5860 = vmatpush.bf16.msra.mxu0 %v5844
        %5861 = vmatpush.bf16.msra.mxu0 %v5843
        %5862 = vmatmul.bf16.gmra.mxu0 %v4791
        %v5863 = vpop.f32.mrf.mxu0
        %v5864 = vadd.f32 0.0, %v5863
        %v5865 = vpop.f32.mrf.mxu0
        %v5866 = vadd.f32 0.0, %v5865
        %5867 = vmatmul.bf16.gmra.mxu0 %v4794
        %v5868 = vpop.f32.mrf.mxu0
        %v5869 = vadd.f32 0.0, %v5868
        %v5870 = vpop.f32.mrf.mxu0
        %v5871 = vadd.f32 0.0, %v5870
        %5872 = vmatmul.bf16.gmra.mxu0 %v4797
        %v5873 = vpop.f32.mrf.mxu0
        %v5874 = vadd.f32 0.0, %v5873
        %v5875 = vpop.f32.mrf.mxu0
        %v5876 = vadd.f32 0.0, %v5875
        %5877 = vmatmul.bf16.gmra.mxu0 %v4800
        %v5878 = vpop.f32.mrf.mxu0
        %v5879 = vadd.f32 0.0, %v5878
        %v5880 = vpop.f32.mrf.mxu0
        %v5881 = vadd.f32 0.0, %v5880
        %5882 = vmatmul.bf16.gmra.mxu0 %v4803
        %v5883 = vpop.f32.mrf.mxu0
        %v5884 = vadd.f32 0.0, %v5883
        %v5885 = vpop.f32.mrf.mxu0
        %v5886 = vadd.f32 0.0, %v5885
        %5887 = vmatmul.bf16.gmra.mxu0 %v4806
        %v5888 = vpop.f32.mrf.mxu0
        %v5889 = vadd.f32 0.0, %v5888
        %v5890 = vpop.f32.mrf.mxu0
        %v5891 = vadd.f32 0.0, %v5890
        %5892 = vmatmul.bf16.gmra.mxu0 %v4809
        %v5893 = vpop.f32.mrf.mxu0
        %v5894 = vadd.f32 0.0, %v5893
        %v5895 = vpop.f32.mrf.mxu0
        %v5896 = vadd.f32 0.0, %v5895
        %5897 = vmatmul.bf16.gmra.mxu0 %v4812
        %v5898 = vpop.f32.mrf.mxu0
        %v5899 = vadd.f32 0.0, %v5898
        %v5900 = vpop.f32.mrf.mxu0
        %v5901 = vadd.f32 0.0, %v5900
        %5902 = vmatmul.bf16.gmra.mxu0 %v4815
        %v5903 = vpop.f32.mrf.mxu0
        %v5904 = vadd.f32 0.0, %v5903
        %v5905 = vpop.f32.mrf.mxu0
        %v5906 = vadd.f32 0.0, %v5905
        %5907 = vmatmul.bf16.gmra.mxu0 %v4818
        %v5908 = vpop.f32.mrf.mxu0
        %v5909 = vadd.f32 0.0, %v5908
        %v5910 = vpop.f32.mrf.mxu0
        %v5911 = vadd.f32 0.0, %v5910
        %5912 = vmatmul.bf16.gmra.mxu0 %v4821
        %v5913 = vpop.f32.mrf.mxu0
        %v5914 = vadd.f32 0.0, %v5913
        %v5915 = vpop.f32.mrf.mxu0
        %v5916 = vadd.f32 0.0, %v5915
        %5917 = vmatmul.bf16.gmra.mxu0 %v4824
        %v5918 = vpop.f32.mrf.mxu0
        %v5919 = vadd.f32 0.0, %v5918
        %v5920 = vpop.f32.mrf.mxu0
        %v5921 = vadd.f32 0.0, %v5920
        %5922 = vmatmul.bf16.gmra.mxu0 %v4827
        %v5923 = vpop.f32.mrf.mxu0
        %v5924 = vadd.f32 0.0, %v5923
        %v5925 = vpop.f32.mrf.mxu0
        %v5926 = vadd.f32 0.0, %v5925
        %5927 = vmatmul.bf16.gmra.mxu0 %v4830
        %v5928 = vpop.f32.mrf.mxu0
        %v5929 = vadd.f32 0.0, %v5928
        %v5930 = vpop.f32.mrf.mxu0
        %v5931 = vadd.f32 0.0, %v5930
        %5932 = vmatmul.bf16.gmra.mxu0 %v5338
        %v5933 = vpop.f32.mrf.mxu0
        %v5934 = vadd.f32 0.0, %v5933
        %v5935 = vpop.f32.mrf.mxu0
        %v5936 = vadd.f32 0.0, %v5935
        %5937 = vmatmul.bf16.gmra.mxu0 %v5852
        %v5938 = vpop.f32.mrf.mxu0
        %v5939 = vadd.f32 0.0, %v5938
        %v5940 = vpop.f32.mrf.mxu0
        %v5941 = vadd.f32 0.0, %v5940
        %5942 = vdwg.mxu0
        %v5943 = vadd.f32 %v5781, %v5864
        %v5944 = vadd.f32 %v5782, %v5866
        %v5945 = vadd.f32 %v5783, %v5869
        %v5946 = vadd.f32 %v5784, %v5871
        %v5947 = vadd.f32 %v5785, %v5874
        %v5948 = vadd.f32 %v5786, %v5876
        %v5949 = vadd.f32 %v5787, %v5879
        %v5950 = vadd.f32 %v5788, %v5881
        %v5951 = vadd.f32 %v5789, %v5884
        %v5952 = vadd.f32 %v5790, %v5886
        %v5953 = vadd.f32 %v5791, %v5889
        %v5954 = vadd.f32 %v5792, %v5891
        %v5955 = vadd.f32 %v5793, %v5894
        %v5956 = vadd.f32 %v5794, %v5896
        %v5957 = vadd.f32 %v5795, %v5899
        %v5958 = vadd.f32 %v5796, %v5901
        %v5959 = vadd.f32 %v5797, %v5904
        %v5960 = vadd.f32 %v5798, %v5906
        %v5961 = vadd.f32 %v5799, %v5909
        %v5962 = vadd.f32 %v5800, %v5911
        %v5963 = vadd.f32 %v5801, %v5914
        %v5964 = vadd.f32 %v5802, %v5916
        %v5965 = vadd.f32 %v5803, %v5919
        %v5966 = vadd.f32 %v5804, %v5921
        %v5967 = vadd.f32 %v5805, %v5924
        %v5968 = vadd.f32 %v5806, %v5926
        %v5969 = vadd.f32 %v5807, %v5929
        %v5970 = vadd.f32 %v5808, %v5931
        %v5971 = vadd.f32 %v5809, %v5934
        %v5972 = vadd.f32 %v5810, %v5936
        %v5973 = vadd.f32 %v5811, %v5939
        %v5974 = vadd.f32 %v5812, %v5941
        %v5976 = vshrl.u32 %v4067, 16
        %v5978 = vrot.slane %v5976, 4
        %v5979 = vshll.u32 %v4067, 16
        %v5981 = vrot.slane %v5979, 5
        %v5982 = vor.u32 %v5978, %v5981
        %v5983 = vrot.slane %v5982, 4
        %v5985 = vshll.u32 %v4068, 16
        %v5987 = vrot.slane %v5985, 5
        %v5988 = vsel %vm497, %v5983, %v5987
        %v5989 = vshrl.u32 %v4068, 16
        %v5991 = vrot.slane %v5989, 4
        %v5992 = vor.u32 %v5991, %v5987
        %v5993 = vrot.slane %v5992, 4
        %v5995 = vshll.u32 %v4069, 16
        %v5997 = vrot.slane %v5995, 5
        %v5998 = vsel %vm497, %v5993, %v5997
        %s5999 = scalar_lea.vmem %s7, 224
        %v6000 = vld [vmem:[%s5999] sm:$0xf]
        %v6001 = vld [vmem:[%s5999 + $0x4] sm:$0xf]
        %v6002 = vld [vmem:[%s5999 + $0x8] sm:$0xf]
        %v6003 = vld [vmem:[%s5999 + $0xc] sm:$0xf]
        %v6004 = vld [vmem:[%s5999 + $0x10] sm:$0xf]
        %v6005 = vld [vmem:[%s5999 + $0x14] sm:$0xf]
        %v6006 = vld [vmem:[%s5999 + $0x18] sm:$0xf]
        %v6007 = vld [vmem:[%s5999 + $0x1c] sm:$0xf]
        %v6008 = vunpack.c.l.b16 %v5988
        %v6009 = vunpack.c.l.b16 %v5998
        %v6010 = vpack.c.b16 %v6009, %v6008
        %v6019 = vunpack.c.l.b16 %v6000
        %v6020 = vunpack.c.l.b16 %v6001
        %v6021 = vunpack.c.l.b16 %v6002
        %v6022 = vunpack.c.l.b16 %v6003
        %v6023 = vunpack.c.l.b16 %v6004
        %v6024 = vunpack.c.l.b16 %v6005
        %v6025 = vunpack.c.l.b16 %v6006
        %v6026 = vunpack.c.l.b16 %v6007
        %v6027 = vpack.c.b16 %v6020, %v6019
        %v6028 = vpack.c.b16 %v6022, %v6021
        %v6029 = vpack.c.b16 %v6024, %v6023
        %v6030 = vpack.c.b16 %v6026, %v6025
        %v6036 = vsel %vm3873, %v6010, 0
        %6038 = vmatpush.bf16.msra.mxu0 0
        %6039 = vmatpush.bf16.msra.mxu0 0
        %6040 = vmatpush.bf16.msra.mxu0 0
        %6041 = vmatpush.bf16.msra.mxu0 0
        %6042 = vmatpush.bf16.msra.mxu0 %v6030
        %6043 = vmatpush.bf16.msra.mxu0 %v6029
        %6044 = vmatpush.bf16.msra.mxu0 %v6028
        %6045 = vmatpush.bf16.msra.mxu0 %v6027
        %6046 = vmatmul.bf16.gmra.mxu0 %v4550
        %v6047 = vpop.f32.mrf.mxu0
        %v6048 = vadd.f32 0.0, %v6047
        %v6049 = vpop.f32.mrf.mxu0
        %v6050 = vadd.f32 0.0, %v6049
        %6051 = vmatmul.bf16.gmra.mxu0 %v4553
        %v6052 = vpop.f32.mrf.mxu0
        %v6053 = vadd.f32 0.0, %v6052
        %v6054 = vpop.f32.mrf.mxu0
        %v6055 = vadd.f32 0.0, %v6054
        %6056 = vmatmul.bf16.gmra.mxu0 %v4556
        %v6057 = vpop.f32.mrf.mxu0
        %v6058 = vadd.f32 0.0, %v6057
        %v6059 = vpop.f32.mrf.mxu0
        %v6060 = vadd.f32 0.0, %v6059
        %6061 = vmatmul.bf16.gmra.mxu0 %v4559
        %v6062 = vpop.f32.mrf.mxu0
        %v6063 = vadd.f32 0.0, %v6062
        %v6064 = vpop.f32.mrf.mxu0
        %v6065 = vadd.f32 0.0, %v6064
        %6066 = vmatmul.bf16.gmra.mxu0 %v4562
        %v6067 = vpop.f32.mrf.mxu0
        %v6068 = vadd.f32 0.0, %v6067
        %v6069 = vpop.f32.mrf.mxu0
        %v6070 = vadd.f32 0.0, %v6069
        %6071 = vmatmul.bf16.gmra.mxu0 %v4565
        %v6072 = vpop.f32.mrf.mxu0
        %v6073 = vadd.f32 0.0, %v6072
        %v6074 = vpop.f32.mrf.mxu0
        %v6075 = vadd.f32 0.0, %v6074
        %6076 = vmatmul.bf16.gmra.mxu0 %v4568
        %v6077 = vpop.f32.mrf.mxu0
        %v6078 = vadd.f32 0.0, %v6077
        %v6079 = vpop.f32.mrf.mxu0
        %v6080 = vadd.f32 0.0, %v6079
        %6081 = vmatmul.bf16.gmra.mxu0 %v4571
        %v6082 = vpop.f32.mrf.mxu0
        %v6083 = vadd.f32 0.0, %v6082
        %v6084 = vpop.f32.mrf.mxu0
        %v6085 = vadd.f32 0.0, %v6084
        %6086 = vmatmul.bf16.gmra.mxu0 %v4574
        %v6087 = vpop.f32.mrf.mxu0
        %v6088 = vadd.f32 0.0, %v6087
        %v6089 = vpop.f32.mrf.mxu0
        %v6090 = vadd.f32 0.0, %v6089
        %6091 = vmatmul.bf16.gmra.mxu0 %v4577
        %v6092 = vpop.f32.mrf.mxu0
        %v6093 = vadd.f32 0.0, %v6092
        %v6094 = vpop.f32.mrf.mxu0
        %v6095 = vadd.f32 0.0, %v6094
        %6096 = vmatmul.bf16.gmra.mxu0 %v4580
        %v6097 = vpop.f32.mrf.mxu0
        %v6098 = vadd.f32 0.0, %v6097
        %v6099 = vpop.f32.mrf.mxu0
        %v6100 = vadd.f32 0.0, %v6099
        %6101 = vmatmul.bf16.gmra.mxu0 %v4583
        %v6102 = vpop.f32.mrf.mxu0
        %v6103 = vadd.f32 0.0, %v6102
        %v6104 = vpop.f32.mrf.mxu0
        %v6105 = vadd.f32 0.0, %v6104
        %6106 = vmatmul.bf16.gmra.mxu0 %v4586
        %v6107 = vpop.f32.mrf.mxu0
        %v6108 = vadd.f32 0.0, %v6107
        %v6109 = vpop.f32.mrf.mxu0
        %v6110 = vadd.f32 0.0, %v6109
        %6111 = vmatmul.bf16.gmra.mxu0 %v4589
        %v6112 = vpop.f32.mrf.mxu0
        %v6113 = vadd.f32 0.0, %v6112
        %v6114 = vpop.f32.mrf.mxu0
        %v6115 = vadd.f32 0.0, %v6114
        %6116 = vmatmul.bf16.gmra.mxu0 %v5522
        %v6117 = vpop.f32.mrf.mxu0
        %v6118 = vadd.f32 0.0, %v6117
        %v6119 = vpop.f32.mrf.mxu0
        %v6120 = vadd.f32 0.0, %v6119
        %6121 = vmatmul.bf16.gmra.mxu0 %v6036
        %v6122 = vpop.f32.mrf.mxu0
        %v6123 = vadd.f32 0.0, %v6122
        %v6124 = vpop.f32.mrf.mxu0
        %v6125 = vadd.f32 0.0, %v6124
        %6126 = vdwg.mxu0
        %v6127 = vadd.f32 %v5943, %v6048
        %v6128 = vadd.f32 %v5944, %v6050
        %v6129 = vadd.f32 %v5945, %v6053
        %v6130 = vadd.f32 %v5946, %v6055
        %v6131 = vadd.f32 %v5947, %v6058
        %v6132 = vadd.f32 %v5948, %v6060
        %v6133 = vadd.f32 %v5949, %v6063
        %v6134 = vadd.f32 %v5950, %v6065
        %v6135 = vadd.f32 %v5951, %v6068
        %v6136 = vadd.f32 %v5952, %v6070
        %v6137 = vadd.f32 %v5953, %v6073
        %v6138 = vadd.f32 %v5954, %v6075
        %v6139 = vadd.f32 %v5955, %v6078
        %v6140 = vadd.f32 %v5956, %v6080
        %v6141 = vadd.f32 %v5957, %v6083
        %v6142 = vadd.f32 %v5958, %v6085
        %v6143 = vadd.f32 %v5959, %v6088
        %v6144 = vadd.f32 %v5960, %v6090
        %v6145 = vadd.f32 %v5961, %v6093
        %v6146 = vadd.f32 %v5962, %v6095
        %v6147 = vadd.f32 %v5963, %v6098
        %v6148 = vadd.f32 %v5964, %v6100
        %v6149 = vadd.f32 %v5965, %v6103
        %v6150 = vadd.f32 %v5966, %v6105
        %v6151 = vadd.f32 %v5967, %v6108
        %v6152 = vadd.f32 %v5968, %v6110
        %v6153 = vadd.f32 %v5969, %v6113
        %v6154 = vadd.f32 %v5970, %v6115
        %v6155 = vadd.f32 %v5971, %v6118
        %v6156 = vadd.f32 %v5972, %v6120
        %v6157 = vadd.f32 %v5973, %v6123
        %v6158 = vadd.f32 %v5974, %v6125
        %v6160 = vrot.slane %v4067, 5
        %v6161 = vrot.slane %v6160, 4
        %v6162 = vrot.slane %v4068, 5
        %v6163 = vsel %vm1312, %v6161, %v6162
        %v6164 = vrot.slane %v6162, 4
        %v6165 = vrot.slane %v4069, 5
        %v6166 = vsel %vm1312, %v6164, %v6165
        %s6167 = scalar_lea.vmem %s7, 256
        %v6168 = vld [vmem:[%s6167] sm:$0xf]
        %v6169 = vld [vmem:[%s6167 + $0x4] sm:$0xf]
        %v6170 = vld [vmem:[%s6167 + $0x8] sm:$0xf]
        %v6171 = vld [vmem:[%s6167 + $0xc] sm:$0xf]
        %v6172 = vld [vmem:[%s6167 + $0x10] sm:$0xf]
        %v6173 = vld [vmem:[%s6167 + $0x14] sm:$0xf]
        %v6174 = vld [vmem:[%s6167 + $0x18] sm:$0xf]
        %v6175 = vld [vmem:[%s6167 + $0x1c] sm:$0xf]
        %v6176 = vunpack.c.l.b16 %v6163
        %v6177 = vunpack.c.l.b16 %v6166
        %v6178 = vpack.c.b16 %v6177, %v6176
        %v6187 = vunpack.c.l.b16 %v6168
        %v6188 = vunpack.c.l.b16 %v6169
        %v6189 = vunpack.c.l.b16 %v6170
        %v6190 = vunpack.c.l.b16 %v6171
        %v6191 = vunpack.c.l.b16 %v6172
        %v6192 = vunpack.c.l.b16 %v6173
        %v6193 = vunpack.c.l.b16 %v6174
        %v6194 = vunpack.c.l.b16 %v6175
        %v6195 = vpack.c.b16 %v6188, %v6187
        %v6196 = vpack.c.b16 %v6190, %v6189
        %v6197 = vpack.c.b16 %v6192, %v6191
        %v6198 = vpack.c.b16 %v6194, %v6193
        %v6204 = vsel %vm3873, %v6178, 0
        %6206 = vmatpush.bf16.msra.mxu0 0
        %6207 = vmatpush.bf16.msra.mxu0 0
        %6208 = vmatpush.bf16.msra.mxu0 0
        %6209 = vmatpush.bf16.msra.mxu0 0
        %6210 = vmatpush.bf16.msra.mxu0 %v6198
        %6211 = vmatpush.bf16.msra.mxu0 %v6197
        %6212 = vmatpush.bf16.msra.mxu0 %v6196
        %6213 = vmatpush.bf16.msra.mxu0 %v6195
        %6214 = vmatmul.bf16.gmra.mxu0 %v5137
        %v6215 = vpop.f32.mrf.mxu0
        %v6216 = vadd.f32 0.0, %v6215
        %v6217 = vpop.f32.mrf.mxu0
        %v6218 = vadd.f32 0.0, %v6217
        %6219 = vmatmul.bf16.gmra.mxu0 %v5140
        %v6220 = vpop.f32.mrf.mxu0
        %v6221 = vadd.f32 0.0, %v6220
        %v6222 = vpop.f32.mrf.mxu0
        %v6223 = vadd.f32 0.0, %v6222
        %6224 = vmatmul.bf16.gmra.mxu0 %v5143
        %v6225 = vpop.f32.mrf.mxu0
        %v6226 = vadd.f32 0.0, %v6225
        %v6227 = vpop.f32.mrf.mxu0
        %v6228 = vadd.f32 0.0, %v6227
        %6229 = vmatmul.bf16.gmra.mxu0 %v5146
        %v6230 = vpop.f32.mrf.mxu0
        %v6231 = vadd.f32 0.0, %v6230
        %v6232 = vpop.f32.mrf.mxu0
        %v6233 = vadd.f32 0.0, %v6232
        %6234 = vmatmul.bf16.gmra.mxu0 %v5149
        %v6235 = vpop.f32.mrf.mxu0
        %v6236 = vadd.f32 0.0, %v6235
        %v6237 = vpop.f32.mrf.mxu0
        %v6238 = vadd.f32 0.0, %v6237
        %6239 = vmatmul.bf16.gmra.mxu0 %v5152
        %v6240 = vpop.f32.mrf.mxu0
        %v6241 = vadd.f32 0.0, %v6240
        %v6242 = vpop.f32.mrf.mxu0
        %v6243 = vadd.f32 0.0, %v6242
        %6244 = vmatmul.bf16.gmra.mxu0 %v5155
        %v6245 = vpop.f32.mrf.mxu0
        %v6246 = vadd.f32 0.0, %v6245
        %v6247 = vpop.f32.mrf.mxu0
        %v6248 = vadd.f32 0.0, %v6247
        %6249 = vmatmul.bf16.gmra.mxu0 %v5158
        %v6250 = vpop.f32.mrf.mxu0
        %v6251 = vadd.f32 0.0, %v6250
        %v6252 = vpop.f32.mrf.mxu0
        %v6253 = vadd.f32 0.0, %v6252
        %6254 = vmatmul.bf16.gmra.mxu0 %v5161
        %v6255 = vpop.f32.mrf.mxu0
        %v6256 = vadd.f32 0.0, %v6255
        %v6257 = vpop.f32.mrf.mxu0
        %v6258 = vadd.f32 0.0, %v6257
        %6259 = vmatmul.bf16.gmra.mxu0 %v5164
        %v6260 = vpop.f32.mrf.mxu0
        %v6261 = vadd.f32 0.0, %v6260
        %v6262 = vpop.f32.mrf.mxu0
        %v6263 = vadd.f32 0.0, %v6262
        %6264 = vmatmul.bf16.gmra.mxu0 %v5167
        %v6265 = vpop.f32.mrf.mxu0
        %v6266 = vadd.f32 0.0, %v6265
        %v6267 = vpop.f32.mrf.mxu0
        %v6268 = vadd.f32 0.0, %v6267
        %6269 = vmatmul.bf16.gmra.mxu0 %v5170
        %v6270 = vpop.f32.mrf.mxu0
        %v6271 = vadd.f32 0.0, %v6270
        %v6272 = vpop.f32.mrf.mxu0
        %v6273 = vadd.f32 0.0, %v6272
        %6274 = vmatmul.bf16.gmra.mxu0 %v5173
        %v6275 = vpop.f32.mrf.mxu0
        %v6276 = vadd.f32 0.0, %v6275
        %v6277 = vpop.f32.mrf.mxu0
        %v6278 = vadd.f32 0.0, %v6277
        %6279 = vmatmul.bf16.gmra.mxu0 %v5176
        %v6280 = vpop.f32.mrf.mxu0
        %v6281 = vadd.f32 0.0, %v6280
        %v6282 = vpop.f32.mrf.mxu0
        %v6283 = vadd.f32 0.0, %v6282
        %6284 = vmatmul.bf16.gmra.mxu0 %v5690
        %v6285 = vpop.f32.mrf.mxu0
        %v6286 = vadd.f32 0.0, %v6285
        %v6287 = vpop.f32.mrf.mxu0
        %v6288 = vadd.f32 0.0, %v6287
        %6289 = vmatmul.bf16.gmra.mxu0 %v6204
        %v6290 = vpop.f32.mrf.mxu0
        %v6291 = vadd.f32 0.0, %v6290
        %v6292 = vpop.f32.mrf.mxu0
        %v6293 = vadd.f32 0.0, %v6292
        %6294 = vdwg.mxu0
        %v6295 = vadd.f32 %v6127, %v6216
        %v6296 = vadd.f32 %v6128, %v6218
        %v6297 = vadd.f32 %v6129, %v6221
        %v6298 = vadd.f32 %v6130, %v6223
        %v6299 = vadd.f32 %v6131, %v6226
        %v6300 = vadd.f32 %v6132, %v6228
        %v6301 = vadd.f32 %v6133, %v6231
        %v6302 = vadd.f32 %v6134, %v6233
        %v6303 = vadd.f32 %v6135, %v6236
        %v6304 = vadd.f32 %v6136, %v6238
        %v6305 = vadd.f32 %v6137, %v6241
        %v6306 = vadd.f32 %v6138, %v6243
        %v6307 = vadd.f32 %v6139, %v6246
        %v6308 = vadd.f32 %v6140, %v6248
        %v6309 = vadd.f32 %v6141, %v6251
        %v6310 = vadd.f32 %v6142, %v6253
        %v6311 = vadd.f32 %v6143, %v6256
        %v6312 = vadd.f32 %v6144, %v6258
        %v6313 = vadd.f32 %v6145, %v6261
        %v6314 = vadd.f32 %v6146, %v6263
        %v6315 = vadd.f32 %v6147, %v6266
        %v6316 = vadd.f32 %v6148, %v6268
        %v6317 = vadd.f32 %v6149, %v6271
        %v6318 = vadd.f32 %v6150, %v6273
        %v6319 = vadd.f32 %v6151, %v6276
        %v6320 = vadd.f32 %v6152, %v6278
        %v6321 = vadd.f32 %v6153, %v6281
        %v6322 = vadd.f32 %v6154, %v6283
        %v6323 = vadd.f32 %v6155, %v6286
        %v6324 = vadd.f32 %v6156, %v6288
        %v6325 = vadd.f32 %v6157, %v6291
        %v6326 = vadd.f32 %v6158, %v6293
        %v6327 = vld [vmem:[%s8] sm:$0x1]
        %v6329 = vperm.slane %v6327, 0
        %v6331 = vmul.f32 %v6295, %v6329
        %v6332 = vmul.f32 %v6296, %v6329
        %v6333 = vmul.f32 %v6297, %v6329
        %v6334 = vmul.f32 %v6298, %v6329
        %v6335 = vmul.f32 %v6299, %v6329
        %v6336 = vmul.f32 %v6300, %v6329
        %v6337 = vmul.f32 %v6301, %v6329
        %v6338 = vmul.f32 %v6302, %v6329
        %v6339 = vmul.f32 %v6303, %v6329
        %v6340 = vmul.f32 %v6304, %v6329
        %v6341 = vmul.f32 %v6305, %v6329
        %v6342 = vmul.f32 %v6306, %v6329
        %v6343 = vmul.f32 %v6307, %v6329
        %v6344 = vmul.f32 %v6308, %v6329
        %v6345 = vmul.f32 %v6309, %v6329
        %v6346 = vmul.f32 %v6310, %v6329
        %v6347 = vmul.f32 %v6311, %v6329
        %v6348 = vmul.f32 %v6312, %v6329
        %v6349 = vmul.f32 %v6313, %v6329
        %v6350 = vmul.f32 %v6314, %v6329
        %v6351 = vmul.f32 %v6315, %v6329
        %v6352 = vmul.f32 %v6316, %v6329
        %v6353 = vmul.f32 %v6317, %v6329
        %v6354 = vmul.f32 %v6318, %v6329
        %v6355 = vmul.f32 %v6319, %v6329
        %v6356 = vmul.f32 %v6320, %v6329
        %v6357 = vmul.f32 %v6321, %v6329
        %v6358 = vmul.f32 %v6322, %v6329
        %v6359 = vmul.f32 %v6323, %v6329
        %v6360 = vmul.f32 %v6324, %v6329
        %v6361 = vmul.f32 %v6325, %v6329
        %v6362 = vmul.f32 %v6326, %v6329
        %v6363 = vld [vmem:[%s9] sm:$0x1]
        %v6365 = vperm.slane %v6363, 0
        %v6367 = vadd.f32 %v6331, %v6365
        %v6368 = vadd.f32 %v6332, %v6365
        %v6369 = vadd.f32 %v6333, %v6365
        %v6370 = vadd.f32 %v6334, %v6365
        %v6371 = vadd.f32 %v6335, %v6365
        %v6372 = vadd.f32 %v6336, %v6365
        %v6373 = vadd.f32 %v6337, %v6365
        %v6374 = vadd.f32 %v6338, %v6365
        %v6375 = vadd.f32 %v6339, %v6365
        %v6376 = vadd.f32 %v6340, %v6365
        %v6377 = vadd.f32 %v6341, %v6365
        %v6378 = vadd.f32 %v6342, %v6365
        %v6379 = vadd.f32 %v6343, %v6365
        %v6380 = vadd.f32 %v6344, %v6365
        %v6381 = vadd.f32 %v6345, %v6365
        %v6382 = vadd.f32 %v6346, %v6365
        %v6383 = vadd.f32 %v6347, %v6365
        %v6384 = vadd.f32 %v6348, %v6365
        %v6385 = vadd.f32 %v6349, %v6365
        %v6386 = vadd.f32 %v6350, %v6365
        %v6387 = vadd.f32 %v6351, %v6365
        %v6388 = vadd.f32 %v6352, %v6365
        %v6389 = vadd.f32 %v6353, %v6365
        %v6390 = vadd.f32 %v6354, %v6365
        %v6391 = vadd.f32 %v6355, %v6365
        %v6392 = vadd.f32 %v6356, %v6365
        %v6393 = vadd.f32 %v6357, %v6365
        %v6394 = vadd.f32 %v6358, %v6365
        %v6395 = vadd.f32 %v6359, %v6365
        %v6396 = vadd.f32 %v6360, %v6365
        %v6397 = vadd.f32 %v6361, %v6365
        %v6398 = vadd.f32 %v6362, %v6365
        %v6399 = vmax.f32 %v6367, 0.0
        %v6400 = vmax.f32 %v6368, 0.0
        %v6401 = vmax.f32 %v6369, 0.0
        %v6402 = vmax.f32 %v6370, 0.0
        %v6403 = vmax.f32 %v6371, 0.0
        %v6404 = vmax.f32 %v6372, 0.0
        %v6405 = vmax.f32 %v6373, 0.0
        %v6406 = vmax.f32 %v6374, 0.0
        %v6407 = vmax.f32 %v6375, 0.0
        %v6408 = vmax.f32 %v6376, 0.0
        %v6409 = vmax.f32 %v6377, 0.0
        %v6410 = vmax.f32 %v6378, 0.0
        %v6411 = vmax.f32 %v6379, 0.0
        %v6412 = vmax.f32 %v6380, 0.0
        %v6413 = vmax.f32 %v6381, 0.0
        %v6414 = vmax.f32 %v6382, 0.0
        %v6415 = vmax.f32 %v6383, 0.0
        %v6416 = vmax.f32 %v6384, 0.0
        %v6417 = vmax.f32 %v6385, 0.0
        %v6418 = vmax.f32 %v6386, 0.0
        %v6419 = vmax.f32 %v6387, 0.0
        %v6420 = vmax.f32 %v6388, 0.0
        %v6421 = vmax.f32 %v6389, 0.0
        %v6422 = vmax.f32 %v6390, 0.0
        %v6423 = vmax.f32 %v6391, 0.0
        %v6424 = vmax.f32 %v6392, 0.0
        %v6425 = vmax.f32 %v6393, 0.0
        %v6426 = vmax.f32 %v6394, 0.0
        %v6427 = vmax.f32 %v6395, 0.0
        %v6428 = vmax.f32 %v6396, 0.0
        %v6429 = vmax.f32 %v6397, 0.0
        %v6430 = vmax.f32 %v6398, 0.0
        %6431 = vst.msk [vmem:[#allocation4] sm:$0xff] %vm2611, 0.0
        %6432 = vst.msk [vmem:[#allocation4 + $0x8] sm:$0xff] %vm2611, 0.0
        %6433 = vst.msk [vmem:[#allocation4 + $0x10] sm:$0x3] %vm2614, 0.0
        %6434 = vst.msk [vmem:[#allocation4 + $0x18] sm:$0xff] %vm2611, 0.0
        %6435 = vst.msk [vmem:[#allocation4 + $0x20] sm:$0xff] %vm2611, 0.0
        %6436 = vst.msk [vmem:[#allocation4 + $0x28] sm:$0x3] %vm2614, 0.0
        %6437 = vst.msk [vmem:[#allocation4 + $0x30] sm:$0xff] %vm2611, 0.0
        %6438 = vst.msk [vmem:[#allocation4 + $0x38] sm:$0xff] %vm2611, 0.0
        %6439 = vst.msk [vmem:[#allocation4 + $0x40] sm:$0x3] %vm2614, 0.0
        %6440 = vst.msk [vmem:[#allocation4 + $0x48] sm:$0xff] %vm2611, 0.0
        %6441 = vst.msk [vmem:[#allocation4 + $0x50] sm:$0xff] %vm2611, 0.0
        %6442 = vst.msk [vmem:[#allocation4 + $0x58] sm:$0x3] %vm2614, 0.0
        %6443 = vst.msk [vmem:[#allocation4 + $0x60] sm:$0xff] %vm2611, 0.0
        %6444 = vst.msk [vmem:[#allocation4 + $0x68] sm:$0xff] %vm2611, 0.0
        %6445 = vst.msk [vmem:[#allocation4 + $0x70] sm:$0x3] %vm2614, 0.0
        %6446 = vst.msk [vmem:[#allocation4 + $0x78] sm:$0xff] %vm2611, 0.0
        %6447 = vst.msk [vmem:[#allocation4 + $0x80] sm:$0xff] %vm2611, 0.0
        %6448 = vst.msk [vmem:[#allocation4 + $0x88] sm:$0x3] %vm2614, 0.0
        %6449 = vst.msk [vmem:[#allocation4 + $0x90] sm:$0xff] %vm2611, 0.0
        %6450 = vst.msk [vmem:[#allocation4 + $0x98] sm:$0xff] %vm2611, 0.0
        %6451 = vst.msk [vmem:[#allocation4 + $0xa0] sm:$0x3] %vm2614, 0.0
        %6452 = vst.msk [vmem:[#allocation4 + $0xa8] sm:$0xff] %vm2611, 0.0
        %6453 = vst.msk [vmem:[#allocation4 + $0xb0] sm:$0xff] %vm2611, 0.0
        %6454 = vst.msk [vmem:[#allocation4 + $0xb8] sm:$0x3] %vm2614, 0.0
        %6455 = vst.msk [vmem:[#allocation4 + $0xc0] sm:$0xff] %vm2611, 0.0
        %6456 = vst.msk [vmem:[#allocation4 + $0xc8] sm:$0xff] %vm2611, 0.0
        %6457 = vst.msk [vmem:[#allocation4 + $0xd0] sm:$0x3] %vm2614, 0.0
        %6458 = vst.msk [vmem:[#allocation4 + $0xd8] sm:$0xff] %vm2611, 0.0
        %6459 = vst.msk [vmem:[#allocation4 + $0xe0] sm:$0xff] %vm2611, 0.0
        %6460 = vst.msk [vmem:[#allocation4 + $0xe8] sm:$0x3] %vm2614, 0.0
        %6461 = vst.msk [vmem:[#allocation4 + $0xf0] sm:$0xff] %vm2611, 0.0
        %6462 = vst.msk [vmem:[#allocation4 + $0xf8] sm:$0xff] %vm2611, 0.0
        %6463 = vst.msk [vmem:[#allocation4 + $0x100] sm:$0x3] %vm2614, 0.0
        %6464 = vst.msk [vmem:[#allocation4 + $0x108] sm:$0xff] %vm2611, 0.0
        %6465 = vst.msk [vmem:[#allocation4 + $0x110] sm:$0xff] %vm2611, 0.0
        %6466 = vst.msk [vmem:[#allocation4 + $0x118] sm:$0x3] %vm2614, 0.0
        %6467 = vst.msk [vmem:[#allocation4 + $0x120] sm:$0xff] %vm2611, 0.0
        %6468 = vst.msk [vmem:[#allocation4 + $0x128] sm:$0xff] %vm2611, 0.0
        %6469 = vst.msk [vmem:[#allocation4 + $0x130] sm:$0x3] %vm2614, 0.0
        %6470 = vst.msk [vmem:[#allocation4 + $0x138] sm:$0xff] %vm2611, 0.0
        %6471 = vst.msk [vmem:[#allocation4 + $0x140] sm:$0xff] %vm2611, 0.0
        %6472 = vst.msk [vmem:[#allocation4 + $0x148] sm:$0x3] %vm2614, 0.0
        %6473 = vst.msk [vmem:[#allocation4 + $0x150] sm:$0xff] %vm2611, 0.0
        %6474 = vst.msk [vmem:[#allocation4 + $0x158] sm:$0xff] %vm2611, 0.0
        %6475 = vst.msk [vmem:[#allocation4 + $0x160] sm:$0x3] %vm2614, 0.0
        %6476 = vst.msk [vmem:[#allocation4 + $0x168] sm:$0xff] %vm2611, 0.0
        %6477 = vst.msk [vmem:[#allocation4 + $0x170] sm:$0xff] %vm2611, 0.0
        %6478 = vst.msk [vmem:[#allocation4 + $0x178] sm:$0x3] %vm2614, 0.0
        %6479 = vst.msk [vmem:[#allocation4 + $0x180] sm:$0xff] %vm2611, 0.0
        %6480 = vst.msk [vmem:[#allocation4 + $0x188] sm:$0xff] %vm2611, 0.0
        %6481 = vst.msk [vmem:[#allocation4 + $0x190] sm:$0x3] %vm2614, 0.0
        %6482 = vst.msk [vmem:[#allocation4 + $0x198] sm:$0xff] %vm2611, 0.0
        %6483 = vst.msk [vmem:[#allocation4 + $0x1a0] sm:$0xff] %vm2611, 0.0
        %6484 = vst.msk [vmem:[#allocation4 + $0x1a8] sm:$0x3] %vm2614, 0.0
        %s6485 = scalar_lea.vmem [#allocation4], 24
        %6486 = vst.msk [vmem:[%s6485 + $0x1] sm:$0xff] %vm2611, %v6399
        %6487 = vst.msk [vmem:[%s6485 + $0x9] sm:$0xff] %vm2611, %v6400
        %6488 = vst.msk [vmem:[%s6485 + $0x19] sm:$0xff] %vm2611, %v6401
        %6489 = vst.msk [vmem:[%s6485 + $0x21] sm:$0xff] %vm2611, %v6402
        %6490 = vst.msk [vmem:[%s6485 + $0x31] sm:$0xff] %vm2611, %v6403
        %6491 = vst.msk [vmem:[%s6485 + $0x39] sm:$0xff] %vm2611, %v6404
        %6492 = vst.msk [vmem:[%s6485 + $0x49] sm:$0xff] %vm2611, %v6405
        %6493 = vst.msk [vmem:[%s6485 + $0x51] sm:$0xff] %vm2611, %v6406
        %6494 = vst.msk [vmem:[%s6485 + $0x61] sm:$0xff] %vm2611, %v6407
        %6495 = vst.msk [vmem:[%s6485 + $0x69] sm:$0xff] %vm2611, %v6408
        %6496 = vst.msk [vmem:[%s6485 + $0x79] sm:$0xff] %vm2611, %v6409
        %6497 = vst.msk [vmem:[%s6485 + $0x81] sm:$0xff] %vm2611, %v6410
        %6498 = vst.msk [vmem:[%s6485 + $0x91] sm:$0xff] %vm2611, %v6411
        %6499 = vst.msk [vmem:[%s6485 + $0x99] sm:$0xff] %vm2611, %v6412
        %6500 = vst.msk [vmem:[%s6485 + $0xa9] sm:$0xff] %vm2611, %v6413
        %6501 = vst.msk [vmem:[%s6485 + $0xb1] sm:$0xff] %vm2611, %v6414
        %6502 = vst.msk [vmem:[%s6485 + $0xc1] sm:$0xff] %vm2611, %v6415
        %6503 = vst.msk [vmem:[%s6485 + $0xc9] sm:$0xff] %vm2611, %v6416
        %6504 = vst.msk [vmem:[%s6485 + $0xd9] sm:$0xff] %vm2611, %v6417
        %6505 = vst.msk [vmem:[%s6485 + $0xe1] sm:$0xff] %vm2611, %v6418
        %6506 = vst.msk [vmem:[%s6485 + $0xf1] sm:$0xff] %vm2611, %v6419
        %6507 = vst.msk [vmem:[%s6485 + $0xf9] sm:$0xff] %vm2611, %v6420
        %6508 = vst.msk [vmem:[%s6485 + $0x109] sm:$0xff] %vm2611, %v6421
        %6509 = vst.msk [vmem:[%s6485 + $0x111] sm:$0xff] %vm2611, %v6422
        %6510 = vst.msk [vmem:[%s6485 + $0x121] sm:$0xff] %vm2611, %v6423
        %6511 = vst.msk [vmem:[%s6485 + $0x129] sm:$0xff] %vm2611, %v6424
        %6512 = vst.msk [vmem:[%s6485 + $0x139] sm:$0xff] %vm2611, %v6425
        %6513 = vst.msk [vmem:[%s6485 + $0x141] sm:$0xff] %vm2611, %v6426
        %6514 = vst.msk [vmem:[%s6485 + $0x151] sm:$0xff] %vm2611, %v6427
        %6515 = vst.msk [vmem:[%s6485 + $0x159] sm:$0xff] %vm2611, %v6428
        %6516 = vst.msk [vmem:[%s6485 + $0x169] sm:$0xff] %vm2611, %v6429
        %6517 = vst.msk [vmem:[%s6485 + $0x171] sm:$0xff] %vm2611, %v6430
        %v6518 = vld [vmem:[#allocation4] sm:$0xff]
        %v6519 = vld [vmem:[#allocation4 + $0x8] sm:$0xff]
        %v6520 = vld [vmem:[#allocation4 + $0x18] sm:$0xff]
        %v6521 = vld [vmem:[#allocation4 + $0x20] sm:$0xff]
        %v6522 = vld [vmem:[#allocation4 + $0x30] sm:$0xff]
        %v6523 = vld [vmem:[#allocation4 + $0x38] sm:$0xff]
        %v6524 = vld [vmem:[#allocation4 + $0x48] sm:$0xff]
        %v6525 = vld [vmem:[#allocation4 + $0x50] sm:$0xff]
        %v6526 = vld [vmem:[#allocation4 + $0x60] sm:$0xff]
        %v6527 = vld [vmem:[#allocation4 + $0x68] sm:$0xff]
        %v6528 = vld [vmem:[#allocation4 + $0x78] sm:$0xff]
        %v6529 = vld [vmem:[#allocation4 + $0x80] sm:$0xff]
        %v6530 = vld [vmem:[#allocation4 + $0x90] sm:$0xff]
        %v6531 = vld [vmem:[#allocation4 + $0x98] sm:$0xff]
        %v6532 = vld [vmem:[#allocation4 + $0xa8] sm:$0xff]
        %v6533 = vld [vmem:[#allocation4 + $0xb0] sm:$0xff]
        %v6534 = vld [vmem:[#allocation4 + $0xc0] sm:$0xff]
        %v6535 = vld [vmem:[#allocation4 + $0xc8] sm:$0xff]
        %v6536 = vld [vmem:[#allocation4 + $0xd8] sm:$0xff]
        %v6537 = vld [vmem:[#allocation4 + $0xe0] sm:$0xff]
        %v6538 = vld [vmem:[#allocation4 + $0xf0] sm:$0xff]
        %v6539 = vld [vmem:[#allocation4 + $0xf8] sm:$0xff]
        %v6540 = vld [vmem:[#allocation4 + $0x108] sm:$0xff]
        %v6541 = vld [vmem:[#allocation4 + $0x110] sm:$0xff]
        %v6542 = vld [vmem:[#allocation4 + $0x120] sm:$0xff]
        %v6543 = vld [vmem:[#allocation4 + $0x128] sm:$0xff]
        %v6544 = vld [vmem:[#allocation4 + $0x138] sm:$0xff]
        %v6545 = vld [vmem:[#allocation4 + $0x140] sm:$0xff]
        %v6546 = vld [vmem:[#allocation4 + $0x150] sm:$0xff]
        %v6547 = vld [vmem:[#allocation4 + $0x158] sm:$0xff]
        %v6548 = vld [vmem:[#allocation4 + $0x168] sm:$0xff]
        %v6549 = vld [vmem:[#allocation4 + $0x170] sm:$0xff]
        %v6550 = vld [vmem:[%s10] sm:$0x1]
        %v6552 = vperm.slane %v6550, 0
        %v6554 = vmul.f32 %v6518, %v6552
        %v6555 = vmul.f32 %v6519, %v6552
        %v6556 = vmul.f32 %v6520, %v6552
        %v6557 = vmul.f32 %v6521, %v6552
        %v6558 = vmul.f32 %v6522, %v6552
        %v6559 = vmul.f32 %v6523, %v6552
        %v6560 = vmul.f32 %v6524, %v6552
        %v6561 = vmul.f32 %v6525, %v6552
        %v6562 = vmul.f32 %v6526, %v6552
        %v6563 = vmul.f32 %v6527, %v6552
        %v6564 = vmul.f32 %v6528, %v6552
        %v6565 = vmul.f32 %v6529, %v6552
        %v6566 = vmul.f32 %v6530, %v6552
        %v6567 = vmul.f32 %v6531, %v6552
        %v6568 = vmul.f32 %v6532, %v6552
        %v6569 = vmul.f32 %v6533, %v6552
        %v6570 = vmul.f32 %v6534, %v6552
        %v6571 = vmul.f32 %v6535, %v6552
        %v6572 = vmul.f32 %v6536, %v6552
        %v6573 = vmul.f32 %v6537, %v6552
        %v6574 = vmul.f32 %v6538, %v6552
        %v6575 = vmul.f32 %v6539, %v6552
        %v6576 = vmul.f32 %v6540, %v6552
        %v6577 = vmul.f32 %v6541, %v6552
        %v6578 = vmul.f32 %v6542, %v6552
        %v6579 = vmul.f32 %v6543, %v6552
        %v6580 = vmul.f32 %v6544, %v6552
        %v6581 = vmul.f32 %v6545, %v6552
        %v6582 = vmul.f32 %v6546, %v6552
        %v6583 = vmul.f32 %v6547, %v6552
        %v6584 = vmul.f32 %v6548, %v6552
        %v6585 = vmul.f32 %v6549, %v6552
        %v6586 = vadd.f32 %v6554, 0.0
        %v6587 = vadd.f32 %v6555, 0.0
        %v6588 = vadd.f32 %v6556, 0.0
        %v6589 = vadd.f32 %v6557, 0.0
        %v6590 = vadd.f32 %v6558, 0.0
        %v6591 = vadd.f32 %v6559, 0.0
        %v6592 = vadd.f32 %v6560, 0.0
        %v6593 = vadd.f32 %v6561, 0.0
        %v6594 = vadd.f32 %v6562, 0.0
        %v6595 = vadd.f32 %v6563, 0.0
        %v6596 = vadd.f32 %v6564, 0.0
        %v6597 = vadd.f32 %v6565, 0.0
        %v6598 = vadd.f32 %v6566, 0.0
        %v6599 = vadd.f32 %v6567, 0.0
        %v6600 = vadd.f32 %v6568, 0.0
        %v6601 = vadd.f32 %v6569, 0.0
        %v6602 = vadd.f32 %v6570, 0.0
        %v6603 = vadd.f32 %v6571, 0.0
        %v6604 = vadd.f32 %v6572, 0.0
        %v6605 = vadd.f32 %v6573, 0.0
        %v6606 = vadd.f32 %v6574, 0.0
        %v6607 = vadd.f32 %v6575, 0.0
        %v6608 = vadd.f32 %v6576, 0.0
        %v6609 = vadd.f32 %v6577, 0.0
        %v6610 = vadd.f32 %v6578, 0.0
        %v6611 = vadd.f32 %v6579, 0.0
        %v6612 = vadd.f32 %v6580, 0.0
        %v6613 = vadd.f32 %v6581, 0.0
        %v6614 = vadd.f32 %v6582, 0.0
        %v6615 = vadd.f32 %v6583, 0.0
        %v6616 = vadd.f32 %v6584, 0.0
        %v6617 = vadd.f32 %v6585, 0.0
        %v6618 = vld [vmem:[#allocation4 + $0x1] sm:$0xff]
        %v6619 = vld [vmem:[#allocation4 + $0x9] sm:$0xff]
        %v6620 = vld [vmem:[#allocation4 + $0x19] sm:$0xff]
        %v6621 = vld [vmem:[#allocation4 + $0x21] sm:$0xff]
        %v6622 = vld [vmem:[#allocation4 + $0x31] sm:$0xff]
        %v6623 = vld [vmem:[#allocation4 + $0x39] sm:$0xff]
        %v6624 = vld [vmem:[#allocation4 + $0x49] sm:$0xff]
        %v6625 = vld [vmem:[#allocation4 + $0x51] sm:$0xff]
        %v6626 = vld [vmem:[#allocation4 + $0x61] sm:$0xff]
        %v6627 = vld [vmem:[#allocation4 + $0x69] sm:$0xff]
        %v6628 = vld [vmem:[#allocation4 + $0x79] sm:$0xff]
        %v6629 = vld [vmem:[#allocation4 + $0x81] sm:$0xff]
        %v6630 = vld [vmem:[#allocation4 + $0x91] sm:$0xff]
        %v6631 = vld [vmem:[#allocation4 + $0x99] sm:$0xff]
        %v6632 = vld [vmem:[#allocation4 + $0xa9] sm:$0xff]
        %v6633 = vld [vmem:[#allocation4 + $0xb1] sm:$0xff]
        %v6634 = vld [vmem:[#allocation4 + $0xc1] sm:$0xff]
        %v6635 = vld [vmem:[#allocation4 + $0xc9] sm:$0xff]
        %v6636 = vld [vmem:[#allocation4 + $0xd9] sm:$0xff]
        %v6637 = vld [vmem:[#allocation4 + $0xe1] sm:$0xff]
        %v6638 = vld [vmem:[#allocation4 + $0xf1] sm:$0xff]
        %v6639 = vld [vmem:[#allocation4 + $0xf9] sm:$0xff]
        %v6640 = vld [vmem:[#allocation4 + $0x109] sm:$0xff]
        %v6641 = vld [vmem:[#allocation4 + $0x111] sm:$0xff]
        %v6642 = vld [vmem:[#allocation4 + $0x121] sm:$0xff]
        %v6643 = vld [vmem:[#allocation4 + $0x129] sm:$0xff]
        %v6644 = vld [vmem:[#allocation4 + $0x139] sm:$0xff]
        %v6645 = vld [vmem:[#allocation4 + $0x141] sm:$0xff]
        %v6646 = vld [vmem:[#allocation4 + $0x151] sm:$0xff]
        %v6647 = vld [vmem:[#allocation4 + $0x159] sm:$0xff]
        %v6648 = vld [vmem:[#allocation4 + $0x169] sm:$0xff]
        %v6649 = vld [vmem:[#allocation4 + $0x171] sm:$0xff]
        %s6650 = scalar_lea.vmem %s10, 1
        %v6651 = vld [vmem:[%s6650] sm:$0x1]
        %v6653 = vperm.slane %v6651, 0
        %v6655 = vmul.f32 %v6618, %v6653
        %v6656 = vmul.f32 %v6619, %v6653
        %v6657 = vmul.f32 %v6620, %v6653
        %v6658 = vmul.f32 %v6621, %v6653
        %v6659 = vmul.f32 %v6622, %v6653
        %v6660 = vmul.f32 %v6623, %v6653
        %v6661 = vmul.f32 %v6624, %v6653
        %v6662 = vmul.f32 %v6625, %v6653
        %v6663 = vmul.f32 %v6626, %v6653
        %v6664 = vmul.f32 %v6627, %v6653
        %v6665 = vmul.f32 %v6628, %v6653
        %v6666 = vmul.f32 %v6629, %v6653
        %v6667 = vmul.f32 %v6630, %v6653
        %v6668 = vmul.f32 %v6631, %v6653
        %v6669 = vmul.f32 %v6632, %v6653
        %v6670 = vmul.f32 %v6633, %v6653
        %v6671 = vmul.f32 %v6634, %v6653
        %v6672 = vmul.f32 %v6635, %v6653
        %v6673 = vmul.f32 %v6636, %v6653
        %v6674 = vmul.f32 %v6637, %v6653
        %v6675 = vmul.f32 %v6638, %v6653
        %v6676 = vmul.f32 %v6639, %v6653
        %v6677 = vmul.f32 %v6640, %v6653
        %v6678 = vmul.f32 %v6641, %v6653
        %v6679 = vmul.f32 %v6642, %v6653
        %v6680 = vmul.f32 %v6643, %v6653
        %v6681 = vmul.f32 %v6644, %v6653
        %v6682 = vmul.f32 %v6645, %v6653
        %v6683 = vmul.f32 %v6646, %v6653
        %v6684 = vmul.f32 %v6647, %v6653
        %v6685 = vmul.f32 %v6648, %v6653
        %v6686 = vmul.f32 %v6649, %v6653
        %v6687 = vadd.f32 %v6586, %v6655
        %v6688 = vadd.f32 %v6587, %v6656
        %v6689 = vadd.f32 %v6588, %v6657
        %v6690 = vadd.f32 %v6589, %v6658
        %v6691 = vadd.f32 %v6590, %v6659
        %v6692 = vadd.f32 %v6591, %v6660
        %v6693 = vadd.f32 %v6592, %v6661
        %v6694 = vadd.f32 %v6593, %v6662
        %v6695 = vadd.f32 %v6594, %v6663
        %v6696 = vadd.f32 %v6595, %v6664
        %v6697 = vadd.f32 %v6596, %v6665
        %v6698 = vadd.f32 %v6597, %v6666
        %v6699 = vadd.f32 %v6598, %v6667
        %v6700 = vadd.f32 %v6599, %v6668
        %v6701 = vadd.f32 %v6600, %v6669
        %v6702 = vadd.f32 %v6601, %v6670
        %v6703 = vadd.f32 %v6602, %v6671
        %v6704 = vadd.f32 %v6603, %v6672
        %v6705 = vadd.f32 %v6604, %v6673
        %v6706 = vadd.f32 %v6605, %v6674
        %v6707 = vadd.f32 %v6606, %v6675
        %v6708 = vadd.f32 %v6607, %v6676
        %v6709 = vadd.f32 %v6608, %v6677
        %v6710 = vadd.f32 %v6609, %v6678
        %v6711 = vadd.f32 %v6610, %v6679
        %v6712 = vadd.f32 %v6611, %v6680
        %v6713 = vadd.f32 %v6612, %v6681
        %v6714 = vadd.f32 %v6613, %v6682
        %v6715 = vadd.f32 %v6614, %v6683
        %v6716 = vadd.f32 %v6615, %v6684
        %v6717 = vadd.f32 %v6616, %v6685
        %v6718 = vadd.f32 %v6617, %v6686
        %v6719 = vld [vmem:[#allocation4 + $0x2] sm:$0xff]
        %v6720 = vld [vmem:[#allocation4 + $0xa] sm:$0xff]
        %v6721 = vld [vmem:[#allocation4 + $0x1a] sm:$0xff]
        %v6722 = vld [vmem:[#allocation4 + $0x22] sm:$0xff]
        %v6723 = vld [vmem:[#allocation4 + $0x32] sm:$0xff]
        %v6724 = vld [vmem:[#allocation4 + $0x3a] sm:$0xff]
        %v6725 = vld [vmem:[#allocation4 + $0x4a] sm:$0xff]
        %v6726 = vld [vmem:[#allocation4 + $0x52] sm:$0xff]
        %v6727 = vld [vmem:[#allocation4 + $0x62] sm:$0xff]
        %v6728 = vld [vmem:[#allocation4 + $0x6a] sm:$0xff]
        %v6729 = vld [vmem:[#allocation4 + $0x7a] sm:$0xff]
        %v6730 = vld [vmem:[#allocation4 + $0x82] sm:$0xff]
        %v6731 = vld [vmem:[#allocation4 + $0x92] sm:$0xff]
        %v6732 = vld [vmem:[#allocation4 + $0x9a] sm:$0xff]
        %v6733 = vld [vmem:[#allocation4 + $0xaa] sm:$0xff]
        %v6734 = vld [vmem:[#allocation4 + $0xb2] sm:$0xff]
        %v6735 = vld [vmem:[#allocation4 + $0xc2] sm:$0xff]
        %v6736 = vld [vmem:[#allocation4 + $0xca] sm:$0xff]
        %v6737 = vld [vmem:[#allocation4 + $0xda] sm:$0xff]
        %v6738 = vld [vmem:[#allocation4 + $0xe2] sm:$0xff]
        %v6739 = vld [vmem:[#allocation4 + $0xf2] sm:$0xff]
        %v6740 = vld [vmem:[#allocation4 + $0xfa] sm:$0xff]
        %v6741 = vld [vmem:[#allocation4 + $0x10a] sm:$0xff]
        %v6742 = vld [vmem:[#allocation4 + $0x112] sm:$0xff]
        %v6743 = vld [vmem:[#allocation4 + $0x122] sm:$0xff]
        %v6744 = vld [vmem:[#allocation4 + $0x12a] sm:$0xff]
        %v6745 = vld [vmem:[#allocation4 + $0x13a] sm:$0xff]
        %v6746 = vld [vmem:[#allocation4 + $0x142] sm:$0xff]
        %v6747 = vld [vmem:[#allocation4 + $0x152] sm:$0xff]
        %v6748 = vld [vmem:[#allocation4 + $0x15a] sm:$0xff]
        %v6749 = vld [vmem:[#allocation4 + $0x16a] sm:$0xff]
        %v6750 = vld [vmem:[#allocation4 + $0x172] sm:$0xff]
        %s6751 = scalar_lea.vmem %s10, 2
        %v6752 = vld [vmem:[%s6751] sm:$0x1]
        %v6754 = vperm.slane %v6752, 0
        %v6756 = vmul.f32 %v6719, %v6754
        %v6757 = vmul.f32 %v6720, %v6754
        %v6758 = vmul.f32 %v6721, %v6754
        %v6759 = vmul.f32 %v6722, %v6754
        %v6760 = vmul.f32 %v6723, %v6754
        %v6761 = vmul.f32 %v6724, %v6754
        %v6762 = vmul.f32 %v6725, %v6754
        %v6763 = vmul.f32 %v6726, %v6754
        %v6764 = vmul.f32 %v6727, %v6754
        %v6765 = vmul.f32 %v6728, %v6754
        %v6766 = vmul.f32 %v6729, %v6754
        %v6767 = vmul.f32 %v6730, %v6754
        %v6768 = vmul.f32 %v6731, %v6754
        %v6769 = vmul.f32 %v6732, %v6754
        %v6770 = vmul.f32 %v6733, %v6754
        %v6771 = vmul.f32 %v6734, %v6754
        %v6772 = vmul.f32 %v6735, %v6754
        %v6773 = vmul.f32 %v6736, %v6754
        %v6774 = vmul.f32 %v6737, %v6754
        %v6775 = vmul.f32 %v6738, %v6754
        %v6776 = vmul.f32 %v6739, %v6754
        %v6777 = vmul.f32 %v6740, %v6754
        %v6778 = vmul.f32 %v6741, %v6754
        %v6779 = vmul.f32 %v6742, %v6754
        %v6780 = vmul.f32 %v6743, %v6754
        %v6781 = vmul.f32 %v6744, %v6754
        %v6782 = vmul.f32 %v6745, %v6754
        %v6783 = vmul.f32 %v6746, %v6754
        %v6784 = vmul.f32 %v6747, %v6754
        %v6785 = vmul.f32 %v6748, %v6754
        %v6786 = vmul.f32 %v6749, %v6754
        %v6787 = vmul.f32 %v6750, %v6754
        %v6788 = vadd.f32 %v6687, %v6756
        %v6789 = vadd.f32 %v6688, %v6757
        %v6790 = vadd.f32 %v6689, %v6758
        %v6791 = vadd.f32 %v6690, %v6759
        %v6792 = vadd.f32 %v6691, %v6760
        %v6793 = vadd.f32 %v6692, %v6761
        %v6794 = vadd.f32 %v6693, %v6762
        %v6795 = vadd.f32 %v6694, %v6763
        %v6796 = vadd.f32 %v6695, %v6764
        %v6797 = vadd.f32 %v6696, %v6765
        %v6798 = vadd.f32 %v6697, %v6766
        %v6799 = vadd.f32 %v6698, %v6767
        %v6800 = vadd.f32 %v6699, %v6768
        %v6801 = vadd.f32 %v6700, %v6769
        %v6802 = vadd.f32 %v6701, %v6770
        %v6803 = vadd.f32 %v6702, %v6771
        %v6804 = vadd.f32 %v6703, %v6772
        %v6805 = vadd.f32 %v6704, %v6773
        %v6806 = vadd.f32 %v6705, %v6774
        %v6807 = vadd.f32 %v6706, %v6775
        %v6808 = vadd.f32 %v6707, %v6776
        %v6809 = vadd.f32 %v6708, %v6777
        %v6810 = vadd.f32 %v6709, %v6778
        %v6811 = vadd.f32 %v6710, %v6779
        %v6812 = vadd.f32 %v6711, %v6780
        %v6813 = vadd.f32 %v6712, %v6781
        %v6814 = vadd.f32 %v6713, %v6782
        %v6815 = vadd.f32 %v6714, %v6783
        %v6816 = vadd.f32 %v6715, %v6784
        %v6817 = vadd.f32 %v6716, %v6785
        %v6818 = vadd.f32 %v6717, %v6786
        %v6819 = vadd.f32 %v6718, %v6787
        %v6820 = vld [vmem:[%s6485] sm:$0xff]
        %v6821 = vld [vmem:[%s6485 + $0x8] sm:$0xff]
        %v6822 = vld [vmem:[%s6485 + $0x18] sm:$0xff]
        %v6823 = vld [vmem:[%s6485 + $0x20] sm:$0xff]
        %v6824 = vld [vmem:[%s6485 + $0x30] sm:$0xff]
        %v6825 = vld [vmem:[%s6485 + $0x38] sm:$0xff]
        %v6826 = vld [vmem:[%s6485 + $0x48] sm:$0xff]
        %v6827 = vld [vmem:[%s6485 + $0x50] sm:$0xff]
        %v6828 = vld [vmem:[%s6485 + $0x60] sm:$0xff]
        %v6829 = vld [vmem:[%s6485 + $0x68] sm:$0xff]
        %v6830 = vld [vmem:[%s6485 + $0x78] sm:$0xff]
        %v6831 = vld [vmem:[%s6485 + $0x80] sm:$0xff]
        %v6832 = vld [vmem:[%s6485 + $0x90] sm:$0xff]
        %v6833 = vld [vmem:[%s6485 + $0x98] sm:$0xff]
        %v6834 = vld [vmem:[%s6485 + $0xa8] sm:$0xff]
        %v6835 = vld [vmem:[%s6485 + $0xb0] sm:$0xff]
        %v6836 = vld [vmem:[%s6485 + $0xc0] sm:$0xff]
        %v6837 = vld [vmem:[%s6485 + $0xc8] sm:$0xff]
        %v6838 = vld [vmem:[%s6485 + $0xd8] sm:$0xff]
        %v6839 = vld [vmem:[%s6485 + $0xe0] sm:$0xff]
        %v6840 = vld [vmem:[%s6485 + $0xf0] sm:$0xff]
        %v6841 = vld [vmem:[%s6485 + $0xf8] sm:$0xff]
        %v6842 = vld [vmem:[%s6485 + $0x108] sm:$0xff]
        %v6843 = vld [vmem:[%s6485 + $0x110] sm:$0xff]
        %v6844 = vld [vmem:[%s6485 + $0x120] sm:$0xff]
        %v6845 = vld [vmem:[%s6485 + $0x128] sm:$0xff]
        %v6846 = vld [vmem:[%s6485 + $0x138] sm:$0xff]
        %v6847 = vld [vmem:[%s6485 + $0x140] sm:$0xff]
        %v6848 = vld [vmem:[%s6485 + $0x150] sm:$0xff]
        %v6849 = vld [vmem:[%s6485 + $0x158] sm:$0xff]
        %v6850 = vld [vmem:[%s6485 + $0x168] sm:$0xff]
        %v6851 = vld [vmem:[%s6485 + $0x170] sm:$0xff]
        %s6852 = scalar_lea.vmem %s10, 3
        %v6853 = vld [vmem:[%s6852] sm:$0x1]
        %v6855 = vperm.slane %v6853, 0
        %v6857 = vmul.f32 %v6820, %v6855
        %v6858 = vmul.f32 %v6821, %v6855
        %v6859 = vmul.f32 %v6822, %v6855
        %v6860 = vmul.f32 %v6823, %v6855
        %v6861 = vmul.f32 %v6824, %v6855
        %v6862 = vmul.f32 %v6825, %v6855
        %v6863 = vmul.f32 %v6826, %v6855
        %v6864 = vmul.f32 %v6827, %v6855
        %v6865 = vmul.f32 %v6828, %v6855
        %v6866 = vmul.f32 %v6829, %v6855
        %v6867 = vmul.f32 %v6830, %v6855
        %v6868 = vmul.f32 %v6831, %v6855
        %v6869 = vmul.f32 %v6832, %v6855
        %v6870 = vmul.f32 %v6833, %v6855
        %v6871 = vmul.f32 %v6834, %v6855
        %v6872 = vmul.f32 %v6835, %v6855
        %v6873 = vmul.f32 %v6836, %v6855
        %v6874 = vmul.f32 %v6837, %v6855
        %v6875 = vmul.f32 %v6838, %v6855
        %v6876 = vmul.f32 %v6839, %v6855
        %v6877 = vmul.f32 %v6840, %v6855
        %v6878 = vmul.f32 %v6841, %v6855
        %v6879 = vmul.f32 %v6842, %v6855
        %v6880 = vmul.f32 %v6843, %v6855
        %v6881 = vmul.f32 %v6844, %v6855
        %v6882 = vmul.f32 %v6845, %v6855
        %v6883 = vmul.f32 %v6846, %v6855
        %v6884 = vmul.f32 %v6847, %v6855
        %v6885 = vmul.f32 %v6848, %v6855
        %v6886 = vmul.f32 %v6849, %v6855
        %v6887 = vmul.f32 %v6850, %v6855
        %v6888 = vmul.f32 %v6851, %v6855
        %v6889 = vadd.f32 %v6788, %v6857
        %v6890 = vadd.f32 %v6789, %v6858
        %v6891 = vadd.f32 %v6790, %v6859
        %v6892 = vadd.f32 %v6791, %v6860
        %v6893 = vadd.f32 %v6792, %v6861
        %v6894 = vadd.f32 %v6793, %v6862
        %v6895 = vadd.f32 %v6794, %v6863
        %v6896 = vadd.f32 %v6795, %v6864
        %v6897 = vadd.f32 %v6796, %v6865
        %v6898 = vadd.f32 %v6797, %v6866
        %v6899 = vadd.f32 %v6798, %v6867
        %v6900 = vadd.f32 %v6799, %v6868
        %v6901 = vadd.f32 %v6800, %v6869
        %v6902 = vadd.f32 %v6801, %v6870
        %v6903 = vadd.f32 %v6802, %v6871
        %v6904 = vadd.f32 %v6803, %v6872
        %v6905 = vadd.f32 %v6804, %v6873
        %v6906 = vadd.f32 %v6805, %v6874
        %v6907 = vadd.f32 %v6806, %v6875
        %v6908 = vadd.f32 %v6807, %v6876
        %v6909 = vadd.f32 %v6808, %v6877
        %v6910 = vadd.f32 %v6809, %v6878
        %v6911 = vadd.f32 %v6810, %v6879
        %v6912 = vadd.f32 %v6811, %v6880
        %v6913 = vadd.f32 %v6812, %v6881
        %v6914 = vadd.f32 %v6813, %v6882
        %v6915 = vadd.f32 %v6814, %v6883
        %v6916 = vadd.f32 %v6815, %v6884
        %v6917 = vadd.f32 %v6816, %v6885
        %v6918 = vadd.f32 %v6817, %v6886
        %v6919 = vadd.f32 %v6818, %v6887
        %v6920 = vadd.f32 %v6819, %v6888
        %v6921 = vld [vmem:[%s6485 + $0x1] sm:$0xff]
        %v6922 = vld [vmem:[%s6485 + $0x9] sm:$0xff]
        %v6923 = vld [vmem:[%s6485 + $0x19] sm:$0xff]
        %v6924 = vld [vmem:[%s6485 + $0x21] sm:$0xff]
        %v6925 = vld [vmem:[%s6485 + $0x31] sm:$0xff]
        %v6926 = vld [vmem:[%s6485 + $0x39] sm:$0xff]
        %v6927 = vld [vmem:[%s6485 + $0x49] sm:$0xff]
        %v6928 = vld [vmem:[%s6485 + $0x51] sm:$0xff]
        %v6929 = vld [vmem:[%s6485 + $0x61] sm:$0xff]
        %v6930 = vld [vmem:[%s6485 + $0x69] sm:$0xff]
        %v6931 = vld [vmem:[%s6485 + $0x79] sm:$0xff]
        %v6932 = vld [vmem:[%s6485 + $0x81] sm:$0xff]
        %v6933 = vld [vmem:[%s6485 + $0x91] sm:$0xff]
        %v6934 = vld [vmem:[%s6485 + $0x99] sm:$0xff]
        %v6935 = vld [vmem:[%s6485 + $0xa9] sm:$0xff]
        %v6936 = vld [vmem:[%s6485 + $0xb1] sm:$0xff]
        %v6937 = vld [vmem:[%s6485 + $0xc1] sm:$0xff]
        %v6938 = vld [vmem:[%s6485 + $0xc9] sm:$0xff]
        %v6939 = vld [vmem:[%s6485 + $0xd9] sm:$0xff]
        %v6940 = vld [vmem:[%s6485 + $0xe1] sm:$0xff]
        %v6941 = vld [vmem:[%s6485 + $0xf1] sm:$0xff]
        %v6942 = vld [vmem:[%s6485 + $0xf9] sm:$0xff]
        %v6943 = vld [vmem:[%s6485 + $0x109] sm:$0xff]
        %v6944 = vld [vmem:[%s6485 + $0x111] sm:$0xff]
        %v6945 = vld [vmem:[%s6485 + $0x121] sm:$0xff]
        %v6946 = vld [vmem:[%s6485 + $0x129] sm:$0xff]
        %v6947 = vld [vmem:[%s6485 + $0x139] sm:$0xff]
        %v6948 = vld [vmem:[%s6485 + $0x141] sm:$0xff]
        %v6949 = vld [vmem:[%s6485 + $0x151] sm:$0xff]
        %v6950 = vld [vmem:[%s6485 + $0x159] sm:$0xff]
        %v6951 = vld [vmem:[%s6485 + $0x169] sm:$0xff]
        %v6952 = vld [vmem:[%s6485 + $0x171] sm:$0xff]
        %s6953 = scalar_lea.vmem %s10, 4
        %v6954 = vld [vmem:[%s6953] sm:$0x1]
        %v6956 = vperm.slane %v6954, 0
        %v6958 = vmul.f32 %v6921, %v6956
        %v6959 = vmul.f32 %v6922, %v6956
        %v6960 = vmul.f32 %v6923, %v6956
        %v6961 = vmul.f32 %v6924, %v6956
        %v6962 = vmul.f32 %v6925, %v6956
        %v6963 = vmul.f32 %v6926, %v6956
        %v6964 = vmul.f32 %v6927, %v6956
        %v6965 = vmul.f32 %v6928, %v6956
        %v6966 = vmul.f32 %v6929, %v6956
        %v6967 = vmul.f32 %v6930, %v6956
        %v6968 = vmul.f32 %v6931, %v6956
        %v6969 = vmul.f32 %v6932, %v6956
        %v6970 = vmul.f32 %v6933, %v6956
        %v6971 = vmul.f32 %v6934, %v6956
        %v6972 = vmul.f32 %v6935, %v6956
        %v6973 = vmul.f32 %v6936, %v6956
        %v6974 = vmul.f32 %v6937, %v6956
        %v6975 = vmul.f32 %v6938, %v6956
        %v6976 = vmul.f32 %v6939, %v6956
        %v6977 = vmul.f32 %v6940, %v6956
        %v6978 = vmul.f32 %v6941, %v6956
        %v6979 = vmul.f32 %v6942, %v6956
        %v6980 = vmul.f32 %v6943, %v6956
        %v6981 = vmul.f32 %v6944, %v6956
        %v6982 = vmul.f32 %v6945, %v6956
        %v6983 = vmul.f32 %v6946, %v6956
        %v6984 = vmul.f32 %v6947, %v6956
        %v6985 = vmul.f32 %v6948, %v6956
        %v6986 = vmul.f32 %v6949, %v6956
        %v6987 = vmul.f32 %v6950, %v6956
        %v6988 = vmul.f32 %v6951, %v6956
        %v6989 = vmul.f32 %v6952, %v6956
        %v6990 = vadd.f32 %v6889, %v6958
        %v6991 = vadd.f32 %v6890, %v6959
        %v6992 = vadd.f32 %v6891, %v6960
        %v6993 = vadd.f32 %v6892, %v6961
        %v6994 = vadd.f32 %v6893, %v6962
        %v6995 = vadd.f32 %v6894, %v6963
        %v6996 = vadd.f32 %v6895, %v6964
        %v6997 = vadd.f32 %v6896, %v6965
        %v6998 = vadd.f32 %v6897, %v6966
        %v6999 = vadd.f32 %v6898, %v6967
        %v7000 = vadd.f32 %v6899, %v6968
        %v7001 = vadd.f32 %v6900, %v6969
        %v7002 = vadd.f32 %v6901, %v6970
        %v7003 = vadd.f32 %v6902, %v6971
        %v7004 = vadd.f32 %v6903, %v6972
        %v7005 = vadd.f32 %v6904, %v6973
        %v7006 = vadd.f32 %v6905, %v6974
        %v7007 = vadd.f32 %v6906, %v6975
        %v7008 = vadd.f32 %v6907, %v6976
        %v7009 = vadd.f32 %v6908, %v6977
        %v7010 = vadd.f32 %v6909, %v6978
        %v7011 = vadd.f32 %v6910, %v6979
        %v7012 = vadd.f32 %v6911, %v6980
        %v7013 = vadd.f32 %v6912, %v6981
        %v7014 = vadd.f32 %v6913, %v6982
        %v7015 = vadd.f32 %v6914, %v6983
        %v7016 = vadd.f32 %v6915, %v6984
        %v7017 = vadd.f32 %v6916, %v6985
        %v7018 = vadd.f32 %v6917, %v6986
        %v7019 = vadd.f32 %v6918, %v6987
        %v7020 = vadd.f32 %v6919, %v6988
        %v7021 = vadd.f32 %v6920, %v6989
        %v7022 = vld [vmem:[%s6485 + $0x2] sm:$0xff]
        %v7023 = vld [vmem:[%s6485 + $0xa] sm:$0xff]
        %v7024 = vld [vmem:[%s6485 + $0x1a] sm:$0xff]
        %v7025 = vld [vmem:[%s6485 + $0x22] sm:$0xff]
        %v7026 = vld [vmem:[%s6485 + $0x32] sm:$0xff]
        %v7027 = vld [vmem:[%s6485 + $0x3a] sm:$0xff]
        %v7028 = vld [vmem:[%s6485 + $0x4a] sm:$0xff]
        %v7029 = vld [vmem:[%s6485 + $0x52] sm:$0xff]
        %v7030 = vld [vmem:[%s6485 + $0x62] sm:$0xff]
        %v7031 = vld [vmem:[%s6485 + $0x6a] sm:$0xff]
        %v7032 = vld [vmem:[%s6485 + $0x7a] sm:$0xff]
        %v7033 = vld [vmem:[%s6485 + $0x82] sm:$0xff]
        %v7034 = vld [vmem:[%s6485 + $0x92] sm:$0xff]
        %v7035 = vld [vmem:[%s6485 + $0x9a] sm:$0xff]
        %v7036 = vld [vmem:[%s6485 + $0xaa] sm:$0xff]
        %v7037 = vld [vmem:[%s6485 + $0xb2] sm:$0xff]
        %v7038 = vld [vmem:[%s6485 + $0xc2] sm:$0xff]
        %v7039 = vld [vmem:[%s6485 + $0xca] sm:$0xff]
        %v7040 = vld [vmem:[%s6485 + $0xda] sm:$0xff]
        %v7041 = vld [vmem:[%s6485 + $0xe2] sm:$0xff]
        %v7042 = vld [vmem:[%s6485 + $0xf2] sm:$0xff]
        %v7043 = vld [vmem:[%s6485 + $0xfa] sm:$0xff]
        %v7044 = vld [vmem:[%s6485 + $0x10a] sm:$0xff]
        %v7045 = vld [vmem:[%s6485 + $0x112] sm:$0xff]
        %v7046 = vld [vmem:[%s6485 + $0x122] sm:$0xff]
        %v7047 = vld [vmem:[%s6485 + $0x12a] sm:$0xff]
        %v7048 = vld [vmem:[%s6485 + $0x13a] sm:$0xff]
        %v7049 = vld [vmem:[%s6485 + $0x142] sm:$0xff]
        %v7050 = vld [vmem:[%s6485 + $0x152] sm:$0xff]
        %v7051 = vld [vmem:[%s6485 + $0x15a] sm:$0xff]
        %v7052 = vld [vmem:[%s6485 + $0x16a] sm:$0xff]
        %v7053 = vld [vmem:[%s6485 + $0x172] sm:$0xff]
        %s7054 = scalar_lea.vmem %s10, 5
        %v7055 = vld [vmem:[%s7054] sm:$0x1]
        %v7057 = vperm.slane %v7055, 0
        %v7059 = vmul.f32 %v7022, %v7057
        %v7060 = vmul.f32 %v7023, %v7057
        %v7061 = vmul.f32 %v7024, %v7057
        %v7062 = vmul.f32 %v7025, %v7057
        %v7063 = vmul.f32 %v7026, %v7057
        %v7064 = vmul.f32 %v7027, %v7057
        %v7065 = vmul.f32 %v7028, %v7057
        %v7066 = vmul.f32 %v7029, %v7057
        %v7067 = vmul.f32 %v7030, %v7057
        %v7068 = vmul.f32 %v7031, %v7057
        %v7069 = vmul.f32 %v7032, %v7057
        %v7070 = vmul.f32 %v7033, %v7057
        %v7071 = vmul.f32 %v7034, %v7057
        %v7072 = vmul.f32 %v7035, %v7057
        %v7073 = vmul.f32 %v7036, %v7057
        %v7074 = vmul.f32 %v7037, %v7057
        %v7075 = vmul.f32 %v7038, %v7057
        %v7076 = vmul.f32 %v7039, %v7057
        %v7077 = vmul.f32 %v7040, %v7057
        %v7078 = vmul.f32 %v7041, %v7057
        %v7079 = vmul.f32 %v7042, %v7057
        %v7080 = vmul.f32 %v7043, %v7057
        %v7081 = vmul.f32 %v7044, %v7057
        %v7082 = vmul.f32 %v7045, %v7057
        %v7083 = vmul.f32 %v7046, %v7057
        %v7084 = vmul.f32 %v7047, %v7057
        %v7085 = vmul.f32 %v7048, %v7057
        %v7086 = vmul.f32 %v7049, %v7057
        %v7087 = vmul.f32 %v7050, %v7057
        %v7088 = vmul.f32 %v7051, %v7057
        %v7089 = vmul.f32 %v7052, %v7057
        %v7090 = vmul.f32 %v7053, %v7057
        %v7091 = vadd.f32 %v6990, %v7059
        %v7092 = vadd.f32 %v6991, %v7060
        %v7093 = vadd.f32 %v6992, %v7061
        %v7094 = vadd.f32 %v6993, %v7062
        %v7095 = vadd.f32 %v6994, %v7063
        %v7096 = vadd.f32 %v6995, %v7064
        %v7097 = vadd.f32 %v6996, %v7065
        %v7098 = vadd.f32 %v6997, %v7066
        %v7099 = vadd.f32 %v6998, %v7067
        %v7100 = vadd.f32 %v6999, %v7068
        %v7101 = vadd.f32 %v7000, %v7069
        %v7102 = vadd.f32 %v7001, %v7070
        %v7103 = vadd.f32 %v7002, %v7071
        %v7104 = vadd.f32 %v7003, %v7072
        %v7105 = vadd.f32 %v7004, %v7073
        %v7106 = vadd.f32 %v7005, %v7074
        %v7107 = vadd.f32 %v7006, %v7075
        %v7108 = vadd.f32 %v7007, %v7076
        %v7109 = vadd.f32 %v7008, %v7077
        %v7110 = vadd.f32 %v7009, %v7078
        %v7111 = vadd.f32 %v7010, %v7079
        %v7112 = vadd.f32 %v7011, %v7080
        %v7113 = vadd.f32 %v7012, %v7081
        %v7114 = vadd.f32 %v7013, %v7082
        %v7115 = vadd.f32 %v7014, %v7083
        %v7116 = vadd.f32 %v7015, %v7084
        %v7117 = vadd.f32 %v7016, %v7085
        %v7118 = vadd.f32 %v7017, %v7086
        %v7119 = vadd.f32 %v7018, %v7087
        %v7120 = vadd.f32 %v7019, %v7088
        %v7121 = vadd.f32 %v7020, %v7089
        %v7122 = vadd.f32 %v7021, %v7090
        %s7123 = scalar_lea.vmem [#allocation4], 48
        %v7124 = vld [vmem:[%s7123] sm:$0xff]
        %v7125 = vld [vmem:[%s7123 + $0x8] sm:$0xff]
        %v7126 = vld [vmem:[%s7123 + $0x18] sm:$0xff]
        %v7127 = vld [vmem:[%s7123 + $0x20] sm:$0xff]
        %v7128 = vld [vmem:[%s7123 + $0x30] sm:$0xff]
        %v7129 = vld [vmem:[%s7123 + $0x38] sm:$0xff]
        %v7130 = vld [vmem:[%s7123 + $0x48] sm:$0xff]
        %v7131 = vld [vmem:[%s7123 + $0x50] sm:$0xff]
        %v7132 = vld [vmem:[%s7123 + $0x60] sm:$0xff]
        %v7133 = vld [vmem:[%s7123 + $0x68] sm:$0xff]
        %v7134 = vld [vmem:[%s7123 + $0x78] sm:$0xff]
        %v7135 = vld [vmem:[%s7123 + $0x80] sm:$0xff]
        %v7136 = vld [vmem:[%s7123 + $0x90] sm:$0xff]
        %v7137 = vld [vmem:[%s7123 + $0x98] sm:$0xff]
        %v7138 = vld [vmem:[%s7123 + $0xa8] sm:$0xff]
        %v7139 = vld [vmem:[%s7123 + $0xb0] sm:$0xff]
        %v7140 = vld [vmem:[%s7123 + $0xc0] sm:$0xff]
        %v7141 = vld [vmem:[%s7123 + $0xc8] sm:$0xff]
        %v7142 = vld [vmem:[%s7123 + $0xd8] sm:$0xff]
        %v7143 = vld [vmem:[%s7123 + $0xe0] sm:$0xff]
        %v7144 = vld [vmem:[%s7123 + $0xf0] sm:$0xff]
        %v7145 = vld [vmem:[%s7123 + $0xf8] sm:$0xff]
        %v7146 = vld [vmem:[%s7123 + $0x108] sm:$0xff]
        %v7147 = vld [vmem:[%s7123 + $0x110] sm:$0xff]
        %v7148 = vld [vmem:[%s7123 + $0x120] sm:$0xff]
        %v7149 = vld [vmem:[%s7123 + $0x128] sm:$0xff]
        %v7150 = vld [vmem:[%s7123 + $0x138] sm:$0xff]
        %v7151 = vld [vmem:[%s7123 + $0x140] sm:$0xff]
        %v7152 = vld [vmem:[%s7123 + $0x150] sm:$0xff]
        %v7153 = vld [vmem:[%s7123 + $0x158] sm:$0xff]
        %v7154 = vld [vmem:[%s7123 + $0x168] sm:$0xff]
        %v7155 = vld [vmem:[%s7123 + $0x170] sm:$0xff]
        %s7156 = scalar_lea.vmem %s10, 6
        %v7157 = vld [vmem:[%s7156] sm:$0x1]
        %v7159 = vperm.slane %v7157, 0
        %v7161 = vmul.f32 %v7124, %v7159
        %v7162 = vmul.f32 %v7125, %v7159
        %v7163 = vmul.f32 %v7126, %v7159
        %v7164 = vmul.f32 %v7127, %v7159
        %v7165 = vmul.f32 %v7128, %v7159
        %v7166 = vmul.f32 %v7129, %v7159
        %v7167 = vmul.f32 %v7130, %v7159
        %v7168 = vmul.f32 %v7131, %v7159
        %v7169 = vmul.f32 %v7132, %v7159
        %v7170 = vmul.f32 %v7133, %v7159
        %v7171 = vmul.f32 %v7134, %v7159
        %v7172 = vmul.f32 %v7135, %v7159
        %v7173 = vmul.f32 %v7136, %v7159
        %v7174 = vmul.f32 %v7137, %v7159
        %v7175 = vmul.f32 %v7138, %v7159
        %v7176 = vmul.f32 %v7139, %v7159
        %v7177 = vmul.f32 %v7140, %v7159
        %v7178 = vmul.f32 %v7141, %v7159
        %v7179 = vmul.f32 %v7142, %v7159
        %v7180 = vmul.f32 %v7143, %v7159
        %v7181 = vmul.f32 %v7144, %v7159
        %v7182 = vmul.f32 %v7145, %v7159
        %v7183 = vmul.f32 %v7146, %v7159
        %v7184 = vmul.f32 %v7147, %v7159
        %v7185 = vmul.f32 %v7148, %v7159
        %v7186 = vmul.f32 %v7149, %v7159
        %v7187 = vmul.f32 %v7150, %v7159
        %v7188 = vmul.f32 %v7151, %v7159
        %v7189 = vmul.f32 %v7152, %v7159
        %v7190 = vmul.f32 %v7153, %v7159
        %v7191 = vmul.f32 %v7154, %v7159
        %v7192 = vmul.f32 %v7155, %v7159
        %v7193 = vadd.f32 %v7091, %v7161
        %v7194 = vadd.f32 %v7092, %v7162
        %v7195 = vadd.f32 %v7093, %v7163
        %v7196 = vadd.f32 %v7094, %v7164
        %v7197 = vadd.f32 %v7095, %v7165
        %v7198 = vadd.f32 %v7096, %v7166
        %v7199 = vadd.f32 %v7097, %v7167
        %v7200 = vadd.f32 %v7098, %v7168
        %v7201 = vadd.f32 %v7099, %v7169
        %v7202 = vadd.f32 %v7100, %v7170
        %v7203 = vadd.f32 %v7101, %v7171
        %v7204 = vadd.f32 %v7102, %v7172
        %v7205 = vadd.f32 %v7103, %v7173
        %v7206 = vadd.f32 %v7104, %v7174
        %v7207 = vadd.f32 %v7105, %v7175
        %v7208 = vadd.f32 %v7106, %v7176
        %v7209 = vadd.f32 %v7107, %v7177
        %v7210 = vadd.f32 %v7108, %v7178
        %v7211 = vadd.f32 %v7109, %v7179
        %v7212 = vadd.f32 %v7110, %v7180
        %v7213 = vadd.f32 %v7111, %v7181
        %v7214 = vadd.f32 %v7112, %v7182
        %v7215 = vadd.f32 %v7113, %v7183
        %v7216 = vadd.f32 %v7114, %v7184
        %v7217 = vadd.f32 %v7115, %v7185
        %v7218 = vadd.f32 %v7116, %v7186
        %v7219 = vadd.f32 %v7117, %v7187
        %v7220 = vadd.f32 %v7118, %v7188
        %v7221 = vadd.f32 %v7119, %v7189
        %v7222 = vadd.f32 %v7120, %v7190
        %v7223 = vadd.f32 %v7121, %v7191
        %v7224 = vadd.f32 %v7122, %v7192
        %v7225 = vld [vmem:[%s7123 + $0x1] sm:$0xff]
        %v7226 = vld [vmem:[%s7123 + $0x9] sm:$0xff]
        %v7227 = vld [vmem:[%s7123 + $0x19] sm:$0xff]
        %v7228 = vld [vmem:[%s7123 + $0x21] sm:$0xff]
        %v7229 = vld [vmem:[%s7123 + $0x31] sm:$0xff]
        %v7230 = vld [vmem:[%s7123 + $0x39] sm:$0xff]
        %v7231 = vld [vmem:[%s7123 + $0x49] sm:$0xff]
        %v7232 = vld [vmem:[%s7123 + $0x51] sm:$0xff]
        %v7233 = vld [vmem:[%s7123 + $0x61] sm:$0xff]
        %v7234 = vld [vmem:[%s7123 + $0x69] sm:$0xff]
        %v7235 = vld [vmem:[%s7123 + $0x79] sm:$0xff]
        %v7236 = vld [vmem:[%s7123 + $0x81] sm:$0xff]
        %v7237 = vld [vmem:[%s7123 + $0x91] sm:$0xff]
        %v7238 = vld [vmem:[%s7123 + $0x99] sm:$0xff]
        %v7239 = vld [vmem:[%s7123 + $0xa9] sm:$0xff]
        %v7240 = vld [vmem:[%s7123 + $0xb1] sm:$0xff]
        %v7241 = vld [vmem:[%s7123 + $0xc1] sm:$0xff]
        %v7242 = vld [vmem:[%s7123 + $0xc9] sm:$0xff]
        %v7243 = vld [vmem:[%s7123 + $0xd9] sm:$0xff]
        %v7244 = vld [vmem:[%s7123 + $0xe1] sm:$0xff]
        %v7245 = vld [vmem:[%s7123 + $0xf1] sm:$0xff]
        %v7246 = vld [vmem:[%s7123 + $0xf9] sm:$0xff]
        %v7247 = vld [vmem:[%s7123 + $0x109] sm:$0xff]
        %v7248 = vld [vmem:[%s7123 + $0x111] sm:$0xff]
        %v7249 = vld [vmem:[%s7123 + $0x121] sm:$0xff]
        %v7250 = vld [vmem:[%s7123 + $0x129] sm:$0xff]
        %v7251 = vld [vmem:[%s7123 + $0x139] sm:$0xff]
        %v7252 = vld [vmem:[%s7123 + $0x141] sm:$0xff]
        %v7253 = vld [vmem:[%s7123 + $0x151] sm:$0xff]
        %v7254 = vld [vmem:[%s7123 + $0x159] sm:$0xff]
        %v7255 = vld [vmem:[%s7123 + $0x169] sm:$0xff]
        %v7256 = vld [vmem:[%s7123 + $0x171] sm:$0xff]
        %s7257 = scalar_lea.vmem %s10, 7
        %v7258 = vld [vmem:[%s7257] sm:$0x1]
        %v7260 = vperm.slane %v7258, 0
        %v7262 = vmul.f32 %v7225, %v7260
        %v7263 = vmul.f32 %v7226, %v7260
        %v7264 = vmul.f32 %v7227, %v7260
        %v7265 = vmul.f32 %v7228, %v7260
        %v7266 = vmul.f32 %v7229, %v7260
        %v7267 = vmul.f32 %v7230, %v7260
        %v7268 = vmul.f32 %v7231, %v7260
        %v7269 = vmul.f32 %v7232, %v7260
        %v7270 = vmul.f32 %v7233, %v7260
        %v7271 = vmul.f32 %v7234, %v7260
        %v7272 = vmul.f32 %v7235, %v7260
        %v7273 = vmul.f32 %v7236, %v7260
        %v7274 = vmul.f32 %v7237, %v7260
        %v7275 = vmul.f32 %v7238, %v7260
        %v7276 = vmul.f32 %v7239, %v7260
        %v7277 = vmul.f32 %v7240, %v7260
        %v7278 = vmul.f32 %v7241, %v7260
        %v7279 = vmul.f32 %v7242, %v7260
        %v7280 = vmul.f32 %v7243, %v7260
        %v7281 = vmul.f32 %v7244, %v7260
        %v7282 = vmul.f32 %v7245, %v7260
        %v7283 = vmul.f32 %v7246, %v7260
        %v7284 = vmul.f32 %v7247, %v7260
        %v7285 = vmul.f32 %v7248, %v7260
        %v7286 = vmul.f32 %v7249, %v7260
        %v7287 = vmul.f32 %v7250, %v7260
        %v7288 = vmul.f32 %v7251, %v7260
        %v7289 = vmul.f32 %v7252, %v7260
        %v7290 = vmul.f32 %v7253, %v7260
        %v7291 = vmul.f32 %v7254, %v7260
        %v7292 = vmul.f32 %v7255, %v7260
        %v7293 = vmul.f32 %v7256, %v7260
        %v7294 = vadd.f32 %v7193, %v7262
        %v7295 = vadd.f32 %v7194, %v7263
        %v7296 = vadd.f32 %v7195, %v7264
        %v7297 = vadd.f32 %v7196, %v7265
        %v7298 = vadd.f32 %v7197, %v7266
        %v7299 = vadd.f32 %v7198, %v7267
        %v7300 = vadd.f32 %v7199, %v7268
        %v7301 = vadd.f32 %v7200, %v7269
        %v7302 = vadd.f32 %v7201, %v7270
        %v7303 = vadd.f32 %v7202, %v7271
        %v7304 = vadd.f32 %v7203, %v7272
        %v7305 = vadd.f32 %v7204, %v7273
        %v7306 = vadd.f32 %v7205, %v7274
        %v7307 = vadd.f32 %v7206, %v7275
        %v7308 = vadd.f32 %v7207, %v7276
        %v7309 = vadd.f32 %v7208, %v7277
        %v7310 = vadd.f32 %v7209, %v7278
        %v7311 = vadd.f32 %v7210, %v7279
        %v7312 = vadd.f32 %v7211, %v7280
        %v7313 = vadd.f32 %v7212, %v7281
        %v7314 = vadd.f32 %v7213, %v7282
        %v7315 = vadd.f32 %v7214, %v7283
        %v7316 = vadd.f32 %v7215, %v7284
        %v7317 = vadd.f32 %v7216, %v7285
        %v7318 = vadd.f32 %v7217, %v7286
        %v7319 = vadd.f32 %v7218, %v7287
        %v7320 = vadd.f32 %v7219, %v7288
        %v7321 = vadd.f32 %v7220, %v7289
        %v7322 = vadd.f32 %v7221, %v7290
        %v7323 = vadd.f32 %v7222, %v7291
        %v7324 = vadd.f32 %v7223, %v7292
        %v7325 = vadd.f32 %v7224, %v7293
        %v7326 = vld [vmem:[%s7123 + $0x2] sm:$0xff]
        %v7327 = vld [vmem:[%s7123 + $0xa] sm:$0xff]
        %v7328 = vld [vmem:[%s7123 + $0x1a] sm:$0xff]
        %v7329 = vld [vmem:[%s7123 + $0x22] sm:$0xff]
        %v7330 = vld [vmem:[%s7123 + $0x32] sm:$0xff]
        %v7331 = vld [vmem:[%s7123 + $0x3a] sm:$0xff]
        %v7332 = vld [vmem:[%s7123 + $0x4a] sm:$0xff]
        %v7333 = vld [vmem:[%s7123 + $0x52] sm:$0xff]
        %v7334 = vld [vmem:[%s7123 + $0x62] sm:$0xff]
        %v7335 = vld [vmem:[%s7123 + $0x6a] sm:$0xff]
        %v7336 = vld [vmem:[%s7123 + $0x7a] sm:$0xff]
        %v7337 = vld [vmem:[%s7123 + $0x82] sm:$0xff]
        %v7338 = vld [vmem:[%s7123 + $0x92] sm:$0xff]
        %v7339 = vld [vmem:[%s7123 + $0x9a] sm:$0xff]
        %v7340 = vld [vmem:[%s7123 + $0xaa] sm:$0xff]
        %v7341 = vld [vmem:[%s7123 + $0xb2] sm:$0xff]
        %v7342 = vld [vmem:[%s7123 + $0xc2] sm:$0xff]
        %v7343 = vld [vmem:[%s7123 + $0xca] sm:$0xff]
        %v7344 = vld [vmem:[%s7123 + $0xda] sm:$0xff]
        %v7345 = vld [vmem:[%s7123 + $0xe2] sm:$0xff]
        %v7346 = vld [vmem:[%s7123 + $0xf2] sm:$0xff]
        %v7347 = vld [vmem:[%s7123 + $0xfa] sm:$0xff]
        %v7348 = vld [vmem:[%s7123 + $0x10a] sm:$0xff]
        %v7349 = vld [vmem:[%s7123 + $0x112] sm:$0xff]
        %v7350 = vld [vmem:[%s7123 + $0x122] sm:$0xff]
        %v7351 = vld [vmem:[%s7123 + $0x12a] sm:$0xff]
        %v7352 = vld [vmem:[%s7123 + $0x13a] sm:$0xff]
        %v7353 = vld [vmem:[%s7123 + $0x142] sm:$0xff]
        %v7354 = vld [vmem:[%s7123 + $0x152] sm:$0xff]
        %v7355 = vld [vmem:[%s7123 + $0x15a] sm:$0xff]
        %v7356 = vld [vmem:[%s7123 + $0x16a] sm:$0xff]
        %v7357 = vld [vmem:[%s7123 + $0x172] sm:$0xff]
        %s7358 = scalar_lea.vmem %s10, 8
        %v7359 = vld [vmem:[%s7358] sm:$0x1]
        %v7361 = vperm.slane %v7359, 0
        %v7363 = vmul.f32 %v7326, %v7361
        %v7364 = vmul.f32 %v7327, %v7361
        %v7365 = vmul.f32 %v7328, %v7361
        %v7366 = vmul.f32 %v7329, %v7361
        %v7367 = vmul.f32 %v7330, %v7361
        %v7368 = vmul.f32 %v7331, %v7361
        %v7369 = vmul.f32 %v7332, %v7361
        %v7370 = vmul.f32 %v7333, %v7361
        %v7371 = vmul.f32 %v7334, %v7361
        %v7372 = vmul.f32 %v7335, %v7361
        %v7373 = vmul.f32 %v7336, %v7361
        %v7374 = vmul.f32 %v7337, %v7361
        %v7375 = vmul.f32 %v7338, %v7361
        %v7376 = vmul.f32 %v7339, %v7361
        %v7377 = vmul.f32 %v7340, %v7361
        %v7378 = vmul.f32 %v7341, %v7361
        %v7379 = vmul.f32 %v7342, %v7361
        %v7380 = vmul.f32 %v7343, %v7361
        %v7381 = vmul.f32 %v7344, %v7361
        %v7382 = vmul.f32 %v7345, %v7361
        %v7383 = vmul.f32 %v7346, %v7361
        %v7384 = vmul.f32 %v7347, %v7361
        %v7385 = vmul.f32 %v7348, %v7361
        %v7386 = vmul.f32 %v7349, %v7361
        %v7387 = vmul.f32 %v7350, %v7361
        %v7388 = vmul.f32 %v7351, %v7361
        %v7389 = vmul.f32 %v7352, %v7361
        %v7390 = vmul.f32 %v7353, %v7361
        %v7391 = vmul.f32 %v7354, %v7361
        %v7392 = vmul.f32 %v7355, %v7361
        %v7393 = vmul.f32 %v7356, %v7361
        %v7394 = vmul.f32 %v7357, %v7361
        %v7395 = vadd.f32 %v7294, %v7363
        %v7396 = vadd.f32 %v7295, %v7364
        %v7397 = vadd.f32 %v7296, %v7365
        %v7398 = vadd.f32 %v7297, %v7366
        %v7399 = vadd.f32 %v7298, %v7367
        %v7400 = vadd.f32 %v7299, %v7368
        %v7401 = vadd.f32 %v7300, %v7369
        %v7402 = vadd.f32 %v7301, %v7370
        %v7403 = vadd.f32 %v7302, %v7371
        %v7404 = vadd.f32 %v7303, %v7372
        %v7405 = vadd.f32 %v7304, %v7373
        %v7406 = vadd.f32 %v7305, %v7374
        %v7407 = vadd.f32 %v7306, %v7375
        %v7408 = vadd.f32 %v7307, %v7376
        %v7409 = vadd.f32 %v7308, %v7377
        %v7410 = vadd.f32 %v7309, %v7378
        %v7411 = vadd.f32 %v7310, %v7379
        %v7412 = vadd.f32 %v7311, %v7380
        %v7413 = vadd.f32 %v7312, %v7381
        %v7414 = vadd.f32 %v7313, %v7382
        %v7415 = vadd.f32 %v7314, %v7383
        %v7416 = vadd.f32 %v7315, %v7384
        %v7417 = vadd.f32 %v7316, %v7385
        %v7418 = vadd.f32 %v7317, %v7386
        %v7419 = vadd.f32 %v7318, %v7387
        %v7420 = vadd.f32 %v7319, %v7388
        %v7421 = vadd.f32 %v7320, %v7389
        %v7422 = vadd.f32 %v7321, %v7390
        %v7423 = vadd.f32 %v7322, %v7391
        %v7424 = vadd.f32 %v7323, %v7392
        %v7425 = vadd.f32 %v7324, %v7393
        %v7426 = vadd.f32 %v7325, %v7394
        %v7427 = vld [vmem:[%s11] sm:$0x1]
        %v7429 = vperm.slane %v7427, 0
        %v7431 = vmul.f32 %v7395, %v7429
        %v7432 = vmul.f32 %v7396, %v7429
        %v7433 = vmul.f32 %v7397, %v7429
        %v7434 = vmul.f32 %v7398, %v7429
        %v7435 = vmul.f32 %v7399, %v7429
        %v7436 = vmul.f32 %v7400, %v7429
        %v7437 = vmul.f32 %v7401, %v7429
        %v7438 = vmul.f32 %v7402, %v7429
        %v7439 = vmul.f32 %v7403, %v7429
        %v7440 = vmul.f32 %v7404, %v7429
        %v7441 = vmul.f32 %v7405, %v7429
        %v7442 = vmul.f32 %v7406, %v7429
        %v7443 = vmul.f32 %v7407, %v7429
        %v7444 = vmul.f32 %v7408, %v7429
        %v7445 = vmul.f32 %v7409, %v7429
        %v7446 = vmul.f32 %v7410, %v7429
        %v7447 = vmul.f32 %v7411, %v7429
        %v7448 = vmul.f32 %v7412, %v7429
        %v7449 = vmul.f32 %v7413, %v7429
        %v7450 = vmul.f32 %v7414, %v7429
        %v7451 = vmul.f32 %v7415, %v7429
        %v7452 = vmul.f32 %v7416, %v7429
        %v7453 = vmul.f32 %v7417, %v7429
        %v7454 = vmul.f32 %v7418, %v7429
        %v7455 = vmul.f32 %v7419, %v7429
        %v7456 = vmul.f32 %v7420, %v7429
        %v7457 = vmul.f32 %v7421, %v7429
        %v7458 = vmul.f32 %v7422, %v7429
        %v7459 = vmul.f32 %v7423, %v7429
        %v7460 = vmul.f32 %v7424, %v7429
        %v7461 = vmul.f32 %v7425, %v7429
        %v7462 = vmul.f32 %v7426, %v7429
        %v7463 = vld [vmem:[%s12] sm:$0x1]
        %v7465 = vperm.slane %v7463, 0
        %v7467 = vadd.f32 %v7431, %v7465
        %v7468 = vadd.f32 %v7432, %v7465
        %v7469 = vadd.f32 %v7433, %v7465
        %v7470 = vadd.f32 %v7434, %v7465
        %v7471 = vadd.f32 %v7435, %v7465
        %v7472 = vadd.f32 %v7436, %v7465
        %v7473 = vadd.f32 %v7437, %v7465
        %v7474 = vadd.f32 %v7438, %v7465
        %v7475 = vadd.f32 %v7439, %v7465
        %v7476 = vadd.f32 %v7440, %v7465
        %v7477 = vadd.f32 %v7441, %v7465
        %v7478 = vadd.f32 %v7442, %v7465
        %v7479 = vadd.f32 %v7443, %v7465
        %v7480 = vadd.f32 %v7444, %v7465
        %v7481 = vadd.f32 %v7445, %v7465
        %v7482 = vadd.f32 %v7446, %v7465
        %v7483 = vadd.f32 %v7447, %v7465
        %v7484 = vadd.f32 %v7448, %v7465
        %v7485 = vadd.f32 %v7449, %v7465
        %v7486 = vadd.f32 %v7450, %v7465
        %v7487 = vadd.f32 %v7451, %v7465
        %v7488 = vadd.f32 %v7452, %v7465
        %v7489 = vadd.f32 %v7453, %v7465
        %v7490 = vadd.f32 %v7454, %v7465
        %v7491 = vadd.f32 %v7455, %v7465
        %v7492 = vadd.f32 %v7456, %v7465
        %v7493 = vadd.f32 %v7457, %v7465
        %v7494 = vadd.f32 %v7458, %v7465
        %v7495 = vadd.f32 %v7459, %v7465
        %v7496 = vadd.f32 %v7460, %v7465
        %v7497 = vadd.f32 %v7461, %v7465
        %v7498 = vadd.f32 %v7462, %v7465
        %v7499 = vmax.f32 %v7467, 0.0
        %v7500 = vmax.f32 %v7468, 0.0
        %v7501 = vmax.f32 %v7469, 0.0
        %v7502 = vmax.f32 %v7470, 0.0
        %v7503 = vmax.f32 %v7471, 0.0
        %v7504 = vmax.f32 %v7472, 0.0
        %v7505 = vmax.f32 %v7473, 0.0
        %v7506 = vmax.f32 %v7474, 0.0
        %v7507 = vmax.f32 %v7475, 0.0
        %v7508 = vmax.f32 %v7476, 0.0
        %v7509 = vmax.f32 %v7477, 0.0
        %v7510 = vmax.f32 %v7478, 0.0
        %v7511 = vmax.f32 %v7479, 0.0
        %v7512 = vmax.f32 %v7480, 0.0
        %v7513 = vmax.f32 %v7481, 0.0
        %v7514 = vmax.f32 %v7482, 0.0
        %v7515 = vmax.f32 %v7483, 0.0
        %v7516 = vmax.f32 %v7484, 0.0
        %v7517 = vmax.f32 %v7485, 0.0
        %v7518 = vmax.f32 %v7486, 0.0
        %v7519 = vmax.f32 %v7487, 0.0
        %v7520 = vmax.f32 %v7488, 0.0
        %v7521 = vmax.f32 %v7489, 0.0
        %v7522 = vmax.f32 %v7490, 0.0
        %v7523 = vmax.f32 %v7491, 0.0
        %v7524 = vmax.f32 %v7492, 0.0
        %v7525 = vmax.f32 %v7493, 0.0
        %v7526 = vmax.f32 %v7494, 0.0
        %v7527 = vmax.f32 %v7495, 0.0
        %v7528 = vmax.f32 %v7496, 0.0
        %v7529 = vmax.f32 %v7497, 0.0
        %v7530 = vmax.f32 %v7498, 0.0
        %7563 = vrot.lane.b32.xlu0 %v7499, 32
        %v7564 = vpop.permute.xlu0 %7563
        %7565 = vrot.lane.b32.xlu0 %v7500, 32
        %v7566 = vpop.permute.xlu0 %7565
        %7567 = vrot.lane.b32.xlu0 %v7501, 32
        %v7568 = vpop.permute.xlu0 %7567
        %7569 = vrot.lane.b32.xlu0 %v7502, 32
        %v7570 = vpop.permute.xlu0 %7569
        %7571 = vrot.lane.b32.xlu0 %v7503, 32
        %v7572 = vpop.permute.xlu0 %7571
        %7573 = vrot.lane.b32.xlu0 %v7504, 32
        %v7574 = vpop.permute.xlu0 %7573
        %7575 = vrot.lane.b32.xlu0 %v7505, 32
        %v7576 = vpop.permute.xlu0 %7575
        %7577 = vrot.lane.b32.xlu0 %v7506, 32
        %v7578 = vpop.permute.xlu0 %7577
        %7579 = vrot.lane.b32.xlu0 %v7507, 32
        %v7580 = vpop.permute.xlu0 %7579
        %7581 = vrot.lane.b32.xlu0 %v7508, 32
        %v7582 = vpop.permute.xlu0 %7581
        %7583 = vrot.lane.b32.xlu0 %v7509, 32
        %v7584 = vpop.permute.xlu0 %7583
        %7585 = vrot.lane.b32.xlu0 %v7510, 32
        %v7586 = vpop.permute.xlu0 %7585
        %7587 = vrot.lane.b32.xlu0 %v7511, 32
        %v7588 = vpop.permute.xlu0 %7587
        %7589 = vrot.lane.b32.xlu0 %v7512, 32
        %v7590 = vpop.permute.xlu0 %7589
        %7591 = vrot.lane.b32.xlu0 %v7513, 32
        %v7592 = vpop.permute.xlu0 %7591
        %7593 = vrot.lane.b32.xlu0 %v7514, 32
        %v7594 = vpop.permute.xlu0 %7593
        %7595 = vrot.lane.b32.xlu0 %v7515, 32
        %v7596 = vpop.permute.xlu0 %7595
        %7597 = vrot.lane.b32.xlu0 %v7516, 32
        %v7598 = vpop.permute.xlu0 %7597
        %7599 = vrot.lane.b32.xlu0 %v7517, 32
        %v7600 = vpop.permute.xlu0 %7599
        %7601 = vrot.lane.b32.xlu0 %v7518, 32
        %v7602 = vpop.permute.xlu0 %7601
        %7603 = vrot.lane.b32.xlu0 %v7519, 32
        %v7604 = vpop.permute.xlu0 %7603
        %7605 = vrot.lane.b32.xlu0 %v7520, 32
        %v7606 = vpop.permute.xlu0 %7605
        %7607 = vrot.lane.b32.xlu0 %v7521, 32
        %v7608 = vpop.permute.xlu0 %7607
        %7609 = vrot.lane.b32.xlu0 %v7522, 32
        %v7610 = vpop.permute.xlu0 %7609
        %7611 = vrot.lane.b32.xlu0 %v7523, 32
        %v7612 = vpop.permute.xlu0 %7611
        %7613 = vrot.lane.b32.xlu0 %v7524, 32
        %v7614 = vpop.permute.xlu0 %7613
        %7615 = vrot.lane.b32.xlu0 %v7525, 32
        %v7616 = vpop.permute.xlu0 %7615
        %7617 = vrot.lane.b32.xlu0 %v7526, 32
        %v7618 = vpop.permute.xlu0 %7617
        %7619 = vrot.lane.b32.xlu0 %v7527, 32
        %v7620 = vpop.permute.xlu0 %7619
        %7621 = vrot.lane.b32.xlu0 %v7528, 32
        %v7622 = vpop.permute.xlu0 %7621
        %7623 = vrot.lane.b32.xlu0 %v7529, 32
        %v7624 = vpop.permute.xlu0 %7623
        %7625 = vrot.lane.b32.xlu0 %v7530, 32
        %v7626 = vpop.permute.xlu0 %7625
        %v7659 = vsel %vm2611, %v6399, %v7564
        %v7660 = vsel %vm2611, %v6400, %v7566
        %v7661 = vsel %vm2611, %v6401, %v7568
        %v7662 = vsel %vm2611, %v6402, %v7570
        %v7663 = vsel %vm2611, %v6403, %v7572
        %v7664 = vsel %vm2611, %v6404, %v7574
        %v7665 = vsel %vm2611, %v6405, %v7576
        %v7666 = vsel %vm2611, %v6406, %v7578
        %v7667 = vsel %vm2611, %v6407, %v7580
        %v7668 = vsel %vm2611, %v6408, %v7582
        %v7669 = vsel %vm2611, %v6409, %v7584
        %v7670 = vsel %vm2611, %v6410, %v7586
        %v7671 = vsel %vm2611, %v6411, %v7588
        %v7672 = vsel %vm2611, %v6412, %v7590
        %v7673 = vsel %vm2611, %v6413, %v7592
        %v7674 = vsel %vm2611, %v6414, %v7594
        %v7675 = vsel %vm2611, %v6415, %v7596
        %v7676 = vsel %vm2611, %v6416, %v7598
        %v7677 = vsel %vm2611, %v6417, %v7600
        %v7678 = vsel %vm2611, %v6418, %v7602
        %v7679 = vsel %vm2611, %v6419, %v7604
        %v7680 = vsel %vm2611, %v6420, %v7606
        %v7681 = vsel %vm2611, %v6421, %v7608
        %v7682 = vsel %vm2611, %v6422, %v7610
        %v7683 = vsel %vm2611, %v6423, %v7612
        %v7684 = vsel %vm2611, %v6424, %v7614
        %v7685 = vsel %vm2611, %v6425, %v7616
        %v7686 = vsel %vm2611, %v6426, %v7618
        %v7687 = vsel %vm2611, %v6427, %v7620
        %v7688 = vsel %vm2611, %v6428, %v7622
        %v7689 = vsel %vm2611, %v6429, %v7624
        %v7690 = vsel %vm2611, %v6430, %v7626
        %7691 = vst.msk [vmem:[%s433] sm:$0xff] %vm3873, %v7659
        %7692 = vst.msk [vmem:[%s433 + $0x8] sm:$0xff] %vm3873, %v7660
        %7693 = vst.msk [vmem:[%s433 + $0x10] sm:$0xff] %vm3873, %v7661
        %7694 = vst.msk [vmem:[%s433 + $0x18] sm:$0xff] %vm3873, %v7662
        %7695 = vst.msk [vmem:[%s433 + $0x20] sm:$0xff] %vm3873, %v7663
        %7696 = vst.msk [vmem:[%s433 + $0x28] sm:$0xff] %vm3873, %v7664
        %7697 = vst.msk [vmem:[%s433 + $0x30] sm:$0xff] %vm3873, %v7665
        %7698 = vst.msk [vmem:[%s433 + $0x38] sm:$0xff] %vm3873, %v7666
        %7699 = vst.msk [vmem:[%s433 + $0x40] sm:$0xff] %vm3873, %v7667
        %7700 = vst.msk [vmem:[%s433 + $0x48] sm:$0xff] %vm3873, %v7668
        %7701 = vst.msk [vmem:[%s433 + $0x50] sm:$0xff] %vm3873, %v7669
        %7702 = vst.msk [vmem:[%s433 + $0x58] sm:$0xff] %vm3873, %v7670
        %7703 = vst.msk [vmem:[%s433 + $0x60] sm:$0xff] %vm3873, %v7671
        %7704 = vst.msk [vmem:[%s433 + $0x68] sm:$0xff] %vm3873, %v7672
        %7705 = vst.msk [vmem:[%s433 + $0x70] sm:$0xff] %vm3873, %v7673
        %7706 = vst.msk [vmem:[%s433 + $0x78] sm:$0xff] %vm3873, %v7674
        %7707 = vst.msk [vmem:[%s433 + $0x80] sm:$0xff] %vm3873, %v7675
        %7708 = vst.msk [vmem:[%s433 + $0x88] sm:$0xff] %vm3873, %v7676
        %7709 = vst.msk [vmem:[%s433 + $0x90] sm:$0xff] %vm3873, %v7677
        %7710 = vst.msk [vmem:[%s433 + $0x98] sm:$0xff] %vm3873, %v7678
        %7711 = vst.msk [vmem:[%s433 + $0xa0] sm:$0xff] %vm3873, %v7679
        %7712 = vst.msk [vmem:[%s433 + $0xa8] sm:$0xff] %vm3873, %v7680
        %7713 = vst.msk [vmem:[%s433 + $0xb0] sm:$0xff] %vm3873, %v7681
        %7714 = vst.msk [vmem:[%s433 + $0xb8] sm:$0xff] %vm3873, %v7682
        %7715 = vst.msk [vmem:[%s433 + $0xc0] sm:$0xff] %vm3873, %v7683
        %7716 = vst.msk [vmem:[%s433 + $0xc8] sm:$0xff] %vm3873, %v7684
        %7717 = vst.msk [vmem:[%s433 + $0xd0] sm:$0xff] %vm3873, %v7685
        %7718 = vst.msk [vmem:[%s433 + $0xd8] sm:$0xff] %vm3873, %v7686
        %7719 = vst.msk [vmem:[%s433 + $0xe0] sm:$0xff] %vm3873, %v7687
        %7720 = vst.msk [vmem:[%s433 + $0xe8] sm:$0xff] %vm3873, %v7688
        %7721 = vst.msk [vmem:[%s433 + $0xf0] sm:$0xff] %vm3873, %v7689
        %7722 = vst.msk [vmem:[%s433 + $0xf8] sm:$0xff] %vm3873, %v7690
        %s7723 = sand.u32 %s313, 1
        %s7724 = scalar_lea.sflag [#allocation6], %s7723
        %s7725 = sand.u32 %s313, 1
        %s7726 = smul.addr %s7725, 256
        %s7727 = scalar_lea.vmem [#allocation5], %s7726
        // Predicated region
        $region73: #{double_conv.1} parent=71 // pred_check
          %p7728 = pneg %p323
        $region74: #{double_conv.1} parent=71 // pred_check_branch
          %7730 = sbr.rel (%p7728) target = $region76
        $region75: #{double_conv.1} parent=71 // pred_region
          %7732 = vsyncadd %s7724, 0
          %s7733 = smul.addr %s27, 32
          %s7734 = smul.addr %s7733, 8
          %s7735 = scalar_lea.hbm %s13, %s7734
          %s7736 = sshll.u32 %s7727, 4
          %s7737 = int_to_ptr.vmem [resolvable:$true] %s7736
          %s7738 = sshll.u32 %s7735, 4
          %s7739 = int_to_ptr.hbm [resolvable:$true] %s7738
          %7744 = dma.vmem_to_hbm [thread:$0]  %s7737, 4096, %s7739, %s7724, 128, 128, 8
        $region76: #{double_conv.1} parent=71 // pred_fallthru
          _
      $region72: #{double_conv.1} parent=5 // pred_fallthru
        _
      %p7745 = scmp.le.s32.totalorder 2, %s22
      // Predicated region
      $region77: #{double_conv.1} parent=5 // pred_check
        %p7746 = pneg %p7745
      $region78: #{double_conv.1} parent=5 // pred_check_branch
        %7748 = sbr.rel (%p7746) target = $region80
      $region79: #{double_conv.1} parent=5 // pred_region
        %s7749 = ssub.s32 %s22, 2
        // Predicated region
        $region81: #{double_conv.1} parent=79 // pred_check
          %p7750 = pneg %p329
        $region82: #{double_conv.1} parent=79 // pred_check_branch
          %7752 = sbr.rel (%p7750) target = $region84
        $region83: #{double_conv.1} parent=79 // pred_region
          %s7753 = sand.u32 %s314, 1
          %s7754 = scalar_lea.sflag [#allocation6], %s7753
          %s7755 = sand.u32 %s314, 1
          %s7756 = smul.addr %s7755, 256
          %s7757 = scalar_lea.vmem [#allocation5], %s7756
          %7759 = dma.done %s7754, 4096
        $region84: #{double_conv.1} parent=79 // pred_fallthru
          _
      $region80: #{double_conv.1} parent=5 // pred_fallthru
        _
    $region6: #{double_conv.1} parent=1 // loop_footer
      %s26 = sadd.s32 1, %s22
    $region7: #{double_conv.1} parent=1 // loop_footer_branch
      %21 = sbr.rel target = $region3
    $region8: #{double_conv.1} parent=1 // loop_exit
      _
    %7760 = vsyncpa [#allocation6], 1
    %s7761 = scalar_lea.sflag [#allocation6], 1
    %7762 = vsyncpa %s7761, 1

</llo_original>
